<compile_context>
chip_gen: v7x
topology: tpu7x:2x2x1
jax: 0.10.0
libtpu: 0.0.40
codegen_flags: <defaults>
</compile_context>

<pallas_src>
import functools
import math

import jax
import jax.numpy as jnp
from jax import lax
from jax.experimental import pallas as pl
from jax.experimental.pallas import tpu as pltpu

LANE = 128


def _round_up(x, m):
    return ((x + m - 1) // m) * m


# ----------------------------------------------------------------------------- kernel
def _pred_stack_kernel(x_ref, w_ref, b_ref, o_ref, act_ref, *,
                       H, W, C, cin, n_blocks, left):
    """Fused Pred stack for one batch element.

    x_ref   : (1, H, W, cin)        raw NHWC input tile (no host-side channel pad)
    w_ref   : (L, 9, C, C)          per-block, per-tap folded weights (grid-invariant)
    b_ref   : (L, 1, C)             per-block folded biases, f32 (grid-invariant)
    o_ref   : (1, H, W, C)          output of the last (OnlyConv) block, f32
    act_ref : (H+2, Wpad, C)        VMEM activation scratch; interior at [1:H+1, left:left+W]
    """
    dt = act_ref.dtype

    # ---- in-VMEM "pad": zero the used window (halo + pad channels), then drop in x.
    # Done every grid step so it is correct for any per-core grid split (v7x megacore)
    # and never reads uninitialized VMEM.  Cost is a small window-only VMEM store.
    act_ref[:, left - 1:left + W + 1, :] = jnp.zeros((H + 2, W + 2, C), dt)
    act_ref[1:H + 1, left:left + W, :cin] = x_ref[0].astype(dt)

    # ---- RepVGG stack: each block = 9 accumulated MXU matmuls (one per 3x3 tap).
    for l in range(n_blocks):                       # static unroll (depth is small)
        y = None
        for ky in range(3):
            for kx in range(3):
                tap = act_ref[ky:ky + H, left - 1 + kx:left - 1 + kx + W, :]
                tap = tap.reshape(H * W, C)         # bf16 (or f32) MXU input
                part = jnp.dot(tap, w_ref[l, ky * 3 + kx],
                               preferred_element_type=jnp.float32)
                y = part if y is None else y + part
        y = y + b_ref[l]                            # (H*W, C) + (1, C), f32 bias

        if l < n_blocks - 1:
            y = jnp.maximum(y, 0.0)                 # RepVGG block: ReLU
            # Sublane-aligned writeback (interior starts at a multiple of 16).
            act_ref[1:H + 1, left:left + W, :] = y.reshape(H, W, C).astype(dt)
        else:
            o_ref[0] = y.reshape(H, W, C).astype(o_ref.dtype)   # OnlyConv: no activation


def pred_stack_pallas(x_nhwc, w_stack, b_stack):
    """Run the full fused Pred stack.  Grid iterates over batch only."""
    N, H, W, cin = x_nhwc.shape
    L = w_stack.shape[0]
    C = w_stack.shape[-1]
    act_dtype = w_stack.dtype                       # bf16 fast path or f32 reference path

    LEFT = 16                                       # sublane-aligned interior (bf16: 16 rows/vreg)
    Wpad = _round_up(LEFT + W + 1, 16)

    kernel = functools.partial(_pred_stack_kernel, H=H, W=W, C=C, cin=cin,
                               n_blocks=L, left=LEFT)
    return pl.pallas_call(
        kernel,
        out_shape=jax.ShapeDtypeStruct((N, H, W, C), jnp.float32),
        grid_spec=pltpu.PrefetchScalarGridSpec(
            num_scalar_prefetch=0,
            grid=(N,),
            in_specs=[
                pl.BlockSpec((1, H, W, cin), lambda n: (n, 0, 0, 0)),
                pl.BlockSpec((L, 9, C, C), lambda n: (0, 0, 0, 0)),   # grid-invariant
                pl.BlockSpec((L, 1, C), lambda n: (0, 0, 0)),         # grid-invariant
            ],
            out_specs=pl.BlockSpec((1, H, W, C), lambda n: (n, 0, 0, 0)),
            scratch_shapes=[pltpu.VMEM((H + 2, Wpad, C), act_dtype)],
        ),
        compiler_params=pltpu.CompilerParams(
            dimension_semantics=("parallel",),      # batch axis sharded across TCs on v7x
        ),
    )(x_nhwc, w_stack, b_stack)


# --------------------------------------------------------------------- parameter setup
def _fold_bn(w_oihw, gamma, beta, mean, var, eps=1e-5):
    std = jnp.sqrt(var + eps)
    w = w_oihw * (gamma / std)[:, None, None, None]
    b = beta - gamma * mean / std
    return w, b


def _fold_repvgg_block(p, cin, cout):
    """Fold 3x3+BN, 1x1+BN and identity-BN branches into one 3x3 conv + bias."""
    w3, b3 = _fold_bn(p["w3"], *p["bn3"])
    w1, b1 = _fold_bn(p["w1"], *p["bn1"])
    w = w3.at[:, :, 1, 1].add(w1[:, :, 0, 0])
    b = b3 + b1
    if cin == cout:                                   # identity (BN-only) branch
        gamma, beta, mean, var = p["bnid"]
        std = jnp.sqrt(var + 1e-5)
        idx = jnp.arange(cout)
        w = w.at[idx, idx, 1, 1].add(gamma / std)
        b = b + (beta - gamma * mean / std)
    return w, b


def _fold_onlyconv_block(p):
    w = p["w3"].at[:, :, 1, 1].add(p["w1"][:, :, 0, 0])
    b = p["b3"] + p["b1"]
    return w, b


def prepare_pred_params(params, cpad, compute_dtype=jnp.bfloat16):
    """ONE-TIME prep (hoisted off the forward path):

    fold every block into a single 3x3 conv, zero-pad channels to `cpad` (lane-dense),
    and pack weights per 3x3 tap: (L, 9, cpad, cpad) in `compute_dtype` plus biases
    (L, 1, cpad) in f32.  Padded weight rows/columns and biases are exactly zero, so
    padded lanes stay 0 through ReLU and never leak into real channels.
    """
    w_list, b_list = [], []
    for kind, p, cin, cout in params:
        if kind == "repvgg":
            w, b = _fold_repvgg_block(p, cin, cout)
        else:
            w, b = _fold_onlyconv_block(p)
        w_hwio = jnp.transpose(w, (2, 3, 1, 0))                     # OIHW -> HWIO (ky,kx,ci,co)
        w_pad = jnp.zeros((3, 3, cpad, cpad), jnp.float32)
        w_pad = w_pad.at[:, :, :cin, :cout].set(w_hwio.astype(jnp.float32))
        b_pad = jnp.zeros((cpad,), jnp.float32).at[:cout].set(b.astype(jnp.float32))
        w_list.append(w_pad.reshape(9, cpad, cpad).astype(compute_dtype))
        b_list.append(b_pad.reshape(1, cpad))                       # bias kept f32
    return jnp.stack(w_list), jnp.stack(b_list)


def make_pred_params(key, pred_planes, inplanes, outplanes, depth, is_cls=False):
    """Deterministic synthetic parameters matching Pred.__init__ structure."""
    params = []

    def bn_params(k, c):
        k1, k2, k3, k4 = jax.random.split(k, 4)
        gamma = 0.5 + jax.random.uniform(k1, (c,))
        beta = 0.1 * jax.random.normal(k2, (c,))
        mean = 0.1 * jax.random.normal(k3, (c,))
        var = 0.5 + jax.random.uniform(k4, (c,))
        return gamma, beta, mean, var

    cin = inplanes
    for _ in range(depth):
        key, k3, k1, kb3, kb1, kbid = jax.random.split(key, 6)
        p = {
            "w3": 0.1 * jax.random.normal(k3, (outplanes, cin, 3, 3)),
            "bn3": bn_params(kb3, outplanes),
            "w1": 0.1 * jax.random.normal(k1, (outplanes, cin, 1, 1)),
            "bn1": bn_params(kb1, outplanes),
        }
        if cin == outplanes:
            p["bnid"] = bn_params(kbid, outplanes)
        params.append(("repvgg", p, cin, outplanes))
        cin = outplanes

    key, k3, k1, kb3, kb1 = jax.random.split(key, 5)
    bias_init = -math.log((1 - 0.01) / 0.01) if is_cls else 0.0
    p = {
        "w3": 0.1 * jax.random.normal(k3, (pred_planes, outplanes, 3, 3)),
        "b3": jnp.full((pred_planes,), bias_init)
        + (0.0 if is_cls else 0.1 * jax.random.normal(kb3, (pred_planes,))),
        "w1": 0.1 * jax.random.normal(k1, (pred_planes, outplanes, 1, 1)),
        "b1": jnp.full((pred_planes,), bias_init)
        + (0.0 if is_cls else 0.1 * jax.random.normal(kb1, (pred_planes,))),
    }
    params.append(("onlyconv", p, outplanes, pred_planes))
    return params


# ------------------------------------------------------------------------- Pred forward
def pred_forward_pallas(x_nchw, w_stack, b_stack, *, pred_planes):
    """Forward pass: NCHW -> (one fused Pallas call) -> NCHW."""
    x = jnp.transpose(x_nchw, (0, 2, 3, 1)).astype(jnp.float32)     # NCHW -> NHWC (no channel pad)
    y = pred_stack_pallas(x, w_stack, b_stack)                      # (N, H, W, C)
    return jnp.transpose(y[..., :pred_planes], (0, 3, 1, 2))        # slice + NHWC -> NCHW


# ------------------------------------------------------------------------ pure-JAX ref
def pred_forward_reference(x_nchw, params):
    """Un-fused branch-by-branch reference (matches the PyTorch forward in eval mode)."""
    dn = ("NHWC", "HWIO", "NHWC")
    x = jnp.transpose(x_nchw, (0, 2, 3, 1)).astype(jnp.float32)

    def conv(x, w_oihw, pad):
        return lax.conv_general_dilated(
            x, jnp.transpose(w_oihw, (2, 3, 1, 0)), (1, 1), pad, dimension_numbers=dn)

    def bn(y, gamma, beta, mean, var, eps=1e-5):
        return (y - mean) / jnp.sqrt(var + eps) * gamma + beta

    for kind, p, cin, cout in params:
        if kind == "repvgg":
            y = bn(conv(x, p["w3"], [(1, 1), (1, 1)]), *p["bn3"])
            y = y + bn(conv(x, p["w1"], [(0, 0), (0, 0)]), *p["bn1"])
            if cin == cout:
                y = y + bn(x, *p["bnid"])
            x = jnp.maximum(y, 0.0)
        else:
            y = conv(x, p["w3"], [(1, 1), (1, 1)]) + p["b3"]
            y = y + conv(x, p["w1"], [(0, 0), (0, 0)]) + p["b1"]
            x = y
    return jnp.transpose(x, (0, 3, 1, 2))


# --------------------------------------------------------------------------------- main
if __name__ == "__main__":
    key = jax.random.PRNGKey(0)

    # small shapes consistent with the module
    N, inplanes, outplanes, pred_planes, depth, H, W = 2, 8, 16, 4, 2, 16, 16

    kx_, kp = jax.random.split(key)
    x = jax.random.normal(kx_, (N, inplanes, H, W), jnp.float32)    # NCHW input

    params = make_pred_params(kp, pred_planes, inplanes, outplanes, depth, is_cls=False)

    cpad = _round_up(max(inplanes, outplanes, pred_planes), LANE)   # lane-dense channel pad

    ref = jax.block_until_ready(pred_forward_reference(x, params))

    fwd = jax.jit(functools.partial(pred_forward_pallas, pred_planes=pred_planes))

    # 1) f32 MXU path: tight element-wise validation of the fused kernel structure.
    w32, b32 = jax.block_until_ready(prepare_pred_params(params, cpad, jnp.float32))
    out32 = jax.block_until_ready(fwd(x, w32, b32))
    assert out32.shape == (N, pred_planes, H, W), out32.shape
    assert jnp.allclose(out32, ref, rtol=1e-2, atol=1e-2), float(jnp.max(jnp.abs(out32 - ref)))

    # 2) bf16 MXU fast path (f32 accumulation, f32 biases): validated with relative-L2,
    #    the appropriate metric for bf16 input quantization across a depth-deep stack.
    wbf, bbf = jax.block_until_ready(prepare_pred_params(params, cpad, jnp.bfloat16))
    outbf = jax.block_until_ready(fwd(x, wbf, bbf))
    assert outbf.shape == (N, pred_planes, H, W), outbf.shape
    rel_l2 = float(jnp.sqrt(jnp.sum((outbf - ref) ** 2)) / jnp.sqrt(jnp.sum(ref ** 2)))
    assert rel_l2 < 1e-2, rel_l2

    print("KERNEL_OK")
</pallas_src>

<mosaic_0001>
module attributes {stable_mosaic.version = 11 : i64} {
  func.func @_pred_stack_kernel(%arg0: i32, %arg1: memref<1x16x16x8xf32, #tpu.memory_space<vmem>>, %arg2: memref<3x9x128x128xf32, #tpu.memory_space<vmem>>, %arg3: memref<3x1x128xf32, #tpu.memory_space<vmem>>, %arg4: memref<1x16x16x128xf32, #tpu.memory_space<vmem>>, %arg5: memref<18x48x128xf32, #tpu.memory_space<vmem>>) attributes {dimension_semantics = [#tpu.dimension_semantics<parallel>], iteration_bounds = array<i64: 2>, scalar_prefetch = 0 : i64, scratch_operands = 1 : i64, tpu.core_type = #tpu.core_type<tc>, window_params = [{transform_indices = @transform_0, window_bounds = array<i64: 1, 16, 16, 8>}, {pipeline_mode = #tpu.pipeline_mode<synchronous>, transform_indices = @transform_1, window_bounds = array<i64: 3, 9, 128, 128>}, {pipeline_mode = #tpu.pipeline_mode<synchronous>, transform_indices = @transform_2, window_bounds = array<i64: 3, 1, 128>}, {transform_indices = @transform_3, window_bounds = array<i64: 1, 16, 16, 128>}]} {
    %cst = arith.constant 0.000000e+00 : f32
    %0 = vector.broadcast %cst : f32 to vector<18x18x128xf32>
    %c0 = arith.constant 0 : index
    %c15 = arith.constant 15 : index
    %c0_0 = arith.constant 0 : index
    %1 = vector.load %arg5[%c0, %c15, %c0_0] : memref<18x48x128xf32, #tpu.memory_space<vmem>>, vector<18x18x128xf32>
    tpu.vector_store %arg5[%c0, %c15, %c0_0], %0 {strides = array<i32>} : memref<18x48x128xf32, #tpu.memory_space<vmem>>, vector<18x18x128xf32>,
    %c0_1 = arith.constant 0 : index
    %c0_2 = arith.constant 0 : index
    %c0_3 = arith.constant 0 : index
    %c0_4 = arith.constant 0 : index
    %2 = vector.load %arg1[%c0_1, %c0_2, %c0_3, %c0_4] : memref<1x16x16x8xf32, #tpu.memory_space<vmem>>, vector<1x16x16x8xf32>
    %3 = vector.shape_cast %2 : vector<1x16x16x8xf32> to vector<16x16x8xf32>
    %c1 = arith.constant 1 : index
    %c16 = arith.constant 16 : index
    %c0_5 = arith.constant 0 : index
    %4 = vector.load %arg5[%c1, %c16, %c0_5] : memref<18x48x128xf32, #tpu.memory_space<vmem>>, vector<16x16x8xf32>
    tpu.vector_store %arg5[%c1, %c16, %c0_5], %3 {strides = array<i32>} : memref<18x48x128xf32, #tpu.memory_space<vmem>>, vector<16x16x8xf32>,
    %c0_6 = arith.constant 0 : index
    %c15_7 = arith.constant 15 : index
    %c0_8 = arith.constant 0 : index
    %5 = vector.load %arg5[%c0_6, %c15_7, %c0_8] : memref<18x48x128xf32, #tpu.memory_space<vmem>>, vector<16x16x128xf32>
    %6 = vector.shape_cast %5 : vector<16x16x128xf32> to vector<256x128xf32>
    %c0_9 = arith.constant 0 : index
    %c0_10 = arith.constant 0 : index
    %c0_11 = arith.constant 0 : index
    %c0_12 = arith.constant 0 : index
    %7 = vector.load %arg2[%c0_9, %c0_10, %c0_11, %c0_12] : memref<3x9x128x128xf32, #tpu.memory_space<vmem>>, vector<1x1x128x128xf32>
    %8 = vector.shape_cast %7 : vector<1x1x128x128xf32> to vector<128x128xf32>
    %cst_13 = arith.constant dense<0.000000e+00> : vector<256x128xf32>
    %9 = tpu.matmul %6, %8, %cst_13 {dimension_numbers = #tpu.dot_dimension_numbers<[1], [0], [0], [1], [0, 0, 1, 1], [], []>} : vector<256x128xf32>, vector<128x128xf32>, vector<256x128xf32> -> vector<256x128xf32>
    %c0_14 = arith.constant 0 : index
    %c16_15 = arith.constant 16 : index
    %c0_16 = arith.constant 0 : index
    %10 = vector.load %arg5[%c0_14, %c16_15, %c0_16] : memref<18x48x128xf32, #tpu.memory_space<vmem>>, vector<16x16x128xf32>
    %11 = vector.shape_cast %10 : vector<16x16x128xf32> to vector<256x128xf32>
    %c0_17 = arith.constant 0 : index
    %c1_18 = arith.constant 1 : index
    %c0_19 = arith.constant 0 : index
    %c0_20 = arith.constant 0 : index
    %12 = vector.load %arg2[%c0_17, %c1_18, %c0_19, %c0_20] : memref<3x9x128x128xf32, #tpu.memory_space<vmem>>, vector<1x1x128x128xf32>
    %13 = vector.shape_cast %12 : vector<1x1x128x128xf32> to vector<128x128xf32>
    %cst_21 = arith.constant dense<0.000000e+00> : vector<256x128xf32>
    %14 = tpu.matmul %11, %13, %cst_21 {dimension_numbers = #tpu.dot_dimension_numbers<[1], [0], [0], [1], [0, 0, 1, 1], [], []>} : vector<256x128xf32>, vector<128x128xf32>, vector<256x128xf32> -> vector<256x128xf32>
    %15 = arith.addf %9, %14 : vector<256x128xf32>
    %c0_22 = arith.constant 0 : index
    %c17 = arith.constant 17 : index
    %c0_23 = arith.constant 0 : index
    %16 = vector.load %arg5[%c0_22, %c17, %c0_23] : memref<18x48x128xf32, #tpu.memory_space<vmem>>, vector<16x16x128xf32>
    %17 = vector.shape_cast %16 : vector<16x16x128xf32> to vector<256x128xf32>
    %c0_24 = arith.constant 0 : index
    %c2 = arith.constant 2 : index
    %c0_25 = arith.constant 0 : index
    %c0_26 = arith.constant 0 : index
    %18 = vector.load %arg2[%c0_24, %c2, %c0_25, %c0_26] : memref<3x9x128x128xf32, #tpu.memory_space<vmem>>, vector<1x1x128x128xf32>
    %19 = vector.shape_cast %18 : vector<1x1x128x128xf32> to vector<128x128xf32>
    %cst_27 = arith.constant dense<0.000000e+00> : vector<256x128xf32>
    %20 = tpu.matmul %17, %19, %cst_27 {dimension_numbers = #tpu.dot_dimension_numbers<[1], [0], [0], [1], [0, 0, 1, 1], [], []>} : vector<256x128xf32>, vector<128x128xf32>, vector<256x128xf32> -> vector<256x128xf32>
    %21 = arith.addf %15, %20 : vector<256x128xf32>
    %c1_28 = arith.constant 1 : index
    %c15_29 = arith.constant 15 : index
    %c0_30 = arith.constant 0 : index
    %22 = vector.load %arg5[%c1_28, %c15_29, %c0_30] : memref<18x48x128xf32, #tpu.memory_space<vmem>>, vector<16x16x128xf32>
    %23 = vector.shape_cast %22 : vector<16x16x128xf32> to vector<256x128xf32>
    %c0_31 = arith.constant 0 : index
    %c3 = arith.constant 3 : index
    %c0_32 = arith.constant 0 : index
    %c0_33 = arith.constant 0 : index
    %24 = vector.load %arg2[%c0_31, %c3, %c0_32, %c0_33] : memref<3x9x128x128xf32, #tpu.memory_space<vmem>>, vector<1x1x128x128xf32>
    %25 = vector.shape_cast %24 : vector<1x1x128x128xf32> to vector<128x128xf32>
    %cst_34 = arith.constant dense<0.000000e+00> : vector<256x128xf32>
    %26 = tpu.matmul %23, %25, %cst_34 {dimension_numbers = #tpu.dot_dimension_numbers<[1], [0], [0], [1], [0, 0, 1, 1], [], []>} : vector<256x128xf32>, vector<128x128xf32>, vector<256x128xf32> -> vector<256x128xf32>
    %27 = arith.addf %21, %26 : vector<256x128xf32>
    %c1_35 = arith.constant 1 : index
    %c16_36 = arith.constant 16 : index
    %c0_37 = arith.constant 0 : index
    %28 = vector.load %arg5[%c1_35, %c16_36, %c0_37] : memref<18x48x128xf32, #tpu.memory_space<vmem>>, vector<16x16x128xf32>
    %29 = vector.shape_cast %28 : vector<16x16x128xf32> to vector<256x128xf32>
    %c0_38 = arith.constant 0 : index
    %c4 = arith.constant 4 : index
    %c0_39 = arith.constant 0 : index
    %c0_40 = arith.constant 0 : index
    %30 = vector.load %arg2[%c0_38, %c4, %c0_39, %c0_40] : memref<3x9x128x128xf32, #tpu.memory_space<vmem>>, vector<1x1x128x128xf32>
    %31 = vector.shape_cast %30 : vector<1x1x128x128xf32> to vector<128x128xf32>
    %cst_41 = arith.constant dense<0.000000e+00> : vector<256x128xf32>
    %32 = tpu.matmul %29, %31, %cst_41 {dimension_numbers = #tpu.dot_dimension_numbers<[1], [0], [0], [1], [0, 0, 1, 1], [], []>} : vector<256x128xf32>, vector<128x128xf32>, vector<256x128xf32> -> vector<256x128xf32>
    %33 = arith.addf %27, %32 : vector<256x128xf32>
    %c1_42 = arith.constant 1 : index
    %c17_43 = arith.constant 17 : index
    %c0_44 = arith.constant 0 : index
    %34 = vector.load %arg5[%c1_42, %c17_43, %c0_44] : memref<18x48x128xf32, #tpu.memory_space<vmem>>, vector<16x16x128xf32>
    %35 = vector.shape_cast %34 : vector<16x16x128xf32> to vector<256x128xf32>
    %c0_45 = arith.constant 0 : index
    %c5 = arith.constant 5 : index
    %c0_46 = arith.constant 0 : index
    %c0_47 = arith.constant 0 : index
    %36 = vector.load %arg2[%c0_45, %c5, %c0_46, %c0_47] : memref<3x9x128x128xf32, #tpu.memory_space<vmem>>, vector<1x1x128x128xf32>
    %37 = vector.shape_cast %36 : vector<1x1x128x128xf32> to vector<128x128xf32>
    %cst_48 = arith.constant dense<0.000000e+00> : vector<256x128xf32>
    %38 = tpu.matmul %35, %37, %cst_48 {dimension_numbers = #tpu.dot_dimension_numbers<[1], [0], [0], [1], [0, 0, 1, 1], [], []>} : vector<256x128xf32>, vector<128x128xf32>, vector<256x128xf32> -> vector<256x128xf32>
    %39 = arith.addf %33, %38 : vector<256x128xf32>
    %c2_49 = arith.constant 2 : index
    %c15_50 = arith.constant 15 : index
    %c0_51 = arith.constant 0 : index
    %40 = vector.load %arg5[%c2_49, %c15_50, %c0_51] : memref<18x48x128xf32, #tpu.memory_space<vmem>>, vector<16x16x128xf32>
    %41 = vector.shape_cast %40 : vector<16x16x128xf32> to vector<256x128xf32>
    %c0_52 = arith.constant 0 : index
    %c6 = arith.constant 6 : index
    %c0_53 = arith.constant 0 : index
    %c0_54 = arith.constant 0 : index
    %42 = vector.load %arg2[%c0_52, %c6, %c0_53, %c0_54] : memref<3x9x128x128xf32, #tpu.memory_space<vmem>>, vector<1x1x128x128xf32>
    %43 = vector.shape_cast %42 : vector<1x1x128x128xf32> to vector<128x128xf32>
    %cst_55 = arith.constant dense<0.000000e+00> : vector<256x128xf32>
    %44 = tpu.matmul %41, %43, %cst_55 {dimension_numbers = #tpu.dot_dimension_numbers<[1], [0], [0], [1], [0, 0, 1, 1], [], []>} : vector<256x128xf32>, vector<128x128xf32>, vector<256x128xf32> -> vector<256x128xf32>
    %45 = arith.addf %39, %44 : vector<256x128xf32>
    %c2_56 = arith.constant 2 : index
    %c16_57 = arith.constant 16 : index
    %c0_58 = arith.constant 0 : index
    %46 = vector.load %arg5[%c2_56, %c16_57, %c0_58] : memref<18x48x128xf32, #tpu.memory_space<vmem>>, vector<16x16x128xf32>
    %47 = vector.shape_cast %46 : vector<16x16x128xf32> to vector<256x128xf32>
    %c0_59 = arith.constant 0 : index
    %c7 = arith.constant 7 : index
    %c0_60 = arith.constant 0 : index
    %c0_61 = arith.constant 0 : index
    %48 = vector.load %arg2[%c0_59, %c7, %c0_60, %c0_61] : memref<3x9x128x128xf32, #tpu.memory_space<vmem>>, vector<1x1x128x128xf32>
    %49 = vector.shape_cast %48 : vector<1x1x128x128xf32> to vector<128x128xf32>
    %cst_62 = arith.constant dense<0.000000e+00> : vector<256x128xf32>
    %50 = tpu.matmul %47, %49, %cst_62 {dimension_numbers = #tpu.dot_dimension_numbers<[1], [0], [0], [1], [0, 0, 1, 1], [], []>} : vector<256x128xf32>, vector<128x128xf32>, vector<256x128xf32> -> vector<256x128xf32>
    %51 = arith.addf %45, %50 : vector<256x128xf32>
    %c2_63 = arith.constant 2 : index
    %c17_64 = arith.constant 17 : index
    %c0_65 = arith.constant 0 : index
    %52 = vector.load %arg5[%c2_63, %c17_64, %c0_65] : memref<18x48x128xf32, #tpu.memory_space<vmem>>, vector<16x16x128xf32>
    %53 = vector.shape_cast %52 : vector<16x16x128xf32> to vector<256x128xf32>
    %c0_66 = arith.constant 0 : index
    %c8 = arith.constant 8 : index
    %c0_67 = arith.constant 0 : index
    %c0_68 = arith.constant 0 : index
    %54 = vector.load %arg2[%c0_66, %c8, %c0_67, %c0_68] : memref<3x9x128x128xf32, #tpu.memory_space<vmem>>, vector<1x1x128x128xf32>
    %55 = vector.shape_cast %54 : vector<1x1x128x128xf32> to vector<128x128xf32>
    %cst_69 = arith.constant dense<0.000000e+00> : vector<256x128xf32>
    %56 = tpu.matmul %53, %55, %cst_69 {dimension_numbers = #tpu.dot_dimension_numbers<[1], [0], [0], [1], [0, 0, 1, 1], [], []>} : vector<256x128xf32>, vector<128x128xf32>, vector<256x128xf32> -> vector<256x128xf32>
    %57 = arith.addf %51, %56 : vector<256x128xf32>
    %c0_70 = arith.constant 0 : index
    %c0_71 = arith.constant 0 : index
    %c0_72 = arith.constant 0 : index
    %58 = vector.load %arg3[%c0_70, %c0_71, %c0_72] : memref<3x1x128xf32, #tpu.memory_space<vmem>>, vector<1x1x128xf32>
    %59 = vector.shape_cast %58 : vector<1x1x128xf32> to vector<1x128xf32>
    %60 = vector.broadcast %59 : vector<1x128xf32> to vector<256x128xf32>
    %61 = arith.addf %57, %60 : vector<256x128xf32>
    %cst_73 = arith.constant 0.000000e+00 : f32
    %62 = vector.broadcast %cst_73 : f32 to vector<256x128xf32>
    %63 = arith.maximumf %61, %62 : vector<256x128xf32>
    %64 = vector.shape_cast %63 : vector<256x128xf32> to vector<16x16x128xf32>
    %c1_74 = arith.constant 1 : index
    %c16_75 = arith.constant 16 : index
    %c0_76 = arith.constant 0 : index
    %65 = vector.load %arg5[%c1_74, %c16_75, %c0_76] : memref<18x48x128xf32, #tpu.memory_space<vmem>>, vector<16x16x128xf32>
    tpu.vector_store %arg5[%c1_74, %c16_75, %c0_76], %64 {strides = array<i32>} : memref<18x48x128xf32, #tpu.memory_space<vmem>>, vector<16x16x128xf32>,
    %c0_77 = arith.constant 0 : index
    %c15_78 = arith.constant 15 : index
    %c0_79 = arith.constant 0 : index
    %66 = vector.load %arg5[%c0_77, %c15_78, %c0_79] : memref<18x48x128xf32, #tpu.memory_space<vmem>>, vector<16x16x128xf32>
    %67 = vector.shape_cast %66 : vector<16x16x128xf32> to vector<256x128xf32>
    %c1_80 = arith.constant 1 : index
    %c0_81 = arith.constant 0 : index
    %c0_82 = arith.constant 0 : index
    %c0_83 = arith.constant 0 : index
    %68 = vector.load %arg2[%c1_80, %c0_81, %c0_82, %c0_83] : memref<3x9x128x128xf32, #tpu.memory_space<vmem>>, vector<1x1x128x128xf32>
    %69 = vector.shape_cast %68 : vector<1x1x128x128xf32> to vector<128x128xf32>
    %cst_84 = arith.constant dense<0.000000e+00> : vector<256x128xf32>
    %70 = tpu.matmul %67, %69, %cst_84 {dimension_numbers = #tpu.dot_dimension_numbers<[1], [0], [0], [1], [0, 0, 1, 1], [], []>} : vector<256x128xf32>, vector<128x128xf32>, vector<256x128xf32> -> vector<256x128xf32>
    %c0_85 = arith.constant 0 : index
    %c16_86 = arith.constant 16 : index
    %c0_87 = arith.constant 0 : index
    %71 = vector.load %arg5[%c0_85, %c16_86, %c0_87] : memref<18x48x128xf32, #tpu.memory_space<vmem>>, vector<16x16x128xf32>
    %72 = vector.shape_cast %71 : vector<16x16x128xf32> to vector<256x128xf32>
    %c1_88 = arith.constant 1 : index
    %c1_89 = arith.constant 1 : index
    %c0_90 = arith.constant 0 : index
    %c0_91 = arith.constant 0 : index
    %73 = vector.load %arg2[%c1_88, %c1_89, %c0_90, %c0_91] : memref<3x9x128x128xf32, #tpu.memory_space<vmem>>, vector<1x1x128x128xf32>
    %74 = vector.shape_cast %73 : vector<1x1x128x128xf32> to vector<128x128xf32>
    %cst_92 = arith.constant dense<0.000000e+00> : vector<256x128xf32>
    %75 = tpu.matmul %72, %74, %cst_92 {dimension_numbers = #tpu.dot_dimension_numbers<[1], [0], [0], [1], [0, 0, 1, 1], [], []>} : vector<256x128xf32>, vector<128x128xf32>, vector<256x128xf32> -> vector<256x128xf32>
    %76 = arith.addf %70, %75 : vector<256x128xf32>
    %c0_93 = arith.constant 0 : index
    %c17_94 = arith.constant 17 : index
    %c0_95 = arith.constant 0 : index
    %77 = vector.load %arg5[%c0_93, %c17_94, %c0_95] : memref<18x48x128xf32, #tpu.memory_space<vmem>>, vector<16x16x128xf32>
    %78 = vector.shape_cast %77 : vector<16x16x128xf32> to vector<256x128xf32>
    %c1_96 = arith.constant 1 : index
    %c2_97 = arith.constant 2 : index
    %c0_98 = arith.constant 0 : index
    %c0_99 = arith.constant 0 : index
    %79 = vector.load %arg2[%c1_96, %c2_97, %c0_98, %c0_99] : memref<3x9x128x128xf32, #tpu.memory_space<vmem>>, vector<1x1x128x128xf32>
    %80 = vector.shape_cast %79 : vector<1x1x128x128xf32> to vector<128x128xf32>
    %cst_100 = arith.constant dense<0.000000e+00> : vector<256x128xf32>
    %81 = tpu.matmul %78, %80, %cst_100 {dimension_numbers = #tpu.dot_dimension_numbers<[1], [0], [0], [1], [0, 0, 1, 1], [], []>} : vector<256x128xf32>, vector<128x128xf32>, vector<256x128xf32> -> vector<256x128xf32>
    %82 = arith.addf %76, %81 : vector<256x128xf32>
    %c1_101 = arith.constant 1 : index
    %c15_102 = arith.constant 15 : index
    %c0_103 = arith.constant 0 : index
    %83 = vector.load %arg5[%c1_101, %c15_102, %c0_103] : memref<18x48x128xf32, #tpu.memory_space<vmem>>, vector<16x16x128xf32>
    %84 = vector.shape_cast %83 : vector<16x16x128xf32> to vector<256x128xf32>
    %c1_104 = arith.constant 1 : index
    %c3_105 = arith.constant 3 : index
    %c0_106 = arith.constant 0 : index
    %c0_107 = arith.constant 0 : index
    %85 = vector.load %arg2[%c1_104, %c3_105, %c0_106, %c0_107] : memref<3x9x128x128xf32, #tpu.memory_space<vmem>>, vector<1x1x128x128xf32>
    %86 = vector.shape_cast %85 : vector<1x1x128x128xf32> to vector<128x128xf32>
    %cst_108 = arith.constant dense<0.000000e+00> : vector<256x128xf32>
    %87 = tpu.matmul %84, %86, %cst_108 {dimension_numbers = #tpu.dot_dimension_numbers<[1], [0], [0], [1], [0, 0, 1, 1], [], []>} : vector<256x128xf32>, vector<128x128xf32>, vector<256x128xf32> -> vector<256x128xf32>
    %88 = arith.addf %82, %87 : vector<256x128xf32>
    %c1_109 = arith.constant 1 : index
    %c16_110 = arith.constant 16 : index
    %c0_111 = arith.constant 0 : index
    %89 = vector.load %arg5[%c1_109, %c16_110, %c0_111] : memref<18x48x128xf32, #tpu.memory_space<vmem>>, vector<16x16x128xf32>
    %90 = vector.shape_cast %89 : vector<16x16x128xf32> to vector<256x128xf32>
    %c1_112 = arith.constant 1 : index
    %c4_113 = arith.constant 4 : index
    %c0_114 = arith.constant 0 : index
    %c0_115 = arith.constant 0 : index
    %91 = vector.load %arg2[%c1_112, %c4_113, %c0_114, %c0_115] : memref<3x9x128x128xf32, #tpu.memory_space<vmem>>, vector<1x1x128x128xf32>
    %92 = vector.shape_cast %91 : vector<1x1x128x128xf32> to vector<128x128xf32>
    %cst_116 = arith.constant dense<0.000000e+00> : vector<256x128xf32>
    %93 = tpu.matmul %90, %92, %cst_116 {dimension_numbers = #tpu.dot_dimension_numbers<[1], [0], [0], [1], [0, 0, 1, 1], [], []>} : vector<256x128xf32>, vector<128x128xf32>, vector<256x128xf32> -> vector<256x128xf32>
    %94 = arith.addf %88, %93 : vector<256x128xf32>
    %c1_117 = arith.constant 1 : index
    %c17_118 = arith.constant 17 : index
    %c0_119 = arith.constant 0 : index
    %95 = vector.load %arg5[%c1_117, %c17_118, %c0_119] : memref<18x48x128xf32, #tpu.memory_space<vmem>>, vector<16x16x128xf32>
    %96 = vector.shape_cast %95 : vector<16x16x128xf32> to vector<256x128xf32>
    %c1_120 = arith.constant 1 : index
    %c5_121 = arith.constant 5 : index
    %c0_122 = arith.constant 0 : index
    %c0_123 = arith.constant 0 : index
    %97 = vector.load %arg2[%c1_120, %c5_121, %c0_122, %c0_123] : memref<3x9x128x128xf32, #tpu.memory_space<vmem>>, vector<1x1x128x128xf32>
    %98 = vector.shape_cast %97 : vector<1x1x128x128xf32> to vector<128x128xf32>
    %cst_124 = arith.constant dense<0.000000e+00> : vector<256x128xf32>
    %99 = tpu.matmul %96, %98, %cst_124 {dimension_numbers = #tpu.dot_dimension_numbers<[1], [0], [0], [1], [0, 0, 1, 1], [], []>} : vector<256x128xf32>, vector<128x128xf32>, vector<256x128xf32> -> vector<256x128xf32>
    %100 = arith.addf %94, %99 : vector<256x128xf32>
    %c2_125 = arith.constant 2 : index
    %c15_126 = arith.constant 15 : index
    %c0_127 = arith.constant 0 : index
    %101 = vector.load %arg5[%c2_125, %c15_126, %c0_127] : memref<18x48x128xf32, #tpu.memory_space<vmem>>, vector<16x16x128xf32>
    %102 = vector.shape_cast %101 : vector<16x16x128xf32> to vector<256x128xf32>
    %c1_128 = arith.constant 1 : index
    %c6_129 = arith.constant 6 : index
    %c0_130 = arith.constant 0 : index
    %c0_131 = arith.constant 0 : index
    %103 = vector.load %arg2[%c1_128, %c6_129, %c0_130, %c0_131] : memref<3x9x128x128xf32, #tpu.memory_space<vmem>>, vector<1x1x128x128xf32>
    %104 = vector.shape_cast %103 : vector<1x1x128x128xf32> to vector<128x128xf32>
    %cst_132 = arith.constant dense<0.000000e+00> : vector<256x128xf32>
    %105 = tpu.matmul %102, %104, %cst_132 {dimension_numbers = #tpu.dot_dimension_numbers<[1], [0], [0], [1], [0, 0, 1, 1], [], []>} : vector<256x128xf32>, vector<128x128xf32>, vector<256x128xf32> -> vector<256x128xf32>
    %106 = arith.addf %100, %105 : vector<256x128xf32>
    %c2_133 = arith.constant 2 : index
    %c16_134 = arith.constant 16 : index
    %c0_135 = arith.constant 0 : index
    %107 = vector.load %arg5[%c2_133, %c16_134, %c0_135] : memref<18x48x128xf32, #tpu.memory_space<vmem>>, vector<16x16x128xf32>
    %108 = vector.shape_cast %107 : vector<16x16x128xf32> to vector<256x128xf32>
    %c1_136 = arith.constant 1 : index
    %c7_137 = arith.constant 7 : index
    %c0_138 = arith.constant 0 : index
    %c0_139 = arith.constant 0 : index
    %109 = vector.load %arg2[%c1_136, %c7_137, %c0_138, %c0_139] : memref<3x9x128x128xf32, #tpu.memory_space<vmem>>, vector<1x1x128x128xf32>
    %110 = vector.shape_cast %109 : vector<1x1x128x128xf32> to vector<128x128xf32>
    %cst_140 = arith.constant dense<0.000000e+00> : vector<256x128xf32>
    %111 = tpu.matmul %108, %110, %cst_140 {dimension_numbers = #tpu.dot_dimension_numbers<[1], [0], [0], [1], [0, 0, 1, 1], [], []>} : vector<256x128xf32>, vector<128x128xf32>, vector<256x128xf32> -> vector<256x128xf32>
    %112 = arith.addf %106, %111 : vector<256x128xf32>
    %c2_141 = arith.constant 2 : index
    %c17_142 = arith.constant 17 : index
    %c0_143 = arith.constant 0 : index
    %113 = vector.load %arg5[%c2_141, %c17_142, %c0_143] : memref<18x48x128xf32, #tpu.memory_space<vmem>>, vector<16x16x128xf32>
    %114 = vector.shape_cast %113 : vector<16x16x128xf32> to vector<256x128xf32>
    %c1_144 = arith.constant 1 : index
    %c8_145 = arith.constant 8 : index
    %c0_146 = arith.constant 0 : index
    %c0_147 = arith.constant 0 : index
    %115 = vector.load %arg2[%c1_144, %c8_145, %c0_146, %c0_147] : memref<3x9x128x128xf32, #tpu.memory_space<vmem>>, vector<1x1x128x128xf32>
    %116 = vector.shape_cast %115 : vector<1x1x128x128xf32> to vector<128x128xf32>
    %cst_148 = arith.constant dense<0.000000e+00> : vector<256x128xf32>
    %117 = tpu.matmul %114, %116, %cst_148 {dimension_numbers = #tpu.dot_dimension_numbers<[1], [0], [0], [1], [0, 0, 1, 1], [], []>} : vector<256x128xf32>, vector<128x128xf32>, vector<256x128xf32> -> vector<256x128xf32>
    %118 = arith.addf %112, %117 : vector<256x128xf32>
    %c1_149 = arith.constant 1 : index
    %c0_150 = arith.constant 0 : index
    %c0_151 = arith.constant 0 : index
    %119 = vector.load %arg3[%c1_149, %c0_150, %c0_151] : memref<3x1x128xf32, #tpu.memory_space<vmem>>, vector<1x1x128xf32>
    %120 = vector.shape_cast %119 : vector<1x1x128xf32> to vector<1x128xf32>
    %121 = vector.broadcast %120 : vector<1x128xf32> to vector<256x128xf32>
    %122 = arith.addf %118, %121 : vector<256x128xf32>
    %cst_152 = arith.constant 0.000000e+00 : f32
    %123 = vector.broadcast %cst_152 : f32 to vector<256x128xf32>
    %124 = arith.maximumf %122, %123 : vector<256x128xf32>
    %125 = vector.shape_cast %124 : vector<256x128xf32> to vector<16x16x128xf32>
    %c1_153 = arith.constant 1 : index
    %c16_154 = arith.constant 16 : index
    %c0_155 = arith.constant 0 : index
    %126 = vector.load %arg5[%c1_153, %c16_154, %c0_155] : memref<18x48x128xf32, #tpu.memory_space<vmem>>, vector<16x16x128xf32>
    tpu.vector_store %arg5[%c1_153, %c16_154, %c0_155], %125 {strides = array<i32>} : memref<18x48x128xf32, #tpu.memory_space<vmem>>, vector<16x16x128xf32>,
    %c0_156 = arith.constant 0 : index
    %c15_157 = arith.constant 15 : index
    %c0_158 = arith.constant 0 : index
    %127 = vector.load %arg5[%c0_156, %c15_157, %c0_158] : memref<18x48x128xf32, #tpu.memory_space<vmem>>, vector<16x16x128xf32>
    %128 = vector.shape_cast %127 : vector<16x16x128xf32> to vector<256x128xf32>
    %c2_159 = arith.constant 2 : index
    %c0_160 = arith.constant 0 : index
    %c0_161 = arith.constant 0 : index
    %c0_162 = arith.constant 0 : index
    %129 = vector.load %arg2[%c2_159, %c0_160, %c0_161, %c0_162] : memref<3x9x128x128xf32, #tpu.memory_space<vmem>>, vector<1x1x128x128xf32>
    %130 = vector.shape_cast %129 : vector<1x1x128x128xf32> to vector<128x128xf32>
    %cst_163 = arith.constant dense<0.000000e+00> : vector<256x128xf32>
    %131 = tpu.matmul %128, %130, %cst_163 {dimension_numbers = #tpu.dot_dimension_numbers<[1], [0], [0], [1], [0, 0, 1, 1], [], []>} : vector<256x128xf32>, vector<128x128xf32>, vector<256x128xf32> -> vector<256x128xf32>
    %c0_164 = arith.constant 0 : index
    %c16_165 = arith.constant 16 : index
    %c0_166 = arith.constant 0 : index
    %132 = vector.load %arg5[%c0_164, %c16_165, %c0_166] : memref<18x48x128xf32, #tpu.memory_space<vmem>>, vector<16x16x128xf32>
    %133 = vector.shape_cast %132 : vector<16x16x128xf32> to vector<256x128xf32>
    %c2_167 = arith.constant 2 : index
    %c1_168 = arith.constant 1 : index
    %c0_169 = arith.constant 0 : index
    %c0_170 = arith.constant 0 : index
    %134 = vector.load %arg2[%c2_167, %c1_168, %c0_169, %c0_170] : memref<3x9x128x128xf32, #tpu.memory_space<vmem>>, vector<1x1x128x128xf32>
    %135 = vector.shape_cast %134 : vector<1x1x128x128xf32> to vector<128x128xf32>
    %cst_171 = arith.constant dense<0.000000e+00> : vector<256x128xf32>
    %136 = tpu.matmul %133, %135, %cst_171 {dimension_numbers = #tpu.dot_dimension_numbers<[1], [0], [0], [1], [0, 0, 1, 1], [], []>} : vector<256x128xf32>, vector<128x128xf32>, vector<256x128xf32> -> vector<256x128xf32>
    %137 = arith.addf %131, %136 : vector<256x128xf32>
    %c0_172 = arith.constant 0 : index
    %c17_173 = arith.constant 17 : index
    %c0_174 = arith.constant 0 : index
    %138 = vector.load %arg5[%c0_172, %c17_173, %c0_174] : memref<18x48x128xf32, #tpu.memory_space<vmem>>, vector<16x16x128xf32>
    %139 = vector.shape_cast %138 : vector<16x16x128xf32> to vector<256x128xf32>
    %c2_175 = arith.constant 2 : index
    %c2_176 = arith.constant 2 : index
    %c0_177 = arith.constant 0 : index
    %c0_178 = arith.constant 0 : index
    %140 = vector.load %arg2[%c2_175, %c2_176, %c0_177, %c0_178] : memref<3x9x128x128xf32, #tpu.memory_space<vmem>>, vector<1x1x128x128xf32>
    %141 = vector.shape_cast %140 : vector<1x1x128x128xf32> to vector<128x128xf32>
    %cst_179 = arith.constant dense<0.000000e+00> : vector<256x128xf32>
    %142 = tpu.matmul %139, %141, %cst_179 {dimension_numbers = #tpu.dot_dimension_numbers<[1], [0], [0], [1], [0, 0, 1, 1], [], []>} : vector<256x128xf32>, vector<128x128xf32>, vector<256x128xf32> -> vector<256x128xf32>
    %143 = arith.addf %137, %142 : vector<256x128xf32>
    %c1_180 = arith.constant 1 : index
    %c15_181 = arith.constant 15 : index
    %c0_182 = arith.constant 0 : index
    %144 = vector.load %arg5[%c1_180, %c15_181, %c0_182] : memref<18x48x128xf32, #tpu.memory_space<vmem>>, vector<16x16x128xf32>
    %145 = vector.shape_cast %144 : vector<16x16x128xf32> to vector<256x128xf32>
    %c2_183 = arith.constant 2 : index
    %c3_184 = arith.constant 3 : index
    %c0_185 = arith.constant 0 : index
    %c0_186 = arith.constant 0 : index
    %146 = vector.load %arg2[%c2_183, %c3_184, %c0_185, %c0_186] : memref<3x9x128x128xf32, #tpu.memory_space<vmem>>, vector<1x1x128x128xf32>
    %147 = vector.shape_cast %146 : vector<1x1x128x128xf32> to vector<128x128xf32>
    %cst_187 = arith.constant dense<0.000000e+00> : vector<256x128xf32>
    %148 = tpu.matmul %145, %147, %cst_187 {dimension_numbers = #tpu.dot_dimension_numbers<[1], [0], [0], [1], [0, 0, 1, 1], [], []>} : vector<256x128xf32>, vector<128x128xf32>, vector<256x128xf32> -> vector<256x128xf32>
    %149 = arith.addf %143, %148 : vector<256x128xf32>
    %c1_188 = arith.constant 1 : index
    %c16_189 = arith.constant 16 : index
    %c0_190 = arith.constant 0 : index
    %150 = vector.load %arg5[%c1_188, %c16_189, %c0_190] : memref<18x48x128xf32, #tpu.memory_space<vmem>>, vector<16x16x128xf32>
    %151 = vector.shape_cast %150 : vector<16x16x128xf32> to vector<256x128xf32>
    %c2_191 = arith.constant 2 : index
    %c4_192 = arith.constant 4 : index
    %c0_193 = arith.constant 0 : index
    %c0_194 = arith.constant 0 : index
    %152 = vector.load %arg2[%c2_191, %c4_192, %c0_193, %c0_194] : memref<3x9x128x128xf32, #tpu.memory_space<vmem>>, vector<1x1x128x128xf32>
    %153 = vector.shape_cast %152 : vector<1x1x128x128xf32> to vector<128x128xf32>
    %cst_195 = arith.constant dense<0.000000e+00> : vector<256x128xf32>
    %154 = tpu.matmul %151, %153, %cst_195 {dimension_numbers = #tpu.dot_dimension_numbers<[1], [0], [0], [1], [0, 0, 1, 1], [], []>} : vector<256x128xf32>, vector<128x128xf32>, vector<256x128xf32> -> vector<256x128xf32>
    %155 = arith.addf %149, %154 : vector<256x128xf32>
    %c1_196 = arith.constant 1 : index
    %c17_197 = arith.constant 17 : index
    %c0_198 = arith.constant 0 : index
    %156 = vector.load %arg5[%c1_196, %c17_197, %c0_198] : memref<18x48x128xf32, #tpu.memory_space<vmem>>, vector<16x16x128xf32>
    %157 = vector.shape_cast %156 : vector<16x16x128xf32> to vector<256x128xf32>
    %c2_199 = arith.constant 2 : index
    %c5_200 = arith.constant 5 : index
    %c0_201 = arith.constant 0 : index
    %c0_202 = arith.constant 0 : index
    %158 = vector.load %arg2[%c2_199, %c5_200, %c0_201, %c0_202] : memref<3x9x128x128xf32, #tpu.memory_space<vmem>>, vector<1x1x128x128xf32>
    %159 = vector.shape_cast %158 : vector<1x1x128x128xf32> to vector<128x128xf32>
    %cst_203 = arith.constant dense<0.000000e+00> : vector<256x128xf32>
    %160 = tpu.matmul %157, %159, %cst_203 {dimension_numbers = #tpu.dot_dimension_numbers<[1], [0], [0], [1], [0, 0, 1, 1], [], []>} : vector<256x128xf32>, vector<128x128xf32>, vector<256x128xf32> -> vector<256x128xf32>
    %161 = arith.addf %155, %160 : vector<256x128xf32>
    %c2_204 = arith.constant 2 : index
    %c15_205 = arith.constant 15 : index
    %c0_206 = arith.constant 0 : index
    %162 = vector.load %arg5[%c2_204, %c15_205, %c0_206] : memref<18x48x128xf32, #tpu.memory_space<vmem>>, vector<16x16x128xf32>
    %163 = vector.shape_cast %162 : vector<16x16x128xf32> to vector<256x128xf32>
    %c2_207 = arith.constant 2 : index
    %c6_208 = arith.constant 6 : index
    %c0_209 = arith.constant 0 : index
    %c0_210 = arith.constant 0 : index
    %164 = vector.load %arg2[%c2_207, %c6_208, %c0_209, %c0_210] : memref<3x9x128x128xf32, #tpu.memory_space<vmem>>, vector<1x1x128x128xf32>
    %165 = vector.shape_cast %164 : vector<1x1x128x128xf32> to vector<128x128xf32>
    %cst_211 = arith.constant dense<0.000000e+00> : vector<256x128xf32>
    %166 = tpu.matmul %163, %165, %cst_211 {dimension_numbers = #tpu.dot_dimension_numbers<[1], [0], [0], [1], [0, 0, 1, 1], [], []>} : vector<256x128xf32>, vector<128x128xf32>, vector<256x128xf32> -> vector<256x128xf32>
    %167 = arith.addf %161, %166 : vector<256x128xf32>
    %c2_212 = arith.constant 2 : index
    %c16_213 = arith.constant 16 : index
    %c0_214 = arith.constant 0 : index
    %168 = vector.load %arg5[%c2_212, %c16_213, %c0_214] : memref<18x48x128xf32, #tpu.memory_space<vmem>>, vector<16x16x128xf32>
    %169 = vector.shape_cast %168 : vector<16x16x128xf32> to vector<256x128xf32>
    %c2_215 = arith.constant 2 : index
    %c7_216 = arith.constant 7 : index
    %c0_217 = arith.constant 0 : index
    %c0_218 = arith.constant 0 : index
    %170 = vector.load %arg2[%c2_215, %c7_216, %c0_217, %c0_218] : memref<3x9x128x128xf32, #tpu.memory_space<vmem>>, vector<1x1x128x128xf32>
    %171 = vector.shape_cast %170 : vector<1x1x128x128xf32> to vector<128x128xf32>
    %cst_219 = arith.constant dense<0.000000e+00> : vector<256x128xf32>
    %172 = tpu.matmul %169, %171, %cst_219 {dimension_numbers = #tpu.dot_dimension_numbers<[1], [0], [0], [1], [0, 0, 1, 1], [], []>} : vector<256x128xf32>, vector<128x128xf32>, vector<256x128xf32> -> vector<256x128xf32>
    %173 = arith.addf %167, %172 : vector<256x128xf32>
    %c2_220 = arith.constant 2 : index
    %c17_221 = arith.constant 17 : index
    %c0_222 = arith.constant 0 : index
    %174 = vector.load %arg5[%c2_220, %c17_221, %c0_222] : memref<18x48x128xf32, #tpu.memory_space<vmem>>, vector<16x16x128xf32>
    %175 = vector.shape_cast %174 : vector<16x16x128xf32> to vector<256x128xf32>
    %c2_223 = arith.constant 2 : index
    %c8_224 = arith.constant 8 : index
    %c0_225 = arith.constant 0 : index
    %c0_226 = arith.constant 0 : index
    %176 = vector.load %arg2[%c2_223, %c8_224, %c0_225, %c0_226] : memref<3x9x128x128xf32, #tpu.memory_space<vmem>>, vector<1x1x128x128xf32>
    %177 = vector.shape_cast %176 : vector<1x1x128x128xf32> to vector<128x128xf32>
    %cst_227 = arith.constant dense<0.000000e+00> : vector<256x128xf32>
    %178 = tpu.matmul %175, %177, %cst_227 {dimension_numbers = #tpu.dot_dimension_numbers<[1], [0], [0], [1], [0, 0, 1, 1], [], []>} : vector<256x128xf32>, vector<128x128xf32>, vector<256x128xf32> -> vector<256x128xf32>
    %179 = arith.addf %173, %178 : vector<256x128xf32>
    %c2_228 = arith.constant 2 : index
    %c0_229 = arith.constant 0 : index
    %c0_230 = arith.constant 0 : index
    %180 = vector.load %arg3[%c2_228, %c0_229, %c0_230] : memref<3x1x128xf32, #tpu.memory_space<vmem>>, vector<1x1x128xf32>
    %181 = vector.shape_cast %180 : vector<1x1x128xf32> to vector<1x128xf32>
    %182 = vector.broadcast %181 : vector<1x128xf32> to vector<256x128xf32>
    %183 = arith.addf %179, %182 : vector<256x128xf32>
    %184 = vector.shape_cast %183 : vector<256x128xf32> to vector<16x16x128xf32>
    %c0_231 = arith.constant 0 : index
    %c0_232 = arith.constant 0 : index
    %c0_233 = arith.constant 0 : index
    %c0_234 = arith.constant 0 : index
    %185 = vector.load %arg4[%c0_231, %c0_232, %c0_233, %c0_234] : memref<1x16x16x128xf32, #tpu.memory_space<vmem>>, vector<1x16x16x128xf32>
    %186 = vector.shape_cast %185 : vector<1x16x16x128xf32> to vector<16x16x128xf32>
    %187 = vector.shape_cast %184 : vector<16x16x128xf32> to vector<1x16x16x128xf32>
    tpu.vector_store %arg4[%c0_231, %c0_232, %c0_233, %c0_234], %187 {strides = array<i32>} : memref<1x16x16x128xf32, #tpu.memory_space<vmem>>, vector<1x16x16x128xf32>,
    return
  }
  func.func @transform_0(%arg0: i32) -> (i32, i32, i32, i32) {
    %c0_i32 = arith.constant 0 : i32
    %c0_i32_0 = arith.constant 0 : i32
    %c0_i32_1 = arith.constant 0 : i32
    %c0_i32_2 = arith.constant 0 : i32
    return %arg0, %c0_i32, %c0_i32_0, %c0_i32_1 : i32, i32, i32, i32
  }
  func.func @transform_1(%arg0: i32) -> (i32, i32, i32, i32) {
    %c0_i32 = arith.constant 0 : i32
    %c0_i32_0 = arith.constant 0 : i32
    %c0_i32_1 = arith.constant 0 : i32
    %c0_i32_2 = arith.constant 0 : i32
    %c0_i32_3 = arith.constant 0 : i32
    return %c0_i32, %c0_i32_0, %c0_i32_1, %c0_i32_2 : i32, i32, i32, i32
  }
  func.func @transform_2(%arg0: i32) -> (i32, i32, i32) {
    %c0_i32 = arith.constant 0 : i32
    %c0_i32_0 = arith.constant 0 : i32
    %c0_i32_1 = arith.constant 0 : i32
    %c0_i32_2 = arith.constant 0 : i32
    return %c0_i32, %c0_i32_0, %c0_i32_1 : i32, i32, i32
  }
  func.func @transform_3(%arg0: i32) -> (i32, i32, i32, i32) {
    %c0_i32 = arith.constant 0 : i32
    %c0_i32_0 = arith.constant 0 : i32
    %c0_i32_1 = arith.constant 0 : i32
    %c0_i32_2 = arith.constant 0 : i32
    return %arg0, %c0_i32, %c0_i32_0, %c0_i32_1 : i32, i32, i32, i32
  }
}

</mosaic_0001>

<llo_original>
// kernel: pred_forward_pallas.1
$region0: #{pred_forward_pallas.1}
  #allocation0 [shape = 'u32[]', space=smem, size = 0x4, offset = 0x4, fixed_abs, tag = 'smem constant byte address 0x4 - core index']
  #allocation1 [shape = 'u32[144,128]{1,0:T(1,128)}', space=vmem, size = 0x12000, scoped, tag = 'internal scratch']
  #allocation2 [shape = 'f32[18,48,128]{2,1,0:T(8,128)}', space=vmem, size = 0x6c000, scoped, tag = 'scratch operand']
  %s0 = inlined_call_operand.vmem [shape: f32[2,16,16,8], index: 0, kind: input, shape index: {}]
  %s1 = inlined_call_operand.hbm [shape: f32[3,9,128,128], index: 1, kind: input, shape index: {}]
  %s2 = inlined_call_operand.hbm [shape: f32[3,1,128], index: 2, kind: input, shape index: {}]
  %s3 = inlined_call_operand.vmem [shape: f32[2,16,16,128], index: 3, kind: output, shape index: {}]
  %s4 = sld [smem:[#allocation0]]
  $region53: #{pred_forward_pallas.1} parent=0
    _
  %s6 = ssub.s32 1, %s4
  %s7 = scalar_select 0, %s6, %s4
  $region1: #{pred_forward_pallas.1} parent=0
    #allocation3 [shape = 'u8[1769472]{0}', space=vmem, size = 0x1b0000, scoped, tag = 'input window, operand 1, single buffered']
    #allocation4 [shape = 's32[2]{0}', space=sflag, size = 0x8, scoped, tag = 'scoped memory for pred_forward_pallas.1']
    #allocation5 [shape = 'u8[1536]{0}', space=vmem, size = 0x800, scoped, tag = 'input window, operand 2, single buffered']
    #allocation6 [shape = 's32[1]{0}', space=sflag, size = 0x4, scoped, tag = 'scoped memory for pred_forward_pallas.1']
    %8 = vsyncpa [#allocation4], 0
    %9 = vsyncpa [#allocation6], 0
    loop: start=0, step=1, limit=4
    $region2: #{pred_forward_pallas.1} parent=1 // loop_pre_header
      _
    $region3: #{pred_forward_pallas.1} parent=1 // loop_header
      %s11 = sphi 0, %s15
      %p12 = scmp.ge.s32.totalorder %s11, 4
      %s21 = sphi 0, %s23
      %s24 = sphi 0, %s21
      %s25 = sphi 0, %s24
      %s41 = sphi 0, %s25
      %s45 = sphi 0, %s45
      %s47 = sphi 0, %s45
      %s48 = sphi 0, %s47
      %s62 = sphi 0, %s48
      %s66 = sphi 0, %s66
      %s68 = sphi 0, %s66
      %s69 = sphi 0, %s68
      %s83 = sphi 0, %s69
      %s89 = sphi 0, %s91
      %s92 = sphi 0, %s89
      %s93 = sphi 0, %s92
      %s109 = sphi 0, %s93
    $region4: #{pred_forward_pallas.1} parent=1 // loop_header_branch
      %14 = sbr.rel (%p12) target = $region8
    $region5: #{pred_forward_pallas.1} parent=1 // loop_body
      %s16 = ssub.s32 %s11, 1
      %s17 = ssub.s32 %s11, 2
      %s18 = sadd.s32 %s11, 1
      %s19 = ssub.s32 %s11, %s18
      %p20 = scmp.eq.s32.totalorder %s19, 0
      %s22 = sadd.s32 %s21, 1
      %s23 = scalar_select %p20, %s21, %s22
      %p26 = pneg %p20
      %p27 = scmp.eq.s32.totalorder %s11, 1
      %p28 = por %p26, %p27
      %p29 = scmp.ne.s32.totalorder %s21, %s24
      %p30 = scmp.eq.s32.totalorder %s11, 0
      %p31 = por %p29, %p30
      %p32 = scmp.ne.s32.totalorder %s21, %s24
      %p33 = scmp.eq.s32.totalorder %s16, 1
      %p34 = por %p32, %p33
      %p35 = scmp.ne.s32.totalorder %s24, %s25
      %p36 = scmp.eq.s32.totalorder %s16, 0
      %p37 = por %p35, %p36
      %p38 = scmp.ne.s32.totalorder %s24, %s25
      %p39 = scmp.eq.s32.totalorder %s17, 1
      %p40 = por %p38, %p39
      %p42 = scmp.ne.s32.totalorder %s25, %s41
      %p43 = scmp.eq.s32.totalorder %s17, 0
      %p44 = por %p42, %p43
      %s46 = sadd.s32 %s45, 1
      %p49 = scmp.eq.s32.totalorder %s11, 1
      %p50 = scmp.ne.s32.totalorder %s45, %s47
      %p51 = scmp.eq.s32.totalorder %s11, 0
      %p52 = por %p50, %p51
      %p53 = scmp.ne.s32.totalorder %s45, %s47
      %p54 = scmp.eq.s32.totalorder %s16, 1
      %p55 = por %p53, %p54
      %p56 = scmp.ne.s32.totalorder %s47, %s48
      %p57 = scmp.eq.s32.totalorder %s16, 0
      %p58 = por %p56, %p57
      %p59 = scmp.ne.s32.totalorder %s47, %s48
      %p60 = scmp.eq.s32.totalorder %s17, 1
      %p61 = por %p59, %p60
      %p63 = scmp.ne.s32.totalorder %s48, %s62
      %p64 = scmp.eq.s32.totalorder %s17, 0
      %p65 = por %p63, %p64
      %s67 = sadd.s32 %s66, 1
      %p70 = scmp.eq.s32.totalorder %s11, 1
      %p71 = scmp.ne.s32.totalorder %s66, %s68
      %p72 = scmp.eq.s32.totalorder %s11, 0
      %p73 = por %p71, %p72
      %p74 = scmp.ne.s32.totalorder %s66, %s68
      %p75 = scmp.eq.s32.totalorder %s16, 1
      %p76 = por %p74, %p75
      %p77 = scmp.ne.s32.totalorder %s68, %s69
      %p78 = scmp.eq.s32.totalorder %s16, 0
      %p79 = por %p77, %p78
      %p80 = scmp.ne.s32.totalorder %s68, %s69
      %p81 = scmp.eq.s32.totalorder %s17, 1
      %p82 = por %p80, %p81
      %p84 = scmp.ne.s32.totalorder %s69, %s83
      %p85 = scmp.eq.s32.totalorder %s17, 0
      %p86 = por %p84, %p85
      %s87 = ssub.s32 %s11, %s18
      %p88 = scmp.eq.s32.totalorder %s87, 0
      %s90 = sadd.s32 %s89, 1
      %s91 = scalar_select %p88, %s89, %s90
      %p94 = pneg %p88
      %p95 = scmp.eq.s32.totalorder %s11, 1
      %p96 = por %p94, %p95
      %p97 = scmp.ne.s32.totalorder %s89, %s92
      %p98 = scmp.eq.s32.totalorder %s11, 0
      %p99 = por %p97, %p98
      %p100 = scmp.ne.s32.totalorder %s89, %s92
      %p101 = scmp.eq.s32.totalorder %s16, 1
      %p102 = por %p100, %p101
      %p103 = scmp.ne.s32.totalorder %s92, %s93
      %p104 = scmp.eq.s32.totalorder %s16, 0
      %p105 = por %p103, %p104
      %p106 = scmp.ne.s32.totalorder %s92, %s93
      %p107 = scmp.eq.s32.totalorder %s17, 1
      %p108 = por %p106, %p107
      %p110 = scmp.ne.s32.totalorder %s93, %s109
      %p111 = scmp.eq.s32.totalorder %s17, 0
      %p112 = por %p110, %p111
      %p113 = scmp.le.s32.totalorder 1, %s11
      %p114 = scmp.lt.s32.totalorder %s11, 3
      %p115 = pnand %p113, %p114
      %p116 = pneg %p115
      // Predicated region
      $region9: #{pred_forward_pallas.1} parent=5 // pred_check
        _
      $region10: #{pred_forward_pallas.1} parent=5 // pred_check_branch
        %118 = sbr.rel (%p115) target = $region12
      $region11: #{pred_forward_pallas.1} parent=5 // pred_region
        %s119 = ssub.s32 %s11, 1
        // Predicated region
        $region13: #{pred_forward_pallas.1} parent=11 // pred_check
          %p120 = pneg %p58
        $region14: #{pred_forward_pallas.1} parent=11 // pred_check_branch
          %122 = sbr.rel (%p120) target = $region16
        $region15: #{pred_forward_pallas.1} parent=11 // pred_region
          %s124 = ssub.s32 55296, 55296
          %125 = vsyncadd [#allocation4], %s124
          %s126 = sshll.u32 [#allocation3], 4
          %s127 = int_to_ptr.vmem [resolvable:$true] %s126
          %132 = dma.hbm_to_vmem [thread:$0]  %s1, 55296, %s127, [#allocation4], 128, 128, 8
        $region16: #{pred_forward_pallas.1} parent=11 // pred_fallthru
          _
        // Predicated region
        $region17: #{pred_forward_pallas.1} parent=11 // pred_check
          %p133 = pneg %p79
        $region18: #{pred_forward_pallas.1} parent=11 // pred_check_branch
          %135 = sbr.rel (%p133) target = $region20
        $region19: #{pred_forward_pallas.1} parent=11 // pred_region
          %s137 = ssub.s32 48, 48
          %138 = vsyncadd [#allocation6], %s137
          %s139 = sshll.u32 [#allocation5], 4
          %s140 = int_to_ptr.vmem [resolvable:$true] %s139
          %145 = dma.hbm_to_vmem [thread:$0]  %s2, 48, %s140, [#allocation6], 16, 16, 1
        $region20: #{pred_forward_pallas.1} parent=11 // pred_fallthru
          _
      $region12: #{pred_forward_pallas.1} parent=5 // pred_fallthru
        _
      %p146 = scmp.lt.s32.totalorder %s11, 2
      // Predicated region
      $region21: #{pred_forward_pallas.1} parent=5 // pred_check
        %p147 = pneg %p146
      $region22: #{pred_forward_pallas.1} parent=5 // pred_check_branch
        %149 = sbr.rel (%p147) target = $region24
      $region23: #{pred_forward_pallas.1} parent=5 // pred_region
        // Predicated region
        $region25: #{pred_forward_pallas.1} parent=23 // pred_check
          %p150 = pneg %p31
        $region26: #{pred_forward_pallas.1} parent=23 // pred_check_branch
          %152 = sbr.rel (%p150) target = $region28
        $region27: #{pred_forward_pallas.1} parent=23 // pred_region
          %p153 = scmp.lt.s32.totalorder %s11, 1
          %s154 = scalar_select %p153, %s11, 1
          %s155 = smul.addr %s154, 32
          %s156 = smul.addr %s155, 8
          %s157 = scalar_lea.vmem %s0, %s156
        $region28: #{pred_forward_pallas.1} parent=23 // pred_fallthru
          _
      $region24: #{pred_forward_pallas.1} parent=5 // pred_fallthru
        _
      %p158 = scmp.le.s32.totalorder 1, %s11
      %p159 = scmp.lt.s32.totalorder %s11, 3
      %p160 = pnand %p158, %p159
      %p161 = pneg %p160
      // Predicated region
      $region29: #{pred_forward_pallas.1} parent=5 // pred_check
        _
      $region30: #{pred_forward_pallas.1} parent=5 // pred_check_branch
        %163 = sbr.rel (%p160) target = $region32
      $region31: #{pred_forward_pallas.1} parent=5 // pred_region
        %s164 = ssub.s32 %s11, 1
        // Predicated region
        $region33: #{pred_forward_pallas.1} parent=31 // pred_check
          %p165 = pneg %p58
        $region34: #{pred_forward_pallas.1} parent=31 // pred_check_branch
          %167 = sbr.rel (%p165) target = $region36
        $region35: #{pred_forward_pallas.1} parent=31 // pred_region
          %168 = dma.done [#allocation4], 55296
        $region36: #{pred_forward_pallas.1} parent=31 // pred_fallthru
          _
        // Predicated region
        $region37: #{pred_forward_pallas.1} parent=31 // pred_check
          %p169 = pneg %p79
        $region38: #{pred_forward_pallas.1} parent=31 // pred_check_branch
          %171 = sbr.rel (%p169) target = $region40
        $region39: #{pred_forward_pallas.1} parent=31 // pred_region
          %172 = dma.done [#allocation6], 48
        $region40: #{pred_forward_pallas.1} parent=31 // pred_fallthru
          _
        %p173 = scmp.lt.s32.totalorder %s16, 1
        %s174 = scalar_select %p173, %s16, 1
        %s175 = smul.addr %s174, 32
        %s176 = smul.addr %s175, 8
        %s177 = scalar_lea.vmem %s0, %s176
        %p178 = pneg %p37
        %p179 = pneg %p34
        %p180 = pneg %p58
        %p181 = pneg %p55
        %p182 = pneg %p79
        %p183 = pneg %p76
        %p184 = pneg %p105
        %p185 = pneg %p102
        %p186 = scmp.lt.s32.totalorder %s16, 1
        %s187 = scalar_select %p186, %s16, 1
        %s188 = smul.addr %s187, 32
        %s189 = smul.addr %s188, 8
        %s190 = scalar_lea.vmem %s3, %s189
        %p191 = scmp.lt.s32.totalorder %s16, 1
        %s192 = scalar_select %p191, %s16, 1
        %s193 = smul.addr %s192, 32
        %s194 = smul.addr %s193, 8
        %s195 = scalar_lea.vmem %s0, %s194
        %p196 = scmp.lt.s32.totalorder %s16, 1
        %s197 = scalar_select %p196, %s16, 1
        %s198 = smul.addr %s197, 32
        %s199 = smul.addr %s198, 8
        %s200 = scalar_lea.vmem %s3, %s199
        %201 = vst [vmem:[#allocation2 + $0xf] sm:$0xff] 0.0
        %202 = vst [vmem:[#allocation2 + $0x17] sm:$0xff] 0.0
        %203 = vst [vmem:[#allocation2 + $0x1f] sm:$0x3] 0.0
        %204 = vst [vmem:[#allocation2 + $0x3f] sm:$0xff] 0.0
        %205 = vst [vmem:[#allocation2 + $0x47] sm:$0xff] 0.0
        %206 = vst [vmem:[#allocation2 + $0x4f] sm:$0x3] 0.0
        %207 = vst [vmem:[#allocation2 + $0x6f] sm:$0xff] 0.0
        %208 = vst [vmem:[#allocation2 + $0x77] sm:$0xff] 0.0
        %209 = vst [vmem:[#allocation2 + $0x7f] sm:$0x3] 0.0
        %210 = vst [vmem:[#allocation2 + $0x9f] sm:$0xff] 0.0
        %211 = vst [vmem:[#allocation2 + $0xa7] sm:$0xff] 0.0
        %212 = vst [vmem:[#allocation2 + $0xaf] sm:$0x3] 0.0
        %213 = vst [vmem:[#allocation2 + $0xcf] sm:$0xff] 0.0
        %214 = vst [vmem:[#allocation2 + $0xd7] sm:$0xff] 0.0
        %215 = vst [vmem:[#allocation2 + $0xdf] sm:$0x3] 0.0
        %216 = vst [vmem:[#allocation2 + $0xff] sm:$0xff] 0.0
        %217 = vst [vmem:[#allocation2 + $0x107] sm:$0xff] 0.0
        %218 = vst [vmem:[#allocation2 + $0x10f] sm:$0x3] 0.0
        %219 = vst [vmem:[#allocation2 + $0x12f] sm:$0xff] 0.0
        %220 = vst [vmem:[#allocation2 + $0x137] sm:$0xff] 0.0
        %221 = vst [vmem:[#allocation2 + $0x13f] sm:$0x3] 0.0
        %222 = vst [vmem:[#allocation2 + $0x15f] sm:$0xff] 0.0
        %223 = vst [vmem:[#allocation2 + $0x167] sm:$0xff] 0.0
        %224 = vst [vmem:[#allocation2 + $0x16f] sm:$0x3] 0.0
        %225 = vst [vmem:[#allocation2 + $0x18f] sm:$0xff] 0.0
        %226 = vst [vmem:[#allocation2 + $0x197] sm:$0xff] 0.0
        %227 = vst [vmem:[#allocation2 + $0x19f] sm:$0x3] 0.0
        %228 = vst [vmem:[#allocation2 + $0x1bf] sm:$0xff] 0.0
        %229 = vst [vmem:[#allocation2 + $0x1c7] sm:$0xff] 0.0
        %230 = vst [vmem:[#allocation2 + $0x1cf] sm:$0x3] 0.0
        %231 = vst [vmem:[#allocation2 + $0x1ef] sm:$0xff] 0.0
        %232 = vst [vmem:[#allocation2 + $0x1f7] sm:$0xff] 0.0
        %233 = vst [vmem:[#allocation2 + $0x1ff] sm:$0x3] 0.0
        %234 = vst [vmem:[#allocation2 + $0x21f] sm:$0xff] 0.0
        %235 = vst [vmem:[#allocation2 + $0x227] sm:$0xff] 0.0
        %236 = vst [vmem:[#allocation2 + $0x22f] sm:$0x3] 0.0
        %237 = vst [vmem:[#allocation2 + $0x24f] sm:$0xff] 0.0
        %238 = vst [vmem:[#allocation2 + $0x257] sm:$0xff] 0.0
        %239 = vst [vmem:[#allocation2 + $0x25f] sm:$0x3] 0.0
        %240 = vst [vmem:[#allocation2 + $0x27f] sm:$0xff] 0.0
        %241 = vst [vmem:[#allocation2 + $0x287] sm:$0xff] 0.0
        %242 = vst [vmem:[#allocation2 + $0x28f] sm:$0x3] 0.0
        %243 = vst [vmem:[#allocation2 + $0x2af] sm:$0xff] 0.0
        %244 = vst [vmem:[#allocation2 + $0x2b7] sm:$0xff] 0.0
        %245 = vst [vmem:[#allocation2 + $0x2bf] sm:$0x3] 0.0
        %246 = vst [vmem:[#allocation2 + $0x2df] sm:$0xff] 0.0
        %247 = vst [vmem:[#allocation2 + $0x2e7] sm:$0xff] 0.0
        %248 = vst [vmem:[#allocation2 + $0x2ef] sm:$0x3] 0.0
        %249 = vst [vmem:[#allocation2 + $0x30f] sm:$0xff] 0.0
        %250 = vst [vmem:[#allocation2 + $0x317] sm:$0xff] 0.0
        %251 = vst [vmem:[#allocation2 + $0x31f] sm:$0x3] 0.0
        %252 = vst [vmem:[#allocation2 + $0x33f] sm:$0xff] 0.0
        %253 = vst [vmem:[#allocation2 + $0x347] sm:$0xff] 0.0
        %254 = vst [vmem:[#allocation2 + $0x34f] sm:$0x3] 0.0
        %v255 = vld [vmem:[%s195] sm:$0xff]
        %v256 = vld [vmem:[%s195 + $0x8] sm:$0xff]
        %v257 = vld [vmem:[%s195 + $0x10] sm:$0xff]
        %v258 = vld [vmem:[%s195 + $0x18] sm:$0xff]
        %v259 = vld [vmem:[%s195 + $0x20] sm:$0xff]
        %v260 = vld [vmem:[%s195 + $0x28] sm:$0xff]
        %v261 = vld [vmem:[%s195 + $0x30] sm:$0xff]
        %v262 = vld [vmem:[%s195 + $0x38] sm:$0xff]
        %v263 = vld [vmem:[%s195 + $0x40] sm:$0xff]
        %v264 = vld [vmem:[%s195 + $0x48] sm:$0xff]
        %v265 = vld [vmem:[%s195 + $0x50] sm:$0xff]
        %v266 = vld [vmem:[%s195 + $0x58] sm:$0xff]
        %v267 = vld [vmem:[%s195 + $0x60] sm:$0xff]
        %v268 = vld [vmem:[%s195 + $0x68] sm:$0xff]
        %v269 = vld [vmem:[%s195 + $0x70] sm:$0xff]
        %v270 = vld [vmem:[%s195 + $0x78] sm:$0xff]
        %v271 = vld [vmem:[%s195 + $0x80] sm:$0xff]
        %v272 = vld [vmem:[%s195 + $0x88] sm:$0xff]
        %v273 = vld [vmem:[%s195 + $0x90] sm:$0xff]
        %v274 = vld [vmem:[%s195 + $0x98] sm:$0xff]
        %v275 = vld [vmem:[%s195 + $0xa0] sm:$0xff]
        %v276 = vld [vmem:[%s195 + $0xa8] sm:$0xff]
        %v277 = vld [vmem:[%s195 + $0xb0] sm:$0xff]
        %v278 = vld [vmem:[%s195 + $0xb8] sm:$0xff]
        %v279 = vld [vmem:[%s195 + $0xc0] sm:$0xff]
        %v280 = vld [vmem:[%s195 + $0xc8] sm:$0xff]
        %v281 = vld [vmem:[%s195 + $0xd0] sm:$0xff]
        %v282 = vld [vmem:[%s195 + $0xd8] sm:$0xff]
        %v283 = vld [vmem:[%s195 + $0xe0] sm:$0xff]
        %v284 = vld [vmem:[%s195 + $0xe8] sm:$0xff]
        %v285 = vld [vmem:[%s195 + $0xf0] sm:$0xff]
        %v286 = vld [vmem:[%s195 + $0xf8] sm:$0xff]
        %s287 = scalar_lea.vmem [#allocation2], 48
        %vm288 = vcmask 64512
        %289 = vst.msk [vmem:[%s287 + $0x10] sm:$0xff] %vm288, %v255
        %290 = vst.msk [vmem:[%s287 + $0x18] sm:$0xff] %vm288, %v256
        %291 = vst.msk [vmem:[%s287 + $0x40] sm:$0xff] %vm288, %v257
        %292 = vst.msk [vmem:[%s287 + $0x48] sm:$0xff] %vm288, %v258
        %293 = vst.msk [vmem:[%s287 + $0x70] sm:$0xff] %vm288, %v259
        %294 = vst.msk [vmem:[%s287 + $0x78] sm:$0xff] %vm288, %v260
        %295 = vst.msk [vmem:[%s287 + $0xa0] sm:$0xff] %vm288, %v261
        %296 = vst.msk [vmem:[%s287 + $0xa8] sm:$0xff] %vm288, %v262
        %297 = vst.msk [vmem:[%s287 + $0xd0] sm:$0xff] %vm288, %v263
        %298 = vst.msk [vmem:[%s287 + $0xd8] sm:$0xff] %vm288, %v264
        %299 = vst.msk [vmem:[%s287 + $0x100] sm:$0xff] %vm288, %v265
        %300 = vst.msk [vmem:[%s287 + $0x108] sm:$0xff] %vm288, %v266
        %301 = vst.msk [vmem:[%s287 + $0x130] sm:$0xff] %vm288, %v267
        %302 = vst.msk [vmem:[%s287 + $0x138] sm:$0xff] %vm288, %v268
        %303 = vst.msk [vmem:[%s287 + $0x160] sm:$0xff] %vm288, %v269
        %304 = vst.msk [vmem:[%s287 + $0x168] sm:$0xff] %vm288, %v270
        %305 = vst.msk [vmem:[%s287 + $0x190] sm:$0xff] %vm288, %v271
        %306 = vst.msk [vmem:[%s287 + $0x198] sm:$0xff] %vm288, %v272
        %307 = vst.msk [vmem:[%s287 + $0x1c0] sm:$0xff] %vm288, %v273
        %308 = vst.msk [vmem:[%s287 + $0x1c8] sm:$0xff] %vm288, %v274
        %309 = vst.msk [vmem:[%s287 + $0x1f0] sm:$0xff] %vm288, %v275
        %310 = vst.msk [vmem:[%s287 + $0x1f8] sm:$0xff] %vm288, %v276
        %311 = vst.msk [vmem:[%s287 + $0x220] sm:$0xff] %vm288, %v277
        %312 = vst.msk [vmem:[%s287 + $0x228] sm:$0xff] %vm288, %v278
        %313 = vst.msk [vmem:[%s287 + $0x250] sm:$0xff] %vm288, %v279
        %314 = vst.msk [vmem:[%s287 + $0x258] sm:$0xff] %vm288, %v280
        %315 = vst.msk [vmem:[%s287 + $0x280] sm:$0xff] %vm288, %v281
        %316 = vst.msk [vmem:[%s287 + $0x288] sm:$0xff] %vm288, %v282
        %317 = vst.msk [vmem:[%s287 + $0x2b0] sm:$0xff] %vm288, %v283
        %318 = vst.msk [vmem:[%s287 + $0x2b8] sm:$0xff] %vm288, %v284
        %319 = vst.msk [vmem:[%s287 + $0x2e0] sm:$0xff] %vm288, %v285
        %320 = vst.msk [vmem:[%s287 + $0x2e8] sm:$0xff] %vm288, %v286
        %v321 = vld [vmem:[#allocation2 + $0xf] sm:$0xff]
        %v322 = vld [vmem:[#allocation2 + $0x17] sm:$0xff]
        %v323 = vld [vmem:[#allocation2 + $0x3f] sm:$0xff]
        %v324 = vld [vmem:[#allocation2 + $0x47] sm:$0xff]
        %v325 = vld [vmem:[#allocation2 + $0x6f] sm:$0xff]
        %v326 = vld [vmem:[#allocation2 + $0x77] sm:$0xff]
        %v327 = vld [vmem:[#allocation2 + $0x9f] sm:$0xff]
        %v328 = vld [vmem:[#allocation2 + $0xa7] sm:$0xff]
        %v329 = vld [vmem:[#allocation2 + $0xcf] sm:$0xff]
        %v330 = vld [vmem:[#allocation2 + $0xd7] sm:$0xff]
        %v331 = vld [vmem:[#allocation2 + $0xff] sm:$0xff]
        %v332 = vld [vmem:[#allocation2 + $0x107] sm:$0xff]
        %v333 = vld [vmem:[#allocation2 + $0x12f] sm:$0xff]
        %v334 = vld [vmem:[#allocation2 + $0x137] sm:$0xff]
        %v335 = vld [vmem:[#allocation2 + $0x15f] sm:$0xff]
        %v336 = vld [vmem:[#allocation2 + $0x167] sm:$0xff]
        %v337 = vld [vmem:[#allocation2 + $0x18f] sm:$0xff]
        %v338 = vld [vmem:[#allocation2 + $0x197] sm:$0xff]
        %v339 = vld [vmem:[#allocation2 + $0x1bf] sm:$0xff]
        %v340 = vld [vmem:[#allocation2 + $0x1c7] sm:$0xff]
        %v341 = vld [vmem:[#allocation2 + $0x1ef] sm:$0xff]
        %v342 = vld [vmem:[#allocation2 + $0x1f7] sm:$0xff]
        %v343 = vld [vmem:[#allocation2 + $0x21f] sm:$0xff]
        %v344 = vld [vmem:[#allocation2 + $0x227] sm:$0xff]
        %v345 = vld [vmem:[#allocation2 + $0x24f] sm:$0xff]
        %v346 = vld [vmem:[#allocation2 + $0x257] sm:$0xff]
        %v347 = vld [vmem:[#allocation2 + $0x27f] sm:$0xff]
        %v348 = vld [vmem:[#allocation2 + $0x287] sm:$0xff]
        %v349 = vld [vmem:[#allocation2 + $0x2af] sm:$0xff]
        %v350 = vld [vmem:[#allocation2 + $0x2b7] sm:$0xff]
        %v351 = vld [vmem:[#allocation2 + $0x2df] sm:$0xff]
        %v352 = vld [vmem:[#allocation2 + $0x2e7] sm:$0xff]
        %v353 = vld [vmem:[#allocation3] sm:$0xff]
        %v354 = vld [vmem:[#allocation3 + $0x8] sm:$0xff]
        %v355 = vld [vmem:[#allocation3 + $0x10] sm:$0xff]
        %v356 = vld [vmem:[#allocation3 + $0x18] sm:$0xff]
        %v357 = vld [vmem:[#allocation3 + $0x20] sm:$0xff]
        %v358 = vld [vmem:[#allocation3 + $0x28] sm:$0xff]
        %v359 = vld [vmem:[#allocation3 + $0x30] sm:$0xff]
        %v360 = vld [vmem:[#allocation3 + $0x38] sm:$0xff]
        %v361 = vld [vmem:[#allocation3 + $0x40] sm:$0xff]
        %v362 = vld [vmem:[#allocation3 + $0x48] sm:$0xff]
        %v363 = vld [vmem:[#allocation3 + $0x50] sm:$0xff]
        %v364 = vld [vmem:[#allocation3 + $0x58] sm:$0xff]
        %v365 = vld [vmem:[#allocation3 + $0x60] sm:$0xff]
        %v366 = vld [vmem:[#allocation3 + $0x68] sm:$0xff]
        %v367 = vld [vmem:[#allocation3 + $0x70] sm:$0xff]
        %v368 = vld [vmem:[#allocation3 + $0x78] sm:$0xff]
        %v369 = vld [vmem:[#allocation2 + $0x10] sm:$0xff]
        %v370 = vld [vmem:[#allocation2 + $0x18] sm:$0xff]
        %v371 = vld [vmem:[#allocation2 + $0x40] sm:$0xff]
        %v372 = vld [vmem:[#allocation2 + $0x48] sm:$0xff]
        %v373 = vld [vmem:[#allocation2 + $0x70] sm:$0xff]
        %v374 = vld [vmem:[#allocation2 + $0x78] sm:$0xff]
        %v375 = vld [vmem:[#allocation2 + $0xa0] sm:$0xff]
        %v376 = vld [vmem:[#allocation2 + $0xa8] sm:$0xff]
        %v377 = vld [vmem:[#allocation2 + $0xd0] sm:$0xff]
        %v378 = vld [vmem:[#allocation2 + $0xd8] sm:$0xff]
        %v379 = vld [vmem:[#allocation2 + $0x100] sm:$0xff]
        %v380 = vld [vmem:[#allocation2 + $0x108] sm:$0xff]
        %v381 = vld [vmem:[#allocation2 + $0x130] sm:$0xff]
        %v382 = vld [vmem:[#allocation2 + $0x138] sm:$0xff]
        %v383 = vld [vmem:[#allocation2 + $0x160] sm:$0xff]
        %v384 = vld [vmem:[#allocation2 + $0x168] sm:$0xff]
        %v385 = vld [vmem:[#allocation2 + $0x190] sm:$0xff]
        %v386 = vld [vmem:[#allocation2 + $0x198] sm:$0xff]
        %v387 = vld [vmem:[#allocation2 + $0x1c0] sm:$0xff]
        %v388 = vld [vmem:[#allocation2 + $0x1c8] sm:$0xff]
        %v389 = vld [vmem:[#allocation2 + $0x1f0] sm:$0xff]
        %v390 = vld [vmem:[#allocation2 + $0x1f8] sm:$0xff]
        %v391 = vld [vmem:[#allocation2 + $0x220] sm:$0xff]
        %v392 = vld [vmem:[#allocation2 + $0x228] sm:$0xff]
        %v393 = vld [vmem:[#allocation2 + $0x250] sm:$0xff]
        %v394 = vld [vmem:[#allocation2 + $0x258] sm:$0xff]
        %v395 = vld [vmem:[#allocation2 + $0x280] sm:$0xff]
        %v396 = vld [vmem:[#allocation2 + $0x288] sm:$0xff]
        %v397 = vld [vmem:[#allocation2 + $0x2b0] sm:$0xff]
        %v398 = vld [vmem:[#allocation2 + $0x2b8] sm:$0xff]
        %v399 = vld [vmem:[#allocation2 + $0x2e0] sm:$0xff]
        %v400 = vld [vmem:[#allocation2 + $0x2e8] sm:$0xff]
        %s401 = scalar_lea.vmem [#allocation3], 128
        %v402 = vld [vmem:[%s401] sm:$0xff]
        %v403 = vld [vmem:[%s401 + $0x8] sm:$0xff]
        %v404 = vld [vmem:[%s401 + $0x10] sm:$0xff]
        %v405 = vld [vmem:[%s401 + $0x18] sm:$0xff]
        %v406 = vld [vmem:[%s401 + $0x20] sm:$0xff]
        %v407 = vld [vmem:[%s401 + $0x28] sm:$0xff]
        %v408 = vld [vmem:[%s401 + $0x30] sm:$0xff]
        %v409 = vld [vmem:[%s401 + $0x38] sm:$0xff]
        %v410 = vld [vmem:[%s401 + $0x40] sm:$0xff]
        %v411 = vld [vmem:[%s401 + $0x48] sm:$0xff]
        %v412 = vld [vmem:[%s401 + $0x50] sm:$0xff]
        %v413 = vld [vmem:[%s401 + $0x58] sm:$0xff]
        %v414 = vld [vmem:[%s401 + $0x60] sm:$0xff]
        %v415 = vld [vmem:[%s401 + $0x68] sm:$0xff]
        %v416 = vld [vmem:[%s401 + $0x70] sm:$0xff]
        %v417 = vld [vmem:[%s401 + $0x78] sm:$0xff]
        %418 = vmatprep.subr.mxu0 0.0
        %419 = vmatpush1.msra.mxu0 %v402
        %420 = vmatprep.subr.mxu0 0.0
        %421 = vmatpush1.msra.mxu0 %v403
        %422 = vmatprep.subr.mxu0 0.0
        %423 = vmatpush1.msra.mxu0 %v404
        %424 = vmatprep.subr.mxu0 0.0
        %425 = vmatpush1.msra.mxu0 %v405
        %426 = vmatprep.subr.mxu0 0.0
        %427 = vmatpush1.msra.mxu0 %v406
        %428 = vmatprep.subr.mxu0 0.0
        %429 = vmatpush1.msra.mxu0 %v407
        %430 = vmatprep.subr.mxu0 0.0
        %431 = vmatpush1.msra.mxu0 %v408
        %432 = vmatprep.subr.mxu0 0.0
        %433 = vmatpush1.msra.mxu0 %v409
        %434 = vmatprep.subr.mxu0 0.0
        %435 = vmatpush1.msra.mxu0 %v410
        %436 = vmatprep.subr.mxu0 0.0
        %437 = vmatpush1.msra.mxu0 %v411
        %438 = vmatprep.subr.mxu0 0.0
        %439 = vmatpush1.msra.mxu0 %v412
        %440 = vmatprep.subr.mxu0 0.0
        %441 = vmatpush1.msra.mxu0 %v413
        %442 = vmatprep.subr.mxu0 0.0
        %443 = vmatpush1.msra.mxu0 %v414
        %444 = vmatprep.subr.mxu0 0.0
        %445 = vmatpush1.msra.mxu0 %v415
        %446 = vmatprep.subr.mxu0 0.0
        %447 = vmatpush1.msra.mxu0 %v416
        %448 = vmatprep.subr.mxu0 0.0
        %449 = vmatpush1.msra.mxu0 %v417
        %450 = vmatprep.subr.mxu0 0.0
        %451 = vmatpush1.msra.mxu0 0.0
        %452 = vmatprep.subr.mxu0 0.0
        %453 = vmatpush1.msra.mxu0 0.0
        %454 = vmatprep.subr.mxu0 0.0
        %455 = vmatpush1.msra.mxu0 0.0
        %456 = vmatprep.subr.mxu0 0.0
        %457 = vmatpush1.msra.mxu0 0.0
        %458 = vmatprep.subr.mxu0 0.0
        %459 = vmatpush1.msra.mxu0 0.0
        %460 = vmatprep.subr.mxu0 0.0
        %461 = vmatpush1.msra.mxu0 0.0
        %462 = vmatprep.subr.mxu0 0.0
        %463 = vmatpush1.msra.mxu0 0.0
        %464 = vmatprep.subr.mxu0 0.0
        %465 = vmatpush1.msra.mxu0 0.0
        %466 = vmatprep.subr.mxu0 0.0
        %467 = vmatpush1.msra.mxu0 0.0
        %468 = vmatprep.subr.mxu0 0.0
        %469 = vmatpush1.msra.mxu0 0.0
        %470 = vmatprep.subr.mxu0 0.0
        %471 = vmatpush1.msra.mxu0 0.0
        %472 = vmatprep.subr.mxu0 0.0
        %473 = vmatpush1.msra.mxu0 0.0
        %474 = vmatprep.subr.mxu0 0.0
        %475 = vmatpush1.msra.mxu0 0.0
        %476 = vmatprep.subr.mxu0 0.0
        %477 = vmatpush1.msra.mxu0 0.0
        %478 = vmatprep.subr.mxu0 0.0
        %479 = vmatpush1.msra.mxu0 0.0
        %480 = vmatprep.subr.mxu0 0.0
        %481 = vmatpush1.msra.mxu0 0.0
        %482 = vmatprep.mubr.f32.mxu0 0.0
        %483 = vmatmul.mubr.f32.gmra.mrb[0].mxu0 %v369
        %v484 = vpop.f32.mrb[0].mxu0
        %v485 = vadd.f32 0.0, %v484
        %v486 = vpop.f32.mrb[0].mxu0
        %487 = vmatprep.mubr.f32.mxu0 0.0
        %488 = vmatmul.mubr.f32.gmra.mrb[0].mxu0 %v370
        %v489 = vpop.f32.mrb[0].mxu0
        %v490 = vadd.f32 0.0, %v489
        %v491 = vpop.f32.mrb[0].mxu0
        %492 = vmatprep.mubr.f32.mxu0 0.0
        %493 = vmatmul.mubr.f32.gmra.mrb[0].mxu0 %v371
        %v494 = vpop.f32.mrb[0].mxu0
        %v495 = vadd.f32 0.0, %v494
        %v496 = vpop.f32.mrb[0].mxu0
        %497 = vmatprep.mubr.f32.mxu0 0.0
        %498 = vmatmul.mubr.f32.gmra.mrb[0].mxu0 %v372
        %v499 = vpop.f32.mrb[0].mxu0
        %v500 = vadd.f32 0.0, %v499
        %v501 = vpop.f32.mrb[0].mxu0
        %502 = vmatprep.mubr.f32.mxu0 0.0
        %503 = vmatmul.mubr.f32.gmra.mrb[0].mxu0 %v373
        %v504 = vpop.f32.mrb[0].mxu0
        %v505 = vadd.f32 0.0, %v504
        %v506 = vpop.f32.mrb[0].mxu0
        %507 = vmatprep.mubr.f32.mxu0 0.0
        %508 = vmatmul.mubr.f32.gmra.mrb[0].mxu0 %v374
        %v509 = vpop.f32.mrb[0].mxu0
        %v510 = vadd.f32 0.0, %v509
        %v511 = vpop.f32.mrb[0].mxu0
        %512 = vmatprep.mubr.f32.mxu0 0.0
        %513 = vmatmul.mubr.f32.gmra.mrb[0].mxu0 %v375
        %v514 = vpop.f32.mrb[0].mxu0
        %v515 = vadd.f32 0.0, %v514
        %v516 = vpop.f32.mrb[0].mxu0
        %517 = vmatprep.mubr.f32.mxu0 0.0
        %518 = vmatmul.mubr.f32.gmra.mrb[0].mxu0 %v376
        %v519 = vpop.f32.mrb[0].mxu0
        %v520 = vadd.f32 0.0, %v519
        %v521 = vpop.f32.mrb[0].mxu0
        %522 = vmatprep.mubr.f32.mxu0 0.0
        %523 = vmatmul.mubr.f32.gmra.mrb[0].mxu0 %v377
        %v524 = vpop.f32.mrb[0].mxu0
        %v525 = vadd.f32 0.0, %v524
        %v526 = vpop.f32.mrb[0].mxu0
        %527 = vmatprep.mubr.f32.mxu0 0.0
        %528 = vmatmul.mubr.f32.gmra.mrb[0].mxu0 %v378
        %v529 = vpop.f32.mrb[0].mxu0
        %v530 = vadd.f32 0.0, %v529
        %v531 = vpop.f32.mrb[0].mxu0
        %532 = vmatprep.mubr.f32.mxu0 0.0
        %533 = vmatmul.mubr.f32.gmra.mrb[0].mxu0 %v379
        %v534 = vpop.f32.mrb[0].mxu0
        %v535 = vadd.f32 0.0, %v534
        %v536 = vpop.f32.mrb[0].mxu0
        %537 = vmatprep.mubr.f32.mxu0 0.0
        %538 = vmatmul.mubr.f32.gmra.mrb[0].mxu0 %v380
        %v539 = vpop.f32.mrb[0].mxu0
        %v540 = vadd.f32 0.0, %v539
        %v541 = vpop.f32.mrb[0].mxu0
        %542 = vmatprep.mubr.f32.mxu0 0.0
        %543 = vmatmul.mubr.f32.gmra.mrb[0].mxu0 %v381
        %v544 = vpop.f32.mrb[0].mxu0
        %v545 = vadd.f32 0.0, %v544
        %v546 = vpop.f32.mrb[0].mxu0
        %547 = vmatprep.mubr.f32.mxu0 0.0
        %548 = vmatmul.mubr.f32.gmra.mrb[0].mxu0 %v382
        %v549 = vpop.f32.mrb[0].mxu0
        %v550 = vadd.f32 0.0, %v549
        %v551 = vpop.f32.mrb[0].mxu0
        %552 = vmatprep.mubr.f32.mxu0 0.0
        %553 = vmatmul.mubr.f32.gmra.mrb[0].mxu0 %v383
        %v554 = vpop.f32.mrb[0].mxu0
        %v555 = vadd.f32 0.0, %v554
        %v556 = vpop.f32.mrb[0].mxu0
        %557 = vmatprep.mubr.f32.mxu0 0.0
        %558 = vmatmul.mubr.f32.gmra.mrb[0].mxu0 %v384
        %v559 = vpop.f32.mrb[0].mxu0
        %v560 = vadd.f32 0.0, %v559
        %v561 = vpop.f32.mrb[0].mxu0
        %562 = vmatprep.mubr.f32.mxu0 0.0
        %563 = vmatmul.mubr.f32.gmra.mrb[0].mxu0 %v385
        %v564 = vpop.f32.mrb[0].mxu0
        %v565 = vadd.f32 0.0, %v564
        %v566 = vpop.f32.mrb[0].mxu0
        %567 = vmatprep.mubr.f32.mxu0 0.0
        %568 = vmatmul.mubr.f32.gmra.mrb[0].mxu0 %v386
        %v569 = vpop.f32.mrb[0].mxu0
        %v570 = vadd.f32 0.0, %v569
        %v571 = vpop.f32.mrb[0].mxu0
        %572 = vmatprep.mubr.f32.mxu0 0.0
        %573 = vmatmul.mubr.f32.gmra.mrb[0].mxu0 %v387
        %v574 = vpop.f32.mrb[0].mxu0
        %v575 = vadd.f32 0.0, %v574
        %v576 = vpop.f32.mrb[0].mxu0
        %577 = vmatprep.mubr.f32.mxu0 0.0
        %578 = vmatmul.mubr.f32.gmra.mrb[0].mxu0 %v388
        %v579 = vpop.f32.mrb[0].mxu0
        %v580 = vadd.f32 0.0, %v579
        %v581 = vpop.f32.mrb[0].mxu0
        %582 = vmatprep.mubr.f32.mxu0 0.0
        %583 = vmatmul.mubr.f32.gmra.mrb[0].mxu0 %v389
        %v584 = vpop.f32.mrb[0].mxu0
        %v585 = vadd.f32 0.0, %v584
        %v586 = vpop.f32.mrb[0].mxu0
        %587 = vmatprep.mubr.f32.mxu0 0.0
        %588 = vmatmul.mubr.f32.gmra.mrb[0].mxu0 %v390
        %v589 = vpop.f32.mrb[0].mxu0
        %v590 = vadd.f32 0.0, %v589
        %v591 = vpop.f32.mrb[0].mxu0
        %592 = vmatprep.mubr.f32.mxu0 0.0
        %593 = vmatmul.mubr.f32.gmra.mrb[0].mxu0 %v391
        %v594 = vpop.f32.mrb[0].mxu0
        %v595 = vadd.f32 0.0, %v594
        %v596 = vpop.f32.mrb[0].mxu0
        %597 = vmatprep.mubr.f32.mxu0 0.0
        %598 = vmatmul.mubr.f32.gmra.mrb[0].mxu0 %v392
        %v599 = vpop.f32.mrb[0].mxu0
        %v600 = vadd.f32 0.0, %v599
        %v601 = vpop.f32.mrb[0].mxu0
        %602 = vmatprep.mubr.f32.mxu0 0.0
        %603 = vmatmul.mubr.f32.gmra.mrb[0].mxu0 %v393
        %v604 = vpop.f32.mrb[0].mxu0
        %v605 = vadd.f32 0.0, %v604
        %v606 = vpop.f32.mrb[0].mxu0
        %607 = vmatprep.mubr.f32.mxu0 0.0
        %608 = vmatmul.mubr.f32.gmra.mrb[0].mxu0 %v394
        %v609 = vpop.f32.mrb[0].mxu0
        %v610 = vadd.f32 0.0, %v609
        %v611 = vpop.f32.mrb[0].mxu0
        %612 = vmatprep.mubr.f32.mxu0 0.0
        %613 = vmatmul.mubr.f32.gmra.mrb[0].mxu0 %v395
        %v614 = vpop.f32.mrb[0].mxu0
        %v615 = vadd.f32 0.0, %v614
        %v616 = vpop.f32.mrb[0].mxu0
        %617 = vmatprep.mubr.f32.mxu0 0.0
        %618 = vmatmul.mubr.f32.gmra.mrb[0].mxu0 %v396
        %v619 = vpop.f32.mrb[0].mxu0
        %v620 = vadd.f32 0.0, %v619
        %v621 = vpop.f32.mrb[0].mxu0
        %622 = vmatprep.mubr.f32.mxu0 0.0
        %623 = vmatmul.mubr.f32.gmra.mrb[0].mxu0 %v397
        %v624 = vpop.f32.mrb[0].mxu0
        %v625 = vadd.f32 0.0, %v624
        %v626 = vpop.f32.mrb[0].mxu0
        %627 = vmatprep.mubr.f32.mxu0 0.0
        %628 = vmatmul.mubr.f32.gmra.mrb[0].mxu0 %v398
        %v629 = vpop.f32.mrb[0].mxu0
        %v630 = vadd.f32 0.0, %v629
        %v631 = vpop.f32.mrb[0].mxu0
        %632 = vmatprep.mubr.f32.mxu0 0.0
        %633 = vmatmul.mubr.f32.gmra.mrb[0].mxu0 %v399
        %v634 = vpop.f32.mrb[0].mxu0
        %v635 = vadd.f32 0.0, %v634
        %v636 = vpop.f32.mrb[0].mxu0
        %637 = vmatprep.mubr.f32.mxu0 0.0
        %638 = vmatmul.mubr.f32.gmra.mrb[0].mxu0 %v400
        %v639 = vpop.f32.mrb[0].mxu0
        %v640 = vadd.f32 0.0, %v639
        %v641 = vpop.f32.mrb[0].mxu0
        %642 = vdwg.mxu0
        %643 = vmatprep.subr.mxu0 0.0
        %644 = vmatpush1.msra.mxu0 %v353
        %645 = vmatprep.subr.mxu0 0.0
        %646 = vmatpush1.msra.mxu0 %v354
        %647 = vmatprep.subr.mxu0 0.0
        %648 = vmatpush1.msra.mxu0 %v355
        %649 = vmatprep.subr.mxu0 0.0
        %650 = vmatpush1.msra.mxu0 %v356
        %651 = vmatprep.subr.mxu0 0.0
        %652 = vmatpush1.msra.mxu0 %v357
        %653 = vmatprep.subr.mxu0 0.0
        %654 = vmatpush1.msra.mxu0 %v358
        %655 = vmatprep.subr.mxu0 0.0
        %656 = vmatpush1.msra.mxu0 %v359
        %657 = vmatprep.subr.mxu0 0.0
        %658 = vmatpush1.msra.mxu0 %v360
        %659 = vmatprep.subr.mxu0 0.0
        %660 = vmatpush1.msra.mxu0 %v361
        %661 = vmatprep.subr.mxu0 0.0
        %662 = vmatpush1.msra.mxu0 %v362
        %663 = vmatprep.subr.mxu0 0.0
        %664 = vmatpush1.msra.mxu0 %v363
        %665 = vmatprep.subr.mxu0 0.0
        %666 = vmatpush1.msra.mxu0 %v364
        %667 = vmatprep.subr.mxu0 0.0
        %668 = vmatpush1.msra.mxu0 %v365
        %669 = vmatprep.subr.mxu0 0.0
        %670 = vmatpush1.msra.mxu0 %v366
        %671 = vmatprep.subr.mxu0 0.0
        %672 = vmatpush1.msra.mxu0 %v367
        %673 = vmatprep.subr.mxu0 0.0
        %674 = vmatpush1.msra.mxu0 %v368
        %675 = vmatprep.subr.mxu0 0.0
        %676 = vmatpush1.msra.mxu0 0.0
        %677 = vmatprep.subr.mxu0 0.0
        %678 = vmatpush1.msra.mxu0 0.0
        %679 = vmatprep.subr.mxu0 0.0
        %680 = vmatpush1.msra.mxu0 0.0
        %681 = vmatprep.subr.mxu0 0.0
        %682 = vmatpush1.msra.mxu0 0.0
        %683 = vmatprep.subr.mxu0 0.0
        %684 = vmatpush1.msra.mxu0 0.0
        %685 = vmatprep.subr.mxu0 0.0
        %686 = vmatpush1.msra.mxu0 0.0
        %687 = vmatprep.subr.mxu0 0.0
        %688 = vmatpush1.msra.mxu0 0.0
        %689 = vmatprep.subr.mxu0 0.0
        %690 = vmatpush1.msra.mxu0 0.0
        %691 = vmatprep.subr.mxu0 0.0
        %692 = vmatpush1.msra.mxu0 0.0
        %693 = vmatprep.subr.mxu0 0.0
        %694 = vmatpush1.msra.mxu0 0.0
        %695 = vmatprep.subr.mxu0 0.0
        %696 = vmatpush1.msra.mxu0 0.0
        %697 = vmatprep.subr.mxu0 0.0
        %698 = vmatpush1.msra.mxu0 0.0
        %699 = vmatprep.subr.mxu0 0.0
        %700 = vmatpush1.msra.mxu0 0.0
        %701 = vmatprep.subr.mxu0 0.0
        %702 = vmatpush1.msra.mxu0 0.0
        %703 = vmatprep.subr.mxu0 0.0
        %704 = vmatpush1.msra.mxu0 0.0
        %705 = vmatprep.subr.mxu0 0.0
        %706 = vmatpush1.msra.mxu0 0.0
        %707 = vmatprep.mubr.f32.mxu0 0.0
        %708 = vmatmul.mubr.f32.gmra.mrb[0].mxu0 %v321
        %v709 = vpop.f32.mrb[0].mxu0
        %v710 = vadd.f32 %v485, %v709
        %v711 = vpop.f32.mrb[0].mxu0
        %712 = vmatprep.mubr.f32.mxu0 0.0
        %713 = vmatmul.mubr.f32.gmra.mrb[0].mxu0 %v322
        %v714 = vpop.f32.mrb[0].mxu0
        %v715 = vadd.f32 %v490, %v714
        %v716 = vpop.f32.mrb[0].mxu0
        %717 = vmatprep.mubr.f32.mxu0 0.0
        %718 = vmatmul.mubr.f32.gmra.mrb[0].mxu0 %v323
        %v719 = vpop.f32.mrb[0].mxu0
        %v720 = vadd.f32 %v495, %v719
        %v721 = vpop.f32.mrb[0].mxu0
        %722 = vmatprep.mubr.f32.mxu0 0.0
        %723 = vmatmul.mubr.f32.gmra.mrb[0].mxu0 %v324
        %v724 = vpop.f32.mrb[0].mxu0
        %v725 = vadd.f32 %v500, %v724
        %v726 = vpop.f32.mrb[0].mxu0
        %727 = vmatprep.mubr.f32.mxu0 0.0
        %728 = vmatmul.mubr.f32.gmra.mrb[0].mxu0 %v325
        %v729 = vpop.f32.mrb[0].mxu0
        %v730 = vadd.f32 %v505, %v729
        %v731 = vpop.f32.mrb[0].mxu0
        %732 = vmatprep.mubr.f32.mxu0 0.0
        %733 = vmatmul.mubr.f32.gmra.mrb[0].mxu0 %v326
        %v734 = vpop.f32.mrb[0].mxu0
        %v735 = vadd.f32 %v510, %v734
        %v736 = vpop.f32.mrb[0].mxu0
        %737 = vmatprep.mubr.f32.mxu0 0.0
        %738 = vmatmul.mubr.f32.gmra.mrb[0].mxu0 %v327
        %v739 = vpop.f32.mrb[0].mxu0
        %v740 = vadd.f32 %v515, %v739
        %v741 = vpop.f32.mrb[0].mxu0
        %742 = vmatprep.mubr.f32.mxu0 0.0
        %743 = vmatmul.mubr.f32.gmra.mrb[0].mxu0 %v328
        %v744 = vpop.f32.mrb[0].mxu0
        %v745 = vadd.f32 %v520, %v744
        %v746 = vpop.f32.mrb[0].mxu0
        %747 = vmatprep.mubr.f32.mxu0 0.0
        %748 = vmatmul.mubr.f32.gmra.mrb[0].mxu0 %v329
        %v749 = vpop.f32.mrb[0].mxu0
        %v750 = vadd.f32 %v525, %v749
        %v751 = vpop.f32.mrb[0].mxu0
        %752 = vmatprep.mubr.f32.mxu0 0.0
        %753 = vmatmul.mubr.f32.gmra.mrb[0].mxu0 %v330
        %v754 = vpop.f32.mrb[0].mxu0
        %v755 = vadd.f32 %v530, %v754
        %v756 = vpop.f32.mrb[0].mxu0
        %757 = vmatprep.mubr.f32.mxu0 0.0
        %758 = vmatmul.mubr.f32.gmra.mrb[0].mxu0 %v331
        %v759 = vpop.f32.mrb[0].mxu0
        %v760 = vadd.f32 %v535, %v759
        %v761 = vpop.f32.mrb[0].mxu0
        %762 = vmatprep.mubr.f32.mxu0 0.0
        %763 = vmatmul.mubr.f32.gmra.mrb[0].mxu0 %v332
        %v764 = vpop.f32.mrb[0].mxu0
        %v765 = vadd.f32 %v540, %v764
        %v766 = vpop.f32.mrb[0].mxu0
        %767 = vmatprep.mubr.f32.mxu0 0.0
        %768 = vmatmul.mubr.f32.gmra.mrb[0].mxu0 %v333
        %v769 = vpop.f32.mrb[0].mxu0
        %v770 = vadd.f32 %v545, %v769
        %v771 = vpop.f32.mrb[0].mxu0
        %772 = vmatprep.mubr.f32.mxu0 0.0
        %773 = vmatmul.mubr.f32.gmra.mrb[0].mxu0 %v334
        %v774 = vpop.f32.mrb[0].mxu0
        %v775 = vadd.f32 %v550, %v774
        %v776 = vpop.f32.mrb[0].mxu0
        %777 = vmatprep.mubr.f32.mxu0 0.0
        %778 = vmatmul.mubr.f32.gmra.mrb[0].mxu0 %v335
        %v779 = vpop.f32.mrb[0].mxu0
        %v780 = vadd.f32 %v555, %v779
        %v781 = vpop.f32.mrb[0].mxu0
        %782 = vmatprep.mubr.f32.mxu0 0.0
        %783 = vmatmul.mubr.f32.gmra.mrb[0].mxu0 %v336
        %v784 = vpop.f32.mrb[0].mxu0
        %v785 = vadd.f32 %v560, %v784
        %v786 = vpop.f32.mrb[0].mxu0
        %787 = vmatprep.mubr.f32.mxu0 0.0
        %788 = vmatmul.mubr.f32.gmra.mrb[0].mxu0 %v337
        %v789 = vpop.f32.mrb[0].mxu0
        %v790 = vadd.f32 %v565, %v789
        %v791 = vpop.f32.mrb[0].mxu0
        %792 = vmatprep.mubr.f32.mxu0 0.0
        %793 = vmatmul.mubr.f32.gmra.mrb[0].mxu0 %v338
        %v794 = vpop.f32.mrb[0].mxu0
        %v795 = vadd.f32 %v570, %v794
        %v796 = vpop.f32.mrb[0].mxu0
        %797 = vmatprep.mubr.f32.mxu0 0.0
        %798 = vmatmul.mubr.f32.gmra.mrb[0].mxu0 %v339
        %v799 = vpop.f32.mrb[0].mxu0
        %v800 = vadd.f32 %v575, %v799
        %v801 = vpop.f32.mrb[0].mxu0
        %802 = vmatprep.mubr.f32.mxu0 0.0
        %803 = vmatmul.mubr.f32.gmra.mrb[0].mxu0 %v340
        %v804 = vpop.f32.mrb[0].mxu0
        %v805 = vadd.f32 %v580, %v804
        %v806 = vpop.f32.mrb[0].mxu0
        %807 = vmatprep.mubr.f32.mxu0 0.0
        %808 = vmatmul.mubr.f32.gmra.mrb[0].mxu0 %v341
        %v809 = vpop.f32.mrb[0].mxu0
        %v810 = vadd.f32 %v585, %v809
        %v811 = vpop.f32.mrb[0].mxu0
        %812 = vmatprep.mubr.f32.mxu0 0.0
        %813 = vmatmul.mubr.f32.gmra.mrb[0].mxu0 %v342
        %v814 = vpop.f32.mrb[0].mxu0
        %v815 = vadd.f32 %v590, %v814
        %v816 = vpop.f32.mrb[0].mxu0
        %817 = vmatprep.mubr.f32.mxu0 0.0
        %818 = vmatmul.mubr.f32.gmra.mrb[0].mxu0 %v343
        %v819 = vpop.f32.mrb[0].mxu0
        %v820 = vadd.f32 %v595, %v819
        %v821 = vpop.f32.mrb[0].mxu0
        %822 = vmatprep.mubr.f32.mxu0 0.0
        %823 = vmatmul.mubr.f32.gmra.mrb[0].mxu0 %v344
        %v824 = vpop.f32.mrb[0].mxu0
        %v825 = vadd.f32 %v600, %v824
        %v826 = vpop.f32.mrb[0].mxu0
        %827 = vmatprep.mubr.f32.mxu0 0.0
        %828 = vmatmul.mubr.f32.gmra.mrb[0].mxu0 %v345
        %v829 = vpop.f32.mrb[0].mxu0
        %v830 = vadd.f32 %v605, %v829
        %v831 = vpop.f32.mrb[0].mxu0
        %832 = vmatprep.mubr.f32.mxu0 0.0
        %833 = vmatmul.mubr.f32.gmra.mrb[0].mxu0 %v346
        %v834 = vpop.f32.mrb[0].mxu0
        %v835 = vadd.f32 %v610, %v834
        %v836 = vpop.f32.mrb[0].mxu0
        %837 = vmatprep.mubr.f32.mxu0 0.0
        %838 = vmatmul.mubr.f32.gmra.mrb[0].mxu0 %v347
        %v839 = vpop.f32.mrb[0].mxu0
        %v840 = vadd.f32 %v615, %v839
        %v841 = vpop.f32.mrb[0].mxu0
        %842 = vmatprep.mubr.f32.mxu0 0.0
        %843 = vmatmul.mubr.f32.gmra.mrb[0].mxu0 %v348
        %v844 = vpop.f32.mrb[0].mxu0
        %v845 = vadd.f32 %v620, %v844
        %v846 = vpop.f32.mrb[0].mxu0
        %847 = vmatprep.mubr.f32.mxu0 0.0
        %848 = vmatmul.mubr.f32.gmra.mrb[0].mxu0 %v349
        %v849 = vpop.f32.mrb[0].mxu0
        %v850 = vadd.f32 %v625, %v849
        %v851 = vpop.f32.mrb[0].mxu0
        %852 = vmatprep.mubr.f32.mxu0 0.0
        %853 = vmatmul.mubr.f32.gmra.mrb[0].mxu0 %v350
        %v854 = vpop.f32.mrb[0].mxu0
        %v855 = vadd.f32 %v630, %v854
        %v856 = vpop.f32.mrb[0].mxu0
        %857 = vmatprep.mubr.f32.mxu0 0.0
        %858 = vmatmul.mubr.f32.gmra.mrb[0].mxu0 %v351
        %v859 = vpop.f32.mrb[0].mxu0
        %v860 = vadd.f32 %v635, %v859
        %v861 = vpop.f32.mrb[0].mxu0
        %862 = vmatprep.mubr.f32.mxu0 0.0
        %863 = vmatmul.mubr.f32.gmra.mrb[0].mxu0 %v352
        %v864 = vpop.f32.mrb[0].mxu0
        %v865 = vadd.f32 %v640, %v864
        %v866 = vpop.f32.mrb[0].mxu0
        %867 = vdwg.mxu0
        %v868 = vld [vmem:[#allocation2 + $0x11] sm:$0xff]
        %v869 = vld [vmem:[#allocation2 + $0x19] sm:$0xff]
        %v870 = vld [vmem:[#allocation2 + $0x41] sm:$0xff]
        %v871 = vld [vmem:[#allocation2 + $0x49] sm:$0xff]
        %v872 = vld [vmem:[#allocation2 + $0x71] sm:$0xff]
        %v873 = vld [vmem:[#allocation2 + $0x79] sm:$0xff]
        %v874 = vld [vmem:[#allocation2 + $0xa1] sm:$0xff]
        %v875 = vld [vmem:[#allocation2 + $0xa9] sm:$0xff]
        %v876 = vld [vmem:[#allocation2 + $0xd1] sm:$0xff]
        %v877 = vld [vmem:[#allocation2 + $0xd9] sm:$0xff]
        %v878 = vld [vmem:[#allocation2 + $0x101] sm:$0xff]
        %v879 = vld [vmem:[#allocation2 + $0x109] sm:$0xff]
        %v880 = vld [vmem:[#allocation2 + $0x131] sm:$0xff]
        %v881 = vld [vmem:[#allocation2 + $0x139] sm:$0xff]
        %v882 = vld [vmem:[#allocation2 + $0x161] sm:$0xff]
        %v883 = vld [vmem:[#allocation2 + $0x169] sm:$0xff]
        %v884 = vld [vmem:[#allocation2 + $0x191] sm:$0xff]
        %v885 = vld [vmem:[#allocation2 + $0x199] sm:$0xff]
        %v886 = vld [vmem:[#allocation2 + $0x1c1] sm:$0xff]
        %v887 = vld [vmem:[#allocation2 + $0x1c9] sm:$0xff]
        %v888 = vld [vmem:[#allocation2 + $0x1f1] sm:$0xff]
        %v889 = vld [vmem:[#allocation2 + $0x1f9] sm:$0xff]
        %v890 = vld [vmem:[#allocation2 + $0x221] sm:$0xff]
        %v891 = vld [vmem:[#allocation2 + $0x229] sm:$0xff]
        %v892 = vld [vmem:[#allocation2 + $0x251] sm:$0xff]
        %v893 = vld [vmem:[#allocation2 + $0x259] sm:$0xff]
        %v894 = vld [vmem:[#allocation2 + $0x281] sm:$0xff]
        %v895 = vld [vmem:[#allocation2 + $0x289] sm:$0xff]
        %v896 = vld [vmem:[#allocation2 + $0x2b1] sm:$0xff]
        %v897 = vld [vmem:[#allocation2 + $0x2b9] sm:$0xff]
        %v898 = vld [vmem:[#allocation2 + $0x2e1] sm:$0xff]
        %v899 = vld [vmem:[#allocation2 + $0x2e9] sm:$0xff]
        %s900 = scalar_lea.vmem [#allocation3], 256
        %v901 = vld [vmem:[%s900] sm:$0xff]
        %v902 = vld [vmem:[%s900 + $0x8] sm:$0xff]
        %v903 = vld [vmem:[%s900 + $0x10] sm:$0xff]
        %v904 = vld [vmem:[%s900 + $0x18] sm:$0xff]
        %v905 = vld [vmem:[%s900 + $0x20] sm:$0xff]
        %v906 = vld [vmem:[%s900 + $0x28] sm:$0xff]
        %v907 = vld [vmem:[%s900 + $0x30] sm:$0xff]
        %v908 = vld [vmem:[%s900 + $0x38] sm:$0xff]
        %v909 = vld [vmem:[%s900 + $0x40] sm:$0xff]
        %v910 = vld [vmem:[%s900 + $0x48] sm:$0xff]
        %v911 = vld [vmem:[%s900 + $0x50] sm:$0xff]
        %v912 = vld [vmem:[%s900 + $0x58] sm:$0xff]
        %v913 = vld [vmem:[%s900 + $0x60] sm:$0xff]
        %v914 = vld [vmem:[%s900 + $0x68] sm:$0xff]
        %v915 = vld [vmem:[%s900 + $0x70] sm:$0xff]
        %v916 = vld [vmem:[%s900 + $0x78] sm:$0xff]
        %917 = vmatprep.subr.mxu0 0.0
        %918 = vmatpush1.msra.mxu0 %v901
        %919 = vmatprep.subr.mxu0 0.0
        %920 = vmatpush1.msra.mxu0 %v902
        %921 = vmatprep.subr.mxu0 0.0
        %922 = vmatpush1.msra.mxu0 %v903
        %923 = vmatprep.subr.mxu0 0.0
        %924 = vmatpush1.msra.mxu0 %v904
        %925 = vmatprep.subr.mxu0 0.0
        %926 = vmatpush1.msra.mxu0 %v905
        %927 = vmatprep.subr.mxu0 0.0
        %928 = vmatpush1.msra.mxu0 %v906
        %929 = vmatprep.subr.mxu0 0.0
        %930 = vmatpush1.msra.mxu0 %v907
        %931 = vmatprep.subr.mxu0 0.0
        %932 = vmatpush1.msra.mxu0 %v908
        %933 = vmatprep.subr.mxu0 0.0
        %934 = vmatpush1.msra.mxu0 %v909
        %935 = vmatprep.subr.mxu0 0.0
        %936 = vmatpush1.msra.mxu0 %v910
        %937 = vmatprep.subr.mxu0 0.0
        %938 = vmatpush1.msra.mxu0 %v911
        %939 = vmatprep.subr.mxu0 0.0
        %940 = vmatpush1.msra.mxu0 %v912
        %941 = vmatprep.subr.mxu0 0.0
        %942 = vmatpush1.msra.mxu0 %v913
        %943 = vmatprep.subr.mxu0 0.0
        %944 = vmatpush1.msra.mxu0 %v914
        %945 = vmatprep.subr.mxu0 0.0
        %946 = vmatpush1.msra.mxu0 %v915
        %947 = vmatprep.subr.mxu0 0.0
        %948 = vmatpush1.msra.mxu0 %v916
        %949 = vmatprep.subr.mxu0 0.0
        %950 = vmatpush1.msra.mxu0 0.0
        %951 = vmatprep.subr.mxu0 0.0
        %952 = vmatpush1.msra.mxu0 0.0
        %953 = vmatprep.subr.mxu0 0.0
        %954 = vmatpush1.msra.mxu0 0.0
        %955 = vmatprep.subr.mxu0 0.0
        %956 = vmatpush1.msra.mxu0 0.0
        %957 = vmatprep.subr.mxu0 0.0
        %958 = vmatpush1.msra.mxu0 0.0
        %959 = vmatprep.subr.mxu0 0.0
        %960 = vmatpush1.msra.mxu0 0.0
        %961 = vmatprep.subr.mxu0 0.0
        %962 = vmatpush1.msra.mxu0 0.0
        %963 = vmatprep.subr.mxu0 0.0
        %964 = vmatpush1.msra.mxu0 0.0
        %965 = vmatprep.subr.mxu0 0.0
        %966 = vmatpush1.msra.mxu0 0.0
        %967 = vmatprep.subr.mxu0 0.0
        %968 = vmatpush1.msra.mxu0 0.0
        %969 = vmatprep.subr.mxu0 0.0
        %970 = vmatpush1.msra.mxu0 0.0
        %971 = vmatprep.subr.mxu0 0.0
        %972 = vmatpush1.msra.mxu0 0.0
        %973 = vmatprep.subr.mxu0 0.0
        %974 = vmatpush1.msra.mxu0 0.0
        %975 = vmatprep.subr.mxu0 0.0
        %976 = vmatpush1.msra.mxu0 0.0
        %977 = vmatprep.subr.mxu0 0.0
        %978 = vmatpush1.msra.mxu0 0.0
        %979 = vmatprep.subr.mxu0 0.0
        %980 = vmatpush1.msra.mxu0 0.0
        %981 = vmatprep.mubr.f32.mxu0 0.0
        %982 = vmatmul.mubr.f32.gmra.mrb[0].mxu0 %v868
        %v983 = vpop.f32.mrb[0].mxu0
        %v984 = vadd.f32 0.0, %v983
        %v985 = vpop.f32.mrb[0].mxu0
        %986 = vmatprep.mubr.f32.mxu0 0.0
        %987 = vmatmul.mubr.f32.gmra.mrb[0].mxu0 %v869
        %v988 = vpop.f32.mrb[0].mxu0
        %v989 = vadd.f32 0.0, %v988
        %v990 = vpop.f32.mrb[0].mxu0
        %991 = vmatprep.mubr.f32.mxu0 0.0
        %992 = vmatmul.mubr.f32.gmra.mrb[0].mxu0 %v870
        %v993 = vpop.f32.mrb[0].mxu0
        %v994 = vadd.f32 0.0, %v993
        %v995 = vpop.f32.mrb[0].mxu0
        %996 = vmatprep.mubr.f32.mxu0 0.0
        %997 = vmatmul.mubr.f32.gmra.mrb[0].mxu0 %v871
        %v998 = vpop.f32.mrb[0].mxu0
        %v999 = vadd.f32 0.0, %v998
        %v1000 = vpop.f32.mrb[0].mxu0
        %1001 = vmatprep.mubr.f32.mxu0 0.0
        %1002 = vmatmul.mubr.f32.gmra.mrb[0].mxu0 %v872
        %v1003 = vpop.f32.mrb[0].mxu0
        %v1004 = vadd.f32 0.0, %v1003
        %v1005 = vpop.f32.mrb[0].mxu0
        %1006 = vmatprep.mubr.f32.mxu0 0.0
        %1007 = vmatmul.mubr.f32.gmra.mrb[0].mxu0 %v873
        %v1008 = vpop.f32.mrb[0].mxu0
        %v1009 = vadd.f32 0.0, %v1008
        %v1010 = vpop.f32.mrb[0].mxu0
        %1011 = vmatprep.mubr.f32.mxu0 0.0
        %1012 = vmatmul.mubr.f32.gmra.mrb[0].mxu0 %v874
        %v1013 = vpop.f32.mrb[0].mxu0
        %v1014 = vadd.f32 0.0, %v1013
        %v1015 = vpop.f32.mrb[0].mxu0
        %1016 = vmatprep.mubr.f32.mxu0 0.0
        %1017 = vmatmul.mubr.f32.gmra.mrb[0].mxu0 %v875
        %v1018 = vpop.f32.mrb[0].mxu0
        %v1019 = vadd.f32 0.0, %v1018
        %v1020 = vpop.f32.mrb[0].mxu0
        %1021 = vmatprep.mubr.f32.mxu0 0.0
        %1022 = vmatmul.mubr.f32.gmra.mrb[0].mxu0 %v876
        %v1023 = vpop.f32.mrb[0].mxu0
        %v1024 = vadd.f32 0.0, %v1023
        %v1025 = vpop.f32.mrb[0].mxu0
        %1026 = vmatprep.mubr.f32.mxu0 0.0
        %1027 = vmatmul.mubr.f32.gmra.mrb[0].mxu0 %v877
        %v1028 = vpop.f32.mrb[0].mxu0
        %v1029 = vadd.f32 0.0, %v1028
        %v1030 = vpop.f32.mrb[0].mxu0
        %1031 = vmatprep.mubr.f32.mxu0 0.0
        %1032 = vmatmul.mubr.f32.gmra.mrb[0].mxu0 %v878
        %v1033 = vpop.f32.mrb[0].mxu0
        %v1034 = vadd.f32 0.0, %v1033
        %v1035 = vpop.f32.mrb[0].mxu0
        %1036 = vmatprep.mubr.f32.mxu0 0.0
        %1037 = vmatmul.mubr.f32.gmra.mrb[0].mxu0 %v879
        %v1038 = vpop.f32.mrb[0].mxu0
        %v1039 = vadd.f32 0.0, %v1038
        %v1040 = vpop.f32.mrb[0].mxu0
        %1041 = vmatprep.mubr.f32.mxu0 0.0
        %1042 = vmatmul.mubr.f32.gmra.mrb[0].mxu0 %v880
        %v1043 = vpop.f32.mrb[0].mxu0
        %v1044 = vadd.f32 0.0, %v1043
        %v1045 = vpop.f32.mrb[0].mxu0
        %1046 = vmatprep.mubr.f32.mxu0 0.0
        %1047 = vmatmul.mubr.f32.gmra.mrb[0].mxu0 %v881
        %v1048 = vpop.f32.mrb[0].mxu0
        %v1049 = vadd.f32 0.0, %v1048
        %v1050 = vpop.f32.mrb[0].mxu0
        %1051 = vmatprep.mubr.f32.mxu0 0.0
        %1052 = vmatmul.mubr.f32.gmra.mrb[0].mxu0 %v882
        %v1053 = vpop.f32.mrb[0].mxu0
        %v1054 = vadd.f32 0.0, %v1053
        %v1055 = vpop.f32.mrb[0].mxu0
        %1056 = vmatprep.mubr.f32.mxu0 0.0
        %1057 = vmatmul.mubr.f32.gmra.mrb[0].mxu0 %v883
        %v1058 = vpop.f32.mrb[0].mxu0
        %v1059 = vadd.f32 0.0, %v1058
        %v1060 = vpop.f32.mrb[0].mxu0
        %1061 = vmatprep.mubr.f32.mxu0 0.0
        %1062 = vmatmul.mubr.f32.gmra.mrb[0].mxu0 %v884
        %v1063 = vpop.f32.mrb[0].mxu0
        %v1064 = vadd.f32 0.0, %v1063
        %v1065 = vpop.f32.mrb[0].mxu0
        %1066 = vmatprep.mubr.f32.mxu0 0.0
        %1067 = vmatmul.mubr.f32.gmra.mrb[0].mxu0 %v885
        %v1068 = vpop.f32.mrb[0].mxu0
        %v1069 = vadd.f32 0.0, %v1068
        %v1070 = vpop.f32.mrb[0].mxu0
        %1071 = vmatprep.mubr.f32.mxu0 0.0
        %1072 = vmatmul.mubr.f32.gmra.mrb[0].mxu0 %v886
        %v1073 = vpop.f32.mrb[0].mxu0
        %v1074 = vadd.f32 0.0, %v1073
        %v1075 = vpop.f32.mrb[0].mxu0
        %1076 = vmatprep.mubr.f32.mxu0 0.0
        %1077 = vmatmul.mubr.f32.gmra.mrb[0].mxu0 %v887
        %v1078 = vpop.f32.mrb[0].mxu0
        %v1079 = vadd.f32 0.0, %v1078
        %v1080 = vpop.f32.mrb[0].mxu0
        %1081 = vmatprep.mubr.f32.mxu0 0.0
        %1082 = vmatmul.mubr.f32.gmra.mrb[0].mxu0 %v888
        %v1083 = vpop.f32.mrb[0].mxu0
        %v1084 = vadd.f32 0.0, %v1083
        %v1085 = vpop.f32.mrb[0].mxu0
        %1086 = vmatprep.mubr.f32.mxu0 0.0
        %1087 = vmatmul.mubr.f32.gmra.mrb[0].mxu0 %v889
        %v1088 = vpop.f32.mrb[0].mxu0
        %v1089 = vadd.f32 0.0, %v1088
        %v1090 = vpop.f32.mrb[0].mxu0
        %1091 = vmatprep.mubr.f32.mxu0 0.0
        %1092 = vmatmul.mubr.f32.gmra.mrb[0].mxu0 %v890
        %v1093 = vpop.f32.mrb[0].mxu0
        %v1094 = vadd.f32 0.0, %v1093
        %v1095 = vpop.f32.mrb[0].mxu0
        %1096 = vmatprep.mubr.f32.mxu0 0.0
        %1097 = vmatmul.mubr.f32.gmra.mrb[0].mxu0 %v891
        %v1098 = vpop.f32.mrb[0].mxu0
        %v1099 = vadd.f32 0.0, %v1098
        %v1100 = vpop.f32.mrb[0].mxu0
        %1101 = vmatprep.mubr.f32.mxu0 0.0
        %1102 = vmatmul.mubr.f32.gmra.mrb[0].mxu0 %v892
        %v1103 = vpop.f32.mrb[0].mxu0
        %v1104 = vadd.f32 0.0, %v1103
        %v1105 = vpop.f32.mrb[0].mxu0
        %1106 = vmatprep.mubr.f32.mxu0 0.0
        %1107 = vmatmul.mubr.f32.gmra.mrb[0].mxu0 %v893
        %v1108 = vpop.f32.mrb[0].mxu0
        %v1109 = vadd.f32 0.0, %v1108
        %v1110 = vpop.f32.mrb[0].mxu0
        %1111 = vmatprep.mubr.f32.mxu0 0.0
        %1112 = vmatmul.mubr.f32.gmra.mrb[0].mxu0 %v894
        %v1113 = vpop.f32.mrb[0].mxu0
        %v1114 = vadd.f32 0.0, %v1113
        %v1115 = vpop.f32.mrb[0].mxu0
        %1116 = vmatprep.mubr.f32.mxu0 0.0
        %1117 = vmatmul.mubr.f32.gmra.mrb[0].mxu0 %v895
        %v1118 = vpop.f32.mrb[0].mxu0
        %v1119 = vadd.f32 0.0, %v1118
        %v1120 = vpop.f32.mrb[0].mxu0
        %1121 = vmatprep.mubr.f32.mxu0 0.0
        %1122 = vmatmul.mubr.f32.gmra.mrb[0].mxu0 %v896
        %v1123 = vpop.f32.mrb[0].mxu0
        %v1124 = vadd.f32 0.0, %v1123
        %v1125 = vpop.f32.mrb[0].mxu0
        %1126 = vmatprep.mubr.f32.mxu0 0.0
        %1127 = vmatmul.mubr.f32.gmra.mrb[0].mxu0 %v897
        %v1128 = vpop.f32.mrb[0].mxu0
        %v1129 = vadd.f32 0.0, %v1128
        %v1130 = vpop.f32.mrb[0].mxu0
        %1131 = vmatprep.mubr.f32.mxu0 0.0
        %1132 = vmatmul.mubr.f32.gmra.mrb[0].mxu0 %v898
        %v1133 = vpop.f32.mrb[0].mxu0
        %v1134 = vadd.f32 0.0, %v1133
        %v1135 = vpop.f32.mrb[0].mxu0
        %1136 = vmatprep.mubr.f32.mxu0 0.0
        %1137 = vmatmul.mubr.f32.gmra.mrb[0].mxu0 %v899
        %v1138 = vpop.f32.mrb[0].mxu0
        %v1139 = vadd.f32 0.0, %v1138
        %v1140 = vpop.f32.mrb[0].mxu0
        %1141 = vdwg.mxu0
        %v1142 = vadd.f32 %v710, %v984
        %v1143 = vadd.f32 %v715, %v989
        %v1144 = vadd.f32 %v720, %v994
        %v1145 = vadd.f32 %v725, %v999
        %v1146 = vadd.f32 %v730, %v1004
        %v1147 = vadd.f32 %v735, %v1009
        %v1148 = vadd.f32 %v740, %v1014
        %v1149 = vadd.f32 %v745, %v1019
        %v1150 = vadd.f32 %v750, %v1024
        %v1151 = vadd.f32 %v755, %v1029
        %v1152 = vadd.f32 %v760, %v1034
        %v1153 = vadd.f32 %v765, %v1039
        %v1154 = vadd.f32 %v770, %v1044
        %v1155 = vadd.f32 %v775, %v1049
        %v1156 = vadd.f32 %v780, %v1054
        %v1157 = vadd.f32 %v785, %v1059
        %v1158 = vadd.f32 %v790, %v1064
        %v1159 = vadd.f32 %v795, %v1069
        %v1160 = vadd.f32 %v800, %v1074
        %v1161 = vadd.f32 %v805, %v1079
        %v1162 = vadd.f32 %v810, %v1084
        %v1163 = vadd.f32 %v815, %v1089
        %v1164 = vadd.f32 %v820, %v1094
        %v1165 = vadd.f32 %v825, %v1099
        %v1166 = vadd.f32 %v830, %v1104
        %v1167 = vadd.f32 %v835, %v1109
        %v1168 = vadd.f32 %v840, %v1114
        %v1169 = vadd.f32 %v845, %v1119
        %v1170 = vadd.f32 %v850, %v1124
        %v1171 = vadd.f32 %v855, %v1129
        %v1172 = vadd.f32 %v860, %v1134
        %v1173 = vadd.f32 %v865, %v1139
        %v1174 = vld [vmem:[%s287 + $0xf] sm:$0xff]
        %v1175 = vld [vmem:[%s287 + $0x17] sm:$0xff]
        %v1176 = vld [vmem:[%s287 + $0x3f] sm:$0xff]
        %v1177 = vld [vmem:[%s287 + $0x47] sm:$0xff]
        %v1178 = vld [vmem:[%s287 + $0x6f] sm:$0xff]
        %v1179 = vld [vmem:[%s287 + $0x77] sm:$0xff]
        %v1180 = vld [vmem:[%s287 + $0x9f] sm:$0xff]
        %v1181 = vld [vmem:[%s287 + $0xa7] sm:$0xff]
        %v1182 = vld [vmem:[%s287 + $0xcf] sm:$0xff]
        %v1183 = vld [vmem:[%s287 + $0xd7] sm:$0xff]
        %v1184 = vld [vmem:[%s287 + $0xff] sm:$0xff]
        %v1185 = vld [vmem:[%s287 + $0x107] sm:$0xff]
        %v1186 = vld [vmem:[%s287 + $0x12f] sm:$0xff]
        %v1187 = vld [vmem:[%s287 + $0x137] sm:$0xff]
        %v1188 = vld [vmem:[%s287 + $0x15f] sm:$0xff]
        %v1189 = vld [vmem:[%s287 + $0x167] sm:$0xff]
        %v1190 = vld [vmem:[%s287 + $0x18f] sm:$0xff]
        %v1191 = vld [vmem:[%s287 + $0x197] sm:$0xff]
        %v1192 = vld [vmem:[%s287 + $0x1bf] sm:$0xff]
        %v1193 = vld [vmem:[%s287 + $0x1c7] sm:$0xff]
        %v1194 = vld [vmem:[%s287 + $0x1ef] sm:$0xff]
        %v1195 = vld [vmem:[%s287 + $0x1f7] sm:$0xff]
        %v1196 = vld [vmem:[%s287 + $0x21f] sm:$0xff]
        %v1197 = vld [vmem:[%s287 + $0x227] sm:$0xff]
        %v1198 = vld [vmem:[%s287 + $0x24f] sm:$0xff]
        %v1199 = vld [vmem:[%s287 + $0x257] sm:$0xff]
        %v1200 = vld [vmem:[%s287 + $0x27f] sm:$0xff]
        %v1201 = vld [vmem:[%s287 + $0x287] sm:$0xff]
        %v1202 = vld [vmem:[%s287 + $0x2af] sm:$0xff]
        %v1203 = vld [vmem:[%s287 + $0x2b7] sm:$0xff]
        %v1204 = vld [vmem:[%s287 + $0x2df] sm:$0xff]
        %v1205 = vld [vmem:[%s287 + $0x2e7] sm:$0xff]
        %s1206 = scalar_lea.vmem [#allocation3], 384
        %v1207 = vld [vmem:[%s1206] sm:$0xff]
        %v1208 = vld [vmem:[%s1206 + $0x8] sm:$0xff]
        %v1209 = vld [vmem:[%s1206 + $0x10] sm:$0xff]
        %v1210 = vld [vmem:[%s1206 + $0x18] sm:$0xff]
        %v1211 = vld [vmem:[%s1206 + $0x20] sm:$0xff]
        %v1212 = vld [vmem:[%s1206 + $0x28] sm:$0xff]
        %v1213 = vld [vmem:[%s1206 + $0x30] sm:$0xff]
        %v1214 = vld [vmem:[%s1206 + $0x38] sm:$0xff]
        %v1215 = vld [vmem:[%s1206 + $0x40] sm:$0xff]
        %v1216 = vld [vmem:[%s1206 + $0x48] sm:$0xff]
        %v1217 = vld [vmem:[%s1206 + $0x50] sm:$0xff]
        %v1218 = vld [vmem:[%s1206 + $0x58] sm:$0xff]
        %v1219 = vld [vmem:[%s1206 + $0x60] sm:$0xff]
        %v1220 = vld [vmem:[%s1206 + $0x68] sm:$0xff]
        %v1221 = vld [vmem:[%s1206 + $0x70] sm:$0xff]
        %v1222 = vld [vmem:[%s1206 + $0x78] sm:$0xff]
        %1223 = vmatprep.subr.mxu0 0.0
        %1224 = vmatpush1.msra.mxu0 %v1207
        %1225 = vmatprep.subr.mxu0 0.0
        %1226 = vmatpush1.msra.mxu0 %v1208
        %1227 = vmatprep.subr.mxu0 0.0
        %1228 = vmatpush1.msra.mxu0 %v1209
        %1229 = vmatprep.subr.mxu0 0.0
        %1230 = vmatpush1.msra.mxu0 %v1210
        %1231 = vmatprep.subr.mxu0 0.0
        %1232 = vmatpush1.msra.mxu0 %v1211
        %1233 = vmatprep.subr.mxu0 0.0
        %1234 = vmatpush1.msra.mxu0 %v1212
        %1235 = vmatprep.subr.mxu0 0.0
        %1236 = vmatpush1.msra.mxu0 %v1213
        %1237 = vmatprep.subr.mxu0 0.0
        %1238 = vmatpush1.msra.mxu0 %v1214
        %1239 = vmatprep.subr.mxu0 0.0
        %1240 = vmatpush1.msra.mxu0 %v1215
        %1241 = vmatprep.subr.mxu0 0.0
        %1242 = vmatpush1.msra.mxu0 %v1216
        %1243 = vmatprep.subr.mxu0 0.0
        %1244 = vmatpush1.msra.mxu0 %v1217
        %1245 = vmatprep.subr.mxu0 0.0
        %1246 = vmatpush1.msra.mxu0 %v1218
        %1247 = vmatprep.subr.mxu0 0.0
        %1248 = vmatpush1.msra.mxu0 %v1219
        %1249 = vmatprep.subr.mxu0 0.0
        %1250 = vmatpush1.msra.mxu0 %v1220
        %1251 = vmatprep.subr.mxu0 0.0
        %1252 = vmatpush1.msra.mxu0 %v1221
        %1253 = vmatprep.subr.mxu0 0.0
        %1254 = vmatpush1.msra.mxu0 %v1222
        %1255 = vmatprep.subr.mxu0 0.0
        %1256 = vmatpush1.msra.mxu0 0.0
        %1257 = vmatprep.subr.mxu0 0.0
        %1258 = vmatpush1.msra.mxu0 0.0
        %1259 = vmatprep.subr.mxu0 0.0
        %1260 = vmatpush1.msra.mxu0 0.0
        %1261 = vmatprep.subr.mxu0 0.0
        %1262 = vmatpush1.msra.mxu0 0.0
        %1263 = vmatprep.subr.mxu0 0.0
        %1264 = vmatpush1.msra.mxu0 0.0
        %1265 = vmatprep.subr.mxu0 0.0
        %1266 = vmatpush1.msra.mxu0 0.0
        %1267 = vmatprep.subr.mxu0 0.0
        %1268 = vmatpush1.msra.mxu0 0.0
        %1269 = vmatprep.subr.mxu0 0.0
        %1270 = vmatpush1.msra.mxu0 0.0
        %1271 = vmatprep.subr.mxu0 0.0
        %1272 = vmatpush1.msra.mxu0 0.0
        %1273 = vmatprep.subr.mxu0 0.0
        %1274 = vmatpush1.msra.mxu0 0.0
        %1275 = vmatprep.subr.mxu0 0.0
        %1276 = vmatpush1.msra.mxu0 0.0
        %1277 = vmatprep.subr.mxu0 0.0
        %1278 = vmatpush1.msra.mxu0 0.0
        %1279 = vmatprep.subr.mxu0 0.0
        %1280 = vmatpush1.msra.mxu0 0.0
        %1281 = vmatprep.subr.mxu0 0.0
        %1282 = vmatpush1.msra.mxu0 0.0
        %1283 = vmatprep.subr.mxu0 0.0
        %1284 = vmatpush1.msra.mxu0 0.0
        %1285 = vmatprep.subr.mxu0 0.0
        %1286 = vmatpush1.msra.mxu0 0.0
        %1287 = vmatprep.mubr.f32.mxu0 0.0
        %1288 = vmatmul.mubr.f32.gmra.mrb[0].mxu0 %v1174
        %v1289 = vpop.f32.mrb[0].mxu0
        %v1290 = vadd.f32 0.0, %v1289
        %v1291 = vpop.f32.mrb[0].mxu0
        %1292 = vmatprep.mubr.f32.mxu0 0.0
        %1293 = vmatmul.mubr.f32.gmra.mrb[0].mxu0 %v1175
        %v1294 = vpop.f32.mrb[0].mxu0
        %v1295 = vadd.f32 0.0, %v1294
        %v1296 = vpop.f32.mrb[0].mxu0
        %1297 = vmatprep.mubr.f32.mxu0 0.0
        %1298 = vmatmul.mubr.f32.gmra.mrb[0].mxu0 %v1176
        %v1299 = vpop.f32.mrb[0].mxu0
        %v1300 = vadd.f32 0.0, %v1299
        %v1301 = vpop.f32.mrb[0].mxu0
        %1302 = vmatprep.mubr.f32.mxu0 0.0
        %1303 = vmatmul.mubr.f32.gmra.mrb[0].mxu0 %v1177
        %v1304 = vpop.f32.mrb[0].mxu0
        %v1305 = vadd.f32 0.0, %v1304
        %v1306 = vpop.f32.mrb[0].mxu0
        %1307 = vmatprep.mubr.f32.mxu0 0.0
        %1308 = vmatmul.mubr.f32.gmra.mrb[0].mxu0 %v1178
        %v1309 = vpop.f32.mrb[0].mxu0
        %v1310 = vadd.f32 0.0, %v1309
        %v1311 = vpop.f32.mrb[0].mxu0
        %1312 = vmatprep.mubr.f32.mxu0 0.0
        %1313 = vmatmul.mubr.f32.gmra.mrb[0].mxu0 %v1179
        %v1314 = vpop.f32.mrb[0].mxu0
        %v1315 = vadd.f32 0.0, %v1314
        %v1316 = vpop.f32.mrb[0].mxu0
        %1317 = vmatprep.mubr.f32.mxu0 0.0
        %1318 = vmatmul.mubr.f32.gmra.mrb[0].mxu0 %v1180
        %v1319 = vpop.f32.mrb[0].mxu0
        %v1320 = vadd.f32 0.0, %v1319
        %v1321 = vpop.f32.mrb[0].mxu0
        %1322 = vmatprep.mubr.f32.mxu0 0.0
        %1323 = vmatmul.mubr.f32.gmra.mrb[0].mxu0 %v1181
        %v1324 = vpop.f32.mrb[0].mxu0
        %v1325 = vadd.f32 0.0, %v1324
        %v1326 = vpop.f32.mrb[0].mxu0
        %1327 = vmatprep.mubr.f32.mxu0 0.0
        %1328 = vmatmul.mubr.f32.gmra.mrb[0].mxu0 %v1182
        %v1329 = vpop.f32.mrb[0].mxu0
        %v1330 = vadd.f32 0.0, %v1329
        %v1331 = vpop.f32.mrb[0].mxu0
        %1332 = vmatprep.mubr.f32.mxu0 0.0
        %1333 = vmatmul.mubr.f32.gmra.mrb[0].mxu0 %v1183
        %v1334 = vpop.f32.mrb[0].mxu0
        %v1335 = vadd.f32 0.0, %v1334
        %v1336 = vpop.f32.mrb[0].mxu0
        %1337 = vmatprep.mubr.f32.mxu0 0.0
        %1338 = vmatmul.mubr.f32.gmra.mrb[0].mxu0 %v1184
        %v1339 = vpop.f32.mrb[0].mxu0
        %v1340 = vadd.f32 0.0, %v1339
        %v1341 = vpop.f32.mrb[0].mxu0
        %1342 = vmatprep.mubr.f32.mxu0 0.0
        %1343 = vmatmul.mubr.f32.gmra.mrb[0].mxu0 %v1185
        %v1344 = vpop.f32.mrb[0].mxu0
        %v1345 = vadd.f32 0.0, %v1344
        %v1346 = vpop.f32.mrb[0].mxu0
        %1347 = vmatprep.mubr.f32.mxu0 0.0
        %1348 = vmatmul.mubr.f32.gmra.mrb[0].mxu0 %v1186
        %v1349 = vpop.f32.mrb[0].mxu0
        %v1350 = vadd.f32 0.0, %v1349
        %v1351 = vpop.f32.mrb[0].mxu0
        %1352 = vmatprep.mubr.f32.mxu0 0.0
        %1353 = vmatmul.mubr.f32.gmra.mrb[0].mxu0 %v1187
        %v1354 = vpop.f32.mrb[0].mxu0
        %v1355 = vadd.f32 0.0, %v1354
        %v1356 = vpop.f32.mrb[0].mxu0
        %1357 = vmatprep.mubr.f32.mxu0 0.0
        %1358 = vmatmul.mubr.f32.gmra.mrb[0].mxu0 %v1188
        %v1359 = vpop.f32.mrb[0].mxu0
        %v1360 = vadd.f32 0.0, %v1359
        %v1361 = vpop.f32.mrb[0].mxu0
        %1362 = vmatprep.mubr.f32.mxu0 0.0
        %1363 = vmatmul.mubr.f32.gmra.mrb[0].mxu0 %v1189
        %v1364 = vpop.f32.mrb[0].mxu0
        %v1365 = vadd.f32 0.0, %v1364
        %v1366 = vpop.f32.mrb[0].mxu0
        %1367 = vmatprep.mubr.f32.mxu0 0.0
        %1368 = vmatmul.mubr.f32.gmra.mrb[0].mxu0 %v1190
        %v1369 = vpop.f32.mrb[0].mxu0
        %v1370 = vadd.f32 0.0, %v1369
        %v1371 = vpop.f32.mrb[0].mxu0
        %1372 = vmatprep.mubr.f32.mxu0 0.0
        %1373 = vmatmul.mubr.f32.gmra.mrb[0].mxu0 %v1191
        %v1374 = vpop.f32.mrb[0].mxu0
        %v1375 = vadd.f32 0.0, %v1374
        %v1376 = vpop.f32.mrb[0].mxu0
        %1377 = vmatprep.mubr.f32.mxu0 0.0
        %1378 = vmatmul.mubr.f32.gmra.mrb[0].mxu0 %v1192
        %v1379 = vpop.f32.mrb[0].mxu0
        %v1380 = vadd.f32 0.0, %v1379
        %v1381 = vpop.f32.mrb[0].mxu0
        %1382 = vmatprep.mubr.f32.mxu0 0.0
        %1383 = vmatmul.mubr.f32.gmra.mrb[0].mxu0 %v1193
        %v1384 = vpop.f32.mrb[0].mxu0
        %v1385 = vadd.f32 0.0, %v1384
        %v1386 = vpop.f32.mrb[0].mxu0
        %1387 = vmatprep.mubr.f32.mxu0 0.0
        %1388 = vmatmul.mubr.f32.gmra.mrb[0].mxu0 %v1194
        %v1389 = vpop.f32.mrb[0].mxu0
        %v1390 = vadd.f32 0.0, %v1389
        %v1391 = vpop.f32.mrb[0].mxu0
        %1392 = vmatprep.mubr.f32.mxu0 0.0
        %1393 = vmatmul.mubr.f32.gmra.mrb[0].mxu0 %v1195
        %v1394 = vpop.f32.mrb[0].mxu0
        %v1395 = vadd.f32 0.0, %v1394
        %v1396 = vpop.f32.mrb[0].mxu0
        %1397 = vmatprep.mubr.f32.mxu0 0.0
        %1398 = vmatmul.mubr.f32.gmra.mrb[0].mxu0 %v1196
        %v1399 = vpop.f32.mrb[0].mxu0
        %v1400 = vadd.f32 0.0, %v1399
        %v1401 = vpop.f32.mrb[0].mxu0
        %1402 = vmatprep.mubr.f32.mxu0 0.0
        %1403 = vmatmul.mubr.f32.gmra.mrb[0].mxu0 %v1197
        %v1404 = vpop.f32.mrb[0].mxu0
        %v1405 = vadd.f32 0.0, %v1404
        %v1406 = vpop.f32.mrb[0].mxu0
        %1407 = vmatprep.mubr.f32.mxu0 0.0
        %1408 = vmatmul.mubr.f32.gmra.mrb[0].mxu0 %v1198
        %v1409 = vpop.f32.mrb[0].mxu0
        %v1410 = vadd.f32 0.0, %v1409
        %v1411 = vpop.f32.mrb[0].mxu0
        %1412 = vmatprep.mubr.f32.mxu0 0.0
        %1413 = vmatmul.mubr.f32.gmra.mrb[0].mxu0 %v1199
        %v1414 = vpop.f32.mrb[0].mxu0
        %v1415 = vadd.f32 0.0, %v1414
        %v1416 = vpop.f32.mrb[0].mxu0
        %1417 = vmatprep.mubr.f32.mxu0 0.0
        %1418 = vmatmul.mubr.f32.gmra.mrb[0].mxu0 %v1200
        %v1419 = vpop.f32.mrb[0].mxu0
        %v1420 = vadd.f32 0.0, %v1419
        %v1421 = vpop.f32.mrb[0].mxu0
        %1422 = vmatprep.mubr.f32.mxu0 0.0
        %1423 = vmatmul.mubr.f32.gmra.mrb[0].mxu0 %v1201
        %v1424 = vpop.f32.mrb[0].mxu0
        %v1425 = vadd.f32 0.0, %v1424
        %v1426 = vpop.f32.mrb[0].mxu0
        %1427 = vmatprep.mubr.f32.mxu0 0.0
        %1428 = vmatmul.mubr.f32.gmra.mrb[0].mxu0 %v1202
        %v1429 = vpop.f32.mrb[0].mxu0
        %v1430 = vadd.f32 0.0, %v1429
        %v1431 = vpop.f32.mrb[0].mxu0
        %1432 = vmatprep.mubr.f32.mxu0 0.0
        %1433 = vmatmul.mubr.f32.gmra.mrb[0].mxu0 %v1203
        %v1434 = vpop.f32.mrb[0].mxu0
        %v1435 = vadd.f32 0.0, %v1434
        %v1436 = vpop.f32.mrb[0].mxu0
        %1437 = vmatprep.mubr.f32.mxu0 0.0
        %1438 = vmatmul.mubr.f32.gmra.mrb[0].mxu0 %v1204
        %v1439 = vpop.f32.mrb[0].mxu0
        %v1440 = vadd.f32 0.0, %v1439
        %v1441 = vpop.f32.mrb[0].mxu0
        %1442 = vmatprep.mubr.f32.mxu0 0.0
        %1443 = vmatmul.mubr.f32.gmra.mrb[0].mxu0 %v1205
        %v1444 = vpop.f32.mrb[0].mxu0
        %v1445 = vadd.f32 0.0, %v1444
        %v1446 = vpop.f32.mrb[0].mxu0
        %1447 = vdwg.mxu0
        %v1448 = vadd.f32 %v1142, %v1290
        %v1449 = vadd.f32 %v1143, %v1295
        %v1450 = vadd.f32 %v1144, %v1300
        %v1451 = vadd.f32 %v1145, %v1305
        %v1452 = vadd.f32 %v1146, %v1310
        %v1453 = vadd.f32 %v1147, %v1315
        %v1454 = vadd.f32 %v1148, %v1320
        %v1455 = vadd.f32 %v1149, %v1325
        %v1456 = vadd.f32 %v1150, %v1330
        %v1457 = vadd.f32 %v1151, %v1335
        %v1458 = vadd.f32 %v1152, %v1340
        %v1459 = vadd.f32 %v1153, %v1345
        %v1460 = vadd.f32 %v1154, %v1350
        %v1461 = vadd.f32 %v1155, %v1355
        %v1462 = vadd.f32 %v1156, %v1360
        %v1463 = vadd.f32 %v1157, %v1365
        %v1464 = vadd.f32 %v1158, %v1370
        %v1465 = vadd.f32 %v1159, %v1375
        %v1466 = vadd.f32 %v1160, %v1380
        %v1467 = vadd.f32 %v1161, %v1385
        %v1468 = vadd.f32 %v1162, %v1390
        %v1469 = vadd.f32 %v1163, %v1395
        %v1470 = vadd.f32 %v1164, %v1400
        %v1471 = vadd.f32 %v1165, %v1405
        %v1472 = vadd.f32 %v1166, %v1410
        %v1473 = vadd.f32 %v1167, %v1415
        %v1474 = vadd.f32 %v1168, %v1420
        %v1475 = vadd.f32 %v1169, %v1425
        %v1476 = vadd.f32 %v1170, %v1430
        %v1477 = vadd.f32 %v1171, %v1435
        %v1478 = vadd.f32 %v1172, %v1440
        %v1479 = vadd.f32 %v1173, %v1445
        %v1480 = vld [vmem:[%s287 + $0x10] sm:$0xff]
        %v1481 = vld [vmem:[%s287 + $0x18] sm:$0xff]
        %v1482 = vld [vmem:[%s287 + $0x40] sm:$0xff]
        %v1483 = vld [vmem:[%s287 + $0x48] sm:$0xff]
        %v1484 = vld [vmem:[%s287 + $0x70] sm:$0xff]
        %v1485 = vld [vmem:[%s287 + $0x78] sm:$0xff]
        %v1486 = vld [vmem:[%s287 + $0xa0] sm:$0xff]
        %v1487 = vld [vmem:[%s287 + $0xa8] sm:$0xff]
        %v1488 = vld [vmem:[%s287 + $0xd0] sm:$0xff]
        %v1489 = vld [vmem:[%s287 + $0xd8] sm:$0xff]
        %v1490 = vld [vmem:[%s287 + $0x100] sm:$0xff]
        %v1491 = vld [vmem:[%s287 + $0x108] sm:$0xff]
        %v1492 = vld [vmem:[%s287 + $0x130] sm:$0xff]
        %v1493 = vld [vmem:[%s287 + $0x138] sm:$0xff]
        %v1494 = vld [vmem:[%s287 + $0x160] sm:$0xff]
        %v1495 = vld [vmem:[%s287 + $0x168] sm:$0xff]
        %v1496 = vld [vmem:[%s287 + $0x190] sm:$0xff]
        %v1497 = vld [vmem:[%s287 + $0x198] sm:$0xff]
        %v1498 = vld [vmem:[%s287 + $0x1c0] sm:$0xff]
        %v1499 = vld [vmem:[%s287 + $0x1c8] sm:$0xff]
        %v1500 = vld [vmem:[%s287 + $0x1f0] sm:$0xff]
        %v1501 = vld [vmem:[%s287 + $0x1f8] sm:$0xff]
        %v1502 = vld [vmem:[%s287 + $0x220] sm:$0xff]
        %v1503 = vld [vmem:[%s287 + $0x228] sm:$0xff]
        %v1504 = vld [vmem:[%s287 + $0x250] sm:$0xff]
        %v1505 = vld [vmem:[%s287 + $0x258] sm:$0xff]
        %v1506 = vld [vmem:[%s287 + $0x280] sm:$0xff]
        %v1507 = vld [vmem:[%s287 + $0x288] sm:$0xff]
        %v1508 = vld [vmem:[%s287 + $0x2b0] sm:$0xff]
        %v1509 = vld [vmem:[%s287 + $0x2b8] sm:$0xff]
        %v1510 = vld [vmem:[%s287 + $0x2e0] sm:$0xff]
        %v1511 = vld [vmem:[%s287 + $0x2e8] sm:$0xff]
        %s1512 = scalar_lea.vmem [#allocation3], 512
        %v1513 = vld [vmem:[%s1512] sm:$0xff]
        %v1514 = vld [vmem:[%s1512 + $0x8] sm:$0xff]
        %v1515 = vld [vmem:[%s1512 + $0x10] sm:$0xff]
        %v1516 = vld [vmem:[%s1512 + $0x18] sm:$0xff]
        %v1517 = vld [vmem:[%s1512 + $0x20] sm:$0xff]
        %v1518 = vld [vmem:[%s1512 + $0x28] sm:$0xff]
        %v1519 = vld [vmem:[%s1512 + $0x30] sm:$0xff]
        %v1520 = vld [vmem:[%s1512 + $0x38] sm:$0xff]
        %v1521 = vld [vmem:[%s1512 + $0x40] sm:$0xff]
        %v1522 = vld [vmem:[%s1512 + $0x48] sm:$0xff]
        %v1523 = vld [vmem:[%s1512 + $0x50] sm:$0xff]
        %v1524 = vld [vmem:[%s1512 + $0x58] sm:$0xff]
        %v1525 = vld [vmem:[%s1512 + $0x60] sm:$0xff]
        %v1526 = vld [vmem:[%s1512 + $0x68] sm:$0xff]
        %v1527 = vld [vmem:[%s1512 + $0x70] sm:$0xff]
        %v1528 = vld [vmem:[%s1512 + $0x78] sm:$0xff]
        %1529 = vmatprep.subr.mxu0 0.0
        %1530 = vmatpush1.msra.mxu0 %v1513
        %1531 = vmatprep.subr.mxu0 0.0
        %1532 = vmatpush1.msra.mxu0 %v1514
        %1533 = vmatprep.subr.mxu0 0.0
        %1534 = vmatpush1.msra.mxu0 %v1515
        %1535 = vmatprep.subr.mxu0 0.0
        %1536 = vmatpush1.msra.mxu0 %v1516
        %1537 = vmatprep.subr.mxu0 0.0
        %1538 = vmatpush1.msra.mxu0 %v1517
        %1539 = vmatprep.subr.mxu0 0.0
        %1540 = vmatpush1.msra.mxu0 %v1518
        %1541 = vmatprep.subr.mxu0 0.0
        %1542 = vmatpush1.msra.mxu0 %v1519
        %1543 = vmatprep.subr.mxu0 0.0
        %1544 = vmatpush1.msra.mxu0 %v1520
        %1545 = vmatprep.subr.mxu0 0.0
        %1546 = vmatpush1.msra.mxu0 %v1521
        %1547 = vmatprep.subr.mxu0 0.0
        %1548 = vmatpush1.msra.mxu0 %v1522
        %1549 = vmatprep.subr.mxu0 0.0
        %1550 = vmatpush1.msra.mxu0 %v1523
        %1551 = vmatprep.subr.mxu0 0.0
        %1552 = vmatpush1.msra.mxu0 %v1524
        %1553 = vmatprep.subr.mxu0 0.0
        %1554 = vmatpush1.msra.mxu0 %v1525
        %1555 = vmatprep.subr.mxu0 0.0
        %1556 = vmatpush1.msra.mxu0 %v1526
        %1557 = vmatprep.subr.mxu0 0.0
        %1558 = vmatpush1.msra.mxu0 %v1527
        %1559 = vmatprep.subr.mxu0 0.0
        %1560 = vmatpush1.msra.mxu0 %v1528
        %1561 = vmatprep.subr.mxu0 0.0
        %1562 = vmatpush1.msra.mxu0 0.0
        %1563 = vmatprep.subr.mxu0 0.0
        %1564 = vmatpush1.msra.mxu0 0.0
        %1565 = vmatprep.subr.mxu0 0.0
        %1566 = vmatpush1.msra.mxu0 0.0
        %1567 = vmatprep.subr.mxu0 0.0
        %1568 = vmatpush1.msra.mxu0 0.0
        %1569 = vmatprep.subr.mxu0 0.0
        %1570 = vmatpush1.msra.mxu0 0.0
        %1571 = vmatprep.subr.mxu0 0.0
        %1572 = vmatpush1.msra.mxu0 0.0
        %1573 = vmatprep.subr.mxu0 0.0
        %1574 = vmatpush1.msra.mxu0 0.0
        %1575 = vmatprep.subr.mxu0 0.0
        %1576 = vmatpush1.msra.mxu0 0.0
        %1577 = vmatprep.subr.mxu0 0.0
        %1578 = vmatpush1.msra.mxu0 0.0
        %1579 = vmatprep.subr.mxu0 0.0
        %1580 = vmatpush1.msra.mxu0 0.0
        %1581 = vmatprep.subr.mxu0 0.0
        %1582 = vmatpush1.msra.mxu0 0.0
        %1583 = vmatprep.subr.mxu0 0.0
        %1584 = vmatpush1.msra.mxu0 0.0
        %1585 = vmatprep.subr.mxu0 0.0
        %1586 = vmatpush1.msra.mxu0 0.0
        %1587 = vmatprep.subr.mxu0 0.0
        %1588 = vmatpush1.msra.mxu0 0.0
        %1589 = vmatprep.subr.mxu0 0.0
        %1590 = vmatpush1.msra.mxu0 0.0
        %1591 = vmatprep.subr.mxu0 0.0
        %1592 = vmatpush1.msra.mxu0 0.0
        %1593 = vmatprep.mubr.f32.mxu0 0.0
        %1594 = vmatmul.mubr.f32.gmra.mrb[0].mxu0 %v1480
        %v1595 = vpop.f32.mrb[0].mxu0
        %v1596 = vadd.f32 0.0, %v1595
        %v1597 = vpop.f32.mrb[0].mxu0
        %1598 = vmatprep.mubr.f32.mxu0 0.0
        %1599 = vmatmul.mubr.f32.gmra.mrb[0].mxu0 %v1481
        %v1600 = vpop.f32.mrb[0].mxu0
        %v1601 = vadd.f32 0.0, %v1600
        %v1602 = vpop.f32.mrb[0].mxu0
        %1603 = vmatprep.mubr.f32.mxu0 0.0
        %1604 = vmatmul.mubr.f32.gmra.mrb[0].mxu0 %v1482
        %v1605 = vpop.f32.mrb[0].mxu0
        %v1606 = vadd.f32 0.0, %v1605
        %v1607 = vpop.f32.mrb[0].mxu0
        %1608 = vmatprep.mubr.f32.mxu0 0.0
        %1609 = vmatmul.mubr.f32.gmra.mrb[0].mxu0 %v1483
        %v1610 = vpop.f32.mrb[0].mxu0
        %v1611 = vadd.f32 0.0, %v1610
        %v1612 = vpop.f32.mrb[0].mxu0
        %1613 = vmatprep.mubr.f32.mxu0 0.0
        %1614 = vmatmul.mubr.f32.gmra.mrb[0].mxu0 %v1484
        %v1615 = vpop.f32.mrb[0].mxu0
        %v1616 = vadd.f32 0.0, %v1615
        %v1617 = vpop.f32.mrb[0].mxu0
        %1618 = vmatprep.mubr.f32.mxu0 0.0
        %1619 = vmatmul.mubr.f32.gmra.mrb[0].mxu0 %v1485
        %v1620 = vpop.f32.mrb[0].mxu0
        %v1621 = vadd.f32 0.0, %v1620
        %v1622 = vpop.f32.mrb[0].mxu0
        %1623 = vmatprep.mubr.f32.mxu0 0.0
        %1624 = vmatmul.mubr.f32.gmra.mrb[0].mxu0 %v1486
        %v1625 = vpop.f32.mrb[0].mxu0
        %v1626 = vadd.f32 0.0, %v1625
        %v1627 = vpop.f32.mrb[0].mxu0
        %1628 = vmatprep.mubr.f32.mxu0 0.0
        %1629 = vmatmul.mubr.f32.gmra.mrb[0].mxu0 %v1487
        %v1630 = vpop.f32.mrb[0].mxu0
        %v1631 = vadd.f32 0.0, %v1630
        %v1632 = vpop.f32.mrb[0].mxu0
        %1633 = vmatprep.mubr.f32.mxu0 0.0
        %1634 = vmatmul.mubr.f32.gmra.mrb[0].mxu0 %v1488
        %v1635 = vpop.f32.mrb[0].mxu0
        %v1636 = vadd.f32 0.0, %v1635
        %v1637 = vpop.f32.mrb[0].mxu0
        %1638 = vmatprep.mubr.f32.mxu0 0.0
        %1639 = vmatmul.mubr.f32.gmra.mrb[0].mxu0 %v1489
        %v1640 = vpop.f32.mrb[0].mxu0
        %v1641 = vadd.f32 0.0, %v1640
        %v1642 = vpop.f32.mrb[0].mxu0
        %1643 = vmatprep.mubr.f32.mxu0 0.0
        %1644 = vmatmul.mubr.f32.gmra.mrb[0].mxu0 %v1490
        %v1645 = vpop.f32.mrb[0].mxu0
        %v1646 = vadd.f32 0.0, %v1645
        %v1647 = vpop.f32.mrb[0].mxu0
        %1648 = vmatprep.mubr.f32.mxu0 0.0
        %1649 = vmatmul.mubr.f32.gmra.mrb[0].mxu0 %v1491
        %v1650 = vpop.f32.mrb[0].mxu0
        %v1651 = vadd.f32 0.0, %v1650
        %v1652 = vpop.f32.mrb[0].mxu0
        %1653 = vmatprep.mubr.f32.mxu0 0.0
        %1654 = vmatmul.mubr.f32.gmra.mrb[0].mxu0 %v1492
        %v1655 = vpop.f32.mrb[0].mxu0
        %v1656 = vadd.f32 0.0, %v1655
        %v1657 = vpop.f32.mrb[0].mxu0
        %1658 = vmatprep.mubr.f32.mxu0 0.0
        %1659 = vmatmul.mubr.f32.gmra.mrb[0].mxu0 %v1493
        %v1660 = vpop.f32.mrb[0].mxu0
        %v1661 = vadd.f32 0.0, %v1660
        %v1662 = vpop.f32.mrb[0].mxu0
        %1663 = vmatprep.mubr.f32.mxu0 0.0
        %1664 = vmatmul.mubr.f32.gmra.mrb[0].mxu0 %v1494
        %v1665 = vpop.f32.mrb[0].mxu0
        %v1666 = vadd.f32 0.0, %v1665
        %v1667 = vpop.f32.mrb[0].mxu0
        %1668 = vmatprep.mubr.f32.mxu0 0.0
        %1669 = vmatmul.mubr.f32.gmra.mrb[0].mxu0 %v1495
        %v1670 = vpop.f32.mrb[0].mxu0
        %v1671 = vadd.f32 0.0, %v1670
        %v1672 = vpop.f32.mrb[0].mxu0
        %1673 = vmatprep.mubr.f32.mxu0 0.0
        %1674 = vmatmul.mubr.f32.gmra.mrb[0].mxu0 %v1496
        %v1675 = vpop.f32.mrb[0].mxu0
        %v1676 = vadd.f32 0.0, %v1675
        %v1677 = vpop.f32.mrb[0].mxu0
        %1678 = vmatprep.mubr.f32.mxu0 0.0
        %1679 = vmatmul.mubr.f32.gmra.mrb[0].mxu0 %v1497
        %v1680 = vpop.f32.mrb[0].mxu0
        %v1681 = vadd.f32 0.0, %v1680
        %v1682 = vpop.f32.mrb[0].mxu0
        %1683 = vmatprep.mubr.f32.mxu0 0.0
        %1684 = vmatmul.mubr.f32.gmra.mrb[0].mxu0 %v1498
        %v1685 = vpop.f32.mrb[0].mxu0
        %v1686 = vadd.f32 0.0, %v1685
        %v1687 = vpop.f32.mrb[0].mxu0
        %1688 = vmatprep.mubr.f32.mxu0 0.0
        %1689 = vmatmul.mubr.f32.gmra.mrb[0].mxu0 %v1499
        %v1690 = vpop.f32.mrb[0].mxu0
        %v1691 = vadd.f32 0.0, %v1690
        %v1692 = vpop.f32.mrb[0].mxu0
        %1693 = vmatprep.mubr.f32.mxu0 0.0
        %1694 = vmatmul.mubr.f32.gmra.mrb[0].mxu0 %v1500
        %v1695 = vpop.f32.mrb[0].mxu0
        %v1696 = vadd.f32 0.0, %v1695
        %v1697 = vpop.f32.mrb[0].mxu0
        %1698 = vmatprep.mubr.f32.mxu0 0.0
        %1699 = vmatmul.mubr.f32.gmra.mrb[0].mxu0 %v1501
        %v1700 = vpop.f32.mrb[0].mxu0
        %v1701 = vadd.f32 0.0, %v1700
        %v1702 = vpop.f32.mrb[0].mxu0
        %1703 = vmatprep.mubr.f32.mxu0 0.0
        %1704 = vmatmul.mubr.f32.gmra.mrb[0].mxu0 %v1502
        %v1705 = vpop.f32.mrb[0].mxu0
        %v1706 = vadd.f32 0.0, %v1705
        %v1707 = vpop.f32.mrb[0].mxu0
        %1708 = vmatprep.mubr.f32.mxu0 0.0
        %1709 = vmatmul.mubr.f32.gmra.mrb[0].mxu0 %v1503
        %v1710 = vpop.f32.mrb[0].mxu0
        %v1711 = vadd.f32 0.0, %v1710
        %v1712 = vpop.f32.mrb[0].mxu0
        %1713 = vmatprep.mubr.f32.mxu0 0.0
        %1714 = vmatmul.mubr.f32.gmra.mrb[0].mxu0 %v1504
        %v1715 = vpop.f32.mrb[0].mxu0
        %v1716 = vadd.f32 0.0, %v1715
        %v1717 = vpop.f32.mrb[0].mxu0
        %1718 = vmatprep.mubr.f32.mxu0 0.0
        %1719 = vmatmul.mubr.f32.gmra.mrb[0].mxu0 %v1505
        %v1720 = vpop.f32.mrb[0].mxu0
        %v1721 = vadd.f32 0.0, %v1720
        %v1722 = vpop.f32.mrb[0].mxu0
        %1723 = vmatprep.mubr.f32.mxu0 0.0
        %1724 = vmatmul.mubr.f32.gmra.mrb[0].mxu0 %v1506
        %v1725 = vpop.f32.mrb[0].mxu0
        %v1726 = vadd.f32 0.0, %v1725
        %v1727 = vpop.f32.mrb[0].mxu0
        %1728 = vmatprep.mubr.f32.mxu0 0.0
        %1729 = vmatmul.mubr.f32.gmra.mrb[0].mxu0 %v1507
        %v1730 = vpop.f32.mrb[0].mxu0
        %v1731 = vadd.f32 0.0, %v1730
        %v1732 = vpop.f32.mrb[0].mxu0
        %1733 = vmatprep.mubr.f32.mxu0 0.0
        %1734 = vmatmul.mubr.f32.gmra.mrb[0].mxu0 %v1508
        %v1735 = vpop.f32.mrb[0].mxu0
        %v1736 = vadd.f32 0.0, %v1735
        %v1737 = vpop.f32.mrb[0].mxu0
        %1738 = vmatprep.mubr.f32.mxu0 0.0
        %1739 = vmatmul.mubr.f32.gmra.mrb[0].mxu0 %v1509
        %v1740 = vpop.f32.mrb[0].mxu0
        %v1741 = vadd.f32 0.0, %v1740
        %v1742 = vpop.f32.mrb[0].mxu0
        %1743 = vmatprep.mubr.f32.mxu0 0.0
        %1744 = vmatmul.mubr.f32.gmra.mrb[0].mxu0 %v1510
        %v1745 = vpop.f32.mrb[0].mxu0
        %v1746 = vadd.f32 0.0, %v1745
        %v1747 = vpop.f32.mrb[0].mxu0
        %1748 = vmatprep.mubr.f32.mxu0 0.0
        %1749 = vmatmul.mubr.f32.gmra.mrb[0].mxu0 %v1511
        %v1750 = vpop.f32.mrb[0].mxu0
        %v1751 = vadd.f32 0.0, %v1750
        %v1752 = vpop.f32.mrb[0].mxu0
        %1753 = vdwg.mxu0
        %v1754 = vadd.f32 %v1448, %v1596
        %v1755 = vadd.f32 %v1449, %v1601
        %v1756 = vadd.f32 %v1450, %v1606
        %v1757 = vadd.f32 %v1451, %v1611
        %v1758 = vadd.f32 %v1452, %v1616
        %v1759 = vadd.f32 %v1453, %v1621
        %v1760 = vadd.f32 %v1454, %v1626
        %v1761 = vadd.f32 %v1455, %v1631
        %v1762 = vadd.f32 %v1456, %v1636
        %v1763 = vadd.f32 %v1457, %v1641
        %v1764 = vadd.f32 %v1458, %v1646
        %v1765 = vadd.f32 %v1459, %v1651
        %v1766 = vadd.f32 %v1460, %v1656
        %v1767 = vadd.f32 %v1461, %v1661
        %v1768 = vadd.f32 %v1462, %v1666
        %v1769 = vadd.f32 %v1463, %v1671
        %v1770 = vadd.f32 %v1464, %v1676
        %v1771 = vadd.f32 %v1465, %v1681
        %v1772 = vadd.f32 %v1466, %v1686
        %v1773 = vadd.f32 %v1467, %v1691
        %v1774 = vadd.f32 %v1468, %v1696
        %v1775 = vadd.f32 %v1469, %v1701
        %v1776 = vadd.f32 %v1470, %v1706
        %v1777 = vadd.f32 %v1471, %v1711
        %v1778 = vadd.f32 %v1472, %v1716
        %v1779 = vadd.f32 %v1473, %v1721
        %v1780 = vadd.f32 %v1474, %v1726
        %v1781 = vadd.f32 %v1475, %v1731
        %v1782 = vadd.f32 %v1476, %v1736
        %v1783 = vadd.f32 %v1477, %v1741
        %v1784 = vadd.f32 %v1478, %v1746
        %v1785 = vadd.f32 %v1479, %v1751
        %v1786 = vld [vmem:[%s287 + $0x11] sm:$0xff]
        %v1787 = vld [vmem:[%s287 + $0x19] sm:$0xff]
        %v1788 = vld [vmem:[%s287 + $0x41] sm:$0xff]
        %v1789 = vld [vmem:[%s287 + $0x49] sm:$0xff]
        %v1790 = vld [vmem:[%s287 + $0x71] sm:$0xff]
        %v1791 = vld [vmem:[%s287 + $0x79] sm:$0xff]
        %v1792 = vld [vmem:[%s287 + $0xa1] sm:$0xff]
        %v1793 = vld [vmem:[%s287 + $0xa9] sm:$0xff]
        %v1794 = vld [vmem:[%s287 + $0xd1] sm:$0xff]
        %v1795 = vld [vmem:[%s287 + $0xd9] sm:$0xff]
        %v1796 = vld [vmem:[%s287 + $0x101] sm:$0xff]
        %v1797 = vld [vmem:[%s287 + $0x109] sm:$0xff]
        %v1798 = vld [vmem:[%s287 + $0x131] sm:$0xff]
        %v1799 = vld [vmem:[%s287 + $0x139] sm:$0xff]
        %v1800 = vld [vmem:[%s287 + $0x161] sm:$0xff]
        %v1801 = vld [vmem:[%s287 + $0x169] sm:$0xff]
        %v1802 = vld [vmem:[%s287 + $0x191] sm:$0xff]
        %v1803 = vld [vmem:[%s287 + $0x199] sm:$0xff]
        %v1804 = vld [vmem:[%s287 + $0x1c1] sm:$0xff]
        %v1805 = vld [vmem:[%s287 + $0x1c9] sm:$0xff]
        %v1806 = vld [vmem:[%s287 + $0x1f1] sm:$0xff]
        %v1807 = vld [vmem:[%s287 + $0x1f9] sm:$0xff]
        %v1808 = vld [vmem:[%s287 + $0x221] sm:$0xff]
        %v1809 = vld [vmem:[%s287 + $0x229] sm:$0xff]
        %v1810 = vld [vmem:[%s287 + $0x251] sm:$0xff]
        %v1811 = vld [vmem:[%s287 + $0x259] sm:$0xff]
        %v1812 = vld [vmem:[%s287 + $0x281] sm:$0xff]
        %v1813 = vld [vmem:[%s287 + $0x289] sm:$0xff]
        %v1814 = vld [vmem:[%s287 + $0x2b1] sm:$0xff]
        %v1815 = vld [vmem:[%s287 + $0x2b9] sm:$0xff]
        %v1816 = vld [vmem:[%s287 + $0x2e1] sm:$0xff]
        %v1817 = vld [vmem:[%s287 + $0x2e9] sm:$0xff]
        %s1818 = scalar_lea.vmem [#allocation3], 640
        %v1819 = vld [vmem:[%s1818] sm:$0xff]
        %v1820 = vld [vmem:[%s1818 + $0x8] sm:$0xff]
        %v1821 = vld [vmem:[%s1818 + $0x10] sm:$0xff]
        %v1822 = vld [vmem:[%s1818 + $0x18] sm:$0xff]
        %v1823 = vld [vmem:[%s1818 + $0x20] sm:$0xff]
        %v1824 = vld [vmem:[%s1818 + $0x28] sm:$0xff]
        %v1825 = vld [vmem:[%s1818 + $0x30] sm:$0xff]
        %v1826 = vld [vmem:[%s1818 + $0x38] sm:$0xff]
        %v1827 = vld [vmem:[%s1818 + $0x40] sm:$0xff]
        %v1828 = vld [vmem:[%s1818 + $0x48] sm:$0xff]
        %v1829 = vld [vmem:[%s1818 + $0x50] sm:$0xff]
        %v1830 = vld [vmem:[%s1818 + $0x58] sm:$0xff]
        %v1831 = vld [vmem:[%s1818 + $0x60] sm:$0xff]
        %v1832 = vld [vmem:[%s1818 + $0x68] sm:$0xff]
        %v1833 = vld [vmem:[%s1818 + $0x70] sm:$0xff]
        %v1834 = vld [vmem:[%s1818 + $0x78] sm:$0xff]
        %1835 = vmatprep.subr.mxu0 0.0
        %1836 = vmatpush1.msra.mxu0 %v1819
        %1837 = vmatprep.subr.mxu0 0.0
        %1838 = vmatpush1.msra.mxu0 %v1820
        %1839 = vmatprep.subr.mxu0 0.0
        %1840 = vmatpush1.msra.mxu0 %v1821
        %1841 = vmatprep.subr.mxu0 0.0
        %1842 = vmatpush1.msra.mxu0 %v1822
        %1843 = vmatprep.subr.mxu0 0.0
        %1844 = vmatpush1.msra.mxu0 %v1823
        %1845 = vmatprep.subr.mxu0 0.0
        %1846 = vmatpush1.msra.mxu0 %v1824
        %1847 = vmatprep.subr.mxu0 0.0
        %1848 = vmatpush1.msra.mxu0 %v1825
        %1849 = vmatprep.subr.mxu0 0.0
        %1850 = vmatpush1.msra.mxu0 %v1826
        %1851 = vmatprep.subr.mxu0 0.0
        %1852 = vmatpush1.msra.mxu0 %v1827
        %1853 = vmatprep.subr.mxu0 0.0
        %1854 = vmatpush1.msra.mxu0 %v1828
        %1855 = vmatprep.subr.mxu0 0.0
        %1856 = vmatpush1.msra.mxu0 %v1829
        %1857 = vmatprep.subr.mxu0 0.0
        %1858 = vmatpush1.msra.mxu0 %v1830
        %1859 = vmatprep.subr.mxu0 0.0
        %1860 = vmatpush1.msra.mxu0 %v1831
        %1861 = vmatprep.subr.mxu0 0.0
        %1862 = vmatpush1.msra.mxu0 %v1832
        %1863 = vmatprep.subr.mxu0 0.0
        %1864 = vmatpush1.msra.mxu0 %v1833
        %1865 = vmatprep.subr.mxu0 0.0
        %1866 = vmatpush1.msra.mxu0 %v1834
        %1867 = vmatprep.subr.mxu0 0.0
        %1868 = vmatpush1.msra.mxu0 0.0
        %1869 = vmatprep.subr.mxu0 0.0
        %1870 = vmatpush1.msra.mxu0 0.0
        %1871 = vmatprep.subr.mxu0 0.0
        %1872 = vmatpush1.msra.mxu0 0.0
        %1873 = vmatprep.subr.mxu0 0.0
        %1874 = vmatpush1.msra.mxu0 0.0
        %1875 = vmatprep.subr.mxu0 0.0
        %1876 = vmatpush1.msra.mxu0 0.0
        %1877 = vmatprep.subr.mxu0 0.0
        %1878 = vmatpush1.msra.mxu0 0.0
        %1879 = vmatprep.subr.mxu0 0.0
        %1880 = vmatpush1.msra.mxu0 0.0
        %1881 = vmatprep.subr.mxu0 0.0
        %1882 = vmatpush1.msra.mxu0 0.0
        %1883 = vmatprep.subr.mxu0 0.0
        %1884 = vmatpush1.msra.mxu0 0.0
        %1885 = vmatprep.subr.mxu0 0.0
        %1886 = vmatpush1.msra.mxu0 0.0
        %1887 = vmatprep.subr.mxu0 0.0
        %1888 = vmatpush1.msra.mxu0 0.0
        %1889 = vmatprep.subr.mxu0 0.0
        %1890 = vmatpush1.msra.mxu0 0.0
        %1891 = vmatprep.subr.mxu0 0.0
        %1892 = vmatpush1.msra.mxu0 0.0
        %1893 = vmatprep.subr.mxu0 0.0
        %1894 = vmatpush1.msra.mxu0 0.0
        %1895 = vmatprep.subr.mxu0 0.0
        %1896 = vmatpush1.msra.mxu0 0.0
        %1897 = vmatprep.subr.mxu0 0.0
        %1898 = vmatpush1.msra.mxu0 0.0
        %1899 = vmatprep.mubr.f32.mxu0 0.0
        %1900 = vmatmul.mubr.f32.gmra.mrb[0].mxu0 %v1786
        %v1901 = vpop.f32.mrb[0].mxu0
        %v1902 = vadd.f32 0.0, %v1901
        %v1903 = vpop.f32.mrb[0].mxu0
        %1904 = vmatprep.mubr.f32.mxu0 0.0
        %1905 = vmatmul.mubr.f32.gmra.mrb[0].mxu0 %v1787
        %v1906 = vpop.f32.mrb[0].mxu0
        %v1907 = vadd.f32 0.0, %v1906
        %v1908 = vpop.f32.mrb[0].mxu0
        %1909 = vmatprep.mubr.f32.mxu0 0.0
        %1910 = vmatmul.mubr.f32.gmra.mrb[0].mxu0 %v1788
        %v1911 = vpop.f32.mrb[0].mxu0
        %v1912 = vadd.f32 0.0, %v1911
        %v1913 = vpop.f32.mrb[0].mxu0
        %1914 = vmatprep.mubr.f32.mxu0 0.0
        %1915 = vmatmul.mubr.f32.gmra.mrb[0].mxu0 %v1789
        %v1916 = vpop.f32.mrb[0].mxu0
        %v1917 = vadd.f32 0.0, %v1916
        %v1918 = vpop.f32.mrb[0].mxu0
        %1919 = vmatprep.mubr.f32.mxu0 0.0
        %1920 = vmatmul.mubr.f32.gmra.mrb[0].mxu0 %v1790
        %v1921 = vpop.f32.mrb[0].mxu0
        %v1922 = vadd.f32 0.0, %v1921
        %v1923 = vpop.f32.mrb[0].mxu0
        %1924 = vmatprep.mubr.f32.mxu0 0.0
        %1925 = vmatmul.mubr.f32.gmra.mrb[0].mxu0 %v1791
        %v1926 = vpop.f32.mrb[0].mxu0
        %v1927 = vadd.f32 0.0, %v1926
        %v1928 = vpop.f32.mrb[0].mxu0
        %1929 = vmatprep.mubr.f32.mxu0 0.0
        %1930 = vmatmul.mubr.f32.gmra.mrb[0].mxu0 %v1792
        %v1931 = vpop.f32.mrb[0].mxu0
        %v1932 = vadd.f32 0.0, %v1931
        %v1933 = vpop.f32.mrb[0].mxu0
        %1934 = vmatprep.mubr.f32.mxu0 0.0
        %1935 = vmatmul.mubr.f32.gmra.mrb[0].mxu0 %v1793
        %v1936 = vpop.f32.mrb[0].mxu0
        %v1937 = vadd.f32 0.0, %v1936
        %v1938 = vpop.f32.mrb[0].mxu0
        %1939 = vmatprep.mubr.f32.mxu0 0.0
        %1940 = vmatmul.mubr.f32.gmra.mrb[0].mxu0 %v1794
        %v1941 = vpop.f32.mrb[0].mxu0
        %v1942 = vadd.f32 0.0, %v1941
        %v1943 = vpop.f32.mrb[0].mxu0
        %1944 = vmatprep.mubr.f32.mxu0 0.0
        %1945 = vmatmul.mubr.f32.gmra.mrb[0].mxu0 %v1795
        %v1946 = vpop.f32.mrb[0].mxu0
        %v1947 = vadd.f32 0.0, %v1946
        %v1948 = vpop.f32.mrb[0].mxu0
        %1949 = vmatprep.mubr.f32.mxu0 0.0
        %1950 = vmatmul.mubr.f32.gmra.mrb[0].mxu0 %v1796
        %v1951 = vpop.f32.mrb[0].mxu0
        %v1952 = vadd.f32 0.0, %v1951
        %v1953 = vpop.f32.mrb[0].mxu0
        %1954 = vmatprep.mubr.f32.mxu0 0.0
        %1955 = vmatmul.mubr.f32.gmra.mrb[0].mxu0 %v1797
        %v1956 = vpop.f32.mrb[0].mxu0
        %v1957 = vadd.f32 0.0, %v1956
        %v1958 = vpop.f32.mrb[0].mxu0
        %1959 = vmatprep.mubr.f32.mxu0 0.0
        %1960 = vmatmul.mubr.f32.gmra.mrb[0].mxu0 %v1798
        %v1961 = vpop.f32.mrb[0].mxu0
        %v1962 = vadd.f32 0.0, %v1961
        %v1963 = vpop.f32.mrb[0].mxu0
        %1964 = vmatprep.mubr.f32.mxu0 0.0
        %1965 = vmatmul.mubr.f32.gmra.mrb[0].mxu0 %v1799
        %v1966 = vpop.f32.mrb[0].mxu0
        %v1967 = vadd.f32 0.0, %v1966
        %v1968 = vpop.f32.mrb[0].mxu0
        %1969 = vmatprep.mubr.f32.mxu0 0.0
        %1970 = vmatmul.mubr.f32.gmra.mrb[0].mxu0 %v1800
        %v1971 = vpop.f32.mrb[0].mxu0
        %v1972 = vadd.f32 0.0, %v1971
        %v1973 = vpop.f32.mrb[0].mxu0
        %1974 = vmatprep.mubr.f32.mxu0 0.0
        %1975 = vmatmul.mubr.f32.gmra.mrb[0].mxu0 %v1801
        %v1976 = vpop.f32.mrb[0].mxu0
        %v1977 = vadd.f32 0.0, %v1976
        %v1978 = vpop.f32.mrb[0].mxu0
        %1979 = vmatprep.mubr.f32.mxu0 0.0
        %1980 = vmatmul.mubr.f32.gmra.mrb[0].mxu0 %v1802
        %v1981 = vpop.f32.mrb[0].mxu0
        %v1982 = vadd.f32 0.0, %v1981
        %v1983 = vpop.f32.mrb[0].mxu0
        %1984 = vmatprep.mubr.f32.mxu0 0.0
        %1985 = vmatmul.mubr.f32.gmra.mrb[0].mxu0 %v1803
        %v1986 = vpop.f32.mrb[0].mxu0
        %v1987 = vadd.f32 0.0, %v1986
        %v1988 = vpop.f32.mrb[0].mxu0
        %1989 = vmatprep.mubr.f32.mxu0 0.0
        %1990 = vmatmul.mubr.f32.gmra.mrb[0].mxu0 %v1804
        %v1991 = vpop.f32.mrb[0].mxu0
        %v1992 = vadd.f32 0.0, %v1991
        %v1993 = vpop.f32.mrb[0].mxu0
        %1994 = vmatprep.mubr.f32.mxu0 0.0
        %1995 = vmatmul.mubr.f32.gmra.mrb[0].mxu0 %v1805
        %v1996 = vpop.f32.mrb[0].mxu0
        %v1997 = vadd.f32 0.0, %v1996
        %v1998 = vpop.f32.mrb[0].mxu0
        %1999 = vmatprep.mubr.f32.mxu0 0.0
        %2000 = vmatmul.mubr.f32.gmra.mrb[0].mxu0 %v1806
        %v2001 = vpop.f32.mrb[0].mxu0
        %v2002 = vadd.f32 0.0, %v2001
        %v2003 = vpop.f32.mrb[0].mxu0
        %2004 = vmatprep.mubr.f32.mxu0 0.0
        %2005 = vmatmul.mubr.f32.gmra.mrb[0].mxu0 %v1807
        %v2006 = vpop.f32.mrb[0].mxu0
        %v2007 = vadd.f32 0.0, %v2006
        %v2008 = vpop.f32.mrb[0].mxu0
        %2009 = vmatprep.mubr.f32.mxu0 0.0
        %2010 = vmatmul.mubr.f32.gmra.mrb[0].mxu0 %v1808
        %v2011 = vpop.f32.mrb[0].mxu0
        %v2012 = vadd.f32 0.0, %v2011
        %v2013 = vpop.f32.mrb[0].mxu0
        %2014 = vmatprep.mubr.f32.mxu0 0.0
        %2015 = vmatmul.mubr.f32.gmra.mrb[0].mxu0 %v1809
        %v2016 = vpop.f32.mrb[0].mxu0
        %v2017 = vadd.f32 0.0, %v2016
        %v2018 = vpop.f32.mrb[0].mxu0
        %2019 = vmatprep.mubr.f32.mxu0 0.0
        %2020 = vmatmul.mubr.f32.gmra.mrb[0].mxu0 %v1810
        %v2021 = vpop.f32.mrb[0].mxu0
        %v2022 = vadd.f32 0.0, %v2021
        %v2023 = vpop.f32.mrb[0].mxu0
        %2024 = vmatprep.mubr.f32.mxu0 0.0
        %2025 = vmatmul.mubr.f32.gmra.mrb[0].mxu0 %v1811
        %v2026 = vpop.f32.mrb[0].mxu0
        %v2027 = vadd.f32 0.0, %v2026
        %v2028 = vpop.f32.mrb[0].mxu0
        %2029 = vmatprep.mubr.f32.mxu0 0.0
        %2030 = vmatmul.mubr.f32.gmra.mrb[0].mxu0 %v1812
        %v2031 = vpop.f32.mrb[0].mxu0
        %v2032 = vadd.f32 0.0, %v2031
        %v2033 = vpop.f32.mrb[0].mxu0
        %2034 = vmatprep.mubr.f32.mxu0 0.0
        %2035 = vmatmul.mubr.f32.gmra.mrb[0].mxu0 %v1813
        %v2036 = vpop.f32.mrb[0].mxu0
        %v2037 = vadd.f32 0.0, %v2036
        %v2038 = vpop.f32.mrb[0].mxu0
        %2039 = vmatprep.mubr.f32.mxu0 0.0
        %2040 = vmatmul.mubr.f32.gmra.mrb[0].mxu0 %v1814
        %v2041 = vpop.f32.mrb[0].mxu0
        %v2042 = vadd.f32 0.0, %v2041
        %v2043 = vpop.f32.mrb[0].mxu0
        %2044 = vmatprep.mubr.f32.mxu0 0.0
        %2045 = vmatmul.mubr.f32.gmra.mrb[0].mxu0 %v1815
        %v2046 = vpop.f32.mrb[0].mxu0
        %v2047 = vadd.f32 0.0, %v2046
        %v2048 = vpop.f32.mrb[0].mxu0
        %2049 = vmatprep.mubr.f32.mxu0 0.0
        %2050 = vmatmul.mubr.f32.gmra.mrb[0].mxu0 %v1816
        %v2051 = vpop.f32.mrb[0].mxu0
        %v2052 = vadd.f32 0.0, %v2051
        %v2053 = vpop.f32.mrb[0].mxu0
        %2054 = vmatprep.mubr.f32.mxu0 0.0
        %2055 = vmatmul.mubr.f32.gmra.mrb[0].mxu0 %v1817
        %v2056 = vpop.f32.mrb[0].mxu0
        %v2057 = vadd.f32 0.0, %v2056
        %v2058 = vpop.f32.mrb[0].mxu0
        %2059 = vdwg.mxu0
        %v2060 = vadd.f32 %v1754, %v1902
        %v2061 = vadd.f32 %v1755, %v1907
        %v2062 = vadd.f32 %v1756, %v1912
        %v2063 = vadd.f32 %v1757, %v1917
        %v2064 = vadd.f32 %v1758, %v1922
        %v2065 = vadd.f32 %v1759, %v1927
        %v2066 = vadd.f32 %v1760, %v1932
        %v2067 = vadd.f32 %v1761, %v1937
        %v2068 = vadd.f32 %v1762, %v1942
        %v2069 = vadd.f32 %v1763, %v1947
        %v2070 = vadd.f32 %v1764, %v1952
        %v2071 = vadd.f32 %v1765, %v1957
        %v2072 = vadd.f32 %v1766, %v1962
        %v2073 = vadd.f32 %v1767, %v1967
        %v2074 = vadd.f32 %v1768, %v1972
        %v2075 = vadd.f32 %v1769, %v1977
        %v2076 = vadd.f32 %v1770, %v1982
        %v2077 = vadd.f32 %v1771, %v1987
        %v2078 = vadd.f32 %v1772, %v1992
        %v2079 = vadd.f32 %v1773, %v1997
        %v2080 = vadd.f32 %v1774, %v2002
        %v2081 = vadd.f32 %v1775, %v2007
        %v2082 = vadd.f32 %v1776, %v2012
        %v2083 = vadd.f32 %v1777, %v2017
        %v2084 = vadd.f32 %v1778, %v2022
        %v2085 = vadd.f32 %v1779, %v2027
        %v2086 = vadd.f32 %v1780, %v2032
        %v2087 = vadd.f32 %v1781, %v2037
        %v2088 = vadd.f32 %v1782, %v2042
        %v2089 = vadd.f32 %v1783, %v2047
        %v2090 = vadd.f32 %v1784, %v2052
        %v2091 = vadd.f32 %v1785, %v2057
        %s2092 = scalar_lea.vmem [#allocation2], 96
        %v2093 = vld [vmem:[%s2092 + $0xf] sm:$0xff]
        %v2094 = vld [vmem:[%s2092 + $0x17] sm:$0xff]
        %v2095 = vld [vmem:[%s2092 + $0x3f] sm:$0xff]
        %v2096 = vld [vmem:[%s2092 + $0x47] sm:$0xff]
        %v2097 = vld [vmem:[%s2092 + $0x6f] sm:$0xff]
        %v2098 = vld [vmem:[%s2092 + $0x77] sm:$0xff]
        %v2099 = vld [vmem:[%s2092 + $0x9f] sm:$0xff]
        %v2100 = vld [vmem:[%s2092 + $0xa7] sm:$0xff]
        %v2101 = vld [vmem:[%s2092 + $0xcf] sm:$0xff]
        %v2102 = vld [vmem:[%s2092 + $0xd7] sm:$0xff]
        %v2103 = vld [vmem:[%s2092 + $0xff] sm:$0xff]
        %v2104 = vld [vmem:[%s2092 + $0x107] sm:$0xff]
        %v2105 = vld [vmem:[%s2092 + $0x12f] sm:$0xff]
        %v2106 = vld [vmem:[%s2092 + $0x137] sm:$0xff]
        %v2107 = vld [vmem:[%s2092 + $0x15f] sm:$0xff]
        %v2108 = vld [vmem:[%s2092 + $0x167] sm:$0xff]
        %v2109 = vld [vmem:[%s2092 + $0x18f] sm:$0xff]
        %v2110 = vld [vmem:[%s2092 + $0x197] sm:$0xff]
        %v2111 = vld [vmem:[%s2092 + $0x1bf] sm:$0xff]
        %v2112 = vld [vmem:[%s2092 + $0x1c7] sm:$0xff]
        %v2113 = vld [vmem:[%s2092 + $0x1ef] sm:$0xff]
        %v2114 = vld [vmem:[%s2092 + $0x1f7] sm:$0xff]
        %v2115 = vld [vmem:[%s2092 + $0x21f] sm:$0xff]
        %v2116 = vld [vmem:[%s2092 + $0x227] sm:$0xff]
        %v2117 = vld [vmem:[%s2092 + $0x24f] sm:$0xff]
        %v2118 = vld [vmem:[%s2092 + $0x257] sm:$0xff]
        %v2119 = vld [vmem:[%s2092 + $0x27f] sm:$0xff]
        %v2120 = vld [vmem:[%s2092 + $0x287] sm:$0xff]
        %v2121 = vld [vmem:[%s2092 + $0x2af] sm:$0xff]
        %v2122 = vld [vmem:[%s2092 + $0x2b7] sm:$0xff]
        %v2123 = vld [vmem:[%s2092 + $0x2df] sm:$0xff]
        %v2124 = vld [vmem:[%s2092 + $0x2e7] sm:$0xff]
        %s2125 = scalar_lea.vmem [#allocation3], 768
        %v2126 = vld [vmem:[%s2125] sm:$0xff]
        %v2127 = vld [vmem:[%s2125 + $0x8] sm:$0xff]
        %v2128 = vld [vmem:[%s2125 + $0x10] sm:$0xff]
        %v2129 = vld [vmem:[%s2125 + $0x18] sm:$0xff]
        %v2130 = vld [vmem:[%s2125 + $0x20] sm:$0xff]
        %v2131 = vld [vmem:[%s2125 + $0x28] sm:$0xff]
        %v2132 = vld [vmem:[%s2125 + $0x30] sm:$0xff]
        %v2133 = vld [vmem:[%s2125 + $0x38] sm:$0xff]
        %v2134 = vld [vmem:[%s2125 + $0x40] sm:$0xff]
        %v2135 = vld [vmem:[%s2125 + $0x48] sm:$0xff]
        %v2136 = vld [vmem:[%s2125 + $0x50] sm:$0xff]
        %v2137 = vld [vmem:[%s2125 + $0x58] sm:$0xff]
        %v2138 = vld [vmem:[%s2125 + $0x60] sm:$0xff]
        %v2139 = vld [vmem:[%s2125 + $0x68] sm:$0xff]
        %v2140 = vld [vmem:[%s2125 + $0x70] sm:$0xff]
        %v2141 = vld [vmem:[%s2125 + $0x78] sm:$0xff]
        %2142 = vmatprep.subr.mxu0 0.0
        %2143 = vmatpush1.msra.mxu0 %v2126
        %2144 = vmatprep.subr.mxu0 0.0
        %2145 = vmatpush1.msra.mxu0 %v2127
        %2146 = vmatprep.subr.mxu0 0.0
        %2147 = vmatpush1.msra.mxu0 %v2128
        %2148 = vmatprep.subr.mxu0 0.0
        %2149 = vmatpush1.msra.mxu0 %v2129
        %2150 = vmatprep.subr.mxu0 0.0
        %2151 = vmatpush1.msra.mxu0 %v2130
        %2152 = vmatprep.subr.mxu0 0.0
        %2153 = vmatpush1.msra.mxu0 %v2131
        %2154 = vmatprep.subr.mxu0 0.0
        %2155 = vmatpush1.msra.mxu0 %v2132
        %2156 = vmatprep.subr.mxu0 0.0
        %2157 = vmatpush1.msra.mxu0 %v2133
        %2158 = vmatprep.subr.mxu0 0.0
        %2159 = vmatpush1.msra.mxu0 %v2134
        %2160 = vmatprep.subr.mxu0 0.0
        %2161 = vmatpush1.msra.mxu0 %v2135
        %2162 = vmatprep.subr.mxu0 0.0
        %2163 = vmatpush1.msra.mxu0 %v2136
        %2164 = vmatprep.subr.mxu0 0.0
        %2165 = vmatpush1.msra.mxu0 %v2137
        %2166 = vmatprep.subr.mxu0 0.0
        %2167 = vmatpush1.msra.mxu0 %v2138
        %2168 = vmatprep.subr.mxu0 0.0
        %2169 = vmatpush1.msra.mxu0 %v2139
        %2170 = vmatprep.subr.mxu0 0.0
        %2171 = vmatpush1.msra.mxu0 %v2140
        %2172 = vmatprep.subr.mxu0 0.0
        %2173 = vmatpush1.msra.mxu0 %v2141
        %2174 = vmatprep.subr.mxu0 0.0
        %2175 = vmatpush1.msra.mxu0 0.0
        %2176 = vmatprep.subr.mxu0 0.0
        %2177 = vmatpush1.msra.mxu0 0.0
        %2178 = vmatprep.subr.mxu0 0.0
        %2179 = vmatpush1.msra.mxu0 0.0
        %2180 = vmatprep.subr.mxu0 0.0
        %2181 = vmatpush1.msra.mxu0 0.0
        %2182 = vmatprep.subr.mxu0 0.0
        %2183 = vmatpush1.msra.mxu0 0.0
        %2184 = vmatprep.subr.mxu0 0.0
        %2185 = vmatpush1.msra.mxu0 0.0
        %2186 = vmatprep.subr.mxu0 0.0
        %2187 = vmatpush1.msra.mxu0 0.0
        %2188 = vmatprep.subr.mxu0 0.0
        %2189 = vmatpush1.msra.mxu0 0.0
        %2190 = vmatprep.subr.mxu0 0.0
        %2191 = vmatpush1.msra.mxu0 0.0
        %2192 = vmatprep.subr.mxu0 0.0
        %2193 = vmatpush1.msra.mxu0 0.0
        %2194 = vmatprep.subr.mxu0 0.0
        %2195 = vmatpush1.msra.mxu0 0.0
        %2196 = vmatprep.subr.mxu0 0.0
        %2197 = vmatpush1.msra.mxu0 0.0
        %2198 = vmatprep.subr.mxu0 0.0
        %2199 = vmatpush1.msra.mxu0 0.0
        %2200 = vmatprep.subr.mxu0 0.0
        %2201 = vmatpush1.msra.mxu0 0.0
        %2202 = vmatprep.subr.mxu0 0.0
        %2203 = vmatpush1.msra.mxu0 0.0
        %2204 = vmatprep.subr.mxu0 0.0
        %2205 = vmatpush1.msra.mxu0 0.0
        %2206 = vmatprep.mubr.f32.mxu0 0.0
        %2207 = vmatmul.mubr.f32.gmra.mrb[0].mxu0 %v2093
        %v2208 = vpop.f32.mrb[0].mxu0
        %v2209 = vadd.f32 0.0, %v2208
        %v2210 = vpop.f32.mrb[0].mxu0
        %2211 = vmatprep.mubr.f32.mxu0 0.0
        %2212 = vmatmul.mubr.f32.gmra.mrb[0].mxu0 %v2094
        %v2213 = vpop.f32.mrb[0].mxu0
        %v2214 = vadd.f32 0.0, %v2213
        %v2215 = vpop.f32.mrb[0].mxu0
        %2216 = vmatprep.mubr.f32.mxu0 0.0
        %2217 = vmatmul.mubr.f32.gmra.mrb[0].mxu0 %v2095
        %v2218 = vpop.f32.mrb[0].mxu0
        %v2219 = vadd.f32 0.0, %v2218
        %v2220 = vpop.f32.mrb[0].mxu0
        %2221 = vmatprep.mubr.f32.mxu0 0.0
        %2222 = vmatmul.mubr.f32.gmra.mrb[0].mxu0 %v2096
        %v2223 = vpop.f32.mrb[0].mxu0
        %v2224 = vadd.f32 0.0, %v2223
        %v2225 = vpop.f32.mrb[0].mxu0
        %2226 = vmatprep.mubr.f32.mxu0 0.0
        %2227 = vmatmul.mubr.f32.gmra.mrb[0].mxu0 %v2097
        %v2228 = vpop.f32.mrb[0].mxu0
        %v2229 = vadd.f32 0.0, %v2228
        %v2230 = vpop.f32.mrb[0].mxu0
        %2231 = vmatprep.mubr.f32.mxu0 0.0
        %2232 = vmatmul.mubr.f32.gmra.mrb[0].mxu0 %v2098
        %v2233 = vpop.f32.mrb[0].mxu0
        %v2234 = vadd.f32 0.0, %v2233
        %v2235 = vpop.f32.mrb[0].mxu0
        %2236 = vmatprep.mubr.f32.mxu0 0.0
        %2237 = vmatmul.mubr.f32.gmra.mrb[0].mxu0 %v2099
        %v2238 = vpop.f32.mrb[0].mxu0
        %v2239 = vadd.f32 0.0, %v2238
        %v2240 = vpop.f32.mrb[0].mxu0
        %2241 = vmatprep.mubr.f32.mxu0 0.0
        %2242 = vmatmul.mubr.f32.gmra.mrb[0].mxu0 %v2100
        %v2243 = vpop.f32.mrb[0].mxu0
        %v2244 = vadd.f32 0.0, %v2243
        %v2245 = vpop.f32.mrb[0].mxu0
        %2246 = vmatprep.mubr.f32.mxu0 0.0
        %2247 = vmatmul.mubr.f32.gmra.mrb[0].mxu0 %v2101
        %v2248 = vpop.f32.mrb[0].mxu0
        %v2249 = vadd.f32 0.0, %v2248
        %v2250 = vpop.f32.mrb[0].mxu0
        %2251 = vmatprep.mubr.f32.mxu0 0.0
        %2252 = vmatmul.mubr.f32.gmra.mrb[0].mxu0 %v2102
        %v2253 = vpop.f32.mrb[0].mxu0
        %v2254 = vadd.f32 0.0, %v2253
        %v2255 = vpop.f32.mrb[0].mxu0
        %2256 = vmatprep.mubr.f32.mxu0 0.0
        %2257 = vmatmul.mubr.f32.gmra.mrb[0].mxu0 %v2103
        %v2258 = vpop.f32.mrb[0].mxu0
        %v2259 = vadd.f32 0.0, %v2258
        %v2260 = vpop.f32.mrb[0].mxu0
        %2261 = vmatprep.mubr.f32.mxu0 0.0
        %2262 = vmatmul.mubr.f32.gmra.mrb[0].mxu0 %v2104
        %v2263 = vpop.f32.mrb[0].mxu0
        %v2264 = vadd.f32 0.0, %v2263
        %v2265 = vpop.f32.mrb[0].mxu0
        %2266 = vmatprep.mubr.f32.mxu0 0.0
        %2267 = vmatmul.mubr.f32.gmra.mrb[0].mxu0 %v2105
        %v2268 = vpop.f32.mrb[0].mxu0
        %v2269 = vadd.f32 0.0, %v2268
        %v2270 = vpop.f32.mrb[0].mxu0
        %2271 = vmatprep.mubr.f32.mxu0 0.0
        %2272 = vmatmul.mubr.f32.gmra.mrb[0].mxu0 %v2106
        %v2273 = vpop.f32.mrb[0].mxu0
        %v2274 = vadd.f32 0.0, %v2273
        %v2275 = vpop.f32.mrb[0].mxu0
        %2276 = vmatprep.mubr.f32.mxu0 0.0
        %2277 = vmatmul.mubr.f32.gmra.mrb[0].mxu0 %v2107
        %v2278 = vpop.f32.mrb[0].mxu0
        %v2279 = vadd.f32 0.0, %v2278
        %v2280 = vpop.f32.mrb[0].mxu0
        %2281 = vmatprep.mubr.f32.mxu0 0.0
        %2282 = vmatmul.mubr.f32.gmra.mrb[0].mxu0 %v2108
        %v2283 = vpop.f32.mrb[0].mxu0
        %v2284 = vadd.f32 0.0, %v2283
        %v2285 = vpop.f32.mrb[0].mxu0
        %2286 = vmatprep.mubr.f32.mxu0 0.0
        %2287 = vmatmul.mubr.f32.gmra.mrb[0].mxu0 %v2109
        %v2288 = vpop.f32.mrb[0].mxu0
        %v2289 = vadd.f32 0.0, %v2288
        %v2290 = vpop.f32.mrb[0].mxu0
        %2291 = vmatprep.mubr.f32.mxu0 0.0
        %2292 = vmatmul.mubr.f32.gmra.mrb[0].mxu0 %v2110
        %v2293 = vpop.f32.mrb[0].mxu0
        %v2294 = vadd.f32 0.0, %v2293
        %v2295 = vpop.f32.mrb[0].mxu0
        %2296 = vmatprep.mubr.f32.mxu0 0.0
        %2297 = vmatmul.mubr.f32.gmra.mrb[0].mxu0 %v2111
        %v2298 = vpop.f32.mrb[0].mxu0
        %v2299 = vadd.f32 0.0, %v2298
        %v2300 = vpop.f32.mrb[0].mxu0
        %2301 = vmatprep.mubr.f32.mxu0 0.0
        %2302 = vmatmul.mubr.f32.gmra.mrb[0].mxu0 %v2112
        %v2303 = vpop.f32.mrb[0].mxu0
        %v2304 = vadd.f32 0.0, %v2303
        %v2305 = vpop.f32.mrb[0].mxu0
        %2306 = vmatprep.mubr.f32.mxu0 0.0
        %2307 = vmatmul.mubr.f32.gmra.mrb[0].mxu0 %v2113
        %v2308 = vpop.f32.mrb[0].mxu0
        %v2309 = vadd.f32 0.0, %v2308
        %v2310 = vpop.f32.mrb[0].mxu0
        %2311 = vmatprep.mubr.f32.mxu0 0.0
        %2312 = vmatmul.mubr.f32.gmra.mrb[0].mxu0 %v2114
        %v2313 = vpop.f32.mrb[0].mxu0
        %v2314 = vadd.f32 0.0, %v2313
        %v2315 = vpop.f32.mrb[0].mxu0
        %2316 = vmatprep.mubr.f32.mxu0 0.0
        %2317 = vmatmul.mubr.f32.gmra.mrb[0].mxu0 %v2115
        %v2318 = vpop.f32.mrb[0].mxu0
        %v2319 = vadd.f32 0.0, %v2318
        %v2320 = vpop.f32.mrb[0].mxu0
        %2321 = vmatprep.mubr.f32.mxu0 0.0
        %2322 = vmatmul.mubr.f32.gmra.mrb[0].mxu0 %v2116
        %v2323 = vpop.f32.mrb[0].mxu0
        %v2324 = vadd.f32 0.0, %v2323
        %v2325 = vpop.f32.mrb[0].mxu0
        %2326 = vmatprep.mubr.f32.mxu0 0.0
        %2327 = vmatmul.mubr.f32.gmra.mrb[0].mxu0 %v2117
        %v2328 = vpop.f32.mrb[0].mxu0
        %v2329 = vadd.f32 0.0, %v2328
        %v2330 = vpop.f32.mrb[0].mxu0
        %2331 = vmatprep.mubr.f32.mxu0 0.0
        %2332 = vmatmul.mubr.f32.gmra.mrb[0].mxu0 %v2118
        %v2333 = vpop.f32.mrb[0].mxu0
        %v2334 = vadd.f32 0.0, %v2333
        %v2335 = vpop.f32.mrb[0].mxu0
        %2336 = vmatprep.mubr.f32.mxu0 0.0
        %2337 = vmatmul.mubr.f32.gmra.mrb[0].mxu0 %v2119
        %v2338 = vpop.f32.mrb[0].mxu0
        %v2339 = vadd.f32 0.0, %v2338
        %v2340 = vpop.f32.mrb[0].mxu0
        %2341 = vmatprep.mubr.f32.mxu0 0.0
        %2342 = vmatmul.mubr.f32.gmra.mrb[0].mxu0 %v2120
        %v2343 = vpop.f32.mrb[0].mxu0
        %v2344 = vadd.f32 0.0, %v2343
        %v2345 = vpop.f32.mrb[0].mxu0
        %2346 = vmatprep.mubr.f32.mxu0 0.0
        %2347 = vmatmul.mubr.f32.gmra.mrb[0].mxu0 %v2121
        %v2348 = vpop.f32.mrb[0].mxu0
        %v2349 = vadd.f32 0.0, %v2348
        %v2350 = vpop.f32.mrb[0].mxu0
        %2351 = vmatprep.mubr.f32.mxu0 0.0
        %2352 = vmatmul.mubr.f32.gmra.mrb[0].mxu0 %v2122
        %v2353 = vpop.f32.mrb[0].mxu0
        %v2354 = vadd.f32 0.0, %v2353
        %v2355 = vpop.f32.mrb[0].mxu0
        %2356 = vmatprep.mubr.f32.mxu0 0.0
        %2357 = vmatmul.mubr.f32.gmra.mrb[0].mxu0 %v2123
        %v2358 = vpop.f32.mrb[0].mxu0
        %v2359 = vadd.f32 0.0, %v2358
        %v2360 = vpop.f32.mrb[0].mxu0
        %2361 = vmatprep.mubr.f32.mxu0 0.0
        %2362 = vmatmul.mubr.f32.gmra.mrb[0].mxu0 %v2124
        %v2363 = vpop.f32.mrb[0].mxu0
        %v2364 = vadd.f32 0.0, %v2363
        %v2365 = vpop.f32.mrb[0].mxu0
        %2366 = vdwg.mxu0
        %v2367 = vadd.f32 %v2060, %v2209
        %v2368 = vadd.f32 %v2061, %v2214
        %v2369 = vadd.f32 %v2062, %v2219
        %v2370 = vadd.f32 %v2063, %v2224
        %v2371 = vadd.f32 %v2064, %v2229
        %v2372 = vadd.f32 %v2065, %v2234
        %v2373 = vadd.f32 %v2066, %v2239
        %v2374 = vadd.f32 %v2067, %v2244
        %v2375 = vadd.f32 %v2068, %v2249
        %v2376 = vadd.f32 %v2069, %v2254
        %v2377 = vadd.f32 %v2070, %v2259
        %v2378 = vadd.f32 %v2071, %v2264
        %v2379 = vadd.f32 %v2072, %v2269
        %v2380 = vadd.f32 %v2073, %v2274
        %v2381 = vadd.f32 %v2074, %v2279
        %v2382 = vadd.f32 %v2075, %v2284
        %v2383 = vadd.f32 %v2076, %v2289
        %v2384 = vadd.f32 %v2077, %v2294
        %v2385 = vadd.f32 %v2078, %v2299
        %v2386 = vadd.f32 %v2079, %v2304
        %v2387 = vadd.f32 %v2080, %v2309
        %v2388 = vadd.f32 %v2081, %v2314
        %v2389 = vadd.f32 %v2082, %v2319
        %v2390 = vadd.f32 %v2083, %v2324
        %v2391 = vadd.f32 %v2084, %v2329
        %v2392 = vadd.f32 %v2085, %v2334
        %v2393 = vadd.f32 %v2086, %v2339
        %v2394 = vadd.f32 %v2087, %v2344
        %v2395 = vadd.f32 %v2088, %v2349
        %v2396 = vadd.f32 %v2089, %v2354
        %v2397 = vadd.f32 %v2090, %v2359
        %v2398 = vadd.f32 %v2091, %v2364
        %v2399 = vld [vmem:[%s2092 + $0x10] sm:$0xff]
        %v2400 = vld [vmem:[%s2092 + $0x18] sm:$0xff]
        %v2401 = vld [vmem:[%s2092 + $0x40] sm:$0xff]
        %v2402 = vld [vmem:[%s2092 + $0x48] sm:$0xff]
        %v2403 = vld [vmem:[%s2092 + $0x70] sm:$0xff]
        %v2404 = vld [vmem:[%s2092 + $0x78] sm:$0xff]
        %v2405 = vld [vmem:[%s2092 + $0xa0] sm:$0xff]
        %v2406 = vld [vmem:[%s2092 + $0xa8] sm:$0xff]
        %v2407 = vld [vmem:[%s2092 + $0xd0] sm:$0xff]
        %v2408 = vld [vmem:[%s2092 + $0xd8] sm:$0xff]
        %v2409 = vld [vmem:[%s2092 + $0x100] sm:$0xff]
        %v2410 = vld [vmem:[%s2092 + $0x108] sm:$0xff]
        %v2411 = vld [vmem:[%s2092 + $0x130] sm:$0xff]
        %v2412 = vld [vmem:[%s2092 + $0x138] sm:$0xff]
        %v2413 = vld [vmem:[%s2092 + $0x160] sm:$0xff]
        %v2414 = vld [vmem:[%s2092 + $0x168] sm:$0xff]
        %v2415 = vld [vmem:[%s2092 + $0x190] sm:$0xff]
        %v2416 = vld [vmem:[%s2092 + $0x198] sm:$0xff]
        %v2417 = vld [vmem:[%s2092 + $0x1c0] sm:$0xff]
        %v2418 = vld [vmem:[%s2092 + $0x1c8] sm:$0xff]
        %v2419 = vld [vmem:[%s2092 + $0x1f0] sm:$0xff]
        %v2420 = vld [vmem:[%s2092 + $0x1f8] sm:$0xff]
        %v2421 = vld [vmem:[%s2092 + $0x220] sm:$0xff]
        %v2422 = vld [vmem:[%s2092 + $0x228] sm:$0xff]
        %v2423 = vld [vmem:[%s2092 + $0x250] sm:$0xff]
        %v2424 = vld [vmem:[%s2092 + $0x258] sm:$0xff]
        %v2425 = vld [vmem:[%s2092 + $0x280] sm:$0xff]
        %v2426 = vld [vmem:[%s2092 + $0x288] sm:$0xff]
        %v2427 = vld [vmem:[%s2092 + $0x2b0] sm:$0xff]
        %v2428 = vld [vmem:[%s2092 + $0x2b8] sm:$0xff]
        %v2429 = vld [vmem:[%s2092 + $0x2e0] sm:$0xff]
        %v2430 = vld [vmem:[%s2092 + $0x2e8] sm:$0xff]
        %s2431 = scalar_lea.vmem [#allocation3], 896
        %v2432 = vld [vmem:[%s2431] sm:$0xff]
        %v2433 = vld [vmem:[%s2431 + $0x8] sm:$0xff]
        %v2434 = vld [vmem:[%s2431 + $0x10] sm:$0xff]
        %v2435 = vld [vmem:[%s2431 + $0x18] sm:$0xff]
        %v2436 = vld [vmem:[%s2431 + $0x20] sm:$0xff]
        %v2437 = vld [vmem:[%s2431 + $0x28] sm:$0xff]
        %v2438 = vld [vmem:[%s2431 + $0x30] sm:$0xff]
        %v2439 = vld [vmem:[%s2431 + $0x38] sm:$0xff]
        %v2440 = vld [vmem:[%s2431 + $0x40] sm:$0xff]
        %v2441 = vld [vmem:[%s2431 + $0x48] sm:$0xff]
        %v2442 = vld [vmem:[%s2431 + $0x50] sm:$0xff]
        %v2443 = vld [vmem:[%s2431 + $0x58] sm:$0xff]
        %v2444 = vld [vmem:[%s2431 + $0x60] sm:$0xff]
        %v2445 = vld [vmem:[%s2431 + $0x68] sm:$0xff]
        %v2446 = vld [vmem:[%s2431 + $0x70] sm:$0xff]
        %v2447 = vld [vmem:[%s2431 + $0x78] sm:$0xff]
        %2448 = vmatprep.subr.mxu0 0.0
        %2449 = vmatpush1.msra.mxu0 %v2432
        %2450 = vmatprep.subr.mxu0 0.0
        %2451 = vmatpush1.msra.mxu0 %v2433
        %2452 = vmatprep.subr.mxu0 0.0
        %2453 = vmatpush1.msra.mxu0 %v2434
        %2454 = vmatprep.subr.mxu0 0.0
        %2455 = vmatpush1.msra.mxu0 %v2435
        %2456 = vmatprep.subr.mxu0 0.0
        %2457 = vmatpush1.msra.mxu0 %v2436
        %2458 = vmatprep.subr.mxu0 0.0
        %2459 = vmatpush1.msra.mxu0 %v2437
        %2460 = vmatprep.subr.mxu0 0.0
        %2461 = vmatpush1.msra.mxu0 %v2438
        %2462 = vmatprep.subr.mxu0 0.0
        %2463 = vmatpush1.msra.mxu0 %v2439
        %2464 = vmatprep.subr.mxu0 0.0
        %2465 = vmatpush1.msra.mxu0 %v2440
        %2466 = vmatprep.subr.mxu0 0.0
        %2467 = vmatpush1.msra.mxu0 %v2441
        %2468 = vmatprep.subr.mxu0 0.0
        %2469 = vmatpush1.msra.mxu0 %v2442
        %2470 = vmatprep.subr.mxu0 0.0
        %2471 = vmatpush1.msra.mxu0 %v2443
        %2472 = vmatprep.subr.mxu0 0.0
        %2473 = vmatpush1.msra.mxu0 %v2444
        %2474 = vmatprep.subr.mxu0 0.0
        %2475 = vmatpush1.msra.mxu0 %v2445
        %2476 = vmatprep.subr.mxu0 0.0
        %2477 = vmatpush1.msra.mxu0 %v2446
        %2478 = vmatprep.subr.mxu0 0.0
        %2479 = vmatpush1.msra.mxu0 %v2447
        %2480 = vmatprep.subr.mxu0 0.0
        %2481 = vmatpush1.msra.mxu0 0.0
        %2482 = vmatprep.subr.mxu0 0.0
        %2483 = vmatpush1.msra.mxu0 0.0
        %2484 = vmatprep.subr.mxu0 0.0
        %2485 = vmatpush1.msra.mxu0 0.0
        %2486 = vmatprep.subr.mxu0 0.0
        %2487 = vmatpush1.msra.mxu0 0.0
        %2488 = vmatprep.subr.mxu0 0.0
        %2489 = vmatpush1.msra.mxu0 0.0
        %2490 = vmatprep.subr.mxu0 0.0
        %2491 = vmatpush1.msra.mxu0 0.0
        %2492 = vmatprep.subr.mxu0 0.0
        %2493 = vmatpush1.msra.mxu0 0.0
        %2494 = vmatprep.subr.mxu0 0.0
        %2495 = vmatpush1.msra.mxu0 0.0
        %2496 = vmatprep.subr.mxu0 0.0
        %2497 = vmatpush1.msra.mxu0 0.0
        %2498 = vmatprep.subr.mxu0 0.0
        %2499 = vmatpush1.msra.mxu0 0.0
        %2500 = vmatprep.subr.mxu0 0.0
        %2501 = vmatpush1.msra.mxu0 0.0
        %2502 = vmatprep.subr.mxu0 0.0
        %2503 = vmatpush1.msra.mxu0 0.0
        %2504 = vmatprep.subr.mxu0 0.0
        %2505 = vmatpush1.msra.mxu0 0.0
        %2506 = vmatprep.subr.mxu0 0.0
        %2507 = vmatpush1.msra.mxu0 0.0
        %2508 = vmatprep.subr.mxu0 0.0
        %2509 = vmatpush1.msra.mxu0 0.0
        %2510 = vmatprep.subr.mxu0 0.0
        %2511 = vmatpush1.msra.mxu0 0.0
        %2512 = vmatprep.mubr.f32.mxu0 0.0
        %2513 = vmatmul.mubr.f32.gmra.mrb[0].mxu0 %v2399
        %v2514 = vpop.f32.mrb[0].mxu0
        %v2515 = vadd.f32 0.0, %v2514
        %v2516 = vpop.f32.mrb[0].mxu0
        %2517 = vmatprep.mubr.f32.mxu0 0.0
        %2518 = vmatmul.mubr.f32.gmra.mrb[0].mxu0 %v2400
        %v2519 = vpop.f32.mrb[0].mxu0
        %v2520 = vadd.f32 0.0, %v2519
        %v2521 = vpop.f32.mrb[0].mxu0
        %2522 = vmatprep.mubr.f32.mxu0 0.0
        %2523 = vmatmul.mubr.f32.gmra.mrb[0].mxu0 %v2401
        %v2524 = vpop.f32.mrb[0].mxu0
        %v2525 = vadd.f32 0.0, %v2524
        %v2526 = vpop.f32.mrb[0].mxu0
        %2527 = vmatprep.mubr.f32.mxu0 0.0
        %2528 = vmatmul.mubr.f32.gmra.mrb[0].mxu0 %v2402
        %v2529 = vpop.f32.mrb[0].mxu0
        %v2530 = vadd.f32 0.0, %v2529
        %v2531 = vpop.f32.mrb[0].mxu0
        %2532 = vmatprep.mubr.f32.mxu0 0.0
        %2533 = vmatmul.mubr.f32.gmra.mrb[0].mxu0 %v2403
        %v2534 = vpop.f32.mrb[0].mxu0
        %v2535 = vadd.f32 0.0, %v2534
        %v2536 = vpop.f32.mrb[0].mxu0
        %2537 = vmatprep.mubr.f32.mxu0 0.0
        %2538 = vmatmul.mubr.f32.gmra.mrb[0].mxu0 %v2404
        %v2539 = vpop.f32.mrb[0].mxu0
        %v2540 = vadd.f32 0.0, %v2539
        %v2541 = vpop.f32.mrb[0].mxu0
        %2542 = vmatprep.mubr.f32.mxu0 0.0
        %2543 = vmatmul.mubr.f32.gmra.mrb[0].mxu0 %v2405
        %v2544 = vpop.f32.mrb[0].mxu0
        %v2545 = vadd.f32 0.0, %v2544
        %v2546 = vpop.f32.mrb[0].mxu0
        %2547 = vmatprep.mubr.f32.mxu0 0.0
        %2548 = vmatmul.mubr.f32.gmra.mrb[0].mxu0 %v2406
        %v2549 = vpop.f32.mrb[0].mxu0
        %v2550 = vadd.f32 0.0, %v2549
        %v2551 = vpop.f32.mrb[0].mxu0
        %2552 = vmatprep.mubr.f32.mxu0 0.0
        %2553 = vmatmul.mubr.f32.gmra.mrb[0].mxu0 %v2407
        %v2554 = vpop.f32.mrb[0].mxu0
        %v2555 = vadd.f32 0.0, %v2554
        %v2556 = vpop.f32.mrb[0].mxu0
        %2557 = vmatprep.mubr.f32.mxu0 0.0
        %2558 = vmatmul.mubr.f32.gmra.mrb[0].mxu0 %v2408
        %v2559 = vpop.f32.mrb[0].mxu0
        %v2560 = vadd.f32 0.0, %v2559
        %v2561 = vpop.f32.mrb[0].mxu0
        %2562 = vmatprep.mubr.f32.mxu0 0.0
        %2563 = vmatmul.mubr.f32.gmra.mrb[0].mxu0 %v2409
        %v2564 = vpop.f32.mrb[0].mxu0
        %v2565 = vadd.f32 0.0, %v2564
        %v2566 = vpop.f32.mrb[0].mxu0
        %2567 = vmatprep.mubr.f32.mxu0 0.0
        %2568 = vmatmul.mubr.f32.gmra.mrb[0].mxu0 %v2410
        %v2569 = vpop.f32.mrb[0].mxu0
        %v2570 = vadd.f32 0.0, %v2569
        %v2571 = vpop.f32.mrb[0].mxu0
        %2572 = vmatprep.mubr.f32.mxu0 0.0
        %2573 = vmatmul.mubr.f32.gmra.mrb[0].mxu0 %v2411
        %v2574 = vpop.f32.mrb[0].mxu0
        %v2575 = vadd.f32 0.0, %v2574
        %v2576 = vpop.f32.mrb[0].mxu0
        %2577 = vmatprep.mubr.f32.mxu0 0.0
        %2578 = vmatmul.mubr.f32.gmra.mrb[0].mxu0 %v2412
        %v2579 = vpop.f32.mrb[0].mxu0
        %v2580 = vadd.f32 0.0, %v2579
        %v2581 = vpop.f32.mrb[0].mxu0
        %2582 = vmatprep.mubr.f32.mxu0 0.0
        %2583 = vmatmul.mubr.f32.gmra.mrb[0].mxu0 %v2413
        %v2584 = vpop.f32.mrb[0].mxu0
        %v2585 = vadd.f32 0.0, %v2584
        %v2586 = vpop.f32.mrb[0].mxu0
        %2587 = vmatprep.mubr.f32.mxu0 0.0
        %2588 = vmatmul.mubr.f32.gmra.mrb[0].mxu0 %v2414
        %v2589 = vpop.f32.mrb[0].mxu0
        %v2590 = vadd.f32 0.0, %v2589
        %v2591 = vpop.f32.mrb[0].mxu0
        %2592 = vmatprep.mubr.f32.mxu0 0.0
        %2593 = vmatmul.mubr.f32.gmra.mrb[0].mxu0 %v2415
        %v2594 = vpop.f32.mrb[0].mxu0
        %v2595 = vadd.f32 0.0, %v2594
        %v2596 = vpop.f32.mrb[0].mxu0
        %2597 = vmatprep.mubr.f32.mxu0 0.0
        %2598 = vmatmul.mubr.f32.gmra.mrb[0].mxu0 %v2416
        %v2599 = vpop.f32.mrb[0].mxu0
        %v2600 = vadd.f32 0.0, %v2599
        %v2601 = vpop.f32.mrb[0].mxu0
        %2602 = vmatprep.mubr.f32.mxu0 0.0
        %2603 = vmatmul.mubr.f32.gmra.mrb[0].mxu0 %v2417
        %v2604 = vpop.f32.mrb[0].mxu0
        %v2605 = vadd.f32 0.0, %v2604
        %v2606 = vpop.f32.mrb[0].mxu0
        %2607 = vmatprep.mubr.f32.mxu0 0.0
        %2608 = vmatmul.mubr.f32.gmra.mrb[0].mxu0 %v2418
        %v2609 = vpop.f32.mrb[0].mxu0
        %v2610 = vadd.f32 0.0, %v2609
        %v2611 = vpop.f32.mrb[0].mxu0
        %2612 = vmatprep.mubr.f32.mxu0 0.0
        %2613 = vmatmul.mubr.f32.gmra.mrb[0].mxu0 %v2419
        %v2614 = vpop.f32.mrb[0].mxu0
        %v2615 = vadd.f32 0.0, %v2614
        %v2616 = vpop.f32.mrb[0].mxu0
        %2617 = vmatprep.mubr.f32.mxu0 0.0
        %2618 = vmatmul.mubr.f32.gmra.mrb[0].mxu0 %v2420
        %v2619 = vpop.f32.mrb[0].mxu0
        %v2620 = vadd.f32 0.0, %v2619
        %v2621 = vpop.f32.mrb[0].mxu0
        %2622 = vmatprep.mubr.f32.mxu0 0.0
        %2623 = vmatmul.mubr.f32.gmra.mrb[0].mxu0 %v2421
        %v2624 = vpop.f32.mrb[0].mxu0
        %v2625 = vadd.f32 0.0, %v2624
        %v2626 = vpop.f32.mrb[0].mxu0
        %2627 = vmatprep.mubr.f32.mxu0 0.0
        %2628 = vmatmul.mubr.f32.gmra.mrb[0].mxu0 %v2422
        %v2629 = vpop.f32.mrb[0].mxu0
        %v2630 = vadd.f32 0.0, %v2629
        %v2631 = vpop.f32.mrb[0].mxu0
        %2632 = vmatprep.mubr.f32.mxu0 0.0
        %2633 = vmatmul.mubr.f32.gmra.mrb[0].mxu0 %v2423
        %v2634 = vpop.f32.mrb[0].mxu0
        %v2635 = vadd.f32 0.0, %v2634
        %v2636 = vpop.f32.mrb[0].mxu0
        %2637 = vmatprep.mubr.f32.mxu0 0.0
        %2638 = vmatmul.mubr.f32.gmra.mrb[0].mxu0 %v2424
        %v2639 = vpop.f32.mrb[0].mxu0
        %v2640 = vadd.f32 0.0, %v2639
        %v2641 = vpop.f32.mrb[0].mxu0
        %2642 = vmatprep.mubr.f32.mxu0 0.0
        %2643 = vmatmul.mubr.f32.gmra.mrb[0].mxu0 %v2425
        %v2644 = vpop.f32.mrb[0].mxu0
        %v2645 = vadd.f32 0.0, %v2644
        %v2646 = vpop.f32.mrb[0].mxu0
        %2647 = vmatprep.mubr.f32.mxu0 0.0
        %2648 = vmatmul.mubr.f32.gmra.mrb[0].mxu0 %v2426
        %v2649 = vpop.f32.mrb[0].mxu0
        %v2650 = vadd.f32 0.0, %v2649
        %v2651 = vpop.f32.mrb[0].mxu0
        %2652 = vmatprep.mubr.f32.mxu0 0.0
        %2653 = vmatmul.mubr.f32.gmra.mrb[0].mxu0 %v2427
        %v2654 = vpop.f32.mrb[0].mxu0
        %v2655 = vadd.f32 0.0, %v2654
        %v2656 = vpop.f32.mrb[0].mxu0
        %2657 = vmatprep.mubr.f32.mxu0 0.0
        %2658 = vmatmul.mubr.f32.gmra.mrb[0].mxu0 %v2428
        %v2659 = vpop.f32.mrb[0].mxu0
        %v2660 = vadd.f32 0.0, %v2659
        %v2661 = vpop.f32.mrb[0].mxu0
        %2662 = vmatprep.mubr.f32.mxu0 0.0
        %2663 = vmatmul.mubr.f32.gmra.mrb[0].mxu0 %v2429
        %v2664 = vpop.f32.mrb[0].mxu0
        %v2665 = vadd.f32 0.0, %v2664
        %v2666 = vpop.f32.mrb[0].mxu0
        %2667 = vmatprep.mubr.f32.mxu0 0.0
        %2668 = vmatmul.mubr.f32.gmra.mrb[0].mxu0 %v2430
        %v2669 = vpop.f32.mrb[0].mxu0
        %v2670 = vadd.f32 0.0, %v2669
        %v2671 = vpop.f32.mrb[0].mxu0
        %2672 = vdwg.mxu0
        %v2673 = vadd.f32 %v2367, %v2515
        %v2674 = vadd.f32 %v2368, %v2520
        %v2675 = vadd.f32 %v2369, %v2525
        %v2676 = vadd.f32 %v2370, %v2530
        %v2677 = vadd.f32 %v2371, %v2535
        %v2678 = vadd.f32 %v2372, %v2540
        %v2679 = vadd.f32 %v2373, %v2545
        %v2680 = vadd.f32 %v2374, %v2550
        %v2681 = vadd.f32 %v2375, %v2555
        %v2682 = vadd.f32 %v2376, %v2560
        %v2683 = vadd.f32 %v2377, %v2565
        %v2684 = vadd.f32 %v2378, %v2570
        %v2685 = vadd.f32 %v2379, %v2575
        %v2686 = vadd.f32 %v2380, %v2580
        %v2687 = vadd.f32 %v2381, %v2585
        %v2688 = vadd.f32 %v2382, %v2590
        %v2689 = vadd.f32 %v2383, %v2595
        %v2690 = vadd.f32 %v2384, %v2600
        %v2691 = vadd.f32 %v2385, %v2605
        %v2692 = vadd.f32 %v2386, %v2610
        %v2693 = vadd.f32 %v2387, %v2615
        %v2694 = vadd.f32 %v2388, %v2620
        %v2695 = vadd.f32 %v2389, %v2625
        %v2696 = vadd.f32 %v2390, %v2630
        %v2697 = vadd.f32 %v2391, %v2635
        %v2698 = vadd.f32 %v2392, %v2640
        %v2699 = vadd.f32 %v2393, %v2645
        %v2700 = vadd.f32 %v2394, %v2650
        %v2701 = vadd.f32 %v2395, %v2655
        %v2702 = vadd.f32 %v2396, %v2660
        %v2703 = vadd.f32 %v2397, %v2665
        %v2704 = vadd.f32 %v2398, %v2670
        %v2705 = vld [vmem:[%s2092 + $0x11] sm:$0xff]
        %v2706 = vld [vmem:[%s2092 + $0x19] sm:$0xff]
        %v2707 = vld [vmem:[%s2092 + $0x41] sm:$0xff]
        %v2708 = vld [vmem:[%s2092 + $0x49] sm:$0xff]
        %v2709 = vld [vmem:[%s2092 + $0x71] sm:$0xff]
        %v2710 = vld [vmem:[%s2092 + $0x79] sm:$0xff]
        %v2711 = vld [vmem:[%s2092 + $0xa1] sm:$0xff]
        %v2712 = vld [vmem:[%s2092 + $0xa9] sm:$0xff]
        %v2713 = vld [vmem:[%s2092 + $0xd1] sm:$0xff]
        %v2714 = vld [vmem:[%s2092 + $0xd9] sm:$0xff]
        %v2715 = vld [vmem:[%s2092 + $0x101] sm:$0xff]
        %v2716 = vld [vmem:[%s2092 + $0x109] sm:$0xff]
        %v2717 = vld [vmem:[%s2092 + $0x131] sm:$0xff]
        %v2718 = vld [vmem:[%s2092 + $0x139] sm:$0xff]
        %v2719 = vld [vmem:[%s2092 + $0x161] sm:$0xff]
        %v2720 = vld [vmem:[%s2092 + $0x169] sm:$0xff]
        %v2721 = vld [vmem:[%s2092 + $0x191] sm:$0xff]
        %v2722 = vld [vmem:[%s2092 + $0x199] sm:$0xff]
        %v2723 = vld [vmem:[%s2092 + $0x1c1] sm:$0xff]
        %v2724 = vld [vmem:[%s2092 + $0x1c9] sm:$0xff]
        %v2725 = vld [vmem:[%s2092 + $0x1f1] sm:$0xff]
        %v2726 = vld [vmem:[%s2092 + $0x1f9] sm:$0xff]
        %v2727 = vld [vmem:[%s2092 + $0x221] sm:$0xff]
        %v2728 = vld [vmem:[%s2092 + $0x229] sm:$0xff]
        %v2729 = vld [vmem:[%s2092 + $0x251] sm:$0xff]
        %v2730 = vld [vmem:[%s2092 + $0x259] sm:$0xff]
        %v2731 = vld [vmem:[%s2092 + $0x281] sm:$0xff]
        %v2732 = vld [vmem:[%s2092 + $0x289] sm:$0xff]
        %v2733 = vld [vmem:[%s2092 + $0x2b1] sm:$0xff]
        %v2734 = vld [vmem:[%s2092 + $0x2b9] sm:$0xff]
        %v2735 = vld [vmem:[%s2092 + $0x2e1] sm:$0xff]
        %v2736 = vld [vmem:[%s2092 + $0x2e9] sm:$0xff]
        %s2737 = scalar_lea.vmem [#allocation3], 1024
        %v2738 = vld [vmem:[%s2737] sm:$0xff]
        %v2739 = vld [vmem:[%s2737 + $0x8] sm:$0xff]
        %v2740 = vld [vmem:[%s2737 + $0x10] sm:$0xff]
        %v2741 = vld [vmem:[%s2737 + $0x18] sm:$0xff]
        %v2742 = vld [vmem:[%s2737 + $0x20] sm:$0xff]
        %v2743 = vld [vmem:[%s2737 + $0x28] sm:$0xff]
        %v2744 = vld [vmem:[%s2737 + $0x30] sm:$0xff]
        %v2745 = vld [vmem:[%s2737 + $0x38] sm:$0xff]
        %v2746 = vld [vmem:[%s2737 + $0x40] sm:$0xff]
        %v2747 = vld [vmem:[%s2737 + $0x48] sm:$0xff]
        %v2748 = vld [vmem:[%s2737 + $0x50] sm:$0xff]
        %v2749 = vld [vmem:[%s2737 + $0x58] sm:$0xff]
        %v2750 = vld [vmem:[%s2737 + $0x60] sm:$0xff]
        %v2751 = vld [vmem:[%s2737 + $0x68] sm:$0xff]
        %v2752 = vld [vmem:[%s2737 + $0x70] sm:$0xff]
        %v2753 = vld [vmem:[%s2737 + $0x78] sm:$0xff]
        %2754 = vmatprep.subr.mxu0 0.0
        %2755 = vmatpush1.msra.mxu0 %v2738
        %2756 = vmatprep.subr.mxu0 0.0
        %2757 = vmatpush1.msra.mxu0 %v2739
        %2758 = vmatprep.subr.mxu0 0.0
        %2759 = vmatpush1.msra.mxu0 %v2740
        %2760 = vmatprep.subr.mxu0 0.0
        %2761 = vmatpush1.msra.mxu0 %v2741
        %2762 = vmatprep.subr.mxu0 0.0
        %2763 = vmatpush1.msra.mxu0 %v2742
        %2764 = vmatprep.subr.mxu0 0.0
        %2765 = vmatpush1.msra.mxu0 %v2743
        %2766 = vmatprep.subr.mxu0 0.0
        %2767 = vmatpush1.msra.mxu0 %v2744
        %2768 = vmatprep.subr.mxu0 0.0
        %2769 = vmatpush1.msra.mxu0 %v2745
        %2770 = vmatprep.subr.mxu0 0.0
        %2771 = vmatpush1.msra.mxu0 %v2746
        %2772 = vmatprep.subr.mxu0 0.0
        %2773 = vmatpush1.msra.mxu0 %v2747
        %2774 = vmatprep.subr.mxu0 0.0
        %2775 = vmatpush1.msra.mxu0 %v2748
        %2776 = vmatprep.subr.mxu0 0.0
        %2777 = vmatpush1.msra.mxu0 %v2749
        %2778 = vmatprep.subr.mxu0 0.0
        %2779 = vmatpush1.msra.mxu0 %v2750
        %2780 = vmatprep.subr.mxu0 0.0
        %2781 = vmatpush1.msra.mxu0 %v2751
        %2782 = vmatprep.subr.mxu0 0.0
        %2783 = vmatpush1.msra.mxu0 %v2752
        %2784 = vmatprep.subr.mxu0 0.0
        %2785 = vmatpush1.msra.mxu0 %v2753
        %2786 = vmatprep.subr.mxu0 0.0
        %2787 = vmatpush1.msra.mxu0 0.0
        %2788 = vmatprep.subr.mxu0 0.0
        %2789 = vmatpush1.msra.mxu0 0.0
        %2790 = vmatprep.subr.mxu0 0.0
        %2791 = vmatpush1.msra.mxu0 0.0
        %2792 = vmatprep.subr.mxu0 0.0
        %2793 = vmatpush1.msra.mxu0 0.0
        %2794 = vmatprep.subr.mxu0 0.0
        %2795 = vmatpush1.msra.mxu0 0.0
        %2796 = vmatprep.subr.mxu0 0.0
        %2797 = vmatpush1.msra.mxu0 0.0
        %2798 = vmatprep.subr.mxu0 0.0
        %2799 = vmatpush1.msra.mxu0 0.0
        %2800 = vmatprep.subr.mxu0 0.0
        %2801 = vmatpush1.msra.mxu0 0.0
        %2802 = vmatprep.subr.mxu0 0.0
        %2803 = vmatpush1.msra.mxu0 0.0
        %2804 = vmatprep.subr.mxu0 0.0
        %2805 = vmatpush1.msra.mxu0 0.0
        %2806 = vmatprep.subr.mxu0 0.0
        %2807 = vmatpush1.msra.mxu0 0.0
        %2808 = vmatprep.subr.mxu0 0.0
        %2809 = vmatpush1.msra.mxu0 0.0
        %2810 = vmatprep.subr.mxu0 0.0
        %2811 = vmatpush1.msra.mxu0 0.0
        %2812 = vmatprep.subr.mxu0 0.0
        %2813 = vmatpush1.msra.mxu0 0.0
        %2814 = vmatprep.subr.mxu0 0.0
        %2815 = vmatpush1.msra.mxu0 0.0
        %2816 = vmatprep.subr.mxu0 0.0
        %2817 = vmatpush1.msra.mxu0 0.0
        %2818 = vmatprep.mubr.f32.mxu0 0.0
        %2819 = vmatmul.mubr.f32.gmra.mrb[0].mxu0 %v2705
        %v2820 = vpop.f32.mrb[0].mxu0
        %v2821 = vadd.f32 0.0, %v2820
        %v2822 = vpop.f32.mrb[0].mxu0
        %2823 = vmatprep.mubr.f32.mxu0 0.0
        %2824 = vmatmul.mubr.f32.gmra.mrb[0].mxu0 %v2706
        %v2825 = vpop.f32.mrb[0].mxu0
        %v2826 = vadd.f32 0.0, %v2825
        %v2827 = vpop.f32.mrb[0].mxu0
        %2828 = vmatprep.mubr.f32.mxu0 0.0
        %2829 = vmatmul.mubr.f32.gmra.mrb[0].mxu0 %v2707
        %v2830 = vpop.f32.mrb[0].mxu0
        %v2831 = vadd.f32 0.0, %v2830
        %v2832 = vpop.f32.mrb[0].mxu0
        %2833 = vmatprep.mubr.f32.mxu0 0.0
        %2834 = vmatmul.mubr.f32.gmra.mrb[0].mxu0 %v2708
        %v2835 = vpop.f32.mrb[0].mxu0
        %v2836 = vadd.f32 0.0, %v2835
        %v2837 = vpop.f32.mrb[0].mxu0
        %2838 = vmatprep.mubr.f32.mxu0 0.0
        %2839 = vmatmul.mubr.f32.gmra.mrb[0].mxu0 %v2709
        %v2840 = vpop.f32.mrb[0].mxu0
        %v2841 = vadd.f32 0.0, %v2840
        %v2842 = vpop.f32.mrb[0].mxu0
        %2843 = vmatprep.mubr.f32.mxu0 0.0
        %2844 = vmatmul.mubr.f32.gmra.mrb[0].mxu0 %v2710
        %v2845 = vpop.f32.mrb[0].mxu0
        %v2846 = vadd.f32 0.0, %v2845
        %v2847 = vpop.f32.mrb[0].mxu0
        %2848 = vmatprep.mubr.f32.mxu0 0.0
        %2849 = vmatmul.mubr.f32.gmra.mrb[0].mxu0 %v2711
        %v2850 = vpop.f32.mrb[0].mxu0
        %v2851 = vadd.f32 0.0, %v2850
        %v2852 = vpop.f32.mrb[0].mxu0
        %2853 = vmatprep.mubr.f32.mxu0 0.0
        %2854 = vmatmul.mubr.f32.gmra.mrb[0].mxu0 %v2712
        %v2855 = vpop.f32.mrb[0].mxu0
        %v2856 = vadd.f32 0.0, %v2855
        %v2857 = vpop.f32.mrb[0].mxu0
        %2858 = vmatprep.mubr.f32.mxu0 0.0
        %2859 = vmatmul.mubr.f32.gmra.mrb[0].mxu0 %v2713
        %v2860 = vpop.f32.mrb[0].mxu0
        %v2861 = vadd.f32 0.0, %v2860
        %v2862 = vpop.f32.mrb[0].mxu0
        %2863 = vmatprep.mubr.f32.mxu0 0.0
        %2864 = vmatmul.mubr.f32.gmra.mrb[0].mxu0 %v2714
        %v2865 = vpop.f32.mrb[0].mxu0
        %v2866 = vadd.f32 0.0, %v2865
        %v2867 = vpop.f32.mrb[0].mxu0
        %2868 = vmatprep.mubr.f32.mxu0 0.0
        %2869 = vmatmul.mubr.f32.gmra.mrb[0].mxu0 %v2715
        %v2870 = vpop.f32.mrb[0].mxu0
        %v2871 = vadd.f32 0.0, %v2870
        %v2872 = vpop.f32.mrb[0].mxu0
        %2873 = vmatprep.mubr.f32.mxu0 0.0
        %2874 = vmatmul.mubr.f32.gmra.mrb[0].mxu0 %v2716
        %v2875 = vpop.f32.mrb[0].mxu0
        %v2876 = vadd.f32 0.0, %v2875
        %v2877 = vpop.f32.mrb[0].mxu0
        %2878 = vmatprep.mubr.f32.mxu0 0.0
        %2879 = vmatmul.mubr.f32.gmra.mrb[0].mxu0 %v2717
        %v2880 = vpop.f32.mrb[0].mxu0
        %v2881 = vadd.f32 0.0, %v2880
        %v2882 = vpop.f32.mrb[0].mxu0
        %2883 = vmatprep.mubr.f32.mxu0 0.0
        %2884 = vmatmul.mubr.f32.gmra.mrb[0].mxu0 %v2718
        %v2885 = vpop.f32.mrb[0].mxu0
        %v2886 = vadd.f32 0.0, %v2885
        %v2887 = vpop.f32.mrb[0].mxu0
        %2888 = vmatprep.mubr.f32.mxu0 0.0
        %2889 = vmatmul.mubr.f32.gmra.mrb[0].mxu0 %v2719
        %v2890 = vpop.f32.mrb[0].mxu0
        %v2891 = vadd.f32 0.0, %v2890
        %v2892 = vpop.f32.mrb[0].mxu0
        %2893 = vmatprep.mubr.f32.mxu0 0.0
        %2894 = vmatmul.mubr.f32.gmra.mrb[0].mxu0 %v2720
        %v2895 = vpop.f32.mrb[0].mxu0
        %v2896 = vadd.f32 0.0, %v2895
        %v2897 = vpop.f32.mrb[0].mxu0
        %2898 = vmatprep.mubr.f32.mxu0 0.0
        %2899 = vmatmul.mubr.f32.gmra.mrb[0].mxu0 %v2721
        %v2900 = vpop.f32.mrb[0].mxu0
        %v2901 = vadd.f32 0.0, %v2900
        %v2902 = vpop.f32.mrb[0].mxu0
        %2903 = vmatprep.mubr.f32.mxu0 0.0
        %2904 = vmatmul.mubr.f32.gmra.mrb[0].mxu0 %v2722
        %v2905 = vpop.f32.mrb[0].mxu0
        %v2906 = vadd.f32 0.0, %v2905
        %v2907 = vpop.f32.mrb[0].mxu0
        %2908 = vmatprep.mubr.f32.mxu0 0.0
        %2909 = vmatmul.mubr.f32.gmra.mrb[0].mxu0 %v2723
        %v2910 = vpop.f32.mrb[0].mxu0
        %v2911 = vadd.f32 0.0, %v2910
        %v2912 = vpop.f32.mrb[0].mxu0
        %2913 = vmatprep.mubr.f32.mxu0 0.0
        %2914 = vmatmul.mubr.f32.gmra.mrb[0].mxu0 %v2724
        %v2915 = vpop.f32.mrb[0].mxu0
        %v2916 = vadd.f32 0.0, %v2915
        %v2917 = vpop.f32.mrb[0].mxu0
        %2918 = vmatprep.mubr.f32.mxu0 0.0
        %2919 = vmatmul.mubr.f32.gmra.mrb[0].mxu0 %v2725
        %v2920 = vpop.f32.mrb[0].mxu0
        %v2921 = vadd.f32 0.0, %v2920
        %v2922 = vpop.f32.mrb[0].mxu0
        %2923 = vmatprep.mubr.f32.mxu0 0.0
        %2924 = vmatmul.mubr.f32.gmra.mrb[0].mxu0 %v2726
        %v2925 = vpop.f32.mrb[0].mxu0
        %v2926 = vadd.f32 0.0, %v2925
        %v2927 = vpop.f32.mrb[0].mxu0
        %2928 = vmatprep.mubr.f32.mxu0 0.0
        %2929 = vmatmul.mubr.f32.gmra.mrb[0].mxu0 %v2727
        %v2930 = vpop.f32.mrb[0].mxu0
        %v2931 = vadd.f32 0.0, %v2930
        %v2932 = vpop.f32.mrb[0].mxu0
        %2933 = vmatprep.mubr.f32.mxu0 0.0
        %2934 = vmatmul.mubr.f32.gmra.mrb[0].mxu0 %v2728
        %v2935 = vpop.f32.mrb[0].mxu0
        %v2936 = vadd.f32 0.0, %v2935
        %v2937 = vpop.f32.mrb[0].mxu0
        %2938 = vmatprep.mubr.f32.mxu0 0.0
        %2939 = vmatmul.mubr.f32.gmra.mrb[0].mxu0 %v2729
        %v2940 = vpop.f32.mrb[0].mxu0
        %v2941 = vadd.f32 0.0, %v2940
        %v2942 = vpop.f32.mrb[0].mxu0
        %2943 = vmatprep.mubr.f32.mxu0 0.0
        %2944 = vmatmul.mubr.f32.gmra.mrb[0].mxu0 %v2730
        %v2945 = vpop.f32.mrb[0].mxu0
        %v2946 = vadd.f32 0.0, %v2945
        %v2947 = vpop.f32.mrb[0].mxu0
        %2948 = vmatprep.mubr.f32.mxu0 0.0
        %2949 = vmatmul.mubr.f32.gmra.mrb[0].mxu0 %v2731
        %v2950 = vpop.f32.mrb[0].mxu0
        %v2951 = vadd.f32 0.0, %v2950
        %v2952 = vpop.f32.mrb[0].mxu0
        %2953 = vmatprep.mubr.f32.mxu0 0.0
        %2954 = vmatmul.mubr.f32.gmra.mrb[0].mxu0 %v2732
        %v2955 = vpop.f32.mrb[0].mxu0
        %v2956 = vadd.f32 0.0, %v2955
        %v2957 = vpop.f32.mrb[0].mxu0
        %2958 = vmatprep.mubr.f32.mxu0 0.0
        %2959 = vmatmul.mubr.f32.gmra.mrb[0].mxu0 %v2733
        %v2960 = vpop.f32.mrb[0].mxu0
        %v2961 = vadd.f32 0.0, %v2960
        %v2962 = vpop.f32.mrb[0].mxu0
        %2963 = vmatprep.mubr.f32.mxu0 0.0
        %2964 = vmatmul.mubr.f32.gmra.mrb[0].mxu0 %v2734
        %v2965 = vpop.f32.mrb[0].mxu0
        %v2966 = vadd.f32 0.0, %v2965
        %v2967 = vpop.f32.mrb[0].mxu0
        %2968 = vmatprep.mubr.f32.mxu0 0.0
        %2969 = vmatmul.mubr.f32.gmra.mrb[0].mxu0 %v2735
        %v2970 = vpop.f32.mrb[0].mxu0
        %v2971 = vadd.f32 0.0, %v2970
        %v2972 = vpop.f32.mrb[0].mxu0
        %2973 = vmatprep.mubr.f32.mxu0 0.0
        %2974 = vmatmul.mubr.f32.gmra.mrb[0].mxu0 %v2736
        %v2975 = vpop.f32.mrb[0].mxu0
        %v2976 = vadd.f32 0.0, %v2975
        %v2977 = vpop.f32.mrb[0].mxu0
        %2978 = vdwg.mxu0
        %v2979 = vadd.f32 %v2673, %v2821
        %v2980 = vadd.f32 %v2674, %v2826
        %v2981 = vadd.f32 %v2675, %v2831
        %v2982 = vadd.f32 %v2676, %v2836
        %v2983 = vadd.f32 %v2677, %v2841
        %v2984 = vadd.f32 %v2678, %v2846
        %v2985 = vadd.f32 %v2679, %v2851
        %v2986 = vadd.f32 %v2680, %v2856
        %v2987 = vadd.f32 %v2681, %v2861
        %v2988 = vadd.f32 %v2682, %v2866
        %v2989 = vadd.f32 %v2683, %v2871
        %v2990 = vadd.f32 %v2684, %v2876
        %v2991 = vadd.f32 %v2685, %v2881
        %v2992 = vadd.f32 %v2686, %v2886
        %v2993 = vadd.f32 %v2687, %v2891
        %v2994 = vadd.f32 %v2688, %v2896
        %v2995 = vadd.f32 %v2689, %v2901
        %v2996 = vadd.f32 %v2690, %v2906
        %v2997 = vadd.f32 %v2691, %v2911
        %v2998 = vadd.f32 %v2692, %v2916
        %v2999 = vadd.f32 %v2693, %v2921
        %v3000 = vadd.f32 %v2694, %v2926
        %v3001 = vadd.f32 %v2695, %v2931
        %v3002 = vadd.f32 %v2696, %v2936
        %v3003 = vadd.f32 %v2697, %v2941
        %v3004 = vadd.f32 %v2698, %v2946
        %v3005 = vadd.f32 %v2699, %v2951
        %v3006 = vadd.f32 %v2700, %v2956
        %v3007 = vadd.f32 %v2701, %v2961
        %v3008 = vadd.f32 %v2702, %v2966
        %v3009 = vadd.f32 %v2703, %v2971
        %v3010 = vadd.f32 %v2704, %v2976
        %v3011 = vld [vmem:[#allocation5] sm:$0x1]
        %v3013 = vlaneseq
        %v3014 = vshrl.u32 %v3013, 7
        %v3015 = vsub.s32 0, %v3014
        %v3016 = vrot.slane %v3011, %v3015
        %v3018 = vadd.f32 %v2979, %v3016
        %v3019 = vadd.f32 %v2980, %v3016
        %v3020 = vadd.f32 %v2981, %v3016
        %v3021 = vadd.f32 %v2982, %v3016
        %v3022 = vadd.f32 %v2983, %v3016
        %v3023 = vadd.f32 %v2984, %v3016
        %v3024 = vadd.f32 %v2985, %v3016
        %v3025 = vadd.f32 %v2986, %v3016
        %v3026 = vadd.f32 %v2987, %v3016
        %v3027 = vadd.f32 %v2988, %v3016
        %v3028 = vadd.f32 %v2989, %v3016
        %v3029 = vadd.f32 %v2990, %v3016
        %v3030 = vadd.f32 %v2991, %v3016
        %v3031 = vadd.f32 %v2992, %v3016
        %v3032 = vadd.f32 %v2993, %v3016
        %v3033 = vadd.f32 %v2994, %v3016
        %v3034 = vadd.f32 %v2995, %v3016
        %v3035 = vadd.f32 %v2996, %v3016
        %v3036 = vadd.f32 %v2997, %v3016
        %v3037 = vadd.f32 %v2998, %v3016
        %v3038 = vadd.f32 %v2999, %v3016
        %v3039 = vadd.f32 %v3000, %v3016
        %v3040 = vadd.f32 %v3001, %v3016
        %v3041 = vadd.f32 %v3002, %v3016
        %v3042 = vadd.f32 %v3003, %v3016
        %v3043 = vadd.f32 %v3004, %v3016
        %v3044 = vadd.f32 %v3005, %v3016
        %v3045 = vadd.f32 %v3006, %v3016
        %v3046 = vadd.f32 %v3007, %v3016
        %v3047 = vadd.f32 %v3008, %v3016
        %v3048 = vadd.f32 %v3009, %v3016
        %v3049 = vadd.f32 %v3010, %v3016
        %v3050 = vmax.f32 %v3018, 0.0
        %v3051 = vmax.f32 %v3019, 0.0
        %v3052 = vmax.f32 %v3020, 0.0
        %v3053 = vmax.f32 %v3021, 0.0
        %v3054 = vmax.f32 %v3022, 0.0
        %v3055 = vmax.f32 %v3023, 0.0
        %v3056 = vmax.f32 %v3024, 0.0
        %v3057 = vmax.f32 %v3025, 0.0
        %v3058 = vmax.f32 %v3026, 0.0
        %v3059 = vmax.f32 %v3027, 0.0
        %v3060 = vmax.f32 %v3028, 0.0
        %v3061 = vmax.f32 %v3029, 0.0
        %v3062 = vmax.f32 %v3030, 0.0
        %v3063 = vmax.f32 %v3031, 0.0
        %v3064 = vmax.f32 %v3032, 0.0
        %v3065 = vmax.f32 %v3033, 0.0
        %v3066 = vmax.f32 %v3034, 0.0
        %v3067 = vmax.f32 %v3035, 0.0
        %v3068 = vmax.f32 %v3036, 0.0
        %v3069 = vmax.f32 %v3037, 0.0
        %v3070 = vmax.f32 %v3038, 0.0
        %v3071 = vmax.f32 %v3039, 0.0
        %v3072 = vmax.f32 %v3040, 0.0
        %v3073 = vmax.f32 %v3041, 0.0
        %v3074 = vmax.f32 %v3042, 0.0
        %v3075 = vmax.f32 %v3043, 0.0
        %v3076 = vmax.f32 %v3044, 0.0
        %v3077 = vmax.f32 %v3045, 0.0
        %v3078 = vmax.f32 %v3046, 0.0
        %v3079 = vmax.f32 %v3047, 0.0
        %v3080 = vmax.f32 %v3048, 0.0
        %v3081 = vmax.f32 %v3049, 0.0
        %3082 = vst [vmem:[%s287 + $0x10] sm:$0xff] %v3050
        %3083 = vst [vmem:[%s287 + $0x18] sm:$0xff] %v3051
        %3084 = vst [vmem:[%s287 + $0x40] sm:$0xff] %v3052
        %3085 = vst [vmem:[%s287 + $0x48] sm:$0xff] %v3053
        %3086 = vst [vmem:[%s287 + $0x70] sm:$0xff] %v3054
        %3087 = vst [vmem:[%s287 + $0x78] sm:$0xff] %v3055
        %3088 = vst [vmem:[%s287 + $0xa0] sm:$0xff] %v3056
        %3089 = vst [vmem:[%s287 + $0xa8] sm:$0xff] %v3057
        %3090 = vst [vmem:[%s287 + $0xd0] sm:$0xff] %v3058
        %3091 = vst [vmem:[%s287 + $0xd8] sm:$0xff] %v3059
        %3092 = vst [vmem:[%s287 + $0x100] sm:$0xff] %v3060
        %3093 = vst [vmem:[%s287 + $0x108] sm:$0xff] %v3061
        %3094 = vst [vmem:[%s287 + $0x130] sm:$0xff] %v3062
        %3095 = vst [vmem:[%s287 + $0x138] sm:$0xff] %v3063
        %3096 = vst [vmem:[%s287 + $0x160] sm:$0xff] %v3064
        %3097 = vst [vmem:[%s287 + $0x168] sm:$0xff] %v3065
        %3098 = vst [vmem:[%s287 + $0x190] sm:$0xff] %v3066
        %3099 = vst [vmem:[%s287 + $0x198] sm:$0xff] %v3067
        %3100 = vst [vmem:[%s287 + $0x1c0] sm:$0xff] %v3068
        %3101 = vst [vmem:[%s287 + $0x1c8] sm:$0xff] %v3069
        %3102 = vst [vmem:[%s287 + $0x1f0] sm:$0xff] %v3070
        %3103 = vst [vmem:[%s287 + $0x1f8] sm:$0xff] %v3071
        %3104 = vst [vmem:[%s287 + $0x220] sm:$0xff] %v3072
        %3105 = vst [vmem:[%s287 + $0x228] sm:$0xff] %v3073
        %3106 = vst [vmem:[%s287 + $0x250] sm:$0xff] %v3074
        %3107 = vst [vmem:[%s287 + $0x258] sm:$0xff] %v3075
        %3108 = vst [vmem:[%s287 + $0x280] sm:$0xff] %v3076
        %3109 = vst [vmem:[%s287 + $0x288] sm:$0xff] %v3077
        %3110 = vst [vmem:[%s287 + $0x2b0] sm:$0xff] %v3078
        %3111 = vst [vmem:[%s287 + $0x2b8] sm:$0xff] %v3079
        %3112 = vst [vmem:[%s287 + $0x2e0] sm:$0xff] %v3080
        %3113 = vst [vmem:[%s287 + $0x2e8] sm:$0xff] %v3081
        %v3114 = vld [vmem:[#allocation2 + $0xf] sm:$0xff]
        %v3115 = vld [vmem:[#allocation2 + $0x17] sm:$0xff]
        %v3116 = vld [vmem:[#allocation2 + $0x3f] sm:$0xff]
        %v3117 = vld [vmem:[#allocation2 + $0x47] sm:$0xff]
        %v3118 = vld [vmem:[#allocation2 + $0x6f] sm:$0xff]
        %v3119 = vld [vmem:[#allocation2 + $0x77] sm:$0xff]
        %v3120 = vld [vmem:[#allocation2 + $0x9f] sm:$0xff]
        %v3121 = vld [vmem:[#allocation2 + $0xa7] sm:$0xff]
        %v3122 = vld [vmem:[#allocation2 + $0xcf] sm:$0xff]
        %v3123 = vld [vmem:[#allocation2 + $0xd7] sm:$0xff]
        %v3124 = vld [vmem:[#allocation2 + $0xff] sm:$0xff]
        %v3125 = vld [vmem:[#allocation2 + $0x107] sm:$0xff]
        %v3126 = vld [vmem:[#allocation2 + $0x12f] sm:$0xff]
        %v3127 = vld [vmem:[#allocation2 + $0x137] sm:$0xff]
        %v3128 = vld [vmem:[#allocation2 + $0x15f] sm:$0xff]
        %v3129 = vld [vmem:[#allocation2 + $0x167] sm:$0xff]
        %v3130 = vld [vmem:[#allocation2 + $0x18f] sm:$0xff]
        %v3131 = vld [vmem:[#allocation2 + $0x197] sm:$0xff]
        %v3132 = vld [vmem:[#allocation2 + $0x1bf] sm:$0xff]
        %v3133 = vld [vmem:[#allocation2 + $0x1c7] sm:$0xff]
        %v3134 = vld [vmem:[#allocation2 + $0x1ef] sm:$0xff]
        %v3135 = vld [vmem:[#allocation2 + $0x1f7] sm:$0xff]
        %v3136 = vld [vmem:[#allocation2 + $0x21f] sm:$0xff]
        %v3137 = vld [vmem:[#allocation2 + $0x227] sm:$0xff]
        %v3138 = vld [vmem:[#allocation2 + $0x24f] sm:$0xff]
        %v3139 = vld [vmem:[#allocation2 + $0x257] sm:$0xff]
        %v3140 = vld [vmem:[#allocation2 + $0x27f] sm:$0xff]
        %v3141 = vld [vmem:[#allocation2 + $0x287] sm:$0xff]
        %v3142 = vld [vmem:[#allocation2 + $0x2af] sm:$0xff]
        %v3143 = vld [vmem:[#allocation2 + $0x2b7] sm:$0xff]
        %v3144 = vld [vmem:[#allocation2 + $0x2df] sm:$0xff]
        %v3145 = vld [vmem:[#allocation2 + $0x2e7] sm:$0xff]
        %s3146 = scalar_lea.vmem [#allocation3], 1152
        %v3147 = vld [vmem:[%s3146] sm:$0xff]
        %v3148 = vld [vmem:[%s3146 + $0x8] sm:$0xff]
        %v3149 = vld [vmem:[%s3146 + $0x10] sm:$0xff]
        %v3150 = vld [vmem:[%s3146 + $0x18] sm:$0xff]
        %v3151 = vld [vmem:[%s3146 + $0x20] sm:$0xff]
        %v3152 = vld [vmem:[%s3146 + $0x28] sm:$0xff]
        %v3153 = vld [vmem:[%s3146 + $0x30] sm:$0xff]
        %v3154 = vld [vmem:[%s3146 + $0x38] sm:$0xff]
        %v3155 = vld [vmem:[%s3146 + $0x40] sm:$0xff]
        %v3156 = vld [vmem:[%s3146 + $0x48] sm:$0xff]
        %v3157 = vld [vmem:[%s3146 + $0x50] sm:$0xff]
        %v3158 = vld [vmem:[%s3146 + $0x58] sm:$0xff]
        %v3159 = vld [vmem:[%s3146 + $0x60] sm:$0xff]
        %v3160 = vld [vmem:[%s3146 + $0x68] sm:$0xff]
        %v3161 = vld [vmem:[%s3146 + $0x70] sm:$0xff]
        %v3162 = vld [vmem:[%s3146 + $0x78] sm:$0xff]
        %v3163 = vld [vmem:[#allocation2 + $0x10] sm:$0xff]
        %v3164 = vld [vmem:[#allocation2 + $0x18] sm:$0xff]
        %v3165 = vld [vmem:[#allocation2 + $0x40] sm:$0xff]
        %v3166 = vld [vmem:[#allocation2 + $0x48] sm:$0xff]
        %v3167 = vld [vmem:[#allocation2 + $0x70] sm:$0xff]
        %v3168 = vld [vmem:[#allocation2 + $0x78] sm:$0xff]
        %v3169 = vld [vmem:[#allocation2 + $0xa0] sm:$0xff]
        %v3170 = vld [vmem:[#allocation2 + $0xa8] sm:$0xff]
        %v3171 = vld [vmem:[#allocation2 + $0xd0] sm:$0xff]
        %v3172 = vld [vmem:[#allocation2 + $0xd8] sm:$0xff]
        %v3173 = vld [vmem:[#allocation2 + $0x100] sm:$0xff]
        %v3174 = vld [vmem:[#allocation2 + $0x108] sm:$0xff]
        %v3175 = vld [vmem:[#allocation2 + $0x130] sm:$0xff]
        %v3176 = vld [vmem:[#allocation2 + $0x138] sm:$0xff]
        %v3177 = vld [vmem:[#allocation2 + $0x160] sm:$0xff]
        %v3178 = vld [vmem:[#allocation2 + $0x168] sm:$0xff]
        %v3179 = vld [vmem:[#allocation2 + $0x190] sm:$0xff]
        %v3180 = vld [vmem:[#allocation2 + $0x198] sm:$0xff]
        %v3181 = vld [vmem:[#allocation2 + $0x1c0] sm:$0xff]
        %v3182 = vld [vmem:[#allocation2 + $0x1c8] sm:$0xff]
        %v3183 = vld [vmem:[#allocation2 + $0x1f0] sm:$0xff]
        %v3184 = vld [vmem:[#allocation2 + $0x1f8] sm:$0xff]
        %v3185 = vld [vmem:[#allocation2 + $0x220] sm:$0xff]
        %v3186 = vld [vmem:[#allocation2 + $0x228] sm:$0xff]
        %v3187 = vld [vmem:[#allocation2 + $0x250] sm:$0xff]
        %v3188 = vld [vmem:[#allocation2 + $0x258] sm:$0xff]
        %v3189 = vld [vmem:[#allocation2 + $0x280] sm:$0xff]
        %v3190 = vld [vmem:[#allocation2 + $0x288] sm:$0xff]
        %v3191 = vld [vmem:[#allocation2 + $0x2b0] sm:$0xff]
        %v3192 = vld [vmem:[#allocation2 + $0x2b8] sm:$0xff]
        %v3193 = vld [vmem:[#allocation2 + $0x2e0] sm:$0xff]
        %v3194 = vld [vmem:[#allocation2 + $0x2e8] sm:$0xff]
        %s3195 = scalar_lea.vmem [#allocation3], 1280
        %v3196 = vld [vmem:[%s3195] sm:$0xff]
        %v3197 = vld [vmem:[%s3195 + $0x8] sm:$0xff]
        %v3198 = vld [vmem:[%s3195 + $0x10] sm:$0xff]
        %v3199 = vld [vmem:[%s3195 + $0x18] sm:$0xff]
        %v3200 = vld [vmem:[%s3195 + $0x20] sm:$0xff]
        %v3201 = vld [vmem:[%s3195 + $0x28] sm:$0xff]
        %v3202 = vld [vmem:[%s3195 + $0x30] sm:$0xff]
        %v3203 = vld [vmem:[%s3195 + $0x38] sm:$0xff]
        %v3204 = vld [vmem:[%s3195 + $0x40] sm:$0xff]
        %v3205 = vld [vmem:[%s3195 + $0x48] sm:$0xff]
        %v3206 = vld [vmem:[%s3195 + $0x50] sm:$0xff]
        %v3207 = vld [vmem:[%s3195 + $0x58] sm:$0xff]
        %v3208 = vld [vmem:[%s3195 + $0x60] sm:$0xff]
        %v3209 = vld [vmem:[%s3195 + $0x68] sm:$0xff]
        %v3210 = vld [vmem:[%s3195 + $0x70] sm:$0xff]
        %v3211 = vld [vmem:[%s3195 + $0x78] sm:$0xff]
        %3212 = vmatprep.subr.mxu0 0.0
        %3213 = vmatpush1.msra.mxu0 %v3196
        %3214 = vmatprep.subr.mxu0 0.0
        %3215 = vmatpush1.msra.mxu0 %v3197
        %3216 = vmatprep.subr.mxu0 0.0
        %3217 = vmatpush1.msra.mxu0 %v3198
        %3218 = vmatprep.subr.mxu0 0.0
        %3219 = vmatpush1.msra.mxu0 %v3199
        %3220 = vmatprep.subr.mxu0 0.0
        %3221 = vmatpush1.msra.mxu0 %v3200
        %3222 = vmatprep.subr.mxu0 0.0
        %3223 = vmatpush1.msra.mxu0 %v3201
        %3224 = vmatprep.subr.mxu0 0.0
        %3225 = vmatpush1.msra.mxu0 %v3202
        %3226 = vmatprep.subr.mxu0 0.0
        %3227 = vmatpush1.msra.mxu0 %v3203
        %3228 = vmatprep.subr.mxu0 0.0
        %3229 = vmatpush1.msra.mxu0 %v3204
        %3230 = vmatprep.subr.mxu0 0.0
        %3231 = vmatpush1.msra.mxu0 %v3205
        %3232 = vmatprep.subr.mxu0 0.0
        %3233 = vmatpush1.msra.mxu0 %v3206
        %3234 = vmatprep.subr.mxu0 0.0
        %3235 = vmatpush1.msra.mxu0 %v3207
        %3236 = vmatprep.subr.mxu0 0.0
        %3237 = vmatpush1.msra.mxu0 %v3208
        %3238 = vmatprep.subr.mxu0 0.0
        %3239 = vmatpush1.msra.mxu0 %v3209
        %3240 = vmatprep.subr.mxu0 0.0
        %3241 = vmatpush1.msra.mxu0 %v3210
        %3242 = vmatprep.subr.mxu0 0.0
        %3243 = vmatpush1.msra.mxu0 %v3211
        %3244 = vmatprep.subr.mxu0 0.0
        %3245 = vmatpush1.msra.mxu0 0.0
        %3246 = vmatprep.subr.mxu0 0.0
        %3247 = vmatpush1.msra.mxu0 0.0
        %3248 = vmatprep.subr.mxu0 0.0
        %3249 = vmatpush1.msra.mxu0 0.0
        %3250 = vmatprep.subr.mxu0 0.0
        %3251 = vmatpush1.msra.mxu0 0.0
        %3252 = vmatprep.subr.mxu0 0.0
        %3253 = vmatpush1.msra.mxu0 0.0
        %3254 = vmatprep.subr.mxu0 0.0
        %3255 = vmatpush1.msra.mxu0 0.0
        %3256 = vmatprep.subr.mxu0 0.0
        %3257 = vmatpush1.msra.mxu0 0.0
        %3258 = vmatprep.subr.mxu0 0.0
        %3259 = vmatpush1.msra.mxu0 0.0
        %3260 = vmatprep.subr.mxu0 0.0
        %3261 = vmatpush1.msra.mxu0 0.0
        %3262 = vmatprep.subr.mxu0 0.0
        %3263 = vmatpush1.msra.mxu0 0.0
        %3264 = vmatprep.subr.mxu0 0.0
        %3265 = vmatpush1.msra.mxu0 0.0
        %3266 = vmatprep.subr.mxu0 0.0
        %3267 = vmatpush1.msra.mxu0 0.0
        %3268 = vmatprep.subr.mxu0 0.0
        %3269 = vmatpush1.msra.mxu0 0.0
        %3270 = vmatprep.subr.mxu0 0.0
        %3271 = vmatpush1.msra.mxu0 0.0
        %3272 = vmatprep.subr.mxu0 0.0
        %3273 = vmatpush1.msra.mxu0 0.0
        %3274 = vmatprep.subr.mxu0 0.0
        %3275 = vmatpush1.msra.mxu0 0.0
        %3276 = vmatprep.mubr.f32.mxu0 0.0
        %3277 = vmatmul.mubr.f32.gmra.mrb[0].mxu0 %v3163
        %v3278 = vpop.f32.mrb[0].mxu0
        %v3279 = vadd.f32 0.0, %v3278
        %v3280 = vpop.f32.mrb[0].mxu0
        %3281 = vmatprep.mubr.f32.mxu0 0.0
        %3282 = vmatmul.mubr.f32.gmra.mrb[0].mxu0 %v3164
        %v3283 = vpop.f32.mrb[0].mxu0
        %v3284 = vadd.f32 0.0, %v3283
        %v3285 = vpop.f32.mrb[0].mxu0
        %3286 = vmatprep.mubr.f32.mxu0 0.0
        %3287 = vmatmul.mubr.f32.gmra.mrb[0].mxu0 %v3165
        %v3288 = vpop.f32.mrb[0].mxu0
        %v3289 = vadd.f32 0.0, %v3288
        %v3290 = vpop.f32.mrb[0].mxu0
        %3291 = vmatprep.mubr.f32.mxu0 0.0
        %3292 = vmatmul.mubr.f32.gmra.mrb[0].mxu0 %v3166
        %v3293 = vpop.f32.mrb[0].mxu0
        %v3294 = vadd.f32 0.0, %v3293
        %v3295 = vpop.f32.mrb[0].mxu0
        %3296 = vmatprep.mubr.f32.mxu0 0.0
        %3297 = vmatmul.mubr.f32.gmra.mrb[0].mxu0 %v3167
        %v3298 = vpop.f32.mrb[0].mxu0
        %v3299 = vadd.f32 0.0, %v3298
        %v3300 = vpop.f32.mrb[0].mxu0
        %3301 = vmatprep.mubr.f32.mxu0 0.0
        %3302 = vmatmul.mubr.f32.gmra.mrb[0].mxu0 %v3168
        %v3303 = vpop.f32.mrb[0].mxu0
        %v3304 = vadd.f32 0.0, %v3303
        %v3305 = vpop.f32.mrb[0].mxu0
        %3306 = vmatprep.mubr.f32.mxu0 0.0
        %3307 = vmatmul.mubr.f32.gmra.mrb[0].mxu0 %v3169
        %v3308 = vpop.f32.mrb[0].mxu0
        %v3309 = vadd.f32 0.0, %v3308
        %v3310 = vpop.f32.mrb[0].mxu0
        %3311 = vmatprep.mubr.f32.mxu0 0.0
        %3312 = vmatmul.mubr.f32.gmra.mrb[0].mxu0 %v3170
        %v3313 = vpop.f32.mrb[0].mxu0
        %v3314 = vadd.f32 0.0, %v3313
        %v3315 = vpop.f32.mrb[0].mxu0
        %3316 = vmatprep.mubr.f32.mxu0 0.0
        %3317 = vmatmul.mubr.f32.gmra.mrb[0].mxu0 %v3171
        %v3318 = vpop.f32.mrb[0].mxu0
        %v3319 = vadd.f32 0.0, %v3318
        %v3320 = vpop.f32.mrb[0].mxu0
        %3321 = vmatprep.mubr.f32.mxu0 0.0
        %3322 = vmatmul.mubr.f32.gmra.mrb[0].mxu0 %v3172
        %v3323 = vpop.f32.mrb[0].mxu0
        %v3324 = vadd.f32 0.0, %v3323
        %v3325 = vpop.f32.mrb[0].mxu0
        %3326 = vmatprep.mubr.f32.mxu0 0.0
        %3327 = vmatmul.mubr.f32.gmra.mrb[0].mxu0 %v3173
        %v3328 = vpop.f32.mrb[0].mxu0
        %v3329 = vadd.f32 0.0, %v3328
        %v3330 = vpop.f32.mrb[0].mxu0
        %3331 = vmatprep.mubr.f32.mxu0 0.0
        %3332 = vmatmul.mubr.f32.gmra.mrb[0].mxu0 %v3174
        %v3333 = vpop.f32.mrb[0].mxu0
        %v3334 = vadd.f32 0.0, %v3333
        %v3335 = vpop.f32.mrb[0].mxu0
        %3336 = vmatprep.mubr.f32.mxu0 0.0
        %3337 = vmatmul.mubr.f32.gmra.mrb[0].mxu0 %v3175
        %v3338 = vpop.f32.mrb[0].mxu0
        %v3339 = vadd.f32 0.0, %v3338
        %v3340 = vpop.f32.mrb[0].mxu0
        %3341 = vmatprep.mubr.f32.mxu0 0.0
        %3342 = vmatmul.mubr.f32.gmra.mrb[0].mxu0 %v3176
        %v3343 = vpop.f32.mrb[0].mxu0
        %v3344 = vadd.f32 0.0, %v3343
        %v3345 = vpop.f32.mrb[0].mxu0
        %3346 = vmatprep.mubr.f32.mxu0 0.0
        %3347 = vmatmul.mubr.f32.gmra.mrb[0].mxu0 %v3177
        %v3348 = vpop.f32.mrb[0].mxu0
        %v3349 = vadd.f32 0.0, %v3348
        %v3350 = vpop.f32.mrb[0].mxu0
        %3351 = vmatprep.mubr.f32.mxu0 0.0
        %3352 = vmatmul.mubr.f32.gmra.mrb[0].mxu0 %v3178
        %v3353 = vpop.f32.mrb[0].mxu0
        %v3354 = vadd.f32 0.0, %v3353
        %v3355 = vpop.f32.mrb[0].mxu0
        %3356 = vmatprep.mubr.f32.mxu0 0.0
        %3357 = vmatmul.mubr.f32.gmra.mrb[0].mxu0 %v3179
        %v3358 = vpop.f32.mrb[0].mxu0
        %v3359 = vadd.f32 0.0, %v3358
        %v3360 = vpop.f32.mrb[0].mxu0
        %3361 = vmatprep.mubr.f32.mxu0 0.0
        %3362 = vmatmul.mubr.f32.gmra.mrb[0].mxu0 %v3180
        %v3363 = vpop.f32.mrb[0].mxu0
        %v3364 = vadd.f32 0.0, %v3363
        %v3365 = vpop.f32.mrb[0].mxu0
        %3366 = vmatprep.mubr.f32.mxu0 0.0
        %3367 = vmatmul.mubr.f32.gmra.mrb[0].mxu0 %v3181
        %v3368 = vpop.f32.mrb[0].mxu0
        %v3369 = vadd.f32 0.0, %v3368
        %v3370 = vpop.f32.mrb[0].mxu0
        %3371 = vmatprep.mubr.f32.mxu0 0.0
        %3372 = vmatmul.mubr.f32.gmra.mrb[0].mxu0 %v3182
        %v3373 = vpop.f32.mrb[0].mxu0
        %v3374 = vadd.f32 0.0, %v3373
        %v3375 = vpop.f32.mrb[0].mxu0
        %3376 = vmatprep.mubr.f32.mxu0 0.0
        %3377 = vmatmul.mubr.f32.gmra.mrb[0].mxu0 %v3183
        %v3378 = vpop.f32.mrb[0].mxu0
        %v3379 = vadd.f32 0.0, %v3378
        %v3380 = vpop.f32.mrb[0].mxu0
        %3381 = vmatprep.mubr.f32.mxu0 0.0
        %3382 = vmatmul.mubr.f32.gmra.mrb[0].mxu0 %v3184
        %v3383 = vpop.f32.mrb[0].mxu0
        %v3384 = vadd.f32 0.0, %v3383
        %v3385 = vpop.f32.mrb[0].mxu0
        %3386 = vmatprep.mubr.f32.mxu0 0.0
        %3387 = vmatmul.mubr.f32.gmra.mrb[0].mxu0 %v3185
        %v3388 = vpop.f32.mrb[0].mxu0
        %v3389 = vadd.f32 0.0, %v3388
        %v3390 = vpop.f32.mrb[0].mxu0
        %3391 = vmatprep.mubr.f32.mxu0 0.0
        %3392 = vmatmul.mubr.f32.gmra.mrb[0].mxu0 %v3186
        %v3393 = vpop.f32.mrb[0].mxu0
        %v3394 = vadd.f32 0.0, %v3393
        %v3395 = vpop.f32.mrb[0].mxu0
        %3396 = vmatprep.mubr.f32.mxu0 0.0
        %3397 = vmatmul.mubr.f32.gmra.mrb[0].mxu0 %v3187
        %v3398 = vpop.f32.mrb[0].mxu0
        %v3399 = vadd.f32 0.0, %v3398
        %v3400 = vpop.f32.mrb[0].mxu0
        %3401 = vmatprep.mubr.f32.mxu0 0.0
        %3402 = vmatmul.mubr.f32.gmra.mrb[0].mxu0 %v3188
        %v3403 = vpop.f32.mrb[0].mxu0
        %v3404 = vadd.f32 0.0, %v3403
        %v3405 = vpop.f32.mrb[0].mxu0
        %3406 = vmatprep.mubr.f32.mxu0 0.0
        %3407 = vmatmul.mubr.f32.gmra.mrb[0].mxu0 %v3189
        %v3408 = vpop.f32.mrb[0].mxu0
        %v3409 = vadd.f32 0.0, %v3408
        %v3410 = vpop.f32.mrb[0].mxu0
        %3411 = vmatprep.mubr.f32.mxu0 0.0
        %3412 = vmatmul.mubr.f32.gmra.mrb[0].mxu0 %v3190
        %v3413 = vpop.f32.mrb[0].mxu0
        %v3414 = vadd.f32 0.0, %v3413
        %v3415 = vpop.f32.mrb[0].mxu0
        %3416 = vmatprep.mubr.f32.mxu0 0.0
        %3417 = vmatmul.mubr.f32.gmra.mrb[0].mxu0 %v3191
        %v3418 = vpop.f32.mrb[0].mxu0
        %v3419 = vadd.f32 0.0, %v3418
        %v3420 = vpop.f32.mrb[0].mxu0
        %3421 = vmatprep.mubr.f32.mxu0 0.0
        %3422 = vmatmul.mubr.f32.gmra.mrb[0].mxu0 %v3192
        %v3423 = vpop.f32.mrb[0].mxu0
        %v3424 = vadd.f32 0.0, %v3423
        %v3425 = vpop.f32.mrb[0].mxu0
        %3426 = vmatprep.mubr.f32.mxu0 0.0
        %3427 = vmatmul.mubr.f32.gmra.mrb[0].mxu0 %v3193
        %v3428 = vpop.f32.mrb[0].mxu0
        %v3429 = vadd.f32 0.0, %v3428
        %v3430 = vpop.f32.mrb[0].mxu0
        %3431 = vmatprep.mubr.f32.mxu0 0.0
        %3432 = vmatmul.mubr.f32.gmra.mrb[0].mxu0 %v3194
        %v3433 = vpop.f32.mrb[0].mxu0
        %v3434 = vadd.f32 0.0, %v3433
        %v3435 = vpop.f32.mrb[0].mxu0
        %3436 = vdwg.mxu0
        %3437 = vmatprep.subr.mxu0 0.0
        %3438 = vmatpush1.msra.mxu0 %v3147
        %3439 = vmatprep.subr.mxu0 0.0
        %3440 = vmatpush1.msra.mxu0 %v3148
        %3441 = vmatprep.subr.mxu0 0.0
        %3442 = vmatpush1.msra.mxu0 %v3149
        %3443 = vmatprep.subr.mxu0 0.0
        %3444 = vmatpush1.msra.mxu0 %v3150
        %3445 = vmatprep.subr.mxu0 0.0
        %3446 = vmatpush1.msra.mxu0 %v3151
        %3447 = vmatprep.subr.mxu0 0.0
        %3448 = vmatpush1.msra.mxu0 %v3152
        %3449 = vmatprep.subr.mxu0 0.0
        %3450 = vmatpush1.msra.mxu0 %v3153
        %3451 = vmatprep.subr.mxu0 0.0
        %3452 = vmatpush1.msra.mxu0 %v3154
        %3453 = vmatprep.subr.mxu0 0.0
        %3454 = vmatpush1.msra.mxu0 %v3155
        %3455 = vmatprep.subr.mxu0 0.0
        %3456 = vmatpush1.msra.mxu0 %v3156
        %3457 = vmatprep.subr.mxu0 0.0
        %3458 = vmatpush1.msra.mxu0 %v3157
        %3459 = vmatprep.subr.mxu0 0.0
        %3460 = vmatpush1.msra.mxu0 %v3158
        %3461 = vmatprep.subr.mxu0 0.0
        %3462 = vmatpush1.msra.mxu0 %v3159
        %3463 = vmatprep.subr.mxu0 0.0
        %3464 = vmatpush1.msra.mxu0 %v3160
        %3465 = vmatprep.subr.mxu0 0.0
        %3466 = vmatpush1.msra.mxu0 %v3161
        %3467 = vmatprep.subr.mxu0 0.0
        %3468 = vmatpush1.msra.mxu0 %v3162
        %3469 = vmatprep.subr.mxu0 0.0
        %3470 = vmatpush1.msra.mxu0 0.0
        %3471 = vmatprep.subr.mxu0 0.0
        %3472 = vmatpush1.msra.mxu0 0.0
        %3473 = vmatprep.subr.mxu0 0.0
        %3474 = vmatpush1.msra.mxu0 0.0
        %3475 = vmatprep.subr.mxu0 0.0
        %3476 = vmatpush1.msra.mxu0 0.0
        %3477 = vmatprep.subr.mxu0 0.0
        %3478 = vmatpush1.msra.mxu0 0.0
        %3479 = vmatprep.subr.mxu0 0.0
        %3480 = vmatpush1.msra.mxu0 0.0
        %3481 = vmatprep.subr.mxu0 0.0
        %3482 = vmatpush1.msra.mxu0 0.0
        %3483 = vmatprep.subr.mxu0 0.0
        %3484 = vmatpush1.msra.mxu0 0.0
        %3485 = vmatprep.subr.mxu0 0.0
        %3486 = vmatpush1.msra.mxu0 0.0
        %3487 = vmatprep.subr.mxu0 0.0
        %3488 = vmatpush1.msra.mxu0 0.0
        %3489 = vmatprep.subr.mxu0 0.0
        %3490 = vmatpush1.msra.mxu0 0.0
        %3491 = vmatprep.subr.mxu0 0.0
        %3492 = vmatpush1.msra.mxu0 0.0
        %3493 = vmatprep.subr.mxu0 0.0
        %3494 = vmatpush1.msra.mxu0 0.0
        %3495 = vmatprep.subr.mxu0 0.0
        %3496 = vmatpush1.msra.mxu0 0.0
        %3497 = vmatprep.subr.mxu0 0.0
        %3498 = vmatpush1.msra.mxu0 0.0
        %3499 = vmatprep.subr.mxu0 0.0
        %3500 = vmatpush1.msra.mxu0 0.0
        %3501 = vmatprep.mubr.f32.mxu0 0.0
        %3502 = vmatmul.mubr.f32.gmra.mrb[0].mxu0 %v3114
        %v3503 = vpop.f32.mrb[0].mxu0
        %v3504 = vadd.f32 %v3279, %v3503
        %v3505 = vpop.f32.mrb[0].mxu0
        %3506 = vmatprep.mubr.f32.mxu0 0.0
        %3507 = vmatmul.mubr.f32.gmra.mrb[0].mxu0 %v3115
        %v3508 = vpop.f32.mrb[0].mxu0
        %v3509 = vadd.f32 %v3284, %v3508
        %v3510 = vpop.f32.mrb[0].mxu0
        %3511 = vmatprep.mubr.f32.mxu0 0.0
        %3512 = vmatmul.mubr.f32.gmra.mrb[0].mxu0 %v3116
        %v3513 = vpop.f32.mrb[0].mxu0
        %v3514 = vadd.f32 %v3289, %v3513
        %v3515 = vpop.f32.mrb[0].mxu0
        %3516 = vmatprep.mubr.f32.mxu0 0.0
        %3517 = vmatmul.mubr.f32.gmra.mrb[0].mxu0 %v3117
        %v3518 = vpop.f32.mrb[0].mxu0
        %v3519 = vadd.f32 %v3294, %v3518
        %v3520 = vpop.f32.mrb[0].mxu0
        %3521 = vmatprep.mubr.f32.mxu0 0.0
        %3522 = vmatmul.mubr.f32.gmra.mrb[0].mxu0 %v3118
        %v3523 = vpop.f32.mrb[0].mxu0
        %v3524 = vadd.f32 %v3299, %v3523
        %v3525 = vpop.f32.mrb[0].mxu0
        %3526 = vmatprep.mubr.f32.mxu0 0.0
        %3527 = vmatmul.mubr.f32.gmra.mrb[0].mxu0 %v3119
        %v3528 = vpop.f32.mrb[0].mxu0
        %v3529 = vadd.f32 %v3304, %v3528
        %v3530 = vpop.f32.mrb[0].mxu0
        %3531 = vmatprep.mubr.f32.mxu0 0.0
        %3532 = vmatmul.mubr.f32.gmra.mrb[0].mxu0 %v3120
        %v3533 = vpop.f32.mrb[0].mxu0
        %v3534 = vadd.f32 %v3309, %v3533
        %v3535 = vpop.f32.mrb[0].mxu0
        %3536 = vmatprep.mubr.f32.mxu0 0.0
        %3537 = vmatmul.mubr.f32.gmra.mrb[0].mxu0 %v3121
        %v3538 = vpop.f32.mrb[0].mxu0
        %v3539 = vadd.f32 %v3314, %v3538
        %v3540 = vpop.f32.mrb[0].mxu0
        %3541 = vmatprep.mubr.f32.mxu0 0.0
        %3542 = vmatmul.mubr.f32.gmra.mrb[0].mxu0 %v3122
        %v3543 = vpop.f32.mrb[0].mxu0
        %v3544 = vadd.f32 %v3319, %v3543
        %v3545 = vpop.f32.mrb[0].mxu0
        %3546 = vmatprep.mubr.f32.mxu0 0.0
        %3547 = vmatmul.mubr.f32.gmra.mrb[0].mxu0 %v3123
        %v3548 = vpop.f32.mrb[0].mxu0
        %v3549 = vadd.f32 %v3324, %v3548
        %v3550 = vpop.f32.mrb[0].mxu0
        %3551 = vmatprep.mubr.f32.mxu0 0.0
        %3552 = vmatmul.mubr.f32.gmra.mrb[0].mxu0 %v3124
        %v3553 = vpop.f32.mrb[0].mxu0
        %v3554 = vadd.f32 %v3329, %v3553
        %v3555 = vpop.f32.mrb[0].mxu0
        %3556 = vmatprep.mubr.f32.mxu0 0.0
        %3557 = vmatmul.mubr.f32.gmra.mrb[0].mxu0 %v3125
        %v3558 = vpop.f32.mrb[0].mxu0
        %v3559 = vadd.f32 %v3334, %v3558
        %v3560 = vpop.f32.mrb[0].mxu0
        %3561 = vmatprep.mubr.f32.mxu0 0.0
        %3562 = vmatmul.mubr.f32.gmra.mrb[0].mxu0 %v3126
        %v3563 = vpop.f32.mrb[0].mxu0
        %v3564 = vadd.f32 %v3339, %v3563
        %v3565 = vpop.f32.mrb[0].mxu0
        %3566 = vmatprep.mubr.f32.mxu0 0.0
        %3567 = vmatmul.mubr.f32.gmra.mrb[0].mxu0 %v3127
        %v3568 = vpop.f32.mrb[0].mxu0
        %v3569 = vadd.f32 %v3344, %v3568
        %v3570 = vpop.f32.mrb[0].mxu0
        %3571 = vmatprep.mubr.f32.mxu0 0.0
        %3572 = vmatmul.mubr.f32.gmra.mrb[0].mxu0 %v3128
        %v3573 = vpop.f32.mrb[0].mxu0
        %v3574 = vadd.f32 %v3349, %v3573
        %v3575 = vpop.f32.mrb[0].mxu0
        %3576 = vmatprep.mubr.f32.mxu0 0.0
        %3577 = vmatmul.mubr.f32.gmra.mrb[0].mxu0 %v3129
        %v3578 = vpop.f32.mrb[0].mxu0
        %v3579 = vadd.f32 %v3354, %v3578
        %v3580 = vpop.f32.mrb[0].mxu0
        %3581 = vmatprep.mubr.f32.mxu0 0.0
        %3582 = vmatmul.mubr.f32.gmra.mrb[0].mxu0 %v3130
        %v3583 = vpop.f32.mrb[0].mxu0
        %v3584 = vadd.f32 %v3359, %v3583
        %v3585 = vpop.f32.mrb[0].mxu0
        %3586 = vmatprep.mubr.f32.mxu0 0.0
        %3587 = vmatmul.mubr.f32.gmra.mrb[0].mxu0 %v3131
        %v3588 = vpop.f32.mrb[0].mxu0
        %v3589 = vadd.f32 %v3364, %v3588
        %v3590 = vpop.f32.mrb[0].mxu0
        %3591 = vmatprep.mubr.f32.mxu0 0.0
        %3592 = vmatmul.mubr.f32.gmra.mrb[0].mxu0 %v3132
        %v3593 = vpop.f32.mrb[0].mxu0
        %v3594 = vadd.f32 %v3369, %v3593
        %v3595 = vpop.f32.mrb[0].mxu0
        %3596 = vmatprep.mubr.f32.mxu0 0.0
        %3597 = vmatmul.mubr.f32.gmra.mrb[0].mxu0 %v3133
        %v3598 = vpop.f32.mrb[0].mxu0
        %v3599 = vadd.f32 %v3374, %v3598
        %v3600 = vpop.f32.mrb[0].mxu0
        %3601 = vmatprep.mubr.f32.mxu0 0.0
        %3602 = vmatmul.mubr.f32.gmra.mrb[0].mxu0 %v3134
        %v3603 = vpop.f32.mrb[0].mxu0
        %v3604 = vadd.f32 %v3379, %v3603
        %v3605 = vpop.f32.mrb[0].mxu0
        %3606 = vmatprep.mubr.f32.mxu0 0.0
        %3607 = vmatmul.mubr.f32.gmra.mrb[0].mxu0 %v3135
        %v3608 = vpop.f32.mrb[0].mxu0
        %v3609 = vadd.f32 %v3384, %v3608
        %v3610 = vpop.f32.mrb[0].mxu0
        %3611 = vmatprep.mubr.f32.mxu0 0.0
        %3612 = vmatmul.mubr.f32.gmra.mrb[0].mxu0 %v3136
        %v3613 = vpop.f32.mrb[0].mxu0
        %v3614 = vadd.f32 %v3389, %v3613
        %v3615 = vpop.f32.mrb[0].mxu0
        %3616 = vmatprep.mubr.f32.mxu0 0.0
        %3617 = vmatmul.mubr.f32.gmra.mrb[0].mxu0 %v3137
        %v3618 = vpop.f32.mrb[0].mxu0
        %v3619 = vadd.f32 %v3394, %v3618
        %v3620 = vpop.f32.mrb[0].mxu0
        %3621 = vmatprep.mubr.f32.mxu0 0.0
        %3622 = vmatmul.mubr.f32.gmra.mrb[0].mxu0 %v3138
        %v3623 = vpop.f32.mrb[0].mxu0
        %v3624 = vadd.f32 %v3399, %v3623
        %v3625 = vpop.f32.mrb[0].mxu0
        %3626 = vmatprep.mubr.f32.mxu0 0.0
        %3627 = vmatmul.mubr.f32.gmra.mrb[0].mxu0 %v3139
        %v3628 = vpop.f32.mrb[0].mxu0
        %v3629 = vadd.f32 %v3404, %v3628
        %v3630 = vpop.f32.mrb[0].mxu0
        %3631 = vmatprep.mubr.f32.mxu0 0.0
        %3632 = vmatmul.mubr.f32.gmra.mrb[0].mxu0 %v3140
        %v3633 = vpop.f32.mrb[0].mxu0
        %v3634 = vadd.f32 %v3409, %v3633
        %v3635 = vpop.f32.mrb[0].mxu0
        %3636 = vmatprep.mubr.f32.mxu0 0.0
        %3637 = vmatmul.mubr.f32.gmra.mrb[0].mxu0 %v3141
        %v3638 = vpop.f32.mrb[0].mxu0
        %v3639 = vadd.f32 %v3414, %v3638
        %v3640 = vpop.f32.mrb[0].mxu0
        %3641 = vmatprep.mubr.f32.mxu0 0.0
        %3642 = vmatmul.mubr.f32.gmra.mrb[0].mxu0 %v3142
        %v3643 = vpop.f32.mrb[0].mxu0
        %v3644 = vadd.f32 %v3419, %v3643
        %v3645 = vpop.f32.mrb[0].mxu0
        %3646 = vmatprep.mubr.f32.mxu0 0.0
        %3647 = vmatmul.mubr.f32.gmra.mrb[0].mxu0 %v3143
        %v3648 = vpop.f32.mrb[0].mxu0
        %v3649 = vadd.f32 %v3424, %v3648
        %v3650 = vpop.f32.mrb[0].mxu0
        %3651 = vmatprep.mubr.f32.mxu0 0.0
        %3652 = vmatmul.mubr.f32.gmra.mrb[0].mxu0 %v3144
        %v3653 = vpop.f32.mrb[0].mxu0
        %v3654 = vadd.f32 %v3429, %v3653
        %v3655 = vpop.f32.mrb[0].mxu0
        %3656 = vmatprep.mubr.f32.mxu0 0.0
        %3657 = vmatmul.mubr.f32.gmra.mrb[0].mxu0 %v3145
        %v3658 = vpop.f32.mrb[0].mxu0
        %v3659 = vadd.f32 %v3434, %v3658
        %v3660 = vpop.f32.mrb[0].mxu0
        %3661 = vdwg.mxu0
        %v3662 = vld [vmem:[#allocation2 + $0x11] sm:$0xff]
        %v3663 = vld [vmem:[#allocation2 + $0x19] sm:$0xff]
        %v3664 = vld [vmem:[#allocation2 + $0x41] sm:$0xff]
        %v3665 = vld [vmem:[#allocation2 + $0x49] sm:$0xff]
        %v3666 = vld [vmem:[#allocation2 + $0x71] sm:$0xff]
        %v3667 = vld [vmem:[#allocation2 + $0x79] sm:$0xff]
        %v3668 = vld [vmem:[#allocation2 + $0xa1] sm:$0xff]
        %v3669 = vld [vmem:[#allocation2 + $0xa9] sm:$0xff]
        %v3670 = vld [vmem:[#allocation2 + $0xd1] sm:$0xff]
        %v3671 = vld [vmem:[#allocation2 + $0xd9] sm:$0xff]
        %v3672 = vld [vmem:[#allocation2 + $0x101] sm:$0xff]
        %v3673 = vld [vmem:[#allocation2 + $0x109] sm:$0xff]
        %v3674 = vld [vmem:[#allocation2 + $0x131] sm:$0xff]
        %v3675 = vld [vmem:[#allocation2 + $0x139] sm:$0xff]
        %v3676 = vld [vmem:[#allocation2 + $0x161] sm:$0xff]
        %v3677 = vld [vmem:[#allocation2 + $0x169] sm:$0xff]
        %v3678 = vld [vmem:[#allocation2 + $0x191] sm:$0xff]
        %v3679 = vld [vmem:[#allocation2 + $0x199] sm:$0xff]
        %v3680 = vld [vmem:[#allocation2 + $0x1c1] sm:$0xff]
        %v3681 = vld [vmem:[#allocation2 + $0x1c9] sm:$0xff]
        %v3682 = vld [vmem:[#allocation2 + $0x1f1] sm:$0xff]
        %v3683 = vld [vmem:[#allocation2 + $0x1f9] sm:$0xff]
        %v3684 = vld [vmem:[#allocation2 + $0x221] sm:$0xff]
        %v3685 = vld [vmem:[#allocation2 + $0x229] sm:$0xff]
        %v3686 = vld [vmem:[#allocation2 + $0x251] sm:$0xff]
        %v3687 = vld [vmem:[#allocation2 + $0x259] sm:$0xff]
        %v3688 = vld [vmem:[#allocation2 + $0x281] sm:$0xff]
        %v3689 = vld [vmem:[#allocation2 + $0x289] sm:$0xff]
        %v3690 = vld [vmem:[#allocation2 + $0x2b1] sm:$0xff]
        %v3691 = vld [vmem:[#allocation2 + $0x2b9] sm:$0xff]
        %v3692 = vld [vmem:[#allocation2 + $0x2e1] sm:$0xff]
        %v3693 = vld [vmem:[#allocation2 + $0x2e9] sm:$0xff]
        %s3694 = scalar_lea.vmem [#allocation3], 1408
        %v3695 = vld [vmem:[%s3694] sm:$0xff]
        %v3696 = vld [vmem:[%s3694 + $0x8] sm:$0xff]
        %v3697 = vld [vmem:[%s3694 + $0x10] sm:$0xff]
        %v3698 = vld [vmem:[%s3694 + $0x18] sm:$0xff]
        %v3699 = vld [vmem:[%s3694 + $0x20] sm:$0xff]
        %v3700 = vld [vmem:[%s3694 + $0x28] sm:$0xff]
        %v3701 = vld [vmem:[%s3694 + $0x30] sm:$0xff]
        %v3702 = vld [vmem:[%s3694 + $0x38] sm:$0xff]
        %v3703 = vld [vmem:[%s3694 + $0x40] sm:$0xff]
        %v3704 = vld [vmem:[%s3694 + $0x48] sm:$0xff]
        %v3705 = vld [vmem:[%s3694 + $0x50] sm:$0xff]
        %v3706 = vld [vmem:[%s3694 + $0x58] sm:$0xff]
        %v3707 = vld [vmem:[%s3694 + $0x60] sm:$0xff]
        %v3708 = vld [vmem:[%s3694 + $0x68] sm:$0xff]
        %v3709 = vld [vmem:[%s3694 + $0x70] sm:$0xff]
        %v3710 = vld [vmem:[%s3694 + $0x78] sm:$0xff]
        %3711 = vmatprep.subr.mxu0 0.0
        %3712 = vmatpush1.msra.mxu0 %v3695
        %3713 = vmatprep.subr.mxu0 0.0
        %3714 = vmatpush1.msra.mxu0 %v3696
        %3715 = vmatprep.subr.mxu0 0.0
        %3716 = vmatpush1.msra.mxu0 %v3697
        %3717 = vmatprep.subr.mxu0 0.0
        %3718 = vmatpush1.msra.mxu0 %v3698
        %3719 = vmatprep.subr.mxu0 0.0
        %3720 = vmatpush1.msra.mxu0 %v3699
        %3721 = vmatprep.subr.mxu0 0.0
        %3722 = vmatpush1.msra.mxu0 %v3700
        %3723 = vmatprep.subr.mxu0 0.0
        %3724 = vmatpush1.msra.mxu0 %v3701
        %3725 = vmatprep.subr.mxu0 0.0
        %3726 = vmatpush1.msra.mxu0 %v3702
        %3727 = vmatprep.subr.mxu0 0.0
        %3728 = vmatpush1.msra.mxu0 %v3703
        %3729 = vmatprep.subr.mxu0 0.0
        %3730 = vmatpush1.msra.mxu0 %v3704
        %3731 = vmatprep.subr.mxu0 0.0
        %3732 = vmatpush1.msra.mxu0 %v3705
        %3733 = vmatprep.subr.mxu0 0.0
        %3734 = vmatpush1.msra.mxu0 %v3706
        %3735 = vmatprep.subr.mxu0 0.0
        %3736 = vmatpush1.msra.mxu0 %v3707
        %3737 = vmatprep.subr.mxu0 0.0
        %3738 = vmatpush1.msra.mxu0 %v3708
        %3739 = vmatprep.subr.mxu0 0.0
        %3740 = vmatpush1.msra.mxu0 %v3709
        %3741 = vmatprep.subr.mxu0 0.0
        %3742 = vmatpush1.msra.mxu0 %v3710
        %3743 = vmatprep.subr.mxu0 0.0
        %3744 = vmatpush1.msra.mxu0 0.0
        %3745 = vmatprep.subr.mxu0 0.0
        %3746 = vmatpush1.msra.mxu0 0.0
        %3747 = vmatprep.subr.mxu0 0.0
        %3748 = vmatpush1.msra.mxu0 0.0
        %3749 = vmatprep.subr.mxu0 0.0
        %3750 = vmatpush1.msra.mxu0 0.0
        %3751 = vmatprep.subr.mxu0 0.0
        %3752 = vmatpush1.msra.mxu0 0.0
        %3753 = vmatprep.subr.mxu0 0.0
        %3754 = vmatpush1.msra.mxu0 0.0
        %3755 = vmatprep.subr.mxu0 0.0
        %3756 = vmatpush1.msra.mxu0 0.0
        %3757 = vmatprep.subr.mxu0 0.0
        %3758 = vmatpush1.msra.mxu0 0.0
        %3759 = vmatprep.subr.mxu0 0.0
        %3760 = vmatpush1.msra.mxu0 0.0
        %3761 = vmatprep.subr.mxu0 0.0
        %3762 = vmatpush1.msra.mxu0 0.0
        %3763 = vmatprep.subr.mxu0 0.0
        %3764 = vmatpush1.msra.mxu0 0.0
        %3765 = vmatprep.subr.mxu0 0.0
        %3766 = vmatpush1.msra.mxu0 0.0
        %3767 = vmatprep.subr.mxu0 0.0
        %3768 = vmatpush1.msra.mxu0 0.0
        %3769 = vmatprep.subr.mxu0 0.0
        %3770 = vmatpush1.msra.mxu0 0.0
        %3771 = vmatprep.subr.mxu0 0.0
        %3772 = vmatpush1.msra.mxu0 0.0
        %3773 = vmatprep.subr.mxu0 0.0
        %3774 = vmatpush1.msra.mxu0 0.0
        %3775 = vmatprep.mubr.f32.mxu0 0.0
        %3776 = vmatmul.mubr.f32.gmra.mrb[0].mxu0 %v3662
        %v3777 = vpop.f32.mrb[0].mxu0
        %v3778 = vadd.f32 0.0, %v3777
        %v3779 = vpop.f32.mrb[0].mxu0
        %3780 = vmatprep.mubr.f32.mxu0 0.0
        %3781 = vmatmul.mubr.f32.gmra.mrb[0].mxu0 %v3663
        %v3782 = vpop.f32.mrb[0].mxu0
        %v3783 = vadd.f32 0.0, %v3782
        %v3784 = vpop.f32.mrb[0].mxu0
        %3785 = vmatprep.mubr.f32.mxu0 0.0
        %3786 = vmatmul.mubr.f32.gmra.mrb[0].mxu0 %v3664
        %v3787 = vpop.f32.mrb[0].mxu0
        %v3788 = vadd.f32 0.0, %v3787
        %v3789 = vpop.f32.mrb[0].mxu0
        %3790 = vmatprep.mubr.f32.mxu0 0.0
        %3791 = vmatmul.mubr.f32.gmra.mrb[0].mxu0 %v3665
        %v3792 = vpop.f32.mrb[0].mxu0
        %v3793 = vadd.f32 0.0, %v3792
        %v3794 = vpop.f32.mrb[0].mxu0
        %3795 = vmatprep.mubr.f32.mxu0 0.0
        %3796 = vmatmul.mubr.f32.gmra.mrb[0].mxu0 %v3666
        %v3797 = vpop.f32.mrb[0].mxu0
        %v3798 = vadd.f32 0.0, %v3797
        %v3799 = vpop.f32.mrb[0].mxu0
        %3800 = vmatprep.mubr.f32.mxu0 0.0
        %3801 = vmatmul.mubr.f32.gmra.mrb[0].mxu0 %v3667
        %v3802 = vpop.f32.mrb[0].mxu0
        %v3803 = vadd.f32 0.0, %v3802
        %v3804 = vpop.f32.mrb[0].mxu0
        %3805 = vmatprep.mubr.f32.mxu0 0.0
        %3806 = vmatmul.mubr.f32.gmra.mrb[0].mxu0 %v3668
        %v3807 = vpop.f32.mrb[0].mxu0
        %v3808 = vadd.f32 0.0, %v3807
        %v3809 = vpop.f32.mrb[0].mxu0
        %3810 = vmatprep.mubr.f32.mxu0 0.0
        %3811 = vmatmul.mubr.f32.gmra.mrb[0].mxu0 %v3669
        %v3812 = vpop.f32.mrb[0].mxu0
        %v3813 = vadd.f32 0.0, %v3812
        %v3814 = vpop.f32.mrb[0].mxu0
        %3815 = vmatprep.mubr.f32.mxu0 0.0
        %3816 = vmatmul.mubr.f32.gmra.mrb[0].mxu0 %v3670
        %v3817 = vpop.f32.mrb[0].mxu0
        %v3818 = vadd.f32 0.0, %v3817
        %v3819 = vpop.f32.mrb[0].mxu0
        %3820 = vmatprep.mubr.f32.mxu0 0.0
        %3821 = vmatmul.mubr.f32.gmra.mrb[0].mxu0 %v3671
        %v3822 = vpop.f32.mrb[0].mxu0
        %v3823 = vadd.f32 0.0, %v3822
        %v3824 = vpop.f32.mrb[0].mxu0
        %3825 = vmatprep.mubr.f32.mxu0 0.0
        %3826 = vmatmul.mubr.f32.gmra.mrb[0].mxu0 %v3672
        %v3827 = vpop.f32.mrb[0].mxu0
        %v3828 = vadd.f32 0.0, %v3827
        %v3829 = vpop.f32.mrb[0].mxu0
        %3830 = vmatprep.mubr.f32.mxu0 0.0
        %3831 = vmatmul.mubr.f32.gmra.mrb[0].mxu0 %v3673
        %v3832 = vpop.f32.mrb[0].mxu0
        %v3833 = vadd.f32 0.0, %v3832
        %v3834 = vpop.f32.mrb[0].mxu0
        %3835 = vmatprep.mubr.f32.mxu0 0.0
        %3836 = vmatmul.mubr.f32.gmra.mrb[0].mxu0 %v3674
        %v3837 = vpop.f32.mrb[0].mxu0
        %v3838 = vadd.f32 0.0, %v3837
        %v3839 = vpop.f32.mrb[0].mxu0
        %3840 = vmatprep.mubr.f32.mxu0 0.0
        %3841 = vmatmul.mubr.f32.gmra.mrb[0].mxu0 %v3675
        %v3842 = vpop.f32.mrb[0].mxu0
        %v3843 = vadd.f32 0.0, %v3842
        %v3844 = vpop.f32.mrb[0].mxu0
        %3845 = vmatprep.mubr.f32.mxu0 0.0
        %3846 = vmatmul.mubr.f32.gmra.mrb[0].mxu0 %v3676
        %v3847 = vpop.f32.mrb[0].mxu0
        %v3848 = vadd.f32 0.0, %v3847
        %v3849 = vpop.f32.mrb[0].mxu0
        %3850 = vmatprep.mubr.f32.mxu0 0.0
        %3851 = vmatmul.mubr.f32.gmra.mrb[0].mxu0 %v3677
        %v3852 = vpop.f32.mrb[0].mxu0
        %v3853 = vadd.f32 0.0, %v3852
        %v3854 = vpop.f32.mrb[0].mxu0
        %3855 = vmatprep.mubr.f32.mxu0 0.0
        %3856 = vmatmul.mubr.f32.gmra.mrb[0].mxu0 %v3678
        %v3857 = vpop.f32.mrb[0].mxu0
        %v3858 = vadd.f32 0.0, %v3857
        %v3859 = vpop.f32.mrb[0].mxu0
        %3860 = vmatprep.mubr.f32.mxu0 0.0
        %3861 = vmatmul.mubr.f32.gmra.mrb[0].mxu0 %v3679
        %v3862 = vpop.f32.mrb[0].mxu0
        %v3863 = vadd.f32 0.0, %v3862
        %v3864 = vpop.f32.mrb[0].mxu0
        %3865 = vmatprep.mubr.f32.mxu0 0.0
        %3866 = vmatmul.mubr.f32.gmra.mrb[0].mxu0 %v3680
        %v3867 = vpop.f32.mrb[0].mxu0
        %v3868 = vadd.f32 0.0, %v3867
        %v3869 = vpop.f32.mrb[0].mxu0
        %3870 = vmatprep.mubr.f32.mxu0 0.0
        %3871 = vmatmul.mubr.f32.gmra.mrb[0].mxu0 %v3681
        %v3872 = vpop.f32.mrb[0].mxu0
        %v3873 = vadd.f32 0.0, %v3872
        %v3874 = vpop.f32.mrb[0].mxu0
        %3875 = vmatprep.mubr.f32.mxu0 0.0
        %3876 = vmatmul.mubr.f32.gmra.mrb[0].mxu0 %v3682
        %v3877 = vpop.f32.mrb[0].mxu0
        %v3878 = vadd.f32 0.0, %v3877
        %v3879 = vpop.f32.mrb[0].mxu0
        %3880 = vmatprep.mubr.f32.mxu0 0.0
        %3881 = vmatmul.mubr.f32.gmra.mrb[0].mxu0 %v3683
        %v3882 = vpop.f32.mrb[0].mxu0
        %v3883 = vadd.f32 0.0, %v3882
        %v3884 = vpop.f32.mrb[0].mxu0
        %3885 = vmatprep.mubr.f32.mxu0 0.0
        %3886 = vmatmul.mubr.f32.gmra.mrb[0].mxu0 %v3684
        %v3887 = vpop.f32.mrb[0].mxu0
        %v3888 = vadd.f32 0.0, %v3887
        %v3889 = vpop.f32.mrb[0].mxu0
        %3890 = vmatprep.mubr.f32.mxu0 0.0
        %3891 = vmatmul.mubr.f32.gmra.mrb[0].mxu0 %v3685
        %v3892 = vpop.f32.mrb[0].mxu0
        %v3893 = vadd.f32 0.0, %v3892
        %v3894 = vpop.f32.mrb[0].mxu0
        %3895 = vmatprep.mubr.f32.mxu0 0.0
        %3896 = vmatmul.mubr.f32.gmra.mrb[0].mxu0 %v3686
        %v3897 = vpop.f32.mrb[0].mxu0
        %v3898 = vadd.f32 0.0, %v3897
        %v3899 = vpop.f32.mrb[0].mxu0
        %3900 = vmatprep.mubr.f32.mxu0 0.0
        %3901 = vmatmul.mubr.f32.gmra.mrb[0].mxu0 %v3687
        %v3902 = vpop.f32.mrb[0].mxu0
        %v3903 = vadd.f32 0.0, %v3902
        %v3904 = vpop.f32.mrb[0].mxu0
        %3905 = vmatprep.mubr.f32.mxu0 0.0
        %3906 = vmatmul.mubr.f32.gmra.mrb[0].mxu0 %v3688
        %v3907 = vpop.f32.mrb[0].mxu0
        %v3908 = vadd.f32 0.0, %v3907
        %v3909 = vpop.f32.mrb[0].mxu0
        %3910 = vmatprep.mubr.f32.mxu0 0.0
        %3911 = vmatmul.mubr.f32.gmra.mrb[0].mxu0 %v3689
        %v3912 = vpop.f32.mrb[0].mxu0
        %v3913 = vadd.f32 0.0, %v3912
        %v3914 = vpop.f32.mrb[0].mxu0
        %3915 = vmatprep.mubr.f32.mxu0 0.0
        %3916 = vmatmul.mubr.f32.gmra.mrb[0].mxu0 %v3690
        %v3917 = vpop.f32.mrb[0].mxu0
        %v3918 = vadd.f32 0.0, %v3917
        %v3919 = vpop.f32.mrb[0].mxu0
        %3920 = vmatprep.mubr.f32.mxu0 0.0
        %3921 = vmatmul.mubr.f32.gmra.mrb[0].mxu0 %v3691
        %v3922 = vpop.f32.mrb[0].mxu0
        %v3923 = vadd.f32 0.0, %v3922
        %v3924 = vpop.f32.mrb[0].mxu0
        %3925 = vmatprep.mubr.f32.mxu0 0.0
        %3926 = vmatmul.mubr.f32.gmra.mrb[0].mxu0 %v3692
        %v3927 = vpop.f32.mrb[0].mxu0
        %v3928 = vadd.f32 0.0, %v3927
        %v3929 = vpop.f32.mrb[0].mxu0
        %3930 = vmatprep.mubr.f32.mxu0 0.0
        %3931 = vmatmul.mubr.f32.gmra.mrb[0].mxu0 %v3693
        %v3932 = vpop.f32.mrb[0].mxu0
        %v3933 = vadd.f32 0.0, %v3932
        %v3934 = vpop.f32.mrb[0].mxu0
        %3935 = vdwg.mxu0
        %v3936 = vadd.f32 %v3504, %v3778
        %v3937 = vadd.f32 %v3509, %v3783
        %v3938 = vadd.f32 %v3514, %v3788
        %v3939 = vadd.f32 %v3519, %v3793
        %v3940 = vadd.f32 %v3524, %v3798
        %v3941 = vadd.f32 %v3529, %v3803
        %v3942 = vadd.f32 %v3534, %v3808
        %v3943 = vadd.f32 %v3539, %v3813
        %v3944 = vadd.f32 %v3544, %v3818
        %v3945 = vadd.f32 %v3549, %v3823
        %v3946 = vadd.f32 %v3554, %v3828
        %v3947 = vadd.f32 %v3559, %v3833
        %v3948 = vadd.f32 %v3564, %v3838
        %v3949 = vadd.f32 %v3569, %v3843
        %v3950 = vadd.f32 %v3574, %v3848
        %v3951 = vadd.f32 %v3579, %v3853
        %v3952 = vadd.f32 %v3584, %v3858
        %v3953 = vadd.f32 %v3589, %v3863
        %v3954 = vadd.f32 %v3594, %v3868
        %v3955 = vadd.f32 %v3599, %v3873
        %v3956 = vadd.f32 %v3604, %v3878
        %v3957 = vadd.f32 %v3609, %v3883
        %v3958 = vadd.f32 %v3614, %v3888
        %v3959 = vadd.f32 %v3619, %v3893
        %v3960 = vadd.f32 %v3624, %v3898
        %v3961 = vadd.f32 %v3629, %v3903
        %v3962 = vadd.f32 %v3634, %v3908
        %v3963 = vadd.f32 %v3639, %v3913
        %v3964 = vadd.f32 %v3644, %v3918
        %v3965 = vadd.f32 %v3649, %v3923
        %v3966 = vadd.f32 %v3654, %v3928
        %v3967 = vadd.f32 %v3659, %v3933
        %v3968 = vld [vmem:[%s287 + $0xf] sm:$0xff]
        %v3969 = vld [vmem:[%s287 + $0x17] sm:$0xff]
        %v3970 = vld [vmem:[%s287 + $0x3f] sm:$0xff]
        %v3971 = vld [vmem:[%s287 + $0x47] sm:$0xff]
        %v3972 = vld [vmem:[%s287 + $0x6f] sm:$0xff]
        %v3973 = vld [vmem:[%s287 + $0x77] sm:$0xff]
        %v3974 = vld [vmem:[%s287 + $0x9f] sm:$0xff]
        %v3975 = vld [vmem:[%s287 + $0xa7] sm:$0xff]
        %v3976 = vld [vmem:[%s287 + $0xcf] sm:$0xff]
        %v3977 = vld [vmem:[%s287 + $0xd7] sm:$0xff]
        %v3978 = vld [vmem:[%s287 + $0xff] sm:$0xff]
        %v3979 = vld [vmem:[%s287 + $0x107] sm:$0xff]
        %v3980 = vld [vmem:[%s287 + $0x12f] sm:$0xff]
        %v3981 = vld [vmem:[%s287 + $0x137] sm:$0xff]
        %v3982 = vld [vmem:[%s287 + $0x15f] sm:$0xff]
        %v3983 = vld [vmem:[%s287 + $0x167] sm:$0xff]
        %v3984 = vld [vmem:[%s287 + $0x18f] sm:$0xff]
        %v3985 = vld [vmem:[%s287 + $0x197] sm:$0xff]
        %v3986 = vld [vmem:[%s287 + $0x1bf] sm:$0xff]
        %v3987 = vld [vmem:[%s287 + $0x1c7] sm:$0xff]
        %v3988 = vld [vmem:[%s287 + $0x1ef] sm:$0xff]
        %v3989 = vld [vmem:[%s287 + $0x1f7] sm:$0xff]
        %v3990 = vld [vmem:[%s287 + $0x21f] sm:$0xff]
        %v3991 = vld [vmem:[%s287 + $0x227] sm:$0xff]
        %v3992 = vld [vmem:[%s287 + $0x24f] sm:$0xff]
        %v3993 = vld [vmem:[%s287 + $0x257] sm:$0xff]
        %v3994 = vld [vmem:[%s287 + $0x27f] sm:$0xff]
        %v3995 = vld [vmem:[%s287 + $0x287] sm:$0xff]
        %v3996 = vld [vmem:[%s287 + $0x2af] sm:$0xff]
        %v3997 = vld [vmem:[%s287 + $0x2b7] sm:$0xff]
        %v3998 = vld [vmem:[%s287 + $0x2df] sm:$0xff]
        %v3999 = vld [vmem:[%s287 + $0x2e7] sm:$0xff]
        %s4000 = scalar_lea.vmem [#allocation3], 1536
        %v4001 = vld [vmem:[%s4000] sm:$0xff]
        %v4002 = vld [vmem:[%s4000 + $0x8] sm:$0xff]
        %v4003 = vld [vmem:[%s4000 + $0x10] sm:$0xff]
        %v4004 = vld [vmem:[%s4000 + $0x18] sm:$0xff]
        %v4005 = vld [vmem:[%s4000 + $0x20] sm:$0xff]
        %v4006 = vld [vmem:[%s4000 + $0x28] sm:$0xff]
        %v4007 = vld [vmem:[%s4000 + $0x30] sm:$0xff]
        %v4008 = vld [vmem:[%s4000 + $0x38] sm:$0xff]
        %v4009 = vld [vmem:[%s4000 + $0x40] sm:$0xff]
        %v4010 = vld [vmem:[%s4000 + $0x48] sm:$0xff]
        %v4011 = vld [vmem:[%s4000 + $0x50] sm:$0xff]
        %v4012 = vld [vmem:[%s4000 + $0x58] sm:$0xff]
        %v4013 = vld [vmem:[%s4000 + $0x60] sm:$0xff]
        %v4014 = vld [vmem:[%s4000 + $0x68] sm:$0xff]
        %v4015 = vld [vmem:[%s4000 + $0x70] sm:$0xff]
        %v4016 = vld [vmem:[%s4000 + $0x78] sm:$0xff]
        %4017 = vmatprep.subr.mxu0 0.0
        %4018 = vmatpush1.msra.mxu0 %v4001
        %4019 = vmatprep.subr.mxu0 0.0
        %4020 = vmatpush1.msra.mxu0 %v4002
        %4021 = vmatprep.subr.mxu0 0.0
        %4022 = vmatpush1.msra.mxu0 %v4003
        %4023 = vmatprep.subr.mxu0 0.0
        %4024 = vmatpush1.msra.mxu0 %v4004
        %4025 = vmatprep.subr.mxu0 0.0
        %4026 = vmatpush1.msra.mxu0 %v4005
        %4027 = vmatprep.subr.mxu0 0.0
        %4028 = vmatpush1.msra.mxu0 %v4006
        %4029 = vmatprep.subr.mxu0 0.0
        %4030 = vmatpush1.msra.mxu0 %v4007
        %4031 = vmatprep.subr.mxu0 0.0
        %4032 = vmatpush1.msra.mxu0 %v4008
        %4033 = vmatprep.subr.mxu0 0.0
        %4034 = vmatpush1.msra.mxu0 %v4009
        %4035 = vmatprep.subr.mxu0 0.0
        %4036 = vmatpush1.msra.mxu0 %v4010
        %4037 = vmatprep.subr.mxu0 0.0
        %4038 = vmatpush1.msra.mxu0 %v4011
        %4039 = vmatprep.subr.mxu0 0.0
        %4040 = vmatpush1.msra.mxu0 %v4012
        %4041 = vmatprep.subr.mxu0 0.0
        %4042 = vmatpush1.msra.mxu0 %v4013
        %4043 = vmatprep.subr.mxu0 0.0
        %4044 = vmatpush1.msra.mxu0 %v4014
        %4045 = vmatprep.subr.mxu0 0.0
        %4046 = vmatpush1.msra.mxu0 %v4015
        %4047 = vmatprep.subr.mxu0 0.0
        %4048 = vmatpush1.msra.mxu0 %v4016
        %4049 = vmatprep.subr.mxu0 0.0
        %4050 = vmatpush1.msra.mxu0 0.0
        %4051 = vmatprep.subr.mxu0 0.0
        %4052 = vmatpush1.msra.mxu0 0.0
        %4053 = vmatprep.subr.mxu0 0.0
        %4054 = vmatpush1.msra.mxu0 0.0
        %4055 = vmatprep.subr.mxu0 0.0
        %4056 = vmatpush1.msra.mxu0 0.0
        %4057 = vmatprep.subr.mxu0 0.0
        %4058 = vmatpush1.msra.mxu0 0.0
        %4059 = vmatprep.subr.mxu0 0.0
        %4060 = vmatpush1.msra.mxu0 0.0
        %4061 = vmatprep.subr.mxu0 0.0
        %4062 = vmatpush1.msra.mxu0 0.0
        %4063 = vmatprep.subr.mxu0 0.0
        %4064 = vmatpush1.msra.mxu0 0.0
        %4065 = vmatprep.subr.mxu0 0.0
        %4066 = vmatpush1.msra.mxu0 0.0
        %4067 = vmatprep.subr.mxu0 0.0
        %4068 = vmatpush1.msra.mxu0 0.0
        %4069 = vmatprep.subr.mxu0 0.0
        %4070 = vmatpush1.msra.mxu0 0.0
        %4071 = vmatprep.subr.mxu0 0.0
        %4072 = vmatpush1.msra.mxu0 0.0
        %4073 = vmatprep.subr.mxu0 0.0
        %4074 = vmatpush1.msra.mxu0 0.0
        %4075 = vmatprep.subr.mxu0 0.0
        %4076 = vmatpush1.msra.mxu0 0.0
        %4077 = vmatprep.subr.mxu0 0.0
        %4078 = vmatpush1.msra.mxu0 0.0
        %4079 = vmatprep.subr.mxu0 0.0
        %4080 = vmatpush1.msra.mxu0 0.0
        %4081 = vmatprep.mubr.f32.mxu0 0.0
        %4082 = vmatmul.mubr.f32.gmra.mrb[0].mxu0 %v3968
        %v4083 = vpop.f32.mrb[0].mxu0
        %v4084 = vadd.f32 0.0, %v4083
        %v4085 = vpop.f32.mrb[0].mxu0
        %4086 = vmatprep.mubr.f32.mxu0 0.0
        %4087 = vmatmul.mubr.f32.gmra.mrb[0].mxu0 %v3969
        %v4088 = vpop.f32.mrb[0].mxu0
        %v4089 = vadd.f32 0.0, %v4088
        %v4090 = vpop.f32.mrb[0].mxu0
        %4091 = vmatprep.mubr.f32.mxu0 0.0
        %4092 = vmatmul.mubr.f32.gmra.mrb[0].mxu0 %v3970
        %v4093 = vpop.f32.mrb[0].mxu0
        %v4094 = vadd.f32 0.0, %v4093
        %v4095 = vpop.f32.mrb[0].mxu0
        %4096 = vmatprep.mubr.f32.mxu0 0.0
        %4097 = vmatmul.mubr.f32.gmra.mrb[0].mxu0 %v3971
        %v4098 = vpop.f32.mrb[0].mxu0
        %v4099 = vadd.f32 0.0, %v4098
        %v4100 = vpop.f32.mrb[0].mxu0
        %4101 = vmatprep.mubr.f32.mxu0 0.0
        %4102 = vmatmul.mubr.f32.gmra.mrb[0].mxu0 %v3972
        %v4103 = vpop.f32.mrb[0].mxu0
        %v4104 = vadd.f32 0.0, %v4103
        %v4105 = vpop.f32.mrb[0].mxu0
        %4106 = vmatprep.mubr.f32.mxu0 0.0
        %4107 = vmatmul.mubr.f32.gmra.mrb[0].mxu0 %v3973
        %v4108 = vpop.f32.mrb[0].mxu0
        %v4109 = vadd.f32 0.0, %v4108
        %v4110 = vpop.f32.mrb[0].mxu0
        %4111 = vmatprep.mubr.f32.mxu0 0.0
        %4112 = vmatmul.mubr.f32.gmra.mrb[0].mxu0 %v3974
        %v4113 = vpop.f32.mrb[0].mxu0
        %v4114 = vadd.f32 0.0, %v4113
        %v4115 = vpop.f32.mrb[0].mxu0
        %4116 = vmatprep.mubr.f32.mxu0 0.0
        %4117 = vmatmul.mubr.f32.gmra.mrb[0].mxu0 %v3975
        %v4118 = vpop.f32.mrb[0].mxu0
        %v4119 = vadd.f32 0.0, %v4118
        %v4120 = vpop.f32.mrb[0].mxu0
        %4121 = vmatprep.mubr.f32.mxu0 0.0
        %4122 = vmatmul.mubr.f32.gmra.mrb[0].mxu0 %v3976
        %v4123 = vpop.f32.mrb[0].mxu0
        %v4124 = vadd.f32 0.0, %v4123
        %v4125 = vpop.f32.mrb[0].mxu0
        %4126 = vmatprep.mubr.f32.mxu0 0.0
        %4127 = vmatmul.mubr.f32.gmra.mrb[0].mxu0 %v3977
        %v4128 = vpop.f32.mrb[0].mxu0
        %v4129 = vadd.f32 0.0, %v4128
        %v4130 = vpop.f32.mrb[0].mxu0
        %4131 = vmatprep.mubr.f32.mxu0 0.0
        %4132 = vmatmul.mubr.f32.gmra.mrb[0].mxu0 %v3978
        %v4133 = vpop.f32.mrb[0].mxu0
        %v4134 = vadd.f32 0.0, %v4133
        %v4135 = vpop.f32.mrb[0].mxu0
        %4136 = vmatprep.mubr.f32.mxu0 0.0
        %4137 = vmatmul.mubr.f32.gmra.mrb[0].mxu0 %v3979
        %v4138 = vpop.f32.mrb[0].mxu0
        %v4139 = vadd.f32 0.0, %v4138
        %v4140 = vpop.f32.mrb[0].mxu0
        %4141 = vmatprep.mubr.f32.mxu0 0.0
        %4142 = vmatmul.mubr.f32.gmra.mrb[0].mxu0 %v3980
        %v4143 = vpop.f32.mrb[0].mxu0
        %v4144 = vadd.f32 0.0, %v4143
        %v4145 = vpop.f32.mrb[0].mxu0
        %4146 = vmatprep.mubr.f32.mxu0 0.0
        %4147 = vmatmul.mubr.f32.gmra.mrb[0].mxu0 %v3981
        %v4148 = vpop.f32.mrb[0].mxu0
        %v4149 = vadd.f32 0.0, %v4148
        %v4150 = vpop.f32.mrb[0].mxu0
        %4151 = vmatprep.mubr.f32.mxu0 0.0
        %4152 = vmatmul.mubr.f32.gmra.mrb[0].mxu0 %v3982
        %v4153 = vpop.f32.mrb[0].mxu0
        %v4154 = vadd.f32 0.0, %v4153
        %v4155 = vpop.f32.mrb[0].mxu0
        %4156 = vmatprep.mubr.f32.mxu0 0.0
        %4157 = vmatmul.mubr.f32.gmra.mrb[0].mxu0 %v3983
        %v4158 = vpop.f32.mrb[0].mxu0
        %v4159 = vadd.f32 0.0, %v4158
        %v4160 = vpop.f32.mrb[0].mxu0
        %4161 = vmatprep.mubr.f32.mxu0 0.0
        %4162 = vmatmul.mubr.f32.gmra.mrb[0].mxu0 %v3984
        %v4163 = vpop.f32.mrb[0].mxu0
        %v4164 = vadd.f32 0.0, %v4163
        %v4165 = vpop.f32.mrb[0].mxu0
        %4166 = vmatprep.mubr.f32.mxu0 0.0
        %4167 = vmatmul.mubr.f32.gmra.mrb[0].mxu0 %v3985
        %v4168 = vpop.f32.mrb[0].mxu0
        %v4169 = vadd.f32 0.0, %v4168
        %v4170 = vpop.f32.mrb[0].mxu0
        %4171 = vmatprep.mubr.f32.mxu0 0.0
        %4172 = vmatmul.mubr.f32.gmra.mrb[0].mxu0 %v3986
        %v4173 = vpop.f32.mrb[0].mxu0
        %v4174 = vadd.f32 0.0, %v4173
        %v4175 = vpop.f32.mrb[0].mxu0
        %4176 = vmatprep.mubr.f32.mxu0 0.0
        %4177 = vmatmul.mubr.f32.gmra.mrb[0].mxu0 %v3987
        %v4178 = vpop.f32.mrb[0].mxu0
        %v4179 = vadd.f32 0.0, %v4178
        %v4180 = vpop.f32.mrb[0].mxu0
        %4181 = vmatprep.mubr.f32.mxu0 0.0
        %4182 = vmatmul.mubr.f32.gmra.mrb[0].mxu0 %v3988
        %v4183 = vpop.f32.mrb[0].mxu0
        %v4184 = vadd.f32 0.0, %v4183
        %v4185 = vpop.f32.mrb[0].mxu0
        %4186 = vmatprep.mubr.f32.mxu0 0.0
        %4187 = vmatmul.mubr.f32.gmra.mrb[0].mxu0 %v3989
        %v4188 = vpop.f32.mrb[0].mxu0
        %v4189 = vadd.f32 0.0, %v4188
        %v4190 = vpop.f32.mrb[0].mxu0
        %4191 = vmatprep.mubr.f32.mxu0 0.0
        %4192 = vmatmul.mubr.f32.gmra.mrb[0].mxu0 %v3990
        %v4193 = vpop.f32.mrb[0].mxu0
        %v4194 = vadd.f32 0.0, %v4193
        %v4195 = vpop.f32.mrb[0].mxu0
        %4196 = vmatprep.mubr.f32.mxu0 0.0
        %4197 = vmatmul.mubr.f32.gmra.mrb[0].mxu0 %v3991
        %v4198 = vpop.f32.mrb[0].mxu0
        %v4199 = vadd.f32 0.0, %v4198
        %v4200 = vpop.f32.mrb[0].mxu0
        %4201 = vmatprep.mubr.f32.mxu0 0.0
        %4202 = vmatmul.mubr.f32.gmra.mrb[0].mxu0 %v3992
        %v4203 = vpop.f32.mrb[0].mxu0
        %v4204 = vadd.f32 0.0, %v4203
        %v4205 = vpop.f32.mrb[0].mxu0
        %4206 = vmatprep.mubr.f32.mxu0 0.0
        %4207 = vmatmul.mubr.f32.gmra.mrb[0].mxu0 %v3993
        %v4208 = vpop.f32.mrb[0].mxu0
        %v4209 = vadd.f32 0.0, %v4208
        %v4210 = vpop.f32.mrb[0].mxu0
        %4211 = vmatprep.mubr.f32.mxu0 0.0
        %4212 = vmatmul.mubr.f32.gmra.mrb[0].mxu0 %v3994
        %v4213 = vpop.f32.mrb[0].mxu0
        %v4214 = vadd.f32 0.0, %v4213
        %v4215 = vpop.f32.mrb[0].mxu0
        %4216 = vmatprep.mubr.f32.mxu0 0.0
        %4217 = vmatmul.mubr.f32.gmra.mrb[0].mxu0 %v3995
        %v4218 = vpop.f32.mrb[0].mxu0
        %v4219 = vadd.f32 0.0, %v4218
        %v4220 = vpop.f32.mrb[0].mxu0
        %4221 = vmatprep.mubr.f32.mxu0 0.0
        %4222 = vmatmul.mubr.f32.gmra.mrb[0].mxu0 %v3996
        %v4223 = vpop.f32.mrb[0].mxu0
        %v4224 = vadd.f32 0.0, %v4223
        %v4225 = vpop.f32.mrb[0].mxu0
        %4226 = vmatprep.mubr.f32.mxu0 0.0
        %4227 = vmatmul.mubr.f32.gmra.mrb[0].mxu0 %v3997
        %v4228 = vpop.f32.mrb[0].mxu0
        %v4229 = vadd.f32 0.0, %v4228
        %v4230 = vpop.f32.mrb[0].mxu0
        %4231 = vmatprep.mubr.f32.mxu0 0.0
        %4232 = vmatmul.mubr.f32.gmra.mrb[0].mxu0 %v3998
        %v4233 = vpop.f32.mrb[0].mxu0
        %v4234 = vadd.f32 0.0, %v4233
        %v4235 = vpop.f32.mrb[0].mxu0
        %4236 = vmatprep.mubr.f32.mxu0 0.0
        %4237 = vmatmul.mubr.f32.gmra.mrb[0].mxu0 %v3999
        %v4238 = vpop.f32.mrb[0].mxu0
        %v4239 = vadd.f32 0.0, %v4238
        %v4240 = vpop.f32.mrb[0].mxu0
        %4241 = vdwg.mxu0
        %v4242 = vadd.f32 %v3936, %v4084
        %v4243 = vadd.f32 %v3937, %v4089
        %v4244 = vadd.f32 %v3938, %v4094
        %v4245 = vadd.f32 %v3939, %v4099
        %v4246 = vadd.f32 %v3940, %v4104
        %v4247 = vadd.f32 %v3941, %v4109
        %v4248 = vadd.f32 %v3942, %v4114
        %v4249 = vadd.f32 %v3943, %v4119
        %v4250 = vadd.f32 %v3944, %v4124
        %v4251 = vadd.f32 %v3945, %v4129
        %v4252 = vadd.f32 %v3946, %v4134
        %v4253 = vadd.f32 %v3947, %v4139
        %v4254 = vadd.f32 %v3948, %v4144
        %v4255 = vadd.f32 %v3949, %v4149
        %v4256 = vadd.f32 %v3950, %v4154
        %v4257 = vadd.f32 %v3951, %v4159
        %v4258 = vadd.f32 %v3952, %v4164
        %v4259 = vadd.f32 %v3953, %v4169
        %v4260 = vadd.f32 %v3954, %v4174
        %v4261 = vadd.f32 %v3955, %v4179
        %v4262 = vadd.f32 %v3956, %v4184
        %v4263 = vadd.f32 %v3957, %v4189
        %v4264 = vadd.f32 %v3958, %v4194
        %v4265 = vadd.f32 %v3959, %v4199
        %v4266 = vadd.f32 %v3960, %v4204
        %v4267 = vadd.f32 %v3961, %v4209
        %v4268 = vadd.f32 %v3962, %v4214
        %v4269 = vadd.f32 %v3963, %v4219
        %v4270 = vadd.f32 %v3964, %v4224
        %v4271 = vadd.f32 %v3965, %v4229
        %v4272 = vadd.f32 %v3966, %v4234
        %v4273 = vadd.f32 %v3967, %v4239
        %v4274 = vld [vmem:[%s287 + $0x10] sm:$0xff]
        %v4275 = vld [vmem:[%s287 + $0x18] sm:$0xff]
        %v4276 = vld [vmem:[%s287 + $0x40] sm:$0xff]
        %v4277 = vld [vmem:[%s287 + $0x48] sm:$0xff]
        %v4278 = vld [vmem:[%s287 + $0x70] sm:$0xff]
        %v4279 = vld [vmem:[%s287 + $0x78] sm:$0xff]
        %v4280 = vld [vmem:[%s287 + $0xa0] sm:$0xff]
        %v4281 = vld [vmem:[%s287 + $0xa8] sm:$0xff]
        %v4282 = vld [vmem:[%s287 + $0xd0] sm:$0xff]
        %v4283 = vld [vmem:[%s287 + $0xd8] sm:$0xff]
        %v4284 = vld [vmem:[%s287 + $0x100] sm:$0xff]
        %v4285 = vld [vmem:[%s287 + $0x108] sm:$0xff]
        %v4286 = vld [vmem:[%s287 + $0x130] sm:$0xff]
        %v4287 = vld [vmem:[%s287 + $0x138] sm:$0xff]
        %v4288 = vld [vmem:[%s287 + $0x160] sm:$0xff]
        %v4289 = vld [vmem:[%s287 + $0x168] sm:$0xff]
        %v4290 = vld [vmem:[%s287 + $0x190] sm:$0xff]
        %v4291 = vld [vmem:[%s287 + $0x198] sm:$0xff]
        %v4292 = vld [vmem:[%s287 + $0x1c0] sm:$0xff]
        %v4293 = vld [vmem:[%s287 + $0x1c8] sm:$0xff]
        %v4294 = vld [vmem:[%s287 + $0x1f0] sm:$0xff]
        %v4295 = vld [vmem:[%s287 + $0x1f8] sm:$0xff]
        %v4296 = vld [vmem:[%s287 + $0x220] sm:$0xff]
        %v4297 = vld [vmem:[%s287 + $0x228] sm:$0xff]
        %v4298 = vld [vmem:[%s287 + $0x250] sm:$0xff]
        %v4299 = vld [vmem:[%s287 + $0x258] sm:$0xff]
        %v4300 = vld [vmem:[%s287 + $0x280] sm:$0xff]
        %v4301 = vld [vmem:[%s287 + $0x288] sm:$0xff]
        %v4302 = vld [vmem:[%s287 + $0x2b0] sm:$0xff]
        %v4303 = vld [vmem:[%s287 + $0x2b8] sm:$0xff]
        %v4304 = vld [vmem:[%s287 + $0x2e0] sm:$0xff]
        %v4305 = vld [vmem:[%s287 + $0x2e8] sm:$0xff]
        %s4306 = scalar_lea.vmem [#allocation3], 1664
        %v4307 = vld [vmem:[%s4306] sm:$0xff]
        %v4308 = vld [vmem:[%s4306 + $0x8] sm:$0xff]
        %v4309 = vld [vmem:[%s4306 + $0x10] sm:$0xff]
        %v4310 = vld [vmem:[%s4306 + $0x18] sm:$0xff]
        %v4311 = vld [vmem:[%s4306 + $0x20] sm:$0xff]
        %v4312 = vld [vmem:[%s4306 + $0x28] sm:$0xff]
        %v4313 = vld [vmem:[%s4306 + $0x30] sm:$0xff]
        %v4314 = vld [vmem:[%s4306 + $0x38] sm:$0xff]
        %v4315 = vld [vmem:[%s4306 + $0x40] sm:$0xff]
        %v4316 = vld [vmem:[%s4306 + $0x48] sm:$0xff]
        %v4317 = vld [vmem:[%s4306 + $0x50] sm:$0xff]
        %v4318 = vld [vmem:[%s4306 + $0x58] sm:$0xff]
        %v4319 = vld [vmem:[%s4306 + $0x60] sm:$0xff]
        %v4320 = vld [vmem:[%s4306 + $0x68] sm:$0xff]
        %v4321 = vld [vmem:[%s4306 + $0x70] sm:$0xff]
        %v4322 = vld [vmem:[%s4306 + $0x78] sm:$0xff]
        %4323 = vmatprep.subr.mxu0 0.0
        %4324 = vmatpush1.msra.mxu0 %v4307
        %4325 = vmatprep.subr.mxu0 0.0
        %4326 = vmatpush1.msra.mxu0 %v4308
        %4327 = vmatprep.subr.mxu0 0.0
        %4328 = vmatpush1.msra.mxu0 %v4309
        %4329 = vmatprep.subr.mxu0 0.0
        %4330 = vmatpush1.msra.mxu0 %v4310
        %4331 = vmatprep.subr.mxu0 0.0
        %4332 = vmatpush1.msra.mxu0 %v4311
        %4333 = vmatprep.subr.mxu0 0.0
        %4334 = vmatpush1.msra.mxu0 %v4312
        %4335 = vmatprep.subr.mxu0 0.0
        %4336 = vmatpush1.msra.mxu0 %v4313
        %4337 = vmatprep.subr.mxu0 0.0
        %4338 = vmatpush1.msra.mxu0 %v4314
        %4339 = vmatprep.subr.mxu0 0.0
        %4340 = vmatpush1.msra.mxu0 %v4315
        %4341 = vmatprep.subr.mxu0 0.0
        %4342 = vmatpush1.msra.mxu0 %v4316
        %4343 = vmatprep.subr.mxu0 0.0
        %4344 = vmatpush1.msra.mxu0 %v4317
        %4345 = vmatprep.subr.mxu0 0.0
        %4346 = vmatpush1.msra.mxu0 %v4318
        %4347 = vmatprep.subr.mxu0 0.0
        %4348 = vmatpush1.msra.mxu0 %v4319
        %4349 = vmatprep.subr.mxu0 0.0
        %4350 = vmatpush1.msra.mxu0 %v4320
        %4351 = vmatprep.subr.mxu0 0.0
        %4352 = vmatpush1.msra.mxu0 %v4321
        %4353 = vmatprep.subr.mxu0 0.0
        %4354 = vmatpush1.msra.mxu0 %v4322
        %4355 = vmatprep.subr.mxu0 0.0
        %4356 = vmatpush1.msra.mxu0 0.0
        %4357 = vmatprep.subr.mxu0 0.0
        %4358 = vmatpush1.msra.mxu0 0.0
        %4359 = vmatprep.subr.mxu0 0.0
        %4360 = vmatpush1.msra.mxu0 0.0
        %4361 = vmatprep.subr.mxu0 0.0
        %4362 = vmatpush1.msra.mxu0 0.0
        %4363 = vmatprep.subr.mxu0 0.0
        %4364 = vmatpush1.msra.mxu0 0.0
        %4365 = vmatprep.subr.mxu0 0.0
        %4366 = vmatpush1.msra.mxu0 0.0
        %4367 = vmatprep.subr.mxu0 0.0
        %4368 = vmatpush1.msra.mxu0 0.0
        %4369 = vmatprep.subr.mxu0 0.0
        %4370 = vmatpush1.msra.mxu0 0.0
        %4371 = vmatprep.subr.mxu0 0.0
        %4372 = vmatpush1.msra.mxu0 0.0
        %4373 = vmatprep.subr.mxu0 0.0
        %4374 = vmatpush1.msra.mxu0 0.0
        %4375 = vmatprep.subr.mxu0 0.0
        %4376 = vmatpush1.msra.mxu0 0.0
        %4377 = vmatprep.subr.mxu0 0.0
        %4378 = vmatpush1.msra.mxu0 0.0
        %4379 = vmatprep.subr.mxu0 0.0
        %4380 = vmatpush1.msra.mxu0 0.0
        %4381 = vmatprep.subr.mxu0 0.0
        %4382 = vmatpush1.msra.mxu0 0.0
        %4383 = vmatprep.subr.mxu0 0.0
        %4384 = vmatpush1.msra.mxu0 0.0
        %4385 = vmatprep.subr.mxu0 0.0
        %4386 = vmatpush1.msra.mxu0 0.0
        %4387 = vmatprep.mubr.f32.mxu0 0.0
        %4388 = vmatmul.mubr.f32.gmra.mrb[0].mxu0 %v4274
        %v4389 = vpop.f32.mrb[0].mxu0
        %v4390 = vadd.f32 0.0, %v4389
        %v4391 = vpop.f32.mrb[0].mxu0
        %4392 = vmatprep.mubr.f32.mxu0 0.0
        %4393 = vmatmul.mubr.f32.gmra.mrb[0].mxu0 %v4275
        %v4394 = vpop.f32.mrb[0].mxu0
        %v4395 = vadd.f32 0.0, %v4394
        %v4396 = vpop.f32.mrb[0].mxu0
        %4397 = vmatprep.mubr.f32.mxu0 0.0
        %4398 = vmatmul.mubr.f32.gmra.mrb[0].mxu0 %v4276
        %v4399 = vpop.f32.mrb[0].mxu0
        %v4400 = vadd.f32 0.0, %v4399
        %v4401 = vpop.f32.mrb[0].mxu0
        %4402 = vmatprep.mubr.f32.mxu0 0.0
        %4403 = vmatmul.mubr.f32.gmra.mrb[0].mxu0 %v4277
        %v4404 = vpop.f32.mrb[0].mxu0
        %v4405 = vadd.f32 0.0, %v4404
        %v4406 = vpop.f32.mrb[0].mxu0
        %4407 = vmatprep.mubr.f32.mxu0 0.0
        %4408 = vmatmul.mubr.f32.gmra.mrb[0].mxu0 %v4278
        %v4409 = vpop.f32.mrb[0].mxu0
        %v4410 = vadd.f32 0.0, %v4409
        %v4411 = vpop.f32.mrb[0].mxu0
        %4412 = vmatprep.mubr.f32.mxu0 0.0
        %4413 = vmatmul.mubr.f32.gmra.mrb[0].mxu0 %v4279
        %v4414 = vpop.f32.mrb[0].mxu0
        %v4415 = vadd.f32 0.0, %v4414
        %v4416 = vpop.f32.mrb[0].mxu0
        %4417 = vmatprep.mubr.f32.mxu0 0.0
        %4418 = vmatmul.mubr.f32.gmra.mrb[0].mxu0 %v4280
        %v4419 = vpop.f32.mrb[0].mxu0
        %v4420 = vadd.f32 0.0, %v4419
        %v4421 = vpop.f32.mrb[0].mxu0
        %4422 = vmatprep.mubr.f32.mxu0 0.0
        %4423 = vmatmul.mubr.f32.gmra.mrb[0].mxu0 %v4281
        %v4424 = vpop.f32.mrb[0].mxu0
        %v4425 = vadd.f32 0.0, %v4424
        %v4426 = vpop.f32.mrb[0].mxu0
        %4427 = vmatprep.mubr.f32.mxu0 0.0
        %4428 = vmatmul.mubr.f32.gmra.mrb[0].mxu0 %v4282
        %v4429 = vpop.f32.mrb[0].mxu0
        %v4430 = vadd.f32 0.0, %v4429
        %v4431 = vpop.f32.mrb[0].mxu0
        %4432 = vmatprep.mubr.f32.mxu0 0.0
        %4433 = vmatmul.mubr.f32.gmra.mrb[0].mxu0 %v4283
        %v4434 = vpop.f32.mrb[0].mxu0
        %v4435 = vadd.f32 0.0, %v4434
        %v4436 = vpop.f32.mrb[0].mxu0
        %4437 = vmatprep.mubr.f32.mxu0 0.0
        %4438 = vmatmul.mubr.f32.gmra.mrb[0].mxu0 %v4284
        %v4439 = vpop.f32.mrb[0].mxu0
        %v4440 = vadd.f32 0.0, %v4439
        %v4441 = vpop.f32.mrb[0].mxu0
        %4442 = vmatprep.mubr.f32.mxu0 0.0
        %4443 = vmatmul.mubr.f32.gmra.mrb[0].mxu0 %v4285
        %v4444 = vpop.f32.mrb[0].mxu0
        %v4445 = vadd.f32 0.0, %v4444
        %v4446 = vpop.f32.mrb[0].mxu0
        %4447 = vmatprep.mubr.f32.mxu0 0.0
        %4448 = vmatmul.mubr.f32.gmra.mrb[0].mxu0 %v4286
        %v4449 = vpop.f32.mrb[0].mxu0
        %v4450 = vadd.f32 0.0, %v4449
        %v4451 = vpop.f32.mrb[0].mxu0
        %4452 = vmatprep.mubr.f32.mxu0 0.0
        %4453 = vmatmul.mubr.f32.gmra.mrb[0].mxu0 %v4287
        %v4454 = vpop.f32.mrb[0].mxu0
        %v4455 = vadd.f32 0.0, %v4454
        %v4456 = vpop.f32.mrb[0].mxu0
        %4457 = vmatprep.mubr.f32.mxu0 0.0
        %4458 = vmatmul.mubr.f32.gmra.mrb[0].mxu0 %v4288
        %v4459 = vpop.f32.mrb[0].mxu0
        %v4460 = vadd.f32 0.0, %v4459
        %v4461 = vpop.f32.mrb[0].mxu0
        %4462 = vmatprep.mubr.f32.mxu0 0.0
        %4463 = vmatmul.mubr.f32.gmra.mrb[0].mxu0 %v4289
        %v4464 = vpop.f32.mrb[0].mxu0
        %v4465 = vadd.f32 0.0, %v4464
        %v4466 = vpop.f32.mrb[0].mxu0
        %4467 = vmatprep.mubr.f32.mxu0 0.0
        %4468 = vmatmul.mubr.f32.gmra.mrb[0].mxu0 %v4290
        %v4469 = vpop.f32.mrb[0].mxu0
        %v4470 = vadd.f32 0.0, %v4469
        %v4471 = vpop.f32.mrb[0].mxu0
        %4472 = vmatprep.mubr.f32.mxu0 0.0
        %4473 = vmatmul.mubr.f32.gmra.mrb[0].mxu0 %v4291
        %v4474 = vpop.f32.mrb[0].mxu0
        %v4475 = vadd.f32 0.0, %v4474
        %v4476 = vpop.f32.mrb[0].mxu0
        %4477 = vmatprep.mubr.f32.mxu0 0.0
        %4478 = vmatmul.mubr.f32.gmra.mrb[0].mxu0 %v4292
        %v4479 = vpop.f32.mrb[0].mxu0
        %v4480 = vadd.f32 0.0, %v4479
        %v4481 = vpop.f32.mrb[0].mxu0
        %4482 = vmatprep.mubr.f32.mxu0 0.0
        %4483 = vmatmul.mubr.f32.gmra.mrb[0].mxu0 %v4293
        %v4484 = vpop.f32.mrb[0].mxu0
        %v4485 = vadd.f32 0.0, %v4484
        %v4486 = vpop.f32.mrb[0].mxu0
        %4487 = vmatprep.mubr.f32.mxu0 0.0
        %4488 = vmatmul.mubr.f32.gmra.mrb[0].mxu0 %v4294
        %v4489 = vpop.f32.mrb[0].mxu0
        %v4490 = vadd.f32 0.0, %v4489
        %v4491 = vpop.f32.mrb[0].mxu0
        %4492 = vmatprep.mubr.f32.mxu0 0.0
        %4493 = vmatmul.mubr.f32.gmra.mrb[0].mxu0 %v4295
        %v4494 = vpop.f32.mrb[0].mxu0
        %v4495 = vadd.f32 0.0, %v4494
        %v4496 = vpop.f32.mrb[0].mxu0
        %4497 = vmatprep.mubr.f32.mxu0 0.0
        %4498 = vmatmul.mubr.f32.gmra.mrb[0].mxu0 %v4296
        %v4499 = vpop.f32.mrb[0].mxu0
        %v4500 = vadd.f32 0.0, %v4499
        %v4501 = vpop.f32.mrb[0].mxu0
        %4502 = vmatprep.mubr.f32.mxu0 0.0
        %4503 = vmatmul.mubr.f32.gmra.mrb[0].mxu0 %v4297
        %v4504 = vpop.f32.mrb[0].mxu0
        %v4505 = vadd.f32 0.0, %v4504
        %v4506 = vpop.f32.mrb[0].mxu0
        %4507 = vmatprep.mubr.f32.mxu0 0.0
        %4508 = vmatmul.mubr.f32.gmra.mrb[0].mxu0 %v4298
        %v4509 = vpop.f32.mrb[0].mxu0
        %v4510 = vadd.f32 0.0, %v4509
        %v4511 = vpop.f32.mrb[0].mxu0
        %4512 = vmatprep.mubr.f32.mxu0 0.0
        %4513 = vmatmul.mubr.f32.gmra.mrb[0].mxu0 %v4299
        %v4514 = vpop.f32.mrb[0].mxu0
        %v4515 = vadd.f32 0.0, %v4514
        %v4516 = vpop.f32.mrb[0].mxu0
        %4517 = vmatprep.mubr.f32.mxu0 0.0
        %4518 = vmatmul.mubr.f32.gmra.mrb[0].mxu0 %v4300
        %v4519 = vpop.f32.mrb[0].mxu0
        %v4520 = vadd.f32 0.0, %v4519
        %v4521 = vpop.f32.mrb[0].mxu0
        %4522 = vmatprep.mubr.f32.mxu0 0.0
        %4523 = vmatmul.mubr.f32.gmra.mrb[0].mxu0 %v4301
        %v4524 = vpop.f32.mrb[0].mxu0
        %v4525 = vadd.f32 0.0, %v4524
        %v4526 = vpop.f32.mrb[0].mxu0
        %4527 = vmatprep.mubr.f32.mxu0 0.0
        %4528 = vmatmul.mubr.f32.gmra.mrb[0].mxu0 %v4302
        %v4529 = vpop.f32.mrb[0].mxu0
        %v4530 = vadd.f32 0.0, %v4529
        %v4531 = vpop.f32.mrb[0].mxu0
        %4532 = vmatprep.mubr.f32.mxu0 0.0
        %4533 = vmatmul.mubr.f32.gmra.mrb[0].mxu0 %v4303
        %v4534 = vpop.f32.mrb[0].mxu0
        %v4535 = vadd.f32 0.0, %v4534
        %v4536 = vpop.f32.mrb[0].mxu0
        %4537 = vmatprep.mubr.f32.mxu0 0.0
        %4538 = vmatmul.mubr.f32.gmra.mrb[0].mxu0 %v4304
        %v4539 = vpop.f32.mrb[0].mxu0
        %v4540 = vadd.f32 0.0, %v4539
        %v4541 = vpop.f32.mrb[0].mxu0
        %4542 = vmatprep.mubr.f32.mxu0 0.0
        %4543 = vmatmul.mubr.f32.gmra.mrb[0].mxu0 %v4305
        %v4544 = vpop.f32.mrb[0].mxu0
        %v4545 = vadd.f32 0.0, %v4544
        %v4546 = vpop.f32.mrb[0].mxu0
        %4547 = vdwg.mxu0
        %v4548 = vadd.f32 %v4242, %v4390
        %v4549 = vadd.f32 %v4243, %v4395
        %v4550 = vadd.f32 %v4244, %v4400
        %v4551 = vadd.f32 %v4245, %v4405
        %v4552 = vadd.f32 %v4246, %v4410
        %v4553 = vadd.f32 %v4247, %v4415
        %v4554 = vadd.f32 %v4248, %v4420
        %v4555 = vadd.f32 %v4249, %v4425
        %v4556 = vadd.f32 %v4250, %v4430
        %v4557 = vadd.f32 %v4251, %v4435
        %v4558 = vadd.f32 %v4252, %v4440
        %v4559 = vadd.f32 %v4253, %v4445
        %v4560 = vadd.f32 %v4254, %v4450
        %v4561 = vadd.f32 %v4255, %v4455
        %v4562 = vadd.f32 %v4256, %v4460
        %v4563 = vadd.f32 %v4257, %v4465
        %v4564 = vadd.f32 %v4258, %v4470
        %v4565 = vadd.f32 %v4259, %v4475
        %v4566 = vadd.f32 %v4260, %v4480
        %v4567 = vadd.f32 %v4261, %v4485
        %v4568 = vadd.f32 %v4262, %v4490
        %v4569 = vadd.f32 %v4263, %v4495
        %v4570 = vadd.f32 %v4264, %v4500
        %v4571 = vadd.f32 %v4265, %v4505
        %v4572 = vadd.f32 %v4266, %v4510
        %v4573 = vadd.f32 %v4267, %v4515
        %v4574 = vadd.f32 %v4268, %v4520
        %v4575 = vadd.f32 %v4269, %v4525
        %v4576 = vadd.f32 %v4270, %v4530
        %v4577 = vadd.f32 %v4271, %v4535
        %v4578 = vadd.f32 %v4272, %v4540
        %v4579 = vadd.f32 %v4273, %v4545
        %v4580 = vld [vmem:[%s287 + $0x11] sm:$0xff]
        %v4581 = vld [vmem:[%s287 + $0x19] sm:$0xff]
        %v4582 = vld [vmem:[%s287 + $0x41] sm:$0xff]
        %v4583 = vld [vmem:[%s287 + $0x49] sm:$0xff]
        %v4584 = vld [vmem:[%s287 + $0x71] sm:$0xff]
        %v4585 = vld [vmem:[%s287 + $0x79] sm:$0xff]
        %v4586 = vld [vmem:[%s287 + $0xa1] sm:$0xff]
        %v4587 = vld [vmem:[%s287 + $0xa9] sm:$0xff]
        %v4588 = vld [vmem:[%s287 + $0xd1] sm:$0xff]
        %v4589 = vld [vmem:[%s287 + $0xd9] sm:$0xff]
        %v4590 = vld [vmem:[%s287 + $0x101] sm:$0xff]
        %v4591 = vld [vmem:[%s287 + $0x109] sm:$0xff]
        %v4592 = vld [vmem:[%s287 + $0x131] sm:$0xff]
        %v4593 = vld [vmem:[%s287 + $0x139] sm:$0xff]
        %v4594 = vld [vmem:[%s287 + $0x161] sm:$0xff]
        %v4595 = vld [vmem:[%s287 + $0x169] sm:$0xff]
        %v4596 = vld [vmem:[%s287 + $0x191] sm:$0xff]
        %v4597 = vld [vmem:[%s287 + $0x199] sm:$0xff]
        %v4598 = vld [vmem:[%s287 + $0x1c1] sm:$0xff]
        %v4599 = vld [vmem:[%s287 + $0x1c9] sm:$0xff]
        %v4600 = vld [vmem:[%s287 + $0x1f1] sm:$0xff]
        %v4601 = vld [vmem:[%s287 + $0x1f9] sm:$0xff]
        %v4602 = vld [vmem:[%s287 + $0x221] sm:$0xff]
        %v4603 = vld [vmem:[%s287 + $0x229] sm:$0xff]
        %v4604 = vld [vmem:[%s287 + $0x251] sm:$0xff]
        %v4605 = vld [vmem:[%s287 + $0x259] sm:$0xff]
        %v4606 = vld [vmem:[%s287 + $0x281] sm:$0xff]
        %v4607 = vld [vmem:[%s287 + $0x289] sm:$0xff]
        %v4608 = vld [vmem:[%s287 + $0x2b1] sm:$0xff]
        %v4609 = vld [vmem:[%s287 + $0x2b9] sm:$0xff]
        %v4610 = vld [vmem:[%s287 + $0x2e1] sm:$0xff]
        %v4611 = vld [vmem:[%s287 + $0x2e9] sm:$0xff]
        %s4612 = scalar_lea.vmem [#allocation3], 1792
        %v4613 = vld [vmem:[%s4612] sm:$0xff]
        %v4614 = vld [vmem:[%s4612 + $0x8] sm:$0xff]
        %v4615 = vld [vmem:[%s4612 + $0x10] sm:$0xff]
        %v4616 = vld [vmem:[%s4612 + $0x18] sm:$0xff]
        %v4617 = vld [vmem:[%s4612 + $0x20] sm:$0xff]
        %v4618 = vld [vmem:[%s4612 + $0x28] sm:$0xff]
        %v4619 = vld [vmem:[%s4612 + $0x30] sm:$0xff]
        %v4620 = vld [vmem:[%s4612 + $0x38] sm:$0xff]
        %v4621 = vld [vmem:[%s4612 + $0x40] sm:$0xff]
        %v4622 = vld [vmem:[%s4612 + $0x48] sm:$0xff]
        %v4623 = vld [vmem:[%s4612 + $0x50] sm:$0xff]
        %v4624 = vld [vmem:[%s4612 + $0x58] sm:$0xff]
        %v4625 = vld [vmem:[%s4612 + $0x60] sm:$0xff]
        %v4626 = vld [vmem:[%s4612 + $0x68] sm:$0xff]
        %v4627 = vld [vmem:[%s4612 + $0x70] sm:$0xff]
        %v4628 = vld [vmem:[%s4612 + $0x78] sm:$0xff]
        %4629 = vmatprep.subr.mxu0 0.0
        %4630 = vmatpush1.msra.mxu0 %v4613
        %4631 = vmatprep.subr.mxu0 0.0
        %4632 = vmatpush1.msra.mxu0 %v4614
        %4633 = vmatprep.subr.mxu0 0.0
        %4634 = vmatpush1.msra.mxu0 %v4615
        %4635 = vmatprep.subr.mxu0 0.0
        %4636 = vmatpush1.msra.mxu0 %v4616
        %4637 = vmatprep.subr.mxu0 0.0
        %4638 = vmatpush1.msra.mxu0 %v4617
        %4639 = vmatprep.subr.mxu0 0.0
        %4640 = vmatpush1.msra.mxu0 %v4618
        %4641 = vmatprep.subr.mxu0 0.0
        %4642 = vmatpush1.msra.mxu0 %v4619
        %4643 = vmatprep.subr.mxu0 0.0
        %4644 = vmatpush1.msra.mxu0 %v4620
        %4645 = vmatprep.subr.mxu0 0.0
        %4646 = vmatpush1.msra.mxu0 %v4621
        %4647 = vmatprep.subr.mxu0 0.0
        %4648 = vmatpush1.msra.mxu0 %v4622
        %4649 = vmatprep.subr.mxu0 0.0
        %4650 = vmatpush1.msra.mxu0 %v4623
        %4651 = vmatprep.subr.mxu0 0.0
        %4652 = vmatpush1.msra.mxu0 %v4624
        %4653 = vmatprep.subr.mxu0 0.0
        %4654 = vmatpush1.msra.mxu0 %v4625
        %4655 = vmatprep.subr.mxu0 0.0
        %4656 = vmatpush1.msra.mxu0 %v4626
        %4657 = vmatprep.subr.mxu0 0.0
        %4658 = vmatpush1.msra.mxu0 %v4627
        %4659 = vmatprep.subr.mxu0 0.0
        %4660 = vmatpush1.msra.mxu0 %v4628
        %4661 = vmatprep.subr.mxu0 0.0
        %4662 = vmatpush1.msra.mxu0 0.0
        %4663 = vmatprep.subr.mxu0 0.0
        %4664 = vmatpush1.msra.mxu0 0.0
        %4665 = vmatprep.subr.mxu0 0.0
        %4666 = vmatpush1.msra.mxu0 0.0
        %4667 = vmatprep.subr.mxu0 0.0
        %4668 = vmatpush1.msra.mxu0 0.0
        %4669 = vmatprep.subr.mxu0 0.0
        %4670 = vmatpush1.msra.mxu0 0.0
        %4671 = vmatprep.subr.mxu0 0.0
        %4672 = vmatpush1.msra.mxu0 0.0
        %4673 = vmatprep.subr.mxu0 0.0
        %4674 = vmatpush1.msra.mxu0 0.0
        %4675 = vmatprep.subr.mxu0 0.0
        %4676 = vmatpush1.msra.mxu0 0.0
        %4677 = vmatprep.subr.mxu0 0.0
        %4678 = vmatpush1.msra.mxu0 0.0
        %4679 = vmatprep.subr.mxu0 0.0
        %4680 = vmatpush1.msra.mxu0 0.0
        %4681 = vmatprep.subr.mxu0 0.0
        %4682 = vmatpush1.msra.mxu0 0.0
        %4683 = vmatprep.subr.mxu0 0.0
        %4684 = vmatpush1.msra.mxu0 0.0
        %4685 = vmatprep.subr.mxu0 0.0
        %4686 = vmatpush1.msra.mxu0 0.0
        %4687 = vmatprep.subr.mxu0 0.0
        %4688 = vmatpush1.msra.mxu0 0.0
        %4689 = vmatprep.subr.mxu0 0.0
        %4690 = vmatpush1.msra.mxu0 0.0
        %4691 = vmatprep.subr.mxu0 0.0
        %4692 = vmatpush1.msra.mxu0 0.0
        %4693 = vmatprep.mubr.f32.mxu0 0.0
        %4694 = vmatmul.mubr.f32.gmra.mrb[0].mxu0 %v4580
        %v4695 = vpop.f32.mrb[0].mxu0
        %v4696 = vadd.f32 0.0, %v4695
        %v4697 = vpop.f32.mrb[0].mxu0
        %4698 = vmatprep.mubr.f32.mxu0 0.0
        %4699 = vmatmul.mubr.f32.gmra.mrb[0].mxu0 %v4581
        %v4700 = vpop.f32.mrb[0].mxu0
        %v4701 = vadd.f32 0.0, %v4700
        %v4702 = vpop.f32.mrb[0].mxu0
        %4703 = vmatprep.mubr.f32.mxu0 0.0
        %4704 = vmatmul.mubr.f32.gmra.mrb[0].mxu0 %v4582
        %v4705 = vpop.f32.mrb[0].mxu0
        %v4706 = vadd.f32 0.0, %v4705
        %v4707 = vpop.f32.mrb[0].mxu0
        %4708 = vmatprep.mubr.f32.mxu0 0.0
        %4709 = vmatmul.mubr.f32.gmra.mrb[0].mxu0 %v4583
        %v4710 = vpop.f32.mrb[0].mxu0
        %v4711 = vadd.f32 0.0, %v4710
        %v4712 = vpop.f32.mrb[0].mxu0
        %4713 = vmatprep.mubr.f32.mxu0 0.0
        %4714 = vmatmul.mubr.f32.gmra.mrb[0].mxu0 %v4584
        %v4715 = vpop.f32.mrb[0].mxu0
        %v4716 = vadd.f32 0.0, %v4715
        %v4717 = vpop.f32.mrb[0].mxu0
        %4718 = vmatprep.mubr.f32.mxu0 0.0
        %4719 = vmatmul.mubr.f32.gmra.mrb[0].mxu0 %v4585
        %v4720 = vpop.f32.mrb[0].mxu0
        %v4721 = vadd.f32 0.0, %v4720
        %v4722 = vpop.f32.mrb[0].mxu0
        %4723 = vmatprep.mubr.f32.mxu0 0.0
        %4724 = vmatmul.mubr.f32.gmra.mrb[0].mxu0 %v4586
        %v4725 = vpop.f32.mrb[0].mxu0
        %v4726 = vadd.f32 0.0, %v4725
        %v4727 = vpop.f32.mrb[0].mxu0
        %4728 = vmatprep.mubr.f32.mxu0 0.0
        %4729 = vmatmul.mubr.f32.gmra.mrb[0].mxu0 %v4587
        %v4730 = vpop.f32.mrb[0].mxu0
        %v4731 = vadd.f32 0.0, %v4730
        %v4732 = vpop.f32.mrb[0].mxu0
        %4733 = vmatprep.mubr.f32.mxu0 0.0
        %4734 = vmatmul.mubr.f32.gmra.mrb[0].mxu0 %v4588
        %v4735 = vpop.f32.mrb[0].mxu0
        %v4736 = vadd.f32 0.0, %v4735
        %v4737 = vpop.f32.mrb[0].mxu0
        %4738 = vmatprep.mubr.f32.mxu0 0.0
        %4739 = vmatmul.mubr.f32.gmra.mrb[0].mxu0 %v4589
        %v4740 = vpop.f32.mrb[0].mxu0
        %v4741 = vadd.f32 0.0, %v4740
        %v4742 = vpop.f32.mrb[0].mxu0
        %4743 = vmatprep.mubr.f32.mxu0 0.0
        %4744 = vmatmul.mubr.f32.gmra.mrb[0].mxu0 %v4590
        %v4745 = vpop.f32.mrb[0].mxu0
        %v4746 = vadd.f32 0.0, %v4745
        %v4747 = vpop.f32.mrb[0].mxu0
        %4748 = vmatprep.mubr.f32.mxu0 0.0
        %4749 = vmatmul.mubr.f32.gmra.mrb[0].mxu0 %v4591
        %v4750 = vpop.f32.mrb[0].mxu0
        %v4751 = vadd.f32 0.0, %v4750
        %v4752 = vpop.f32.mrb[0].mxu0
        %4753 = vmatprep.mubr.f32.mxu0 0.0
        %4754 = vmatmul.mubr.f32.gmra.mrb[0].mxu0 %v4592
        %v4755 = vpop.f32.mrb[0].mxu0
        %v4756 = vadd.f32 0.0, %v4755
        %v4757 = vpop.f32.mrb[0].mxu0
        %4758 = vmatprep.mubr.f32.mxu0 0.0
        %4759 = vmatmul.mubr.f32.gmra.mrb[0].mxu0 %v4593
        %v4760 = vpop.f32.mrb[0].mxu0
        %v4761 = vadd.f32 0.0, %v4760
        %v4762 = vpop.f32.mrb[0].mxu0
        %4763 = vmatprep.mubr.f32.mxu0 0.0
        %4764 = vmatmul.mubr.f32.gmra.mrb[0].mxu0 %v4594
        %v4765 = vpop.f32.mrb[0].mxu0
        %v4766 = vadd.f32 0.0, %v4765
        %v4767 = vpop.f32.mrb[0].mxu0
        %4768 = vmatprep.mubr.f32.mxu0 0.0
        %4769 = vmatmul.mubr.f32.gmra.mrb[0].mxu0 %v4595
        %v4770 = vpop.f32.mrb[0].mxu0
        %v4771 = vadd.f32 0.0, %v4770
        %v4772 = vpop.f32.mrb[0].mxu0
        %4773 = vmatprep.mubr.f32.mxu0 0.0
        %4774 = vmatmul.mubr.f32.gmra.mrb[0].mxu0 %v4596
        %v4775 = vpop.f32.mrb[0].mxu0
        %v4776 = vadd.f32 0.0, %v4775
        %v4777 = vpop.f32.mrb[0].mxu0
        %4778 = vmatprep.mubr.f32.mxu0 0.0
        %4779 = vmatmul.mubr.f32.gmra.mrb[0].mxu0 %v4597
        %v4780 = vpop.f32.mrb[0].mxu0
        %v4781 = vadd.f32 0.0, %v4780
        %v4782 = vpop.f32.mrb[0].mxu0
        %4783 = vmatprep.mubr.f32.mxu0 0.0
        %4784 = vmatmul.mubr.f32.gmra.mrb[0].mxu0 %v4598
        %v4785 = vpop.f32.mrb[0].mxu0
        %v4786 = vadd.f32 0.0, %v4785
        %v4787 = vpop.f32.mrb[0].mxu0
        %4788 = vmatprep.mubr.f32.mxu0 0.0
        %4789 = vmatmul.mubr.f32.gmra.mrb[0].mxu0 %v4599
        %v4790 = vpop.f32.mrb[0].mxu0
        %v4791 = vadd.f32 0.0, %v4790
        %v4792 = vpop.f32.mrb[0].mxu0
        %4793 = vmatprep.mubr.f32.mxu0 0.0
        %4794 = vmatmul.mubr.f32.gmra.mrb[0].mxu0 %v4600
        %v4795 = vpop.f32.mrb[0].mxu0
        %v4796 = vadd.f32 0.0, %v4795
        %v4797 = vpop.f32.mrb[0].mxu0
        %4798 = vmatprep.mubr.f32.mxu0 0.0
        %4799 = vmatmul.mubr.f32.gmra.mrb[0].mxu0 %v4601
        %v4800 = vpop.f32.mrb[0].mxu0
        %v4801 = vadd.f32 0.0, %v4800
        %v4802 = vpop.f32.mrb[0].mxu0
        %4803 = vmatprep.mubr.f32.mxu0 0.0
        %4804 = vmatmul.mubr.f32.gmra.mrb[0].mxu0 %v4602
        %v4805 = vpop.f32.mrb[0].mxu0
        %v4806 = vadd.f32 0.0, %v4805
        %v4807 = vpop.f32.mrb[0].mxu0
        %4808 = vmatprep.mubr.f32.mxu0 0.0
        %4809 = vmatmul.mubr.f32.gmra.mrb[0].mxu0 %v4603
        %v4810 = vpop.f32.mrb[0].mxu0
        %v4811 = vadd.f32 0.0, %v4810
        %v4812 = vpop.f32.mrb[0].mxu0
        %4813 = vmatprep.mubr.f32.mxu0 0.0
        %4814 = vmatmul.mubr.f32.gmra.mrb[0].mxu0 %v4604
        %v4815 = vpop.f32.mrb[0].mxu0
        %v4816 = vadd.f32 0.0, %v4815
        %v4817 = vpop.f32.mrb[0].mxu0
        %4818 = vmatprep.mubr.f32.mxu0 0.0
        %4819 = vmatmul.mubr.f32.gmra.mrb[0].mxu0 %v4605
        %v4820 = vpop.f32.mrb[0].mxu0
        %v4821 = vadd.f32 0.0, %v4820
        %v4822 = vpop.f32.mrb[0].mxu0
        %4823 = vmatprep.mubr.f32.mxu0 0.0
        %4824 = vmatmul.mubr.f32.gmra.mrb[0].mxu0 %v4606
        %v4825 = vpop.f32.mrb[0].mxu0
        %v4826 = vadd.f32 0.0, %v4825
        %v4827 = vpop.f32.mrb[0].mxu0
        %4828 = vmatprep.mubr.f32.mxu0 0.0
        %4829 = vmatmul.mubr.f32.gmra.mrb[0].mxu0 %v4607
        %v4830 = vpop.f32.mrb[0].mxu0
        %v4831 = vadd.f32 0.0, %v4830
        %v4832 = vpop.f32.mrb[0].mxu0
        %4833 = vmatprep.mubr.f32.mxu0 0.0
        %4834 = vmatmul.mubr.f32.gmra.mrb[0].mxu0 %v4608
        %v4835 = vpop.f32.mrb[0].mxu0
        %v4836 = vadd.f32 0.0, %v4835
        %v4837 = vpop.f32.mrb[0].mxu0
        %4838 = vmatprep.mubr.f32.mxu0 0.0
        %4839 = vmatmul.mubr.f32.gmra.mrb[0].mxu0 %v4609
        %v4840 = vpop.f32.mrb[0].mxu0
        %v4841 = vadd.f32 0.0, %v4840
        %v4842 = vpop.f32.mrb[0].mxu0
        %4843 = vmatprep.mubr.f32.mxu0 0.0
        %4844 = vmatmul.mubr.f32.gmra.mrb[0].mxu0 %v4610
        %v4845 = vpop.f32.mrb[0].mxu0
        %v4846 = vadd.f32 0.0, %v4845
        %v4847 = vpop.f32.mrb[0].mxu0
        %4848 = vmatprep.mubr.f32.mxu0 0.0
        %4849 = vmatmul.mubr.f32.gmra.mrb[0].mxu0 %v4611
        %v4850 = vpop.f32.mrb[0].mxu0
        %v4851 = vadd.f32 0.0, %v4850
        %v4852 = vpop.f32.mrb[0].mxu0
        %4853 = vdwg.mxu0
        %v4854 = vadd.f32 %v4548, %v4696
        %v4855 = vadd.f32 %v4549, %v4701
        %v4856 = vadd.f32 %v4550, %v4706
        %v4857 = vadd.f32 %v4551, %v4711
        %v4858 = vadd.f32 %v4552, %v4716
        %v4859 = vadd.f32 %v4553, %v4721
        %v4860 = vadd.f32 %v4554, %v4726
        %v4861 = vadd.f32 %v4555, %v4731
        %v4862 = vadd.f32 %v4556, %v4736
        %v4863 = vadd.f32 %v4557, %v4741
        %v4864 = vadd.f32 %v4558, %v4746
        %v4865 = vadd.f32 %v4559, %v4751
        %v4866 = vadd.f32 %v4560, %v4756
        %v4867 = vadd.f32 %v4561, %v4761
        %v4868 = vadd.f32 %v4562, %v4766
        %v4869 = vadd.f32 %v4563, %v4771
        %v4870 = vadd.f32 %v4564, %v4776
        %v4871 = vadd.f32 %v4565, %v4781
        %v4872 = vadd.f32 %v4566, %v4786
        %v4873 = vadd.f32 %v4567, %v4791
        %v4874 = vadd.f32 %v4568, %v4796
        %v4875 = vadd.f32 %v4569, %v4801
        %v4876 = vadd.f32 %v4570, %v4806
        %v4877 = vadd.f32 %v4571, %v4811
        %v4878 = vadd.f32 %v4572, %v4816
        %v4879 = vadd.f32 %v4573, %v4821
        %v4880 = vadd.f32 %v4574, %v4826
        %v4881 = vadd.f32 %v4575, %v4831
        %v4882 = vadd.f32 %v4576, %v4836
        %v4883 = vadd.f32 %v4577, %v4841
        %v4884 = vadd.f32 %v4578, %v4846
        %v4885 = vadd.f32 %v4579, %v4851
        %v4886 = vld [vmem:[%s2092 + $0xf] sm:$0xff]
        %v4887 = vld [vmem:[%s2092 + $0x17] sm:$0xff]
        %v4888 = vld [vmem:[%s2092 + $0x3f] sm:$0xff]
        %v4889 = vld [vmem:[%s2092 + $0x47] sm:$0xff]
        %v4890 = vld [vmem:[%s2092 + $0x6f] sm:$0xff]
        %v4891 = vld [vmem:[%s2092 + $0x77] sm:$0xff]
        %v4892 = vld [vmem:[%s2092 + $0x9f] sm:$0xff]
        %v4893 = vld [vmem:[%s2092 + $0xa7] sm:$0xff]
        %v4894 = vld [vmem:[%s2092 + $0xcf] sm:$0xff]
        %v4895 = vld [vmem:[%s2092 + $0xd7] sm:$0xff]
        %v4896 = vld [vmem:[%s2092 + $0xff] sm:$0xff]
        %v4897 = vld [vmem:[%s2092 + $0x107] sm:$0xff]
        %v4898 = vld [vmem:[%s2092 + $0x12f] sm:$0xff]
        %v4899 = vld [vmem:[%s2092 + $0x137] sm:$0xff]
        %v4900 = vld [vmem:[%s2092 + $0x15f] sm:$0xff]
        %v4901 = vld [vmem:[%s2092 + $0x167] sm:$0xff]
        %v4902 = vld [vmem:[%s2092 + $0x18f] sm:$0xff]
        %v4903 = vld [vmem:[%s2092 + $0x197] sm:$0xff]
        %v4904 = vld [vmem:[%s2092 + $0x1bf] sm:$0xff]
        %v4905 = vld [vmem:[%s2092 + $0x1c7] sm:$0xff]
        %v4906 = vld [vmem:[%s2092 + $0x1ef] sm:$0xff]
        %v4907 = vld [vmem:[%s2092 + $0x1f7] sm:$0xff]
        %v4908 = vld [vmem:[%s2092 + $0x21f] sm:$0xff]
        %v4909 = vld [vmem:[%s2092 + $0x227] sm:$0xff]
        %v4910 = vld [vmem:[%s2092 + $0x24f] sm:$0xff]
        %v4911 = vld [vmem:[%s2092 + $0x257] sm:$0xff]
        %v4912 = vld [vmem:[%s2092 + $0x27f] sm:$0xff]
        %v4913 = vld [vmem:[%s2092 + $0x287] sm:$0xff]
        %v4914 = vld [vmem:[%s2092 + $0x2af] sm:$0xff]
        %v4915 = vld [vmem:[%s2092 + $0x2b7] sm:$0xff]
        %v4916 = vld [vmem:[%s2092 + $0x2df] sm:$0xff]
        %v4917 = vld [vmem:[%s2092 + $0x2e7] sm:$0xff]
        %s4918 = scalar_lea.vmem [#allocation3], 1920
        %v4919 = vld [vmem:[%s4918] sm:$0xff]
        %v4920 = vld [vmem:[%s4918 + $0x8] sm:$0xff]
        %v4921 = vld [vmem:[%s4918 + $0x10] sm:$0xff]
        %v4922 = vld [vmem:[%s4918 + $0x18] sm:$0xff]
        %v4923 = vld [vmem:[%s4918 + $0x20] sm:$0xff]
        %v4924 = vld [vmem:[%s4918 + $0x28] sm:$0xff]
        %v4925 = vld [vmem:[%s4918 + $0x30] sm:$0xff]
        %v4926 = vld [vmem:[%s4918 + $0x38] sm:$0xff]
        %v4927 = vld [vmem:[%s4918 + $0x40] sm:$0xff]
        %v4928 = vld [vmem:[%s4918 + $0x48] sm:$0xff]
        %v4929 = vld [vmem:[%s4918 + $0x50] sm:$0xff]
        %v4930 = vld [vmem:[%s4918 + $0x58] sm:$0xff]
        %v4931 = vld [vmem:[%s4918 + $0x60] sm:$0xff]
        %v4932 = vld [vmem:[%s4918 + $0x68] sm:$0xff]
        %v4933 = vld [vmem:[%s4918 + $0x70] sm:$0xff]
        %v4934 = vld [vmem:[%s4918 + $0x78] sm:$0xff]
        %4935 = vmatprep.subr.mxu0 0.0
        %4936 = vmatpush1.msra.mxu0 %v4919
        %4937 = vmatprep.subr.mxu0 0.0
        %4938 = vmatpush1.msra.mxu0 %v4920
        %4939 = vmatprep.subr.mxu0 0.0
        %4940 = vmatpush1.msra.mxu0 %v4921
        %4941 = vmatprep.subr.mxu0 0.0
        %4942 = vmatpush1.msra.mxu0 %v4922
        %4943 = vmatprep.subr.mxu0 0.0
        %4944 = vmatpush1.msra.mxu0 %v4923
        %4945 = vmatprep.subr.mxu0 0.0
        %4946 = vmatpush1.msra.mxu0 %v4924
        %4947 = vmatprep.subr.mxu0 0.0
        %4948 = vmatpush1.msra.mxu0 %v4925
        %4949 = vmatprep.subr.mxu0 0.0
        %4950 = vmatpush1.msra.mxu0 %v4926
        %4951 = vmatprep.subr.mxu0 0.0
        %4952 = vmatpush1.msra.mxu0 %v4927
        %4953 = vmatprep.subr.mxu0 0.0
        %4954 = vmatpush1.msra.mxu0 %v4928
        %4955 = vmatprep.subr.mxu0 0.0
        %4956 = vmatpush1.msra.mxu0 %v4929
        %4957 = vmatprep.subr.mxu0 0.0
        %4958 = vmatpush1.msra.mxu0 %v4930
        %4959 = vmatprep.subr.mxu0 0.0
        %4960 = vmatpush1.msra.mxu0 %v4931
        %4961 = vmatprep.subr.mxu0 0.0
        %4962 = vmatpush1.msra.mxu0 %v4932
        %4963 = vmatprep.subr.mxu0 0.0
        %4964 = vmatpush1.msra.mxu0 %v4933
        %4965 = vmatprep.subr.mxu0 0.0
        %4966 = vmatpush1.msra.mxu0 %v4934
        %4967 = vmatprep.subr.mxu0 0.0
        %4968 = vmatpush1.msra.mxu0 0.0
        %4969 = vmatprep.subr.mxu0 0.0
        %4970 = vmatpush1.msra.mxu0 0.0
        %4971 = vmatprep.subr.mxu0 0.0
        %4972 = vmatpush1.msra.mxu0 0.0
        %4973 = vmatprep.subr.mxu0 0.0
        %4974 = vmatpush1.msra.mxu0 0.0
        %4975 = vmatprep.subr.mxu0 0.0
        %4976 = vmatpush1.msra.mxu0 0.0
        %4977 = vmatprep.subr.mxu0 0.0
        %4978 = vmatpush1.msra.mxu0 0.0
        %4979 = vmatprep.subr.mxu0 0.0
        %4980 = vmatpush1.msra.mxu0 0.0
        %4981 = vmatprep.subr.mxu0 0.0
        %4982 = vmatpush1.msra.mxu0 0.0
        %4983 = vmatprep.subr.mxu0 0.0
        %4984 = vmatpush1.msra.mxu0 0.0
        %4985 = vmatprep.subr.mxu0 0.0
        %4986 = vmatpush1.msra.mxu0 0.0
        %4987 = vmatprep.subr.mxu0 0.0
        %4988 = vmatpush1.msra.mxu0 0.0
        %4989 = vmatprep.subr.mxu0 0.0
        %4990 = vmatpush1.msra.mxu0 0.0
        %4991 = vmatprep.subr.mxu0 0.0
        %4992 = vmatpush1.msra.mxu0 0.0
        %4993 = vmatprep.subr.mxu0 0.0
        %4994 = vmatpush1.msra.mxu0 0.0
        %4995 = vmatprep.subr.mxu0 0.0
        %4996 = vmatpush1.msra.mxu0 0.0
        %4997 = vmatprep.subr.mxu0 0.0
        %4998 = vmatpush1.msra.mxu0 0.0
        %4999 = vmatprep.mubr.f32.mxu0 0.0
        %5000 = vmatmul.mubr.f32.gmra.mrb[0].mxu0 %v4886
        %v5001 = vpop.f32.mrb[0].mxu0
        %v5002 = vadd.f32 0.0, %v5001
        %v5003 = vpop.f32.mrb[0].mxu0
        %5004 = vmatprep.mubr.f32.mxu0 0.0
        %5005 = vmatmul.mubr.f32.gmra.mrb[0].mxu0 %v4887
        %v5006 = vpop.f32.mrb[0].mxu0
        %v5007 = vadd.f32 0.0, %v5006
        %v5008 = vpop.f32.mrb[0].mxu0
        %5009 = vmatprep.mubr.f32.mxu0 0.0
        %5010 = vmatmul.mubr.f32.gmra.mrb[0].mxu0 %v4888
        %v5011 = vpop.f32.mrb[0].mxu0
        %v5012 = vadd.f32 0.0, %v5011
        %v5013 = vpop.f32.mrb[0].mxu0
        %5014 = vmatprep.mubr.f32.mxu0 0.0
        %5015 = vmatmul.mubr.f32.gmra.mrb[0].mxu0 %v4889
        %v5016 = vpop.f32.mrb[0].mxu0
        %v5017 = vadd.f32 0.0, %v5016
        %v5018 = vpop.f32.mrb[0].mxu0
        %5019 = vmatprep.mubr.f32.mxu0 0.0
        %5020 = vmatmul.mubr.f32.gmra.mrb[0].mxu0 %v4890
        %v5021 = vpop.f32.mrb[0].mxu0
        %v5022 = vadd.f32 0.0, %v5021
        %v5023 = vpop.f32.mrb[0].mxu0
        %5024 = vmatprep.mubr.f32.mxu0 0.0
        %5025 = vmatmul.mubr.f32.gmra.mrb[0].mxu0 %v4891
        %v5026 = vpop.f32.mrb[0].mxu0
        %v5027 = vadd.f32 0.0, %v5026
        %v5028 = vpop.f32.mrb[0].mxu0
        %5029 = vmatprep.mubr.f32.mxu0 0.0
        %5030 = vmatmul.mubr.f32.gmra.mrb[0].mxu0 %v4892
        %v5031 = vpop.f32.mrb[0].mxu0
        %v5032 = vadd.f32 0.0, %v5031
        %v5033 = vpop.f32.mrb[0].mxu0
        %5034 = vmatprep.mubr.f32.mxu0 0.0
        %5035 = vmatmul.mubr.f32.gmra.mrb[0].mxu0 %v4893
        %v5036 = vpop.f32.mrb[0].mxu0
        %v5037 = vadd.f32 0.0, %v5036
        %v5038 = vpop.f32.mrb[0].mxu0
        %5039 = vmatprep.mubr.f32.mxu0 0.0
        %5040 = vmatmul.mubr.f32.gmra.mrb[0].mxu0 %v4894
        %v5041 = vpop.f32.mrb[0].mxu0
        %v5042 = vadd.f32 0.0, %v5041
        %v5043 = vpop.f32.mrb[0].mxu0
        %5044 = vmatprep.mubr.f32.mxu0 0.0
        %5045 = vmatmul.mubr.f32.gmra.mrb[0].mxu0 %v4895
        %v5046 = vpop.f32.mrb[0].mxu0
        %v5047 = vadd.f32 0.0, %v5046
        %v5048 = vpop.f32.mrb[0].mxu0
        %5049 = vmatprep.mubr.f32.mxu0 0.0
        %5050 = vmatmul.mubr.f32.gmra.mrb[0].mxu0 %v4896
        %v5051 = vpop.f32.mrb[0].mxu0
        %v5052 = vadd.f32 0.0, %v5051
        %v5053 = vpop.f32.mrb[0].mxu0
        %5054 = vmatprep.mubr.f32.mxu0 0.0
        %5055 = vmatmul.mubr.f32.gmra.mrb[0].mxu0 %v4897
        %v5056 = vpop.f32.mrb[0].mxu0
        %v5057 = vadd.f32 0.0, %v5056
        %v5058 = vpop.f32.mrb[0].mxu0
        %5059 = vmatprep.mubr.f32.mxu0 0.0
        %5060 = vmatmul.mubr.f32.gmra.mrb[0].mxu0 %v4898
        %v5061 = vpop.f32.mrb[0].mxu0
        %v5062 = vadd.f32 0.0, %v5061
        %v5063 = vpop.f32.mrb[0].mxu0
        %5064 = vmatprep.mubr.f32.mxu0 0.0
        %5065 = vmatmul.mubr.f32.gmra.mrb[0].mxu0 %v4899
        %v5066 = vpop.f32.mrb[0].mxu0
        %v5067 = vadd.f32 0.0, %v5066
        %v5068 = vpop.f32.mrb[0].mxu0
        %5069 = vmatprep.mubr.f32.mxu0 0.0
        %5070 = vmatmul.mubr.f32.gmra.mrb[0].mxu0 %v4900
        %v5071 = vpop.f32.mrb[0].mxu0
        %v5072 = vadd.f32 0.0, %v5071
        %v5073 = vpop.f32.mrb[0].mxu0
        %5074 = vmatprep.mubr.f32.mxu0 0.0
        %5075 = vmatmul.mubr.f32.gmra.mrb[0].mxu0 %v4901
        %v5076 = vpop.f32.mrb[0].mxu0
        %v5077 = vadd.f32 0.0, %v5076
        %v5078 = vpop.f32.mrb[0].mxu0
        %5079 = vmatprep.mubr.f32.mxu0 0.0
        %5080 = vmatmul.mubr.f32.gmra.mrb[0].mxu0 %v4902
        %v5081 = vpop.f32.mrb[0].mxu0
        %v5082 = vadd.f32 0.0, %v5081
        %v5083 = vpop.f32.mrb[0].mxu0
        %5084 = vmatprep.mubr.f32.mxu0 0.0
        %5085 = vmatmul.mubr.f32.gmra.mrb[0].mxu0 %v4903
        %v5086 = vpop.f32.mrb[0].mxu0
        %v5087 = vadd.f32 0.0, %v5086
        %v5088 = vpop.f32.mrb[0].mxu0
        %5089 = vmatprep.mubr.f32.mxu0 0.0
        %5090 = vmatmul.mubr.f32.gmra.mrb[0].mxu0 %v4904
        %v5091 = vpop.f32.mrb[0].mxu0
        %v5092 = vadd.f32 0.0, %v5091
        %v5093 = vpop.f32.mrb[0].mxu0
        %5094 = vmatprep.mubr.f32.mxu0 0.0
        %5095 = vmatmul.mubr.f32.gmra.mrb[0].mxu0 %v4905
        %v5096 = vpop.f32.mrb[0].mxu0
        %v5097 = vadd.f32 0.0, %v5096
        %v5098 = vpop.f32.mrb[0].mxu0
        %5099 = vmatprep.mubr.f32.mxu0 0.0
        %5100 = vmatmul.mubr.f32.gmra.mrb[0].mxu0 %v4906
        %v5101 = vpop.f32.mrb[0].mxu0
        %v5102 = vadd.f32 0.0, %v5101
        %v5103 = vpop.f32.mrb[0].mxu0
        %5104 = vmatprep.mubr.f32.mxu0 0.0
        %5105 = vmatmul.mubr.f32.gmra.mrb[0].mxu0 %v4907
        %v5106 = vpop.f32.mrb[0].mxu0
        %v5107 = vadd.f32 0.0, %v5106
        %v5108 = vpop.f32.mrb[0].mxu0
        %5109 = vmatprep.mubr.f32.mxu0 0.0
        %5110 = vmatmul.mubr.f32.gmra.mrb[0].mxu0 %v4908
        %v5111 = vpop.f32.mrb[0].mxu0
        %v5112 = vadd.f32 0.0, %v5111
        %v5113 = vpop.f32.mrb[0].mxu0
        %5114 = vmatprep.mubr.f32.mxu0 0.0
        %5115 = vmatmul.mubr.f32.gmra.mrb[0].mxu0 %v4909
        %v5116 = vpop.f32.mrb[0].mxu0
        %v5117 = vadd.f32 0.0, %v5116
        %v5118 = vpop.f32.mrb[0].mxu0
        %5119 = vmatprep.mubr.f32.mxu0 0.0
        %5120 = vmatmul.mubr.f32.gmra.mrb[0].mxu0 %v4910
        %v5121 = vpop.f32.mrb[0].mxu0
        %v5122 = vadd.f32 0.0, %v5121
        %v5123 = vpop.f32.mrb[0].mxu0
        %5124 = vmatprep.mubr.f32.mxu0 0.0
        %5125 = vmatmul.mubr.f32.gmra.mrb[0].mxu0 %v4911
        %v5126 = vpop.f32.mrb[0].mxu0
        %v5127 = vadd.f32 0.0, %v5126
        %v5128 = vpop.f32.mrb[0].mxu0
        %5129 = vmatprep.mubr.f32.mxu0 0.0
        %5130 = vmatmul.mubr.f32.gmra.mrb[0].mxu0 %v4912
        %v5131 = vpop.f32.mrb[0].mxu0
        %v5132 = vadd.f32 0.0, %v5131
        %v5133 = vpop.f32.mrb[0].mxu0
        %5134 = vmatprep.mubr.f32.mxu0 0.0
        %5135 = vmatmul.mubr.f32.gmra.mrb[0].mxu0 %v4913
        %v5136 = vpop.f32.mrb[0].mxu0
        %v5137 = vadd.f32 0.0, %v5136
        %v5138 = vpop.f32.mrb[0].mxu0
        %5139 = vmatprep.mubr.f32.mxu0 0.0
        %5140 = vmatmul.mubr.f32.gmra.mrb[0].mxu0 %v4914
        %v5141 = vpop.f32.mrb[0].mxu0
        %v5142 = vadd.f32 0.0, %v5141
        %v5143 = vpop.f32.mrb[0].mxu0
        %5144 = vmatprep.mubr.f32.mxu0 0.0
        %5145 = vmatmul.mubr.f32.gmra.mrb[0].mxu0 %v4915
        %v5146 = vpop.f32.mrb[0].mxu0
        %v5147 = vadd.f32 0.0, %v5146
        %v5148 = vpop.f32.mrb[0].mxu0
        %5149 = vmatprep.mubr.f32.mxu0 0.0
        %5150 = vmatmul.mubr.f32.gmra.mrb[0].mxu0 %v4916
        %v5151 = vpop.f32.mrb[0].mxu0
        %v5152 = vadd.f32 0.0, %v5151
        %v5153 = vpop.f32.mrb[0].mxu0
        %5154 = vmatprep.mubr.f32.mxu0 0.0
        %5155 = vmatmul.mubr.f32.gmra.mrb[0].mxu0 %v4917
        %v5156 = vpop.f32.mrb[0].mxu0
        %v5157 = vadd.f32 0.0, %v5156
        %v5158 = vpop.f32.mrb[0].mxu0
        %5159 = vdwg.mxu0
        %v5160 = vadd.f32 %v4854, %v5002
        %v5161 = vadd.f32 %v4855, %v5007
        %v5162 = vadd.f32 %v4856, %v5012
        %v5163 = vadd.f32 %v4857, %v5017
        %v5164 = vadd.f32 %v4858, %v5022
        %v5165 = vadd.f32 %v4859, %v5027
        %v5166 = vadd.f32 %v4860, %v5032
        %v5167 = vadd.f32 %v4861, %v5037
        %v5168 = vadd.f32 %v4862, %v5042
        %v5169 = vadd.f32 %v4863, %v5047
        %v5170 = vadd.f32 %v4864, %v5052
        %v5171 = vadd.f32 %v4865, %v5057
        %v5172 = vadd.f32 %v4866, %v5062
        %v5173 = vadd.f32 %v4867, %v5067
        %v5174 = vadd.f32 %v4868, %v5072
        %v5175 = vadd.f32 %v4869, %v5077
        %v5176 = vadd.f32 %v4870, %v5082
        %v5177 = vadd.f32 %v4871, %v5087
        %v5178 = vadd.f32 %v4872, %v5092
        %v5179 = vadd.f32 %v4873, %v5097
        %v5180 = vadd.f32 %v4874, %v5102
        %v5181 = vadd.f32 %v4875, %v5107
        %v5182 = vadd.f32 %v4876, %v5112
        %v5183 = vadd.f32 %v4877, %v5117
        %v5184 = vadd.f32 %v4878, %v5122
        %v5185 = vadd.f32 %v4879, %v5127
        %v5186 = vadd.f32 %v4880, %v5132
        %v5187 = vadd.f32 %v4881, %v5137
        %v5188 = vadd.f32 %v4882, %v5142
        %v5189 = vadd.f32 %v4883, %v5147
        %v5190 = vadd.f32 %v4884, %v5152
        %v5191 = vadd.f32 %v4885, %v5157
        %v5192 = vld [vmem:[%s2092 + $0x10] sm:$0xff]
        %v5193 = vld [vmem:[%s2092 + $0x18] sm:$0xff]
        %v5194 = vld [vmem:[%s2092 + $0x40] sm:$0xff]
        %v5195 = vld [vmem:[%s2092 + $0x48] sm:$0xff]
        %v5196 = vld [vmem:[%s2092 + $0x70] sm:$0xff]
        %v5197 = vld [vmem:[%s2092 + $0x78] sm:$0xff]
        %v5198 = vld [vmem:[%s2092 + $0xa0] sm:$0xff]
        %v5199 = vld [vmem:[%s2092 + $0xa8] sm:$0xff]
        %v5200 = vld [vmem:[%s2092 + $0xd0] sm:$0xff]
        %v5201 = vld [vmem:[%s2092 + $0xd8] sm:$0xff]
        %v5202 = vld [vmem:[%s2092 + $0x100] sm:$0xff]
        %v5203 = vld [vmem:[%s2092 + $0x108] sm:$0xff]
        %v5204 = vld [vmem:[%s2092 + $0x130] sm:$0xff]
        %v5205 = vld [vmem:[%s2092 + $0x138] sm:$0xff]
        %v5206 = vld [vmem:[%s2092 + $0x160] sm:$0xff]
        %v5207 = vld [vmem:[%s2092 + $0x168] sm:$0xff]
        %v5208 = vld [vmem:[%s2092 + $0x190] sm:$0xff]
        %v5209 = vld [vmem:[%s2092 + $0x198] sm:$0xff]
        %v5210 = vld [vmem:[%s2092 + $0x1c0] sm:$0xff]
        %v5211 = vld [vmem:[%s2092 + $0x1c8] sm:$0xff]
        %v5212 = vld [vmem:[%s2092 + $0x1f0] sm:$0xff]
        %v5213 = vld [vmem:[%s2092 + $0x1f8] sm:$0xff]
        %v5214 = vld [vmem:[%s2092 + $0x220] sm:$0xff]
        %v5215 = vld [vmem:[%s2092 + $0x228] sm:$0xff]
        %v5216 = vld [vmem:[%s2092 + $0x250] sm:$0xff]
        %v5217 = vld [vmem:[%s2092 + $0x258] sm:$0xff]
        %v5218 = vld [vmem:[%s2092 + $0x280] sm:$0xff]
        %v5219 = vld [vmem:[%s2092 + $0x288] sm:$0xff]
        %v5220 = vld [vmem:[%s2092 + $0x2b0] sm:$0xff]
        %v5221 = vld [vmem:[%s2092 + $0x2b8] sm:$0xff]
        %v5222 = vld [vmem:[%s2092 + $0x2e0] sm:$0xff]
        %v5223 = vld [vmem:[%s2092 + $0x2e8] sm:$0xff]
        %s5224 = scalar_lea.vmem [#allocation3], 2048
        %v5225 = vld [vmem:[%s5224] sm:$0xff]
        %v5226 = vld [vmem:[%s5224 + $0x8] sm:$0xff]
        %v5227 = vld [vmem:[%s5224 + $0x10] sm:$0xff]
        %v5228 = vld [vmem:[%s5224 + $0x18] sm:$0xff]
        %v5229 = vld [vmem:[%s5224 + $0x20] sm:$0xff]
        %v5230 = vld [vmem:[%s5224 + $0x28] sm:$0xff]
        %v5231 = vld [vmem:[%s5224 + $0x30] sm:$0xff]
        %v5232 = vld [vmem:[%s5224 + $0x38] sm:$0xff]
        %v5233 = vld [vmem:[%s5224 + $0x40] sm:$0xff]
        %v5234 = vld [vmem:[%s5224 + $0x48] sm:$0xff]
        %v5235 = vld [vmem:[%s5224 + $0x50] sm:$0xff]
        %v5236 = vld [vmem:[%s5224 + $0x58] sm:$0xff]
        %v5237 = vld [vmem:[%s5224 + $0x60] sm:$0xff]
        %v5238 = vld [vmem:[%s5224 + $0x68] sm:$0xff]
        %v5239 = vld [vmem:[%s5224 + $0x70] sm:$0xff]
        %v5240 = vld [vmem:[%s5224 + $0x78] sm:$0xff]
        %5241 = vmatprep.subr.mxu0 0.0
        %5242 = vmatpush1.msra.mxu0 %v5225
        %5243 = vmatprep.subr.mxu0 0.0
        %5244 = vmatpush1.msra.mxu0 %v5226
        %5245 = vmatprep.subr.mxu0 0.0
        %5246 = vmatpush1.msra.mxu0 %v5227
        %5247 = vmatprep.subr.mxu0 0.0
        %5248 = vmatpush1.msra.mxu0 %v5228
        %5249 = vmatprep.subr.mxu0 0.0
        %5250 = vmatpush1.msra.mxu0 %v5229
        %5251 = vmatprep.subr.mxu0 0.0
        %5252 = vmatpush1.msra.mxu0 %v5230
        %5253 = vmatprep.subr.mxu0 0.0
        %5254 = vmatpush1.msra.mxu0 %v5231
        %5255 = vmatprep.subr.mxu0 0.0
        %5256 = vmatpush1.msra.mxu0 %v5232
        %5257 = vmatprep.subr.mxu0 0.0
        %5258 = vmatpush1.msra.mxu0 %v5233
        %5259 = vmatprep.subr.mxu0 0.0
        %5260 = vmatpush1.msra.mxu0 %v5234
        %5261 = vmatprep.subr.mxu0 0.0
        %5262 = vmatpush1.msra.mxu0 %v5235
        %5263 = vmatprep.subr.mxu0 0.0
        %5264 = vmatpush1.msra.mxu0 %v5236
        %5265 = vmatprep.subr.mxu0 0.0
        %5266 = vmatpush1.msra.mxu0 %v5237
        %5267 = vmatprep.subr.mxu0 0.0
        %5268 = vmatpush1.msra.mxu0 %v5238
        %5269 = vmatprep.subr.mxu0 0.0
        %5270 = vmatpush1.msra.mxu0 %v5239
        %5271 = vmatprep.subr.mxu0 0.0
        %5272 = vmatpush1.msra.mxu0 %v5240
        %5273 = vmatprep.subr.mxu0 0.0
        %5274 = vmatpush1.msra.mxu0 0.0
        %5275 = vmatprep.subr.mxu0 0.0
        %5276 = vmatpush1.msra.mxu0 0.0
        %5277 = vmatprep.subr.mxu0 0.0
        %5278 = vmatpush1.msra.mxu0 0.0
        %5279 = vmatprep.subr.mxu0 0.0
        %5280 = vmatpush1.msra.mxu0 0.0
        %5281 = vmatprep.subr.mxu0 0.0
        %5282 = vmatpush1.msra.mxu0 0.0
        %5283 = vmatprep.subr.mxu0 0.0
        %5284 = vmatpush1.msra.mxu0 0.0
        %5285 = vmatprep.subr.mxu0 0.0
        %5286 = vmatpush1.msra.mxu0 0.0
        %5287 = vmatprep.subr.mxu0 0.0
        %5288 = vmatpush1.msra.mxu0 0.0
        %5289 = vmatprep.subr.mxu0 0.0
        %5290 = vmatpush1.msra.mxu0 0.0
        %5291 = vmatprep.subr.mxu0 0.0
        %5292 = vmatpush1.msra.mxu0 0.0
        %5293 = vmatprep.subr.mxu0 0.0
        %5294 = vmatpush1.msra.mxu0 0.0
        %5295 = vmatprep.subr.mxu0 0.0
        %5296 = vmatpush1.msra.mxu0 0.0
        %5297 = vmatprep.subr.mxu0 0.0
        %5298 = vmatpush1.msra.mxu0 0.0
        %5299 = vmatprep.subr.mxu0 0.0
        %5300 = vmatpush1.msra.mxu0 0.0
        %5301 = vmatprep.subr.mxu0 0.0
        %5302 = vmatpush1.msra.mxu0 0.0
        %5303 = vmatprep.subr.mxu0 0.0
        %5304 = vmatpush1.msra.mxu0 0.0
        %5305 = vmatprep.mubr.f32.mxu0 0.0
        %5306 = vmatmul.mubr.f32.gmra.mrb[0].mxu0 %v5192
        %v5307 = vpop.f32.mrb[0].mxu0
        %v5308 = vadd.f32 0.0, %v5307
        %v5309 = vpop.f32.mrb[0].mxu0
        %5310 = vmatprep.mubr.f32.mxu0 0.0
        %5311 = vmatmul.mubr.f32.gmra.mrb[0].mxu0 %v5193
        %v5312 = vpop.f32.mrb[0].mxu0
        %v5313 = vadd.f32 0.0, %v5312
        %v5314 = vpop.f32.mrb[0].mxu0
        %5315 = vmatprep.mubr.f32.mxu0 0.0
        %5316 = vmatmul.mubr.f32.gmra.mrb[0].mxu0 %v5194
        %v5317 = vpop.f32.mrb[0].mxu0
        %v5318 = vadd.f32 0.0, %v5317
        %v5319 = vpop.f32.mrb[0].mxu0
        %5320 = vmatprep.mubr.f32.mxu0 0.0
        %5321 = vmatmul.mubr.f32.gmra.mrb[0].mxu0 %v5195
        %v5322 = vpop.f32.mrb[0].mxu0
        %v5323 = vadd.f32 0.0, %v5322
        %v5324 = vpop.f32.mrb[0].mxu0
        %5325 = vmatprep.mubr.f32.mxu0 0.0
        %5326 = vmatmul.mubr.f32.gmra.mrb[0].mxu0 %v5196
        %v5327 = vpop.f32.mrb[0].mxu0
        %v5328 = vadd.f32 0.0, %v5327
        %v5329 = vpop.f32.mrb[0].mxu0
        %5330 = vmatprep.mubr.f32.mxu0 0.0
        %5331 = vmatmul.mubr.f32.gmra.mrb[0].mxu0 %v5197
        %v5332 = vpop.f32.mrb[0].mxu0
        %v5333 = vadd.f32 0.0, %v5332
        %v5334 = vpop.f32.mrb[0].mxu0
        %5335 = vmatprep.mubr.f32.mxu0 0.0
        %5336 = vmatmul.mubr.f32.gmra.mrb[0].mxu0 %v5198
        %v5337 = vpop.f32.mrb[0].mxu0
        %v5338 = vadd.f32 0.0, %v5337
        %v5339 = vpop.f32.mrb[0].mxu0
        %5340 = vmatprep.mubr.f32.mxu0 0.0
        %5341 = vmatmul.mubr.f32.gmra.mrb[0].mxu0 %v5199
        %v5342 = vpop.f32.mrb[0].mxu0
        %v5343 = vadd.f32 0.0, %v5342
        %v5344 = vpop.f32.mrb[0].mxu0
        %5345 = vmatprep.mubr.f32.mxu0 0.0
        %5346 = vmatmul.mubr.f32.gmra.mrb[0].mxu0 %v5200
        %v5347 = vpop.f32.mrb[0].mxu0
        %v5348 = vadd.f32 0.0, %v5347
        %v5349 = vpop.f32.mrb[0].mxu0
        %5350 = vmatprep.mubr.f32.mxu0 0.0
        %5351 = vmatmul.mubr.f32.gmra.mrb[0].mxu0 %v5201
        %v5352 = vpop.f32.mrb[0].mxu0
        %v5353 = vadd.f32 0.0, %v5352
        %v5354 = vpop.f32.mrb[0].mxu0
        %5355 = vmatprep.mubr.f32.mxu0 0.0
        %5356 = vmatmul.mubr.f32.gmra.mrb[0].mxu0 %v5202
        %v5357 = vpop.f32.mrb[0].mxu0
        %v5358 = vadd.f32 0.0, %v5357
        %v5359 = vpop.f32.mrb[0].mxu0
        %5360 = vmatprep.mubr.f32.mxu0 0.0
        %5361 = vmatmul.mubr.f32.gmra.mrb[0].mxu0 %v5203
        %v5362 = vpop.f32.mrb[0].mxu0
        %v5363 = vadd.f32 0.0, %v5362
        %v5364 = vpop.f32.mrb[0].mxu0
        %5365 = vmatprep.mubr.f32.mxu0 0.0
        %5366 = vmatmul.mubr.f32.gmra.mrb[0].mxu0 %v5204
        %v5367 = vpop.f32.mrb[0].mxu0
        %v5368 = vadd.f32 0.0, %v5367
        %v5369 = vpop.f32.mrb[0].mxu0
        %5370 = vmatprep.mubr.f32.mxu0 0.0
        %5371 = vmatmul.mubr.f32.gmra.mrb[0].mxu0 %v5205
        %v5372 = vpop.f32.mrb[0].mxu0
        %v5373 = vadd.f32 0.0, %v5372
        %v5374 = vpop.f32.mrb[0].mxu0
        %5375 = vmatprep.mubr.f32.mxu0 0.0
        %5376 = vmatmul.mubr.f32.gmra.mrb[0].mxu0 %v5206
        %v5377 = vpop.f32.mrb[0].mxu0
        %v5378 = vadd.f32 0.0, %v5377
        %v5379 = vpop.f32.mrb[0].mxu0
        %5380 = vmatprep.mubr.f32.mxu0 0.0
        %5381 = vmatmul.mubr.f32.gmra.mrb[0].mxu0 %v5207
        %v5382 = vpop.f32.mrb[0].mxu0
        %v5383 = vadd.f32 0.0, %v5382
        %v5384 = vpop.f32.mrb[0].mxu0
        %5385 = vmatprep.mubr.f32.mxu0 0.0
        %5386 = vmatmul.mubr.f32.gmra.mrb[0].mxu0 %v5208
        %v5387 = vpop.f32.mrb[0].mxu0
        %v5388 = vadd.f32 0.0, %v5387
        %v5389 = vpop.f32.mrb[0].mxu0
        %5390 = vmatprep.mubr.f32.mxu0 0.0
        %5391 = vmatmul.mubr.f32.gmra.mrb[0].mxu0 %v5209
        %v5392 = vpop.f32.mrb[0].mxu0
        %v5393 = vadd.f32 0.0, %v5392
        %v5394 = vpop.f32.mrb[0].mxu0
        %5395 = vmatprep.mubr.f32.mxu0 0.0
        %5396 = vmatmul.mubr.f32.gmra.mrb[0].mxu0 %v5210
        %v5397 = vpop.f32.mrb[0].mxu0
        %v5398 = vadd.f32 0.0, %v5397
        %v5399 = vpop.f32.mrb[0].mxu0
        %5400 = vmatprep.mubr.f32.mxu0 0.0
        %5401 = vmatmul.mubr.f32.gmra.mrb[0].mxu0 %v5211
        %v5402 = vpop.f32.mrb[0].mxu0
        %v5403 = vadd.f32 0.0, %v5402
        %v5404 = vpop.f32.mrb[0].mxu0
        %5405 = vmatprep.mubr.f32.mxu0 0.0
        %5406 = vmatmul.mubr.f32.gmra.mrb[0].mxu0 %v5212
        %v5407 = vpop.f32.mrb[0].mxu0
        %v5408 = vadd.f32 0.0, %v5407
        %v5409 = vpop.f32.mrb[0].mxu0
        %5410 = vmatprep.mubr.f32.mxu0 0.0
        %5411 = vmatmul.mubr.f32.gmra.mrb[0].mxu0 %v5213
        %v5412 = vpop.f32.mrb[0].mxu0
        %v5413 = vadd.f32 0.0, %v5412
        %v5414 = vpop.f32.mrb[0].mxu0
        %5415 = vmatprep.mubr.f32.mxu0 0.0
        %5416 = vmatmul.mubr.f32.gmra.mrb[0].mxu0 %v5214
        %v5417 = vpop.f32.mrb[0].mxu0
        %v5418 = vadd.f32 0.0, %v5417
        %v5419 = vpop.f32.mrb[0].mxu0
        %5420 = vmatprep.mubr.f32.mxu0 0.0
        %5421 = vmatmul.mubr.f32.gmra.mrb[0].mxu0 %v5215
        %v5422 = vpop.f32.mrb[0].mxu0
        %v5423 = vadd.f32 0.0, %v5422
        %v5424 = vpop.f32.mrb[0].mxu0
        %5425 = vmatprep.mubr.f32.mxu0 0.0
        %5426 = vmatmul.mubr.f32.gmra.mrb[0].mxu0 %v5216
        %v5427 = vpop.f32.mrb[0].mxu0
        %v5428 = vadd.f32 0.0, %v5427
        %v5429 = vpop.f32.mrb[0].mxu0
        %5430 = vmatprep.mubr.f32.mxu0 0.0
        %5431 = vmatmul.mubr.f32.gmra.mrb[0].mxu0 %v5217
        %v5432 = vpop.f32.mrb[0].mxu0
        %v5433 = vadd.f32 0.0, %v5432
        %v5434 = vpop.f32.mrb[0].mxu0
        %5435 = vmatprep.mubr.f32.mxu0 0.0
        %5436 = vmatmul.mubr.f32.gmra.mrb[0].mxu0 %v5218
        %v5437 = vpop.f32.mrb[0].mxu0
        %v5438 = vadd.f32 0.0, %v5437
        %v5439 = vpop.f32.mrb[0].mxu0
        %5440 = vmatprep.mubr.f32.mxu0 0.0
        %5441 = vmatmul.mubr.f32.gmra.mrb[0].mxu0 %v5219
        %v5442 = vpop.f32.mrb[0].mxu0
        %v5443 = vadd.f32 0.0, %v5442
        %v5444 = vpop.f32.mrb[0].mxu0
        %5445 = vmatprep.mubr.f32.mxu0 0.0
        %5446 = vmatmul.mubr.f32.gmra.mrb[0].mxu0 %v5220
        %v5447 = vpop.f32.mrb[0].mxu0
        %v5448 = vadd.f32 0.0, %v5447
        %v5449 = vpop.f32.mrb[0].mxu0
        %5450 = vmatprep.mubr.f32.mxu0 0.0
        %5451 = vmatmul.mubr.f32.gmra.mrb[0].mxu0 %v5221
        %v5452 = vpop.f32.mrb[0].mxu0
        %v5453 = vadd.f32 0.0, %v5452
        %v5454 = vpop.f32.mrb[0].mxu0
        %5455 = vmatprep.mubr.f32.mxu0 0.0
        %5456 = vmatmul.mubr.f32.gmra.mrb[0].mxu0 %v5222
        %v5457 = vpop.f32.mrb[0].mxu0
        %v5458 = vadd.f32 0.0, %v5457
        %v5459 = vpop.f32.mrb[0].mxu0
        %5460 = vmatprep.mubr.f32.mxu0 0.0
        %5461 = vmatmul.mubr.f32.gmra.mrb[0].mxu0 %v5223
        %v5462 = vpop.f32.mrb[0].mxu0
        %v5463 = vadd.f32 0.0, %v5462
        %v5464 = vpop.f32.mrb[0].mxu0
        %5465 = vdwg.mxu0
        %v5466 = vadd.f32 %v5160, %v5308
        %v5467 = vadd.f32 %v5161, %v5313
        %v5468 = vadd.f32 %v5162, %v5318
        %v5469 = vadd.f32 %v5163, %v5323
        %v5470 = vadd.f32 %v5164, %v5328
        %v5471 = vadd.f32 %v5165, %v5333
        %v5472 = vadd.f32 %v5166, %v5338
        %v5473 = vadd.f32 %v5167, %v5343
        %v5474 = vadd.f32 %v5168, %v5348
        %v5475 = vadd.f32 %v5169, %v5353
        %v5476 = vadd.f32 %v5170, %v5358
        %v5477 = vadd.f32 %v5171, %v5363
        %v5478 = vadd.f32 %v5172, %v5368
        %v5479 = vadd.f32 %v5173, %v5373
        %v5480 = vadd.f32 %v5174, %v5378
        %v5481 = vadd.f32 %v5175, %v5383
        %v5482 = vadd.f32 %v5176, %v5388
        %v5483 = vadd.f32 %v5177, %v5393
        %v5484 = vadd.f32 %v5178, %v5398
        %v5485 = vadd.f32 %v5179, %v5403
        %v5486 = vadd.f32 %v5180, %v5408
        %v5487 = vadd.f32 %v5181, %v5413
        %v5488 = vadd.f32 %v5182, %v5418
        %v5489 = vadd.f32 %v5183, %v5423
        %v5490 = vadd.f32 %v5184, %v5428
        %v5491 = vadd.f32 %v5185, %v5433
        %v5492 = vadd.f32 %v5186, %v5438
        %v5493 = vadd.f32 %v5187, %v5443
        %v5494 = vadd.f32 %v5188, %v5448
        %v5495 = vadd.f32 %v5189, %v5453
        %v5496 = vadd.f32 %v5190, %v5458
        %v5497 = vadd.f32 %v5191, %v5463
        %v5498 = vld [vmem:[%s2092 + $0x11] sm:$0xff]
        %v5499 = vld [vmem:[%s2092 + $0x19] sm:$0xff]
        %v5500 = vld [vmem:[%s2092 + $0x41] sm:$0xff]
        %v5501 = vld [vmem:[%s2092 + $0x49] sm:$0xff]
        %v5502 = vld [vmem:[%s2092 + $0x71] sm:$0xff]
        %v5503 = vld [vmem:[%s2092 + $0x79] sm:$0xff]
        %v5504 = vld [vmem:[%s2092 + $0xa1] sm:$0xff]
        %v5505 = vld [vmem:[%s2092 + $0xa9] sm:$0xff]
        %v5506 = vld [vmem:[%s2092 + $0xd1] sm:$0xff]
        %v5507 = vld [vmem:[%s2092 + $0xd9] sm:$0xff]
        %v5508 = vld [vmem:[%s2092 + $0x101] sm:$0xff]
        %v5509 = vld [vmem:[%s2092 + $0x109] sm:$0xff]
        %v5510 = vld [vmem:[%s2092 + $0x131] sm:$0xff]
        %v5511 = vld [vmem:[%s2092 + $0x139] sm:$0xff]
        %v5512 = vld [vmem:[%s2092 + $0x161] sm:$0xff]
        %v5513 = vld [vmem:[%s2092 + $0x169] sm:$0xff]
        %v5514 = vld [vmem:[%s2092 + $0x191] sm:$0xff]
        %v5515 = vld [vmem:[%s2092 + $0x199] sm:$0xff]
        %v5516 = vld [vmem:[%s2092 + $0x1c1] sm:$0xff]
        %v5517 = vld [vmem:[%s2092 + $0x1c9] sm:$0xff]
        %v5518 = vld [vmem:[%s2092 + $0x1f1] sm:$0xff]
        %v5519 = vld [vmem:[%s2092 + $0x1f9] sm:$0xff]
        %v5520 = vld [vmem:[%s2092 + $0x221] sm:$0xff]
        %v5521 = vld [vmem:[%s2092 + $0x229] sm:$0xff]
        %v5522 = vld [vmem:[%s2092 + $0x251] sm:$0xff]
        %v5523 = vld [vmem:[%s2092 + $0x259] sm:$0xff]
        %v5524 = vld [vmem:[%s2092 + $0x281] sm:$0xff]
        %v5525 = vld [vmem:[%s2092 + $0x289] sm:$0xff]
        %v5526 = vld [vmem:[%s2092 + $0x2b1] sm:$0xff]
        %v5527 = vld [vmem:[%s2092 + $0x2b9] sm:$0xff]
        %v5528 = vld [vmem:[%s2092 + $0x2e1] sm:$0xff]
        %v5529 = vld [vmem:[%s2092 + $0x2e9] sm:$0xff]
        %s5530 = scalar_lea.vmem [#allocation3], 2176
        %v5531 = vld [vmem:[%s5530] sm:$0xff]
        %v5532 = vld [vmem:[%s5530 + $0x8] sm:$0xff]
        %v5533 = vld [vmem:[%s5530 + $0x10] sm:$0xff]
        %v5534 = vld [vmem:[%s5530 + $0x18] sm:$0xff]
        %v5535 = vld [vmem:[%s5530 + $0x20] sm:$0xff]
        %v5536 = vld [vmem:[%s5530 + $0x28] sm:$0xff]
        %v5537 = vld [vmem:[%s5530 + $0x30] sm:$0xff]
        %v5538 = vld [vmem:[%s5530 + $0x38] sm:$0xff]
        %v5539 = vld [vmem:[%s5530 + $0x40] sm:$0xff]
        %v5540 = vld [vmem:[%s5530 + $0x48] sm:$0xff]
        %v5541 = vld [vmem:[%s5530 + $0x50] sm:$0xff]
        %v5542 = vld [vmem:[%s5530 + $0x58] sm:$0xff]
        %v5543 = vld [vmem:[%s5530 + $0x60] sm:$0xff]
        %v5544 = vld [vmem:[%s5530 + $0x68] sm:$0xff]
        %v5545 = vld [vmem:[%s5530 + $0x70] sm:$0xff]
        %v5546 = vld [vmem:[%s5530 + $0x78] sm:$0xff]
        %5547 = vmatprep.subr.mxu0 0.0
        %5548 = vmatpush1.msra.mxu0 %v5531
        %5549 = vmatprep.subr.mxu0 0.0
        %5550 = vmatpush1.msra.mxu0 %v5532
        %5551 = vmatprep.subr.mxu0 0.0
        %5552 = vmatpush1.msra.mxu0 %v5533
        %5553 = vmatprep.subr.mxu0 0.0
        %5554 = vmatpush1.msra.mxu0 %v5534
        %5555 = vmatprep.subr.mxu0 0.0
        %5556 = vmatpush1.msra.mxu0 %v5535
        %5557 = vmatprep.subr.mxu0 0.0
        %5558 = vmatpush1.msra.mxu0 %v5536
        %5559 = vmatprep.subr.mxu0 0.0
        %5560 = vmatpush1.msra.mxu0 %v5537
        %5561 = vmatprep.subr.mxu0 0.0
        %5562 = vmatpush1.msra.mxu0 %v5538
        %5563 = vmatprep.subr.mxu0 0.0
        %5564 = vmatpush1.msra.mxu0 %v5539
        %5565 = vmatprep.subr.mxu0 0.0
        %5566 = vmatpush1.msra.mxu0 %v5540
        %5567 = vmatprep.subr.mxu0 0.0
        %5568 = vmatpush1.msra.mxu0 %v5541
        %5569 = vmatprep.subr.mxu0 0.0
        %5570 = vmatpush1.msra.mxu0 %v5542
        %5571 = vmatprep.subr.mxu0 0.0
        %5572 = vmatpush1.msra.mxu0 %v5543
        %5573 = vmatprep.subr.mxu0 0.0
        %5574 = vmatpush1.msra.mxu0 %v5544
        %5575 = vmatprep.subr.mxu0 0.0
        %5576 = vmatpush1.msra.mxu0 %v5545
        %5577 = vmatprep.subr.mxu0 0.0
        %5578 = vmatpush1.msra.mxu0 %v5546
        %5579 = vmatprep.subr.mxu0 0.0
        %5580 = vmatpush1.msra.mxu0 0.0
        %5581 = vmatprep.subr.mxu0 0.0
        %5582 = vmatpush1.msra.mxu0 0.0
        %5583 = vmatprep.subr.mxu0 0.0
        %5584 = vmatpush1.msra.mxu0 0.0
        %5585 = vmatprep.subr.mxu0 0.0
        %5586 = vmatpush1.msra.mxu0 0.0
        %5587 = vmatprep.subr.mxu0 0.0
        %5588 = vmatpush1.msra.mxu0 0.0
        %5589 = vmatprep.subr.mxu0 0.0
        %5590 = vmatpush1.msra.mxu0 0.0
        %5591 = vmatprep.subr.mxu0 0.0
        %5592 = vmatpush1.msra.mxu0 0.0
        %5593 = vmatprep.subr.mxu0 0.0
        %5594 = vmatpush1.msra.mxu0 0.0
        %5595 = vmatprep.subr.mxu0 0.0
        %5596 = vmatpush1.msra.mxu0 0.0
        %5597 = vmatprep.subr.mxu0 0.0
        %5598 = vmatpush1.msra.mxu0 0.0
        %5599 = vmatprep.subr.mxu0 0.0
        %5600 = vmatpush1.msra.mxu0 0.0
        %5601 = vmatprep.subr.mxu0 0.0
        %5602 = vmatpush1.msra.mxu0 0.0
        %5603 = vmatprep.subr.mxu0 0.0
        %5604 = vmatpush1.msra.mxu0 0.0
        %5605 = vmatprep.subr.mxu0 0.0
        %5606 = vmatpush1.msra.mxu0 0.0
        %5607 = vmatprep.subr.mxu0 0.0
        %5608 = vmatpush1.msra.mxu0 0.0
        %5609 = vmatprep.subr.mxu0 0.0
        %5610 = vmatpush1.msra.mxu0 0.0
        %5611 = vmatprep.mubr.f32.mxu0 0.0
        %5612 = vmatmul.mubr.f32.gmra.mrb[0].mxu0 %v5498
        %v5613 = vpop.f32.mrb[0].mxu0
        %v5614 = vadd.f32 0.0, %v5613
        %v5615 = vpop.f32.mrb[0].mxu0
        %5616 = vmatprep.mubr.f32.mxu0 0.0
        %5617 = vmatmul.mubr.f32.gmra.mrb[0].mxu0 %v5499
        %v5618 = vpop.f32.mrb[0].mxu0
        %v5619 = vadd.f32 0.0, %v5618
        %v5620 = vpop.f32.mrb[0].mxu0
        %5621 = vmatprep.mubr.f32.mxu0 0.0
        %5622 = vmatmul.mubr.f32.gmra.mrb[0].mxu0 %v5500
        %v5623 = vpop.f32.mrb[0].mxu0
        %v5624 = vadd.f32 0.0, %v5623
        %v5625 = vpop.f32.mrb[0].mxu0
        %5626 = vmatprep.mubr.f32.mxu0 0.0
        %5627 = vmatmul.mubr.f32.gmra.mrb[0].mxu0 %v5501
        %v5628 = vpop.f32.mrb[0].mxu0
        %v5629 = vadd.f32 0.0, %v5628
        %v5630 = vpop.f32.mrb[0].mxu0
        %5631 = vmatprep.mubr.f32.mxu0 0.0
        %5632 = vmatmul.mubr.f32.gmra.mrb[0].mxu0 %v5502
        %v5633 = vpop.f32.mrb[0].mxu0
        %v5634 = vadd.f32 0.0, %v5633
        %v5635 = vpop.f32.mrb[0].mxu0
        %5636 = vmatprep.mubr.f32.mxu0 0.0
        %5637 = vmatmul.mubr.f32.gmra.mrb[0].mxu0 %v5503
        %v5638 = vpop.f32.mrb[0].mxu0
        %v5639 = vadd.f32 0.0, %v5638
        %v5640 = vpop.f32.mrb[0].mxu0
        %5641 = vmatprep.mubr.f32.mxu0 0.0
        %5642 = vmatmul.mubr.f32.gmra.mrb[0].mxu0 %v5504
        %v5643 = vpop.f32.mrb[0].mxu0
        %v5644 = vadd.f32 0.0, %v5643
        %v5645 = vpop.f32.mrb[0].mxu0
        %5646 = vmatprep.mubr.f32.mxu0 0.0
        %5647 = vmatmul.mubr.f32.gmra.mrb[0].mxu0 %v5505
        %v5648 = vpop.f32.mrb[0].mxu0
        %v5649 = vadd.f32 0.0, %v5648
        %v5650 = vpop.f32.mrb[0].mxu0
        %5651 = vmatprep.mubr.f32.mxu0 0.0
        %5652 = vmatmul.mubr.f32.gmra.mrb[0].mxu0 %v5506
        %v5653 = vpop.f32.mrb[0].mxu0
        %v5654 = vadd.f32 0.0, %v5653
        %v5655 = vpop.f32.mrb[0].mxu0
        %5656 = vmatprep.mubr.f32.mxu0 0.0
        %5657 = vmatmul.mubr.f32.gmra.mrb[0].mxu0 %v5507
        %v5658 = vpop.f32.mrb[0].mxu0
        %v5659 = vadd.f32 0.0, %v5658
        %v5660 = vpop.f32.mrb[0].mxu0
        %5661 = vmatprep.mubr.f32.mxu0 0.0
        %5662 = vmatmul.mubr.f32.gmra.mrb[0].mxu0 %v5508
        %v5663 = vpop.f32.mrb[0].mxu0
        %v5664 = vadd.f32 0.0, %v5663
        %v5665 = vpop.f32.mrb[0].mxu0
        %5666 = vmatprep.mubr.f32.mxu0 0.0
        %5667 = vmatmul.mubr.f32.gmra.mrb[0].mxu0 %v5509
        %v5668 = vpop.f32.mrb[0].mxu0
        %v5669 = vadd.f32 0.0, %v5668
        %v5670 = vpop.f32.mrb[0].mxu0
        %5671 = vmatprep.mubr.f32.mxu0 0.0
        %5672 = vmatmul.mubr.f32.gmra.mrb[0].mxu0 %v5510
        %v5673 = vpop.f32.mrb[0].mxu0
        %v5674 = vadd.f32 0.0, %v5673
        %v5675 = vpop.f32.mrb[0].mxu0
        %5676 = vmatprep.mubr.f32.mxu0 0.0
        %5677 = vmatmul.mubr.f32.gmra.mrb[0].mxu0 %v5511
        %v5678 = vpop.f32.mrb[0].mxu0
        %v5679 = vadd.f32 0.0, %v5678
        %v5680 = vpop.f32.mrb[0].mxu0
        %5681 = vmatprep.mubr.f32.mxu0 0.0
        %5682 = vmatmul.mubr.f32.gmra.mrb[0].mxu0 %v5512
        %v5683 = vpop.f32.mrb[0].mxu0
        %v5684 = vadd.f32 0.0, %v5683
        %v5685 = vpop.f32.mrb[0].mxu0
        %5686 = vmatprep.mubr.f32.mxu0 0.0
        %5687 = vmatmul.mubr.f32.gmra.mrb[0].mxu0 %v5513
        %v5688 = vpop.f32.mrb[0].mxu0
        %v5689 = vadd.f32 0.0, %v5688
        %v5690 = vpop.f32.mrb[0].mxu0
        %5691 = vmatprep.mubr.f32.mxu0 0.0
        %5692 = vmatmul.mubr.f32.gmra.mrb[0].mxu0 %v5514
        %v5693 = vpop.f32.mrb[0].mxu0
        %v5694 = vadd.f32 0.0, %v5693
        %v5695 = vpop.f32.mrb[0].mxu0
        %5696 = vmatprep.mubr.f32.mxu0 0.0
        %5697 = vmatmul.mubr.f32.gmra.mrb[0].mxu0 %v5515
        %v5698 = vpop.f32.mrb[0].mxu0
        %v5699 = vadd.f32 0.0, %v5698
        %v5700 = vpop.f32.mrb[0].mxu0
        %5701 = vmatprep.mubr.f32.mxu0 0.0
        %5702 = vmatmul.mubr.f32.gmra.mrb[0].mxu0 %v5516
        %v5703 = vpop.f32.mrb[0].mxu0
        %v5704 = vadd.f32 0.0, %v5703
        %v5705 = vpop.f32.mrb[0].mxu0
        %5706 = vmatprep.mubr.f32.mxu0 0.0
        %5707 = vmatmul.mubr.f32.gmra.mrb[0].mxu0 %v5517
        %v5708 = vpop.f32.mrb[0].mxu0
        %v5709 = vadd.f32 0.0, %v5708
        %v5710 = vpop.f32.mrb[0].mxu0
        %5711 = vmatprep.mubr.f32.mxu0 0.0
        %5712 = vmatmul.mubr.f32.gmra.mrb[0].mxu0 %v5518
        %v5713 = vpop.f32.mrb[0].mxu0
        %v5714 = vadd.f32 0.0, %v5713
        %v5715 = vpop.f32.mrb[0].mxu0
        %5716 = vmatprep.mubr.f32.mxu0 0.0
        %5717 = vmatmul.mubr.f32.gmra.mrb[0].mxu0 %v5519
        %v5718 = vpop.f32.mrb[0].mxu0
        %v5719 = vadd.f32 0.0, %v5718
        %v5720 = vpop.f32.mrb[0].mxu0
        %5721 = vmatprep.mubr.f32.mxu0 0.0
        %5722 = vmatmul.mubr.f32.gmra.mrb[0].mxu0 %v5520
        %v5723 = vpop.f32.mrb[0].mxu0
        %v5724 = vadd.f32 0.0, %v5723
        %v5725 = vpop.f32.mrb[0].mxu0
        %5726 = vmatprep.mubr.f32.mxu0 0.0
        %5727 = vmatmul.mubr.f32.gmra.mrb[0].mxu0 %v5521
        %v5728 = vpop.f32.mrb[0].mxu0
        %v5729 = vadd.f32 0.0, %v5728
        %v5730 = vpop.f32.mrb[0].mxu0
        %5731 = vmatprep.mubr.f32.mxu0 0.0
        %5732 = vmatmul.mubr.f32.gmra.mrb[0].mxu0 %v5522
        %v5733 = vpop.f32.mrb[0].mxu0
        %v5734 = vadd.f32 0.0, %v5733
        %v5735 = vpop.f32.mrb[0].mxu0
        %5736 = vmatprep.mubr.f32.mxu0 0.0
        %5737 = vmatmul.mubr.f32.gmra.mrb[0].mxu0 %v5523
        %v5738 = vpop.f32.mrb[0].mxu0
        %v5739 = vadd.f32 0.0, %v5738
        %v5740 = vpop.f32.mrb[0].mxu0
        %5741 = vmatprep.mubr.f32.mxu0 0.0
        %5742 = vmatmul.mubr.f32.gmra.mrb[0].mxu0 %v5524
        %v5743 = vpop.f32.mrb[0].mxu0
        %v5744 = vadd.f32 0.0, %v5743
        %v5745 = vpop.f32.mrb[0].mxu0
        %5746 = vmatprep.mubr.f32.mxu0 0.0
        %5747 = vmatmul.mubr.f32.gmra.mrb[0].mxu0 %v5525
        %v5748 = vpop.f32.mrb[0].mxu0
        %v5749 = vadd.f32 0.0, %v5748
        %v5750 = vpop.f32.mrb[0].mxu0
        %5751 = vmatprep.mubr.f32.mxu0 0.0
        %5752 = vmatmul.mubr.f32.gmra.mrb[0].mxu0 %v5526
        %v5753 = vpop.f32.mrb[0].mxu0
        %v5754 = vadd.f32 0.0, %v5753
        %v5755 = vpop.f32.mrb[0].mxu0
        %5756 = vmatprep.mubr.f32.mxu0 0.0
        %5757 = vmatmul.mubr.f32.gmra.mrb[0].mxu0 %v5527
        %v5758 = vpop.f32.mrb[0].mxu0
        %v5759 = vadd.f32 0.0, %v5758
        %v5760 = vpop.f32.mrb[0].mxu0
        %5761 = vmatprep.mubr.f32.mxu0 0.0
        %5762 = vmatmul.mubr.f32.gmra.mrb[0].mxu0 %v5528
        %v5763 = vpop.f32.mrb[0].mxu0
        %v5764 = vadd.f32 0.0, %v5763
        %v5765 = vpop.f32.mrb[0].mxu0
        %5766 = vmatprep.mubr.f32.mxu0 0.0
        %5767 = vmatmul.mubr.f32.gmra.mrb[0].mxu0 %v5529
        %v5768 = vpop.f32.mrb[0].mxu0
        %v5769 = vadd.f32 0.0, %v5768
        %v5770 = vpop.f32.mrb[0].mxu0
        %5771 = vdwg.mxu0
        %v5772 = vadd.f32 %v5466, %v5614
        %v5773 = vadd.f32 %v5467, %v5619
        %v5774 = vadd.f32 %v5468, %v5624
        %v5775 = vadd.f32 %v5469, %v5629
        %v5776 = vadd.f32 %v5470, %v5634
        %v5777 = vadd.f32 %v5471, %v5639
        %v5778 = vadd.f32 %v5472, %v5644
        %v5779 = vadd.f32 %v5473, %v5649
        %v5780 = vadd.f32 %v5474, %v5654
        %v5781 = vadd.f32 %v5475, %v5659
        %v5782 = vadd.f32 %v5476, %v5664
        %v5783 = vadd.f32 %v5477, %v5669
        %v5784 = vadd.f32 %v5478, %v5674
        %v5785 = vadd.f32 %v5479, %v5679
        %v5786 = vadd.f32 %v5480, %v5684
        %v5787 = vadd.f32 %v5481, %v5689
        %v5788 = vadd.f32 %v5482, %v5694
        %v5789 = vadd.f32 %v5483, %v5699
        %v5790 = vadd.f32 %v5484, %v5704
        %v5791 = vadd.f32 %v5485, %v5709
        %v5792 = vadd.f32 %v5486, %v5714
        %v5793 = vadd.f32 %v5487, %v5719
        %v5794 = vadd.f32 %v5488, %v5724
        %v5795 = vadd.f32 %v5489, %v5729
        %v5796 = vadd.f32 %v5490, %v5734
        %v5797 = vadd.f32 %v5491, %v5739
        %v5798 = vadd.f32 %v5492, %v5744
        %v5799 = vadd.f32 %v5493, %v5749
        %v5800 = vadd.f32 %v5494, %v5754
        %v5801 = vadd.f32 %v5495, %v5759
        %v5802 = vadd.f32 %v5496, %v5764
        %v5803 = vadd.f32 %v5497, %v5769
        %s5804 = scalar_lea.vmem [#allocation5], 1
        %v5805 = vld [vmem:[%s5804] sm:$0x1]
        %v5807 = vlaneseq
        %v5808 = vshrl.u32 %v5807, 7
        %v5809 = vsub.s32 0, %v5808
        %v5810 = vrot.slane %v5805, %v5809
        %v5812 = vadd.f32 %v5772, %v5810
        %v5813 = vadd.f32 %v5773, %v5810
        %v5814 = vadd.f32 %v5774, %v5810
        %v5815 = vadd.f32 %v5775, %v5810
        %v5816 = vadd.f32 %v5776, %v5810
        %v5817 = vadd.f32 %v5777, %v5810
        %v5818 = vadd.f32 %v5778, %v5810
        %v5819 = vadd.f32 %v5779, %v5810
        %v5820 = vadd.f32 %v5780, %v5810
        %v5821 = vadd.f32 %v5781, %v5810
        %v5822 = vadd.f32 %v5782, %v5810
        %v5823 = vadd.f32 %v5783, %v5810
        %v5824 = vadd.f32 %v5784, %v5810
        %v5825 = vadd.f32 %v5785, %v5810
        %v5826 = vadd.f32 %v5786, %v5810
        %v5827 = vadd.f32 %v5787, %v5810
        %v5828 = vadd.f32 %v5788, %v5810
        %v5829 = vadd.f32 %v5789, %v5810
        %v5830 = vadd.f32 %v5790, %v5810
        %v5831 = vadd.f32 %v5791, %v5810
        %v5832 = vadd.f32 %v5792, %v5810
        %v5833 = vadd.f32 %v5793, %v5810
        %v5834 = vadd.f32 %v5794, %v5810
        %v5835 = vadd.f32 %v5795, %v5810
        %v5836 = vadd.f32 %v5796, %v5810
        %v5837 = vadd.f32 %v5797, %v5810
        %v5838 = vadd.f32 %v5798, %v5810
        %v5839 = vadd.f32 %v5799, %v5810
        %v5840 = vadd.f32 %v5800, %v5810
        %v5841 = vadd.f32 %v5801, %v5810
        %v5842 = vadd.f32 %v5802, %v5810
        %v5843 = vadd.f32 %v5803, %v5810
        %v5844 = vmax.f32 %v5812, 0.0
        %v5845 = vmax.f32 %v5813, 0.0
        %v5846 = vmax.f32 %v5814, 0.0
        %v5847 = vmax.f32 %v5815, 0.0
        %v5848 = vmax.f32 %v5816, 0.0
        %v5849 = vmax.f32 %v5817, 0.0
        %v5850 = vmax.f32 %v5818, 0.0
        %v5851 = vmax.f32 %v5819, 0.0
        %v5852 = vmax.f32 %v5820, 0.0
        %v5853 = vmax.f32 %v5821, 0.0
        %v5854 = vmax.f32 %v5822, 0.0
        %v5855 = vmax.f32 %v5823, 0.0
        %v5856 = vmax.f32 %v5824, 0.0
        %v5857 = vmax.f32 %v5825, 0.0
        %v5858 = vmax.f32 %v5826, 0.0
        %v5859 = vmax.f32 %v5827, 0.0
        %v5860 = vmax.f32 %v5828, 0.0
        %v5861 = vmax.f32 %v5829, 0.0
        %v5862 = vmax.f32 %v5830, 0.0
        %v5863 = vmax.f32 %v5831, 0.0
        %v5864 = vmax.f32 %v5832, 0.0
        %v5865 = vmax.f32 %v5833, 0.0
        %v5866 = vmax.f32 %v5834, 0.0
        %v5867 = vmax.f32 %v5835, 0.0
        %v5868 = vmax.f32 %v5836, 0.0
        %v5869 = vmax.f32 %v5837, 0.0
        %v5870 = vmax.f32 %v5838, 0.0
        %v5871 = vmax.f32 %v5839, 0.0
        %v5872 = vmax.f32 %v5840, 0.0
        %v5873 = vmax.f32 %v5841, 0.0
        %v5874 = vmax.f32 %v5842, 0.0
        %v5875 = vmax.f32 %v5843, 0.0
        %5876 = vst [vmem:[%s287 + $0x10] sm:$0xff] %v5844
        %5877 = vst [vmem:[%s287 + $0x18] sm:$0xff] %v5845
        %5878 = vst [vmem:[%s287 + $0x40] sm:$0xff] %v5846
        %5879 = vst [vmem:[%s287 + $0x48] sm:$0xff] %v5847
        %5880 = vst [vmem:[%s287 + $0x70] sm:$0xff] %v5848
        %5881 = vst [vmem:[%s287 + $0x78] sm:$0xff] %v5849
        %5882 = vst [vmem:[%s287 + $0xa0] sm:$0xff] %v5850
        %5883 = vst [vmem:[%s287 + $0xa8] sm:$0xff] %v5851
        %5884 = vst [vmem:[%s287 + $0xd0] sm:$0xff] %v5852
        %5885 = vst [vmem:[%s287 + $0xd8] sm:$0xff] %v5853
        %5886 = vst [vmem:[%s287 + $0x100] sm:$0xff] %v5854
        %5887 = vst [vmem:[%s287 + $0x108] sm:$0xff] %v5855
        %5888 = vst [vmem:[%s287 + $0x130] sm:$0xff] %v5856
        %5889 = vst [vmem:[%s287 + $0x138] sm:$0xff] %v5857
        %5890 = vst [vmem:[%s287 + $0x160] sm:$0xff] %v5858
        %5891 = vst [vmem:[%s287 + $0x168] sm:$0xff] %v5859
        %5892 = vst [vmem:[%s287 + $0x190] sm:$0xff] %v5860
        %5893 = vst [vmem:[%s287 + $0x198] sm:$0xff] %v5861
        %5894 = vst [vmem:[%s287 + $0x1c0] sm:$0xff] %v5862
        %5895 = vst [vmem:[%s287 + $0x1c8] sm:$0xff] %v5863
        %5896 = vst [vmem:[%s287 + $0x1f0] sm:$0xff] %v5864
        %5897 = vst [vmem:[%s287 + $0x1f8] sm:$0xff] %v5865
        %5898 = vst [vmem:[%s287 + $0x220] sm:$0xff] %v5866
        %5899 = vst [vmem:[%s287 + $0x228] sm:$0xff] %v5867
        %5900 = vst [vmem:[%s287 + $0x250] sm:$0xff] %v5868
        %5901 = vst [vmem:[%s287 + $0x258] sm:$0xff] %v5869
        %5902 = vst [vmem:[%s287 + $0x280] sm:$0xff] %v5870
        %5903 = vst [vmem:[%s287 + $0x288] sm:$0xff] %v5871
        %5904 = vst [vmem:[%s287 + $0x2b0] sm:$0xff] %v5872
        %5905 = vst [vmem:[%s287 + $0x2b8] sm:$0xff] %v5873
        %5906 = vst [vmem:[%s287 + $0x2e0] sm:$0xff] %v5874
        %5907 = vst [vmem:[%s287 + $0x2e8] sm:$0xff] %v5875
        %v5908 = vld [vmem:[#allocation2 + $0xf] sm:$0xff]
        %v5909 = vld [vmem:[#allocation2 + $0x17] sm:$0xff]
        %v5910 = vld [vmem:[#allocation2 + $0x3f] sm:$0xff]
        %v5911 = vld [vmem:[#allocation2 + $0x47] sm:$0xff]
        %v5912 = vld [vmem:[#allocation2 + $0x6f] sm:$0xff]
        %v5913 = vld [vmem:[#allocation2 + $0x77] sm:$0xff]
        %v5914 = vld [vmem:[#allocation2 + $0x9f] sm:$0xff]
        %v5915 = vld [vmem:[#allocation2 + $0xa7] sm:$0xff]
        %v5916 = vld [vmem:[#allocation2 + $0xcf] sm:$0xff]
        %v5917 = vld [vmem:[#allocation2 + $0xd7] sm:$0xff]
        %v5918 = vld [vmem:[#allocation2 + $0xff] sm:$0xff]
        %v5919 = vld [vmem:[#allocation2 + $0x107] sm:$0xff]
        %v5920 = vld [vmem:[#allocation2 + $0x12f] sm:$0xff]
        %v5921 = vld [vmem:[#allocation2 + $0x137] sm:$0xff]
        %v5922 = vld [vmem:[#allocation2 + $0x15f] sm:$0xff]
        %v5923 = vld [vmem:[#allocation2 + $0x167] sm:$0xff]
        %v5924 = vld [vmem:[#allocation2 + $0x18f] sm:$0xff]
        %v5925 = vld [vmem:[#allocation2 + $0x197] sm:$0xff]
        %v5926 = vld [vmem:[#allocation2 + $0x1bf] sm:$0xff]
        %v5927 = vld [vmem:[#allocation2 + $0x1c7] sm:$0xff]
        %v5928 = vld [vmem:[#allocation2 + $0x1ef] sm:$0xff]
        %v5929 = vld [vmem:[#allocation2 + $0x1f7] sm:$0xff]
        %v5930 = vld [vmem:[#allocation2 + $0x21f] sm:$0xff]
        %v5931 = vld [vmem:[#allocation2 + $0x227] sm:$0xff]
        %v5932 = vld [vmem:[#allocation2 + $0x24f] sm:$0xff]
        %v5933 = vld [vmem:[#allocation2 + $0x257] sm:$0xff]
        %v5934 = vld [vmem:[#allocation2 + $0x27f] sm:$0xff]
        %v5935 = vld [vmem:[#allocation2 + $0x287] sm:$0xff]
        %v5936 = vld [vmem:[#allocation2 + $0x2af] sm:$0xff]
        %v5937 = vld [vmem:[#allocation2 + $0x2b7] sm:$0xff]
        %v5938 = vld [vmem:[#allocation2 + $0x2df] sm:$0xff]
        %v5939 = vld [vmem:[#allocation2 + $0x2e7] sm:$0xff]
        %s5940 = scalar_lea.vmem [#allocation3], 2304
        %v5941 = vld [vmem:[%s5940] sm:$0xff]
        %v5942 = vld [vmem:[%s5940 + $0x8] sm:$0xff]
        %v5943 = vld [vmem:[%s5940 + $0x10] sm:$0xff]
        %v5944 = vld [vmem:[%s5940 + $0x18] sm:$0xff]
        %v5945 = vld [vmem:[%s5940 + $0x20] sm:$0xff]
        %v5946 = vld [vmem:[%s5940 + $0x28] sm:$0xff]
        %v5947 = vld [vmem:[%s5940 + $0x30] sm:$0xff]
        %v5948 = vld [vmem:[%s5940 + $0x38] sm:$0xff]
        %v5949 = vld [vmem:[%s5940 + $0x40] sm:$0xff]
        %v5950 = vld [vmem:[%s5940 + $0x48] sm:$0xff]
        %v5951 = vld [vmem:[%s5940 + $0x50] sm:$0xff]
        %v5952 = vld [vmem:[%s5940 + $0x58] sm:$0xff]
        %v5953 = vld [vmem:[%s5940 + $0x60] sm:$0xff]
        %v5954 = vld [vmem:[%s5940 + $0x68] sm:$0xff]
        %v5955 = vld [vmem:[%s5940 + $0x70] sm:$0xff]
        %v5956 = vld [vmem:[%s5940 + $0x78] sm:$0xff]
        %v5957 = vld [vmem:[#allocation2 + $0x10] sm:$0xff]
        %v5958 = vld [vmem:[#allocation2 + $0x18] sm:$0xff]
        %v5959 = vld [vmem:[#allocation2 + $0x40] sm:$0xff]
        %v5960 = vld [vmem:[#allocation2 + $0x48] sm:$0xff]
        %v5961 = vld [vmem:[#allocation2 + $0x70] sm:$0xff]
        %v5962 = vld [vmem:[#allocation2 + $0x78] sm:$0xff]
        %v5963 = vld [vmem:[#allocation2 + $0xa0] sm:$0xff]
        %v5964 = vld [vmem:[#allocation2 + $0xa8] sm:$0xff]
        %v5965 = vld [vmem:[#allocation2 + $0xd0] sm:$0xff]
        %v5966 = vld [vmem:[#allocation2 + $0xd8] sm:$0xff]
        %v5967 = vld [vmem:[#allocation2 + $0x100] sm:$0xff]
        %v5968 = vld [vmem:[#allocation2 + $0x108] sm:$0xff]
        %v5969 = vld [vmem:[#allocation2 + $0x130] sm:$0xff]
        %v5970 = vld [vmem:[#allocation2 + $0x138] sm:$0xff]
        %v5971 = vld [vmem:[#allocation2 + $0x160] sm:$0xff]
        %v5972 = vld [vmem:[#allocation2 + $0x168] sm:$0xff]
        %v5973 = vld [vmem:[#allocation2 + $0x190] sm:$0xff]
        %v5974 = vld [vmem:[#allocation2 + $0x198] sm:$0xff]
        %v5975 = vld [vmem:[#allocation2 + $0x1c0] sm:$0xff]
        %v5976 = vld [vmem:[#allocation2 + $0x1c8] sm:$0xff]
        %v5977 = vld [vmem:[#allocation2 + $0x1f0] sm:$0xff]
        %v5978 = vld [vmem:[#allocation2 + $0x1f8] sm:$0xff]
        %v5979 = vld [vmem:[#allocation2 + $0x220] sm:$0xff]
        %v5980 = vld [vmem:[#allocation2 + $0x228] sm:$0xff]
        %v5981 = vld [vmem:[#allocation2 + $0x250] sm:$0xff]
        %v5982 = vld [vmem:[#allocation2 + $0x258] sm:$0xff]
        %v5983 = vld [vmem:[#allocation2 + $0x280] sm:$0xff]
        %v5984 = vld [vmem:[#allocation2 + $0x288] sm:$0xff]
        %v5985 = vld [vmem:[#allocation2 + $0x2b0] sm:$0xff]
        %v5986 = vld [vmem:[#allocation2 + $0x2b8] sm:$0xff]
        %v5987 = vld [vmem:[#allocation2 + $0x2e0] sm:$0xff]
        %v5988 = vld [vmem:[#allocation2 + $0x2e8] sm:$0xff]
        %s5989 = scalar_lea.vmem [#allocation3], 2432
        %v5990 = vld [vmem:[%s5989] sm:$0xff]
        %v5991 = vld [vmem:[%s5989 + $0x8] sm:$0xff]
        %v5992 = vld [vmem:[%s5989 + $0x10] sm:$0xff]
        %v5993 = vld [vmem:[%s5989 + $0x18] sm:$0xff]
        %v5994 = vld [vmem:[%s5989 + $0x20] sm:$0xff]
        %v5995 = vld [vmem:[%s5989 + $0x28] sm:$0xff]
        %v5996 = vld [vmem:[%s5989 + $0x30] sm:$0xff]
        %v5997 = vld [vmem:[%s5989 + $0x38] sm:$0xff]
        %v5998 = vld [vmem:[%s5989 + $0x40] sm:$0xff]
        %v5999 = vld [vmem:[%s5989 + $0x48] sm:$0xff]
        %v6000 = vld [vmem:[%s5989 + $0x50] sm:$0xff]
        %v6001 = vld [vmem:[%s5989 + $0x58] sm:$0xff]
        %v6002 = vld [vmem:[%s5989 + $0x60] sm:$0xff]
        %v6003 = vld [vmem:[%s5989 + $0x68] sm:$0xff]
        %v6004 = vld [vmem:[%s5989 + $0x70] sm:$0xff]
        %v6005 = vld [vmem:[%s5989 + $0x78] sm:$0xff]
        %6006 = vmatprep.subr.mxu0 0.0
        %6007 = vmatpush1.msra.mxu0 %v5990
        %6008 = vmatprep.subr.mxu0 0.0
        %6009 = vmatpush1.msra.mxu0 %v5991
        %6010 = vmatprep.subr.mxu0 0.0
        %6011 = vmatpush1.msra.mxu0 %v5992
        %6012 = vmatprep.subr.mxu0 0.0
        %6013 = vmatpush1.msra.mxu0 %v5993
        %6014 = vmatprep.subr.mxu0 0.0
        %6015 = vmatpush1.msra.mxu0 %v5994
        %6016 = vmatprep.subr.mxu0 0.0
        %6017 = vmatpush1.msra.mxu0 %v5995
        %6018 = vmatprep.subr.mxu0 0.0
        %6019 = vmatpush1.msra.mxu0 %v5996
        %6020 = vmatprep.subr.mxu0 0.0
        %6021 = vmatpush1.msra.mxu0 %v5997
        %6022 = vmatprep.subr.mxu0 0.0
        %6023 = vmatpush1.msra.mxu0 %v5998
        %6024 = vmatprep.subr.mxu0 0.0
        %6025 = vmatpush1.msra.mxu0 %v5999
        %6026 = vmatprep.subr.mxu0 0.0
        %6027 = vmatpush1.msra.mxu0 %v6000
        %6028 = vmatprep.subr.mxu0 0.0
        %6029 = vmatpush1.msra.mxu0 %v6001
        %6030 = vmatprep.subr.mxu0 0.0
        %6031 = vmatpush1.msra.mxu0 %v6002
        %6032 = vmatprep.subr.mxu0 0.0
        %6033 = vmatpush1.msra.mxu0 %v6003
        %6034 = vmatprep.subr.mxu0 0.0
        %6035 = vmatpush1.msra.mxu0 %v6004
        %6036 = vmatprep.subr.mxu0 0.0
        %6037 = vmatpush1.msra.mxu0 %v6005
        %6038 = vmatprep.subr.mxu0 0.0
        %6039 = vmatpush1.msra.mxu0 0.0
        %6040 = vmatprep.subr.mxu0 0.0
        %6041 = vmatpush1.msra.mxu0 0.0
        %6042 = vmatprep.subr.mxu0 0.0
        %6043 = vmatpush1.msra.mxu0 0.0
        %6044 = vmatprep.subr.mxu0 0.0
        %6045 = vmatpush1.msra.mxu0 0.0
        %6046 = vmatprep.subr.mxu0 0.0
        %6047 = vmatpush1.msra.mxu0 0.0
        %6048 = vmatprep.subr.mxu0 0.0
        %6049 = vmatpush1.msra.mxu0 0.0
        %6050 = vmatprep.subr.mxu0 0.0
        %6051 = vmatpush1.msra.mxu0 0.0
        %6052 = vmatprep.subr.mxu0 0.0
        %6053 = vmatpush1.msra.mxu0 0.0
        %6054 = vmatprep.subr.mxu0 0.0
        %6055 = vmatpush1.msra.mxu0 0.0
        %6056 = vmatprep.subr.mxu0 0.0
        %6057 = vmatpush1.msra.mxu0 0.0
        %6058 = vmatprep.subr.mxu0 0.0
        %6059 = vmatpush1.msra.mxu0 0.0
        %6060 = vmatprep.subr.mxu0 0.0
        %6061 = vmatpush1.msra.mxu0 0.0
        %6062 = vmatprep.subr.mxu0 0.0
        %6063 = vmatpush1.msra.mxu0 0.0
        %6064 = vmatprep.subr.mxu0 0.0
        %6065 = vmatpush1.msra.mxu0 0.0
        %6066 = vmatprep.subr.mxu0 0.0
        %6067 = vmatpush1.msra.mxu0 0.0
        %6068 = vmatprep.subr.mxu0 0.0
        %6069 = vmatpush1.msra.mxu0 0.0
        %6070 = vmatprep.mubr.f32.mxu0 0.0
        %6071 = vmatmul.mubr.f32.gmra.mrb[0].mxu0 %v5957
        %v6072 = vpop.f32.mrb[0].mxu0
        %v6073 = vadd.f32 0.0, %v6072
        %v6074 = vpop.f32.mrb[0].mxu0
        %6075 = vmatprep.mubr.f32.mxu0 0.0
        %6076 = vmatmul.mubr.f32.gmra.mrb[0].mxu0 %v5958
        %v6077 = vpop.f32.mrb[0].mxu0
        %v6078 = vadd.f32 0.0, %v6077
        %v6079 = vpop.f32.mrb[0].mxu0
        %6080 = vmatprep.mubr.f32.mxu0 0.0
        %6081 = vmatmul.mubr.f32.gmra.mrb[0].mxu0 %v5959
        %v6082 = vpop.f32.mrb[0].mxu0
        %v6083 = vadd.f32 0.0, %v6082
        %v6084 = vpop.f32.mrb[0].mxu0
        %6085 = vmatprep.mubr.f32.mxu0 0.0
        %6086 = vmatmul.mubr.f32.gmra.mrb[0].mxu0 %v5960
        %v6087 = vpop.f32.mrb[0].mxu0
        %v6088 = vadd.f32 0.0, %v6087
        %v6089 = vpop.f32.mrb[0].mxu0
        %6090 = vmatprep.mubr.f32.mxu0 0.0
        %6091 = vmatmul.mubr.f32.gmra.mrb[0].mxu0 %v5961
        %v6092 = vpop.f32.mrb[0].mxu0
        %v6093 = vadd.f32 0.0, %v6092
        %v6094 = vpop.f32.mrb[0].mxu0
        %6095 = vmatprep.mubr.f32.mxu0 0.0
        %6096 = vmatmul.mubr.f32.gmra.mrb[0].mxu0 %v5962
        %v6097 = vpop.f32.mrb[0].mxu0
        %v6098 = vadd.f32 0.0, %v6097
        %v6099 = vpop.f32.mrb[0].mxu0
        %6100 = vmatprep.mubr.f32.mxu0 0.0
        %6101 = vmatmul.mubr.f32.gmra.mrb[0].mxu0 %v5963
        %v6102 = vpop.f32.mrb[0].mxu0
        %v6103 = vadd.f32 0.0, %v6102
        %v6104 = vpop.f32.mrb[0].mxu0
        %6105 = vmatprep.mubr.f32.mxu0 0.0
        %6106 = vmatmul.mubr.f32.gmra.mrb[0].mxu0 %v5964
        %v6107 = vpop.f32.mrb[0].mxu0
        %v6108 = vadd.f32 0.0, %v6107
        %v6109 = vpop.f32.mrb[0].mxu0
        %6110 = vmatprep.mubr.f32.mxu0 0.0
        %6111 = vmatmul.mubr.f32.gmra.mrb[0].mxu0 %v5965
        %v6112 = vpop.f32.mrb[0].mxu0
        %v6113 = vadd.f32 0.0, %v6112
        %v6114 = vpop.f32.mrb[0].mxu0
        %6115 = vmatprep.mubr.f32.mxu0 0.0
        %6116 = vmatmul.mubr.f32.gmra.mrb[0].mxu0 %v5966
        %v6117 = vpop.f32.mrb[0].mxu0
        %v6118 = vadd.f32 0.0, %v6117
        %v6119 = vpop.f32.mrb[0].mxu0
        %6120 = vmatprep.mubr.f32.mxu0 0.0
        %6121 = vmatmul.mubr.f32.gmra.mrb[0].mxu0 %v5967
        %v6122 = vpop.f32.mrb[0].mxu0
        %v6123 = vadd.f32 0.0, %v6122
        %v6124 = vpop.f32.mrb[0].mxu0
        %6125 = vmatprep.mubr.f32.mxu0 0.0
        %6126 = vmatmul.mubr.f32.gmra.mrb[0].mxu0 %v5968
        %v6127 = vpop.f32.mrb[0].mxu0
        %v6128 = vadd.f32 0.0, %v6127
        %v6129 = vpop.f32.mrb[0].mxu0
        %6130 = vmatprep.mubr.f32.mxu0 0.0
        %6131 = vmatmul.mubr.f32.gmra.mrb[0].mxu0 %v5969
        %v6132 = vpop.f32.mrb[0].mxu0
        %v6133 = vadd.f32 0.0, %v6132
        %v6134 = vpop.f32.mrb[0].mxu0
        %6135 = vmatprep.mubr.f32.mxu0 0.0
        %6136 = vmatmul.mubr.f32.gmra.mrb[0].mxu0 %v5970
        %v6137 = vpop.f32.mrb[0].mxu0
        %v6138 = vadd.f32 0.0, %v6137
        %v6139 = vpop.f32.mrb[0].mxu0
        %6140 = vmatprep.mubr.f32.mxu0 0.0
        %6141 = vmatmul.mubr.f32.gmra.mrb[0].mxu0 %v5971
        %v6142 = vpop.f32.mrb[0].mxu0
        %v6143 = vadd.f32 0.0, %v6142
        %v6144 = vpop.f32.mrb[0].mxu0
        %6145 = vmatprep.mubr.f32.mxu0 0.0
        %6146 = vmatmul.mubr.f32.gmra.mrb[0].mxu0 %v5972
        %v6147 = vpop.f32.mrb[0].mxu0
        %v6148 = vadd.f32 0.0, %v6147
        %v6149 = vpop.f32.mrb[0].mxu0
        %6150 = vmatprep.mubr.f32.mxu0 0.0
        %6151 = vmatmul.mubr.f32.gmra.mrb[0].mxu0 %v5973
        %v6152 = vpop.f32.mrb[0].mxu0
        %v6153 = vadd.f32 0.0, %v6152
        %v6154 = vpop.f32.mrb[0].mxu0
        %6155 = vmatprep.mubr.f32.mxu0 0.0
        %6156 = vmatmul.mubr.f32.gmra.mrb[0].mxu0 %v5974
        %v6157 = vpop.f32.mrb[0].mxu0
        %v6158 = vadd.f32 0.0, %v6157
        %v6159 = vpop.f32.mrb[0].mxu0
        %6160 = vmatprep.mubr.f32.mxu0 0.0
        %6161 = vmatmul.mubr.f32.gmra.mrb[0].mxu0 %v5975
        %v6162 = vpop.f32.mrb[0].mxu0
        %v6163 = vadd.f32 0.0, %v6162
        %v6164 = vpop.f32.mrb[0].mxu0
        %6165 = vmatprep.mubr.f32.mxu0 0.0
        %6166 = vmatmul.mubr.f32.gmra.mrb[0].mxu0 %v5976
        %v6167 = vpop.f32.mrb[0].mxu0
        %v6168 = vadd.f32 0.0, %v6167
        %v6169 = vpop.f32.mrb[0].mxu0
        %6170 = vmatprep.mubr.f32.mxu0 0.0
        %6171 = vmatmul.mubr.f32.gmra.mrb[0].mxu0 %v5977
        %v6172 = vpop.f32.mrb[0].mxu0
        %v6173 = vadd.f32 0.0, %v6172
        %v6174 = vpop.f32.mrb[0].mxu0
        %6175 = vmatprep.mubr.f32.mxu0 0.0
        %6176 = vmatmul.mubr.f32.gmra.mrb[0].mxu0 %v5978
        %v6177 = vpop.f32.mrb[0].mxu0
        %v6178 = vadd.f32 0.0, %v6177
        %v6179 = vpop.f32.mrb[0].mxu0
        %6180 = vmatprep.mubr.f32.mxu0 0.0
        %6181 = vmatmul.mubr.f32.gmra.mrb[0].mxu0 %v5979
        %v6182 = vpop.f32.mrb[0].mxu0
        %v6183 = vadd.f32 0.0, %v6182
        %v6184 = vpop.f32.mrb[0].mxu0
        %6185 = vmatprep.mubr.f32.mxu0 0.0
        %6186 = vmatmul.mubr.f32.gmra.mrb[0].mxu0 %v5980
        %v6187 = vpop.f32.mrb[0].mxu0
        %v6188 = vadd.f32 0.0, %v6187
        %v6189 = vpop.f32.mrb[0].mxu0
        %6190 = vmatprep.mubr.f32.mxu0 0.0
        %6191 = vmatmul.mubr.f32.gmra.mrb[0].mxu0 %v5981
        %v6192 = vpop.f32.mrb[0].mxu0
        %v6193 = vadd.f32 0.0, %v6192
        %v6194 = vpop.f32.mrb[0].mxu0
        %6195 = vmatprep.mubr.f32.mxu0 0.0
        %6196 = vmatmul.mubr.f32.gmra.mrb[0].mxu0 %v5982
        %v6197 = vpop.f32.mrb[0].mxu0
        %v6198 = vadd.f32 0.0, %v6197
        %v6199 = vpop.f32.mrb[0].mxu0
        %6200 = vmatprep.mubr.f32.mxu0 0.0
        %6201 = vmatmul.mubr.f32.gmra.mrb[0].mxu0 %v5983
        %v6202 = vpop.f32.mrb[0].mxu0
        %v6203 = vadd.f32 0.0, %v6202
        %v6204 = vpop.f32.mrb[0].mxu0
        %6205 = vmatprep.mubr.f32.mxu0 0.0
        %6206 = vmatmul.mubr.f32.gmra.mrb[0].mxu0 %v5984
        %v6207 = vpop.f32.mrb[0].mxu0
        %v6208 = vadd.f32 0.0, %v6207
        %v6209 = vpop.f32.mrb[0].mxu0
        %6210 = vmatprep.mubr.f32.mxu0 0.0
        %6211 = vmatmul.mubr.f32.gmra.mrb[0].mxu0 %v5985
        %v6212 = vpop.f32.mrb[0].mxu0
        %v6213 = vadd.f32 0.0, %v6212
        %v6214 = vpop.f32.mrb[0].mxu0
        %6215 = vmatprep.mubr.f32.mxu0 0.0
        %6216 = vmatmul.mubr.f32.gmra.mrb[0].mxu0 %v5986
        %v6217 = vpop.f32.mrb[0].mxu0
        %v6218 = vadd.f32 0.0, %v6217
        %v6219 = vpop.f32.mrb[0].mxu0
        %6220 = vmatprep.mubr.f32.mxu0 0.0
        %6221 = vmatmul.mubr.f32.gmra.mrb[0].mxu0 %v5987
        %v6222 = vpop.f32.mrb[0].mxu0
        %v6223 = vadd.f32 0.0, %v6222
        %v6224 = vpop.f32.mrb[0].mxu0
        %6225 = vmatprep.mubr.f32.mxu0 0.0
        %6226 = vmatmul.mubr.f32.gmra.mrb[0].mxu0 %v5988
        %v6227 = vpop.f32.mrb[0].mxu0
        %v6228 = vadd.f32 0.0, %v6227
        %v6229 = vpop.f32.mrb[0].mxu0
        %6230 = vdwg.mxu0
        %6231 = vmatprep.subr.mxu0 0.0
        %6232 = vmatpush1.msra.mxu0 %v5941
        %6233 = vmatprep.subr.mxu0 0.0
        %6234 = vmatpush1.msra.mxu0 %v5942
        %6235 = vmatprep.subr.mxu0 0.0
        %6236 = vmatpush1.msra.mxu0 %v5943
        %6237 = vmatprep.subr.mxu0 0.0
        %6238 = vmatpush1.msra.mxu0 %v5944
        %6239 = vmatprep.subr.mxu0 0.0
        %6240 = vmatpush1.msra.mxu0 %v5945
        %6241 = vmatprep.subr.mxu0 0.0
        %6242 = vmatpush1.msra.mxu0 %v5946
        %6243 = vmatprep.subr.mxu0 0.0
        %6244 = vmatpush1.msra.mxu0 %v5947
        %6245 = vmatprep.subr.mxu0 0.0
        %6246 = vmatpush1.msra.mxu0 %v5948
        %6247 = vmatprep.subr.mxu0 0.0
        %6248 = vmatpush1.msra.mxu0 %v5949
        %6249 = vmatprep.subr.mxu0 0.0
        %6250 = vmatpush1.msra.mxu0 %v5950
        %6251 = vmatprep.subr.mxu0 0.0
        %6252 = vmatpush1.msra.mxu0 %v5951
        %6253 = vmatprep.subr.mxu0 0.0
        %6254 = vmatpush1.msra.mxu0 %v5952
        %6255 = vmatprep.subr.mxu0 0.0
        %6256 = vmatpush1.msra.mxu0 %v5953
        %6257 = vmatprep.subr.mxu0 0.0
        %6258 = vmatpush1.msra.mxu0 %v5954
        %6259 = vmatprep.subr.mxu0 0.0
        %6260 = vmatpush1.msra.mxu0 %v5955
        %6261 = vmatprep.subr.mxu0 0.0
        %6262 = vmatpush1.msra.mxu0 %v5956
        %6263 = vmatprep.subr.mxu0 0.0
        %6264 = vmatpush1.msra.mxu0 0.0
        %6265 = vmatprep.subr.mxu0 0.0
        %6266 = vmatpush1.msra.mxu0 0.0
        %6267 = vmatprep.subr.mxu0 0.0
        %6268 = vmatpush1.msra.mxu0 0.0
        %6269 = vmatprep.subr.mxu0 0.0
        %6270 = vmatpush1.msra.mxu0 0.0
        %6271 = vmatprep.subr.mxu0 0.0
        %6272 = vmatpush1.msra.mxu0 0.0
        %6273 = vmatprep.subr.mxu0 0.0
        %6274 = vmatpush1.msra.mxu0 0.0
        %6275 = vmatprep.subr.mxu0 0.0
        %6276 = vmatpush1.msra.mxu0 0.0
        %6277 = vmatprep.subr.mxu0 0.0
        %6278 = vmatpush1.msra.mxu0 0.0
        %6279 = vmatprep.subr.mxu0 0.0
        %6280 = vmatpush1.msra.mxu0 0.0
        %6281 = vmatprep.subr.mxu0 0.0
        %6282 = vmatpush1.msra.mxu0 0.0
        %6283 = vmatprep.subr.mxu0 0.0
        %6284 = vmatpush1.msra.mxu0 0.0
        %6285 = vmatprep.subr.mxu0 0.0
        %6286 = vmatpush1.msra.mxu0 0.0
        %6287 = vmatprep.subr.mxu0 0.0
        %6288 = vmatpush1.msra.mxu0 0.0
        %6289 = vmatprep.subr.mxu0 0.0
        %6290 = vmatpush1.msra.mxu0 0.0
        %6291 = vmatprep.subr.mxu0 0.0
        %6292 = vmatpush1.msra.mxu0 0.0
        %6293 = vmatprep.subr.mxu0 0.0
        %6294 = vmatpush1.msra.mxu0 0.0
        %6295 = vmatprep.mubr.f32.mxu0 0.0
        %6296 = vmatmul.mubr.f32.gmra.mrb[0].mxu0 %v5908
        %v6297 = vpop.f32.mrb[0].mxu0
        %v6298 = vadd.f32 %v6073, %v6297
        %v6299 = vpop.f32.mrb[0].mxu0
        %6300 = vmatprep.mubr.f32.mxu0 0.0
        %6301 = vmatmul.mubr.f32.gmra.mrb[0].mxu0 %v5909
        %v6302 = vpop.f32.mrb[0].mxu0
        %v6303 = vadd.f32 %v6078, %v6302
        %v6304 = vpop.f32.mrb[0].mxu0
        %6305 = vmatprep.mubr.f32.mxu0 0.0
        %6306 = vmatmul.mubr.f32.gmra.mrb[0].mxu0 %v5910
        %v6307 = vpop.f32.mrb[0].mxu0
        %v6308 = vadd.f32 %v6083, %v6307
        %v6309 = vpop.f32.mrb[0].mxu0
        %6310 = vmatprep.mubr.f32.mxu0 0.0
        %6311 = vmatmul.mubr.f32.gmra.mrb[0].mxu0 %v5911
        %v6312 = vpop.f32.mrb[0].mxu0
        %v6313 = vadd.f32 %v6088, %v6312
        %v6314 = vpop.f32.mrb[0].mxu0
        %6315 = vmatprep.mubr.f32.mxu0 0.0
        %6316 = vmatmul.mubr.f32.gmra.mrb[0].mxu0 %v5912
        %v6317 = vpop.f32.mrb[0].mxu0
        %v6318 = vadd.f32 %v6093, %v6317
        %v6319 = vpop.f32.mrb[0].mxu0
        %6320 = vmatprep.mubr.f32.mxu0 0.0
        %6321 = vmatmul.mubr.f32.gmra.mrb[0].mxu0 %v5913
        %v6322 = vpop.f32.mrb[0].mxu0
        %v6323 = vadd.f32 %v6098, %v6322
        %v6324 = vpop.f32.mrb[0].mxu0
        %6325 = vmatprep.mubr.f32.mxu0 0.0
        %6326 = vmatmul.mubr.f32.gmra.mrb[0].mxu0 %v5914
        %v6327 = vpop.f32.mrb[0].mxu0
        %v6328 = vadd.f32 %v6103, %v6327
        %v6329 = vpop.f32.mrb[0].mxu0
        %6330 = vmatprep.mubr.f32.mxu0 0.0
        %6331 = vmatmul.mubr.f32.gmra.mrb[0].mxu0 %v5915
        %v6332 = vpop.f32.mrb[0].mxu0
        %v6333 = vadd.f32 %v6108, %v6332
        %v6334 = vpop.f32.mrb[0].mxu0
        %6335 = vmatprep.mubr.f32.mxu0 0.0
        %6336 = vmatmul.mubr.f32.gmra.mrb[0].mxu0 %v5916
        %v6337 = vpop.f32.mrb[0].mxu0
        %v6338 = vadd.f32 %v6113, %v6337
        %v6339 = vpop.f32.mrb[0].mxu0
        %6340 = vmatprep.mubr.f32.mxu0 0.0
        %6341 = vmatmul.mubr.f32.gmra.mrb[0].mxu0 %v5917
        %v6342 = vpop.f32.mrb[0].mxu0
        %v6343 = vadd.f32 %v6118, %v6342
        %v6344 = vpop.f32.mrb[0].mxu0
        %6345 = vmatprep.mubr.f32.mxu0 0.0
        %6346 = vmatmul.mubr.f32.gmra.mrb[0].mxu0 %v5918
        %v6347 = vpop.f32.mrb[0].mxu0
        %v6348 = vadd.f32 %v6123, %v6347
        %v6349 = vpop.f32.mrb[0].mxu0
        %6350 = vmatprep.mubr.f32.mxu0 0.0
        %6351 = vmatmul.mubr.f32.gmra.mrb[0].mxu0 %v5919
        %v6352 = vpop.f32.mrb[0].mxu0
        %v6353 = vadd.f32 %v6128, %v6352
        %v6354 = vpop.f32.mrb[0].mxu0
        %6355 = vmatprep.mubr.f32.mxu0 0.0
        %6356 = vmatmul.mubr.f32.gmra.mrb[0].mxu0 %v5920
        %v6357 = vpop.f32.mrb[0].mxu0
        %v6358 = vadd.f32 %v6133, %v6357
        %v6359 = vpop.f32.mrb[0].mxu0
        %6360 = vmatprep.mubr.f32.mxu0 0.0
        %6361 = vmatmul.mubr.f32.gmra.mrb[0].mxu0 %v5921
        %v6362 = vpop.f32.mrb[0].mxu0
        %v6363 = vadd.f32 %v6138, %v6362
        %v6364 = vpop.f32.mrb[0].mxu0
        %6365 = vmatprep.mubr.f32.mxu0 0.0
        %6366 = vmatmul.mubr.f32.gmra.mrb[0].mxu0 %v5922
        %v6367 = vpop.f32.mrb[0].mxu0
        %v6368 = vadd.f32 %v6143, %v6367
        %v6369 = vpop.f32.mrb[0].mxu0
        %6370 = vmatprep.mubr.f32.mxu0 0.0
        %6371 = vmatmul.mubr.f32.gmra.mrb[0].mxu0 %v5923
        %v6372 = vpop.f32.mrb[0].mxu0
        %v6373 = vadd.f32 %v6148, %v6372
        %v6374 = vpop.f32.mrb[0].mxu0
        %6375 = vmatprep.mubr.f32.mxu0 0.0
        %6376 = vmatmul.mubr.f32.gmra.mrb[0].mxu0 %v5924
        %v6377 = vpop.f32.mrb[0].mxu0
        %v6378 = vadd.f32 %v6153, %v6377
        %v6379 = vpop.f32.mrb[0].mxu0
        %6380 = vmatprep.mubr.f32.mxu0 0.0
        %6381 = vmatmul.mubr.f32.gmra.mrb[0].mxu0 %v5925
        %v6382 = vpop.f32.mrb[0].mxu0
        %v6383 = vadd.f32 %v6158, %v6382
        %v6384 = vpop.f32.mrb[0].mxu0
        %6385 = vmatprep.mubr.f32.mxu0 0.0
        %6386 = vmatmul.mubr.f32.gmra.mrb[0].mxu0 %v5926
        %v6387 = vpop.f32.mrb[0].mxu0
        %v6388 = vadd.f32 %v6163, %v6387
        %v6389 = vpop.f32.mrb[0].mxu0
        %6390 = vmatprep.mubr.f32.mxu0 0.0
        %6391 = vmatmul.mubr.f32.gmra.mrb[0].mxu0 %v5927
        %v6392 = vpop.f32.mrb[0].mxu0
        %v6393 = vadd.f32 %v6168, %v6392
        %v6394 = vpop.f32.mrb[0].mxu0
        %6395 = vmatprep.mubr.f32.mxu0 0.0
        %6396 = vmatmul.mubr.f32.gmra.mrb[0].mxu0 %v5928
        %v6397 = vpop.f32.mrb[0].mxu0
        %v6398 = vadd.f32 %v6173, %v6397
        %v6399 = vpop.f32.mrb[0].mxu0
        %6400 = vmatprep.mubr.f32.mxu0 0.0
        %6401 = vmatmul.mubr.f32.gmra.mrb[0].mxu0 %v5929
        %v6402 = vpop.f32.mrb[0].mxu0
        %v6403 = vadd.f32 %v6178, %v6402
        %v6404 = vpop.f32.mrb[0].mxu0
        %6405 = vmatprep.mubr.f32.mxu0 0.0
        %6406 = vmatmul.mubr.f32.gmra.mrb[0].mxu0 %v5930
        %v6407 = vpop.f32.mrb[0].mxu0
        %v6408 = vadd.f32 %v6183, %v6407
        %v6409 = vpop.f32.mrb[0].mxu0
        %6410 = vmatprep.mubr.f32.mxu0 0.0
        %6411 = vmatmul.mubr.f32.gmra.mrb[0].mxu0 %v5931
        %v6412 = vpop.f32.mrb[0].mxu0
        %v6413 = vadd.f32 %v6188, %v6412
        %v6414 = vpop.f32.mrb[0].mxu0
        %6415 = vmatprep.mubr.f32.mxu0 0.0
        %6416 = vmatmul.mubr.f32.gmra.mrb[0].mxu0 %v5932
        %v6417 = vpop.f32.mrb[0].mxu0
        %v6418 = vadd.f32 %v6193, %v6417
        %v6419 = vpop.f32.mrb[0].mxu0
        %6420 = vmatprep.mubr.f32.mxu0 0.0
        %6421 = vmatmul.mubr.f32.gmra.mrb[0].mxu0 %v5933
        %v6422 = vpop.f32.mrb[0].mxu0
        %v6423 = vadd.f32 %v6198, %v6422
        %v6424 = vpop.f32.mrb[0].mxu0
        %6425 = vmatprep.mubr.f32.mxu0 0.0
        %6426 = vmatmul.mubr.f32.gmra.mrb[0].mxu0 %v5934
        %v6427 = vpop.f32.mrb[0].mxu0
        %v6428 = vadd.f32 %v6203, %v6427
        %v6429 = vpop.f32.mrb[0].mxu0
        %6430 = vmatprep.mubr.f32.mxu0 0.0
        %6431 = vmatmul.mubr.f32.gmra.mrb[0].mxu0 %v5935
        %v6432 = vpop.f32.mrb[0].mxu0
        %v6433 = vadd.f32 %v6208, %v6432
        %v6434 = vpop.f32.mrb[0].mxu0
        %6435 = vmatprep.mubr.f32.mxu0 0.0
        %6436 = vmatmul.mubr.f32.gmra.mrb[0].mxu0 %v5936
        %v6437 = vpop.f32.mrb[0].mxu0
        %v6438 = vadd.f32 %v6213, %v6437
        %v6439 = vpop.f32.mrb[0].mxu0
        %6440 = vmatprep.mubr.f32.mxu0 0.0
        %6441 = vmatmul.mubr.f32.gmra.mrb[0].mxu0 %v5937
        %v6442 = vpop.f32.mrb[0].mxu0
        %v6443 = vadd.f32 %v6218, %v6442
        %v6444 = vpop.f32.mrb[0].mxu0
        %6445 = vmatprep.mubr.f32.mxu0 0.0
        %6446 = vmatmul.mubr.f32.gmra.mrb[0].mxu0 %v5938
        %v6447 = vpop.f32.mrb[0].mxu0
        %v6448 = vadd.f32 %v6223, %v6447
        %v6449 = vpop.f32.mrb[0].mxu0
        %6450 = vmatprep.mubr.f32.mxu0 0.0
        %6451 = vmatmul.mubr.f32.gmra.mrb[0].mxu0 %v5939
        %v6452 = vpop.f32.mrb[0].mxu0
        %v6453 = vadd.f32 %v6228, %v6452
        %v6454 = vpop.f32.mrb[0].mxu0
        %6455 = vdwg.mxu0
        %v6456 = vld [vmem:[#allocation2 + $0x11] sm:$0xff]
        %v6457 = vld [vmem:[#allocation2 + $0x19] sm:$0xff]
        %v6458 = vld [vmem:[#allocation2 + $0x41] sm:$0xff]
        %v6459 = vld [vmem:[#allocation2 + $0x49] sm:$0xff]
        %v6460 = vld [vmem:[#allocation2 + $0x71] sm:$0xff]
        %v6461 = vld [vmem:[#allocation2 + $0x79] sm:$0xff]
        %v6462 = vld [vmem:[#allocation2 + $0xa1] sm:$0xff]
        %v6463 = vld [vmem:[#allocation2 + $0xa9] sm:$0xff]
        %v6464 = vld [vmem:[#allocation2 + $0xd1] sm:$0xff]
        %v6465 = vld [vmem:[#allocation2 + $0xd9] sm:$0xff]
        %v6466 = vld [vmem:[#allocation2 + $0x101] sm:$0xff]
        %v6467 = vld [vmem:[#allocation2 + $0x109] sm:$0xff]
        %v6468 = vld [vmem:[#allocation2 + $0x131] sm:$0xff]
        %v6469 = vld [vmem:[#allocation2 + $0x139] sm:$0xff]
        %v6470 = vld [vmem:[#allocation2 + $0x161] sm:$0xff]
        %v6471 = vld [vmem:[#allocation2 + $0x169] sm:$0xff]
        %v6472 = vld [vmem:[#allocation2 + $0x191] sm:$0xff]
        %v6473 = vld [vmem:[#allocation2 + $0x199] sm:$0xff]
        %v6474 = vld [vmem:[#allocation2 + $0x1c1] sm:$0xff]
        %v6475 = vld [vmem:[#allocation2 + $0x1c9] sm:$0xff]
        %v6476 = vld [vmem:[#allocation2 + $0x1f1] sm:$0xff]
        %v6477 = vld [vmem:[#allocation2 + $0x1f9] sm:$0xff]
        %v6478 = vld [vmem:[#allocation2 + $0x221] sm:$0xff]
        %v6479 = vld [vmem:[#allocation2 + $0x229] sm:$0xff]
        %v6480 = vld [vmem:[#allocation2 + $0x251] sm:$0xff]
        %v6481 = vld [vmem:[#allocation2 + $0x259] sm:$0xff]
        %v6482 = vld [vmem:[#allocation2 + $0x281] sm:$0xff]
        %v6483 = vld [vmem:[#allocation2 + $0x289] sm:$0xff]
        %v6484 = vld [vmem:[#allocation2 + $0x2b1] sm:$0xff]
        %v6485 = vld [vmem:[#allocation2 + $0x2b9] sm:$0xff]
        %v6486 = vld [vmem:[#allocation2 + $0x2e1] sm:$0xff]
        %v6487 = vld [vmem:[#allocation2 + $0x2e9] sm:$0xff]
        %s6488 = scalar_lea.vmem [#allocation3], 2560
        %v6489 = vld [vmem:[%s6488] sm:$0xff]
        %v6490 = vld [vmem:[%s6488 + $0x8] sm:$0xff]
        %v6491 = vld [vmem:[%s6488 + $0x10] sm:$0xff]
        %v6492 = vld [vmem:[%s6488 + $0x18] sm:$0xff]
        %v6493 = vld [vmem:[%s6488 + $0x20] sm:$0xff]
        %v6494 = vld [vmem:[%s6488 + $0x28] sm:$0xff]
        %v6495 = vld [vmem:[%s6488 + $0x30] sm:$0xff]
        %v6496 = vld [vmem:[%s6488 + $0x38] sm:$0xff]
        %v6497 = vld [vmem:[%s6488 + $0x40] sm:$0xff]
        %v6498 = vld [vmem:[%s6488 + $0x48] sm:$0xff]
        %v6499 = vld [vmem:[%s6488 + $0x50] sm:$0xff]
        %v6500 = vld [vmem:[%s6488 + $0x58] sm:$0xff]
        %v6501 = vld [vmem:[%s6488 + $0x60] sm:$0xff]
        %v6502 = vld [vmem:[%s6488 + $0x68] sm:$0xff]
        %v6503 = vld [vmem:[%s6488 + $0x70] sm:$0xff]
        %v6504 = vld [vmem:[%s6488 + $0x78] sm:$0xff]
        %6505 = vmatprep.subr.mxu0 0.0
        %6506 = vmatpush1.msra.mxu0 %v6489
        %6507 = vmatprep.subr.mxu0 0.0
        %6508 = vmatpush1.msra.mxu0 %v6490
        %6509 = vmatprep.subr.mxu0 0.0
        %6510 = vmatpush1.msra.mxu0 %v6491
        %6511 = vmatprep.subr.mxu0 0.0
        %6512 = vmatpush1.msra.mxu0 %v6492
        %6513 = vmatprep.subr.mxu0 0.0
        %6514 = vmatpush1.msra.mxu0 %v6493
        %6515 = vmatprep.subr.mxu0 0.0
        %6516 = vmatpush1.msra.mxu0 %v6494
        %6517 = vmatprep.subr.mxu0 0.0
        %6518 = vmatpush1.msra.mxu0 %v6495
        %6519 = vmatprep.subr.mxu0 0.0
        %6520 = vmatpush1.msra.mxu0 %v6496
        %6521 = vmatprep.subr.mxu0 0.0
        %6522 = vmatpush1.msra.mxu0 %v6497
        %6523 = vmatprep.subr.mxu0 0.0
        %6524 = vmatpush1.msra.mxu0 %v6498
        %6525 = vmatprep.subr.mxu0 0.0
        %6526 = vmatpush1.msra.mxu0 %v6499
        %6527 = vmatprep.subr.mxu0 0.0
        %6528 = vmatpush1.msra.mxu0 %v6500
        %6529 = vmatprep.subr.mxu0 0.0
        %6530 = vmatpush1.msra.mxu0 %v6501
        %6531 = vmatprep.subr.mxu0 0.0
        %6532 = vmatpush1.msra.mxu0 %v6502
        %6533 = vmatprep.subr.mxu0 0.0
        %6534 = vmatpush1.msra.mxu0 %v6503
        %6535 = vmatprep.subr.mxu0 0.0
        %6536 = vmatpush1.msra.mxu0 %v6504
        %6537 = vmatprep.subr.mxu0 0.0
        %6538 = vmatpush1.msra.mxu0 0.0
        %6539 = vmatprep.subr.mxu0 0.0
        %6540 = vmatpush1.msra.mxu0 0.0
        %6541 = vmatprep.subr.mxu0 0.0
        %6542 = vmatpush1.msra.mxu0 0.0
        %6543 = vmatprep.subr.mxu0 0.0
        %6544 = vmatpush1.msra.mxu0 0.0
        %6545 = vmatprep.subr.mxu0 0.0
        %6546 = vmatpush1.msra.mxu0 0.0
        %6547 = vmatprep.subr.mxu0 0.0
        %6548 = vmatpush1.msra.mxu0 0.0
        %6549 = vmatprep.subr.mxu0 0.0
        %6550 = vmatpush1.msra.mxu0 0.0
        %6551 = vmatprep.subr.mxu0 0.0
        %6552 = vmatpush1.msra.mxu0 0.0
        %6553 = vmatprep.subr.mxu0 0.0
        %6554 = vmatpush1.msra.mxu0 0.0
        %6555 = vmatprep.subr.mxu0 0.0
        %6556 = vmatpush1.msra.mxu0 0.0
        %6557 = vmatprep.subr.mxu0 0.0
        %6558 = vmatpush1.msra.mxu0 0.0
        %6559 = vmatprep.subr.mxu0 0.0
        %6560 = vmatpush1.msra.mxu0 0.0
        %6561 = vmatprep.subr.mxu0 0.0
        %6562 = vmatpush1.msra.mxu0 0.0
        %6563 = vmatprep.subr.mxu0 0.0
        %6564 = vmatpush1.msra.mxu0 0.0
        %6565 = vmatprep.subr.mxu0 0.0
        %6566 = vmatpush1.msra.mxu0 0.0
        %6567 = vmatprep.subr.mxu0 0.0
        %6568 = vmatpush1.msra.mxu0 0.0
        %6569 = vmatprep.mubr.f32.mxu0 0.0
        %6570 = vmatmul.mubr.f32.gmra.mrb[0].mxu0 %v6456
        %v6571 = vpop.f32.mrb[0].mxu0
        %v6572 = vadd.f32 0.0, %v6571
        %v6573 = vpop.f32.mrb[0].mxu0
        %6574 = vmatprep.mubr.f32.mxu0 0.0
        %6575 = vmatmul.mubr.f32.gmra.mrb[0].mxu0 %v6457
        %v6576 = vpop.f32.mrb[0].mxu0
        %v6577 = vadd.f32 0.0, %v6576
        %v6578 = vpop.f32.mrb[0].mxu0
        %6579 = vmatprep.mubr.f32.mxu0 0.0
        %6580 = vmatmul.mubr.f32.gmra.mrb[0].mxu0 %v6458
        %v6581 = vpop.f32.mrb[0].mxu0
        %v6582 = vadd.f32 0.0, %v6581
        %v6583 = vpop.f32.mrb[0].mxu0
        %6584 = vmatprep.mubr.f32.mxu0 0.0
        %6585 = vmatmul.mubr.f32.gmra.mrb[0].mxu0 %v6459
        %v6586 = vpop.f32.mrb[0].mxu0
        %v6587 = vadd.f32 0.0, %v6586
        %v6588 = vpop.f32.mrb[0].mxu0
        %6589 = vmatprep.mubr.f32.mxu0 0.0
        %6590 = vmatmul.mubr.f32.gmra.mrb[0].mxu0 %v6460
        %v6591 = vpop.f32.mrb[0].mxu0
        %v6592 = vadd.f32 0.0, %v6591
        %v6593 = vpop.f32.mrb[0].mxu0
        %6594 = vmatprep.mubr.f32.mxu0 0.0
        %6595 = vmatmul.mubr.f32.gmra.mrb[0].mxu0 %v6461
        %v6596 = vpop.f32.mrb[0].mxu0
        %v6597 = vadd.f32 0.0, %v6596
        %v6598 = vpop.f32.mrb[0].mxu0
        %6599 = vmatprep.mubr.f32.mxu0 0.0
        %6600 = vmatmul.mubr.f32.gmra.mrb[0].mxu0 %v6462
        %v6601 = vpop.f32.mrb[0].mxu0
        %v6602 = vadd.f32 0.0, %v6601
        %v6603 = vpop.f32.mrb[0].mxu0
        %6604 = vmatprep.mubr.f32.mxu0 0.0
        %6605 = vmatmul.mubr.f32.gmra.mrb[0].mxu0 %v6463
        %v6606 = vpop.f32.mrb[0].mxu0
        %v6607 = vadd.f32 0.0, %v6606
        %v6608 = vpop.f32.mrb[0].mxu0
        %6609 = vmatprep.mubr.f32.mxu0 0.0
        %6610 = vmatmul.mubr.f32.gmra.mrb[0].mxu0 %v6464
        %v6611 = vpop.f32.mrb[0].mxu0
        %v6612 = vadd.f32 0.0, %v6611
        %v6613 = vpop.f32.mrb[0].mxu0
        %6614 = vmatprep.mubr.f32.mxu0 0.0
        %6615 = vmatmul.mubr.f32.gmra.mrb[0].mxu0 %v6465
        %v6616 = vpop.f32.mrb[0].mxu0
        %v6617 = vadd.f32 0.0, %v6616
        %v6618 = vpop.f32.mrb[0].mxu0
        %6619 = vmatprep.mubr.f32.mxu0 0.0
        %6620 = vmatmul.mubr.f32.gmra.mrb[0].mxu0 %v6466
        %v6621 = vpop.f32.mrb[0].mxu0
        %v6622 = vadd.f32 0.0, %v6621
        %v6623 = vpop.f32.mrb[0].mxu0
        %6624 = vmatprep.mubr.f32.mxu0 0.0
        %6625 = vmatmul.mubr.f32.gmra.mrb[0].mxu0 %v6467
        %v6626 = vpop.f32.mrb[0].mxu0
        %v6627 = vadd.f32 0.0, %v6626
        %v6628 = vpop.f32.mrb[0].mxu0
        %6629 = vmatprep.mubr.f32.mxu0 0.0
        %6630 = vmatmul.mubr.f32.gmra.mrb[0].mxu0 %v6468
        %v6631 = vpop.f32.mrb[0].mxu0
        %v6632 = vadd.f32 0.0, %v6631
        %v6633 = vpop.f32.mrb[0].mxu0
        %6634 = vmatprep.mubr.f32.mxu0 0.0
        %6635 = vmatmul.mubr.f32.gmra.mrb[0].mxu0 %v6469
        %v6636 = vpop.f32.mrb[0].mxu0
        %v6637 = vadd.f32 0.0, %v6636
        %v6638 = vpop.f32.mrb[0].mxu0
        %6639 = vmatprep.mubr.f32.mxu0 0.0
        %6640 = vmatmul.mubr.f32.gmra.mrb[0].mxu0 %v6470
        %v6641 = vpop.f32.mrb[0].mxu0
        %v6642 = vadd.f32 0.0, %v6641
        %v6643 = vpop.f32.mrb[0].mxu0
        %6644 = vmatprep.mubr.f32.mxu0 0.0
        %6645 = vmatmul.mubr.f32.gmra.mrb[0].mxu0 %v6471
        %v6646 = vpop.f32.mrb[0].mxu0
        %v6647 = vadd.f32 0.0, %v6646
        %v6648 = vpop.f32.mrb[0].mxu0
        %6649 = vmatprep.mubr.f32.mxu0 0.0
        %6650 = vmatmul.mubr.f32.gmra.mrb[0].mxu0 %v6472
        %v6651 = vpop.f32.mrb[0].mxu0
        %v6652 = vadd.f32 0.0, %v6651
        %v6653 = vpop.f32.mrb[0].mxu0
        %6654 = vmatprep.mubr.f32.mxu0 0.0
        %6655 = vmatmul.mubr.f32.gmra.mrb[0].mxu0 %v6473
        %v6656 = vpop.f32.mrb[0].mxu0
        %v6657 = vadd.f32 0.0, %v6656
        %v6658 = vpop.f32.mrb[0].mxu0
        %6659 = vmatprep.mubr.f32.mxu0 0.0
        %6660 = vmatmul.mubr.f32.gmra.mrb[0].mxu0 %v6474
        %v6661 = vpop.f32.mrb[0].mxu0
        %v6662 = vadd.f32 0.0, %v6661
        %v6663 = vpop.f32.mrb[0].mxu0
        %6664 = vmatprep.mubr.f32.mxu0 0.0
        %6665 = vmatmul.mubr.f32.gmra.mrb[0].mxu0 %v6475
        %v6666 = vpop.f32.mrb[0].mxu0
        %v6667 = vadd.f32 0.0, %v6666
        %v6668 = vpop.f32.mrb[0].mxu0
        %6669 = vmatprep.mubr.f32.mxu0 0.0
        %6670 = vmatmul.mubr.f32.gmra.mrb[0].mxu0 %v6476
        %v6671 = vpop.f32.mrb[0].mxu0
        %v6672 = vadd.f32 0.0, %v6671
        %v6673 = vpop.f32.mrb[0].mxu0
        %6674 = vmatprep.mubr.f32.mxu0 0.0
        %6675 = vmatmul.mubr.f32.gmra.mrb[0].mxu0 %v6477
        %v6676 = vpop.f32.mrb[0].mxu0
        %v6677 = vadd.f32 0.0, %v6676
        %v6678 = vpop.f32.mrb[0].mxu0
        %6679 = vmatprep.mubr.f32.mxu0 0.0
        %6680 = vmatmul.mubr.f32.gmra.mrb[0].mxu0 %v6478
        %v6681 = vpop.f32.mrb[0].mxu0
        %v6682 = vadd.f32 0.0, %v6681
        %v6683 = vpop.f32.mrb[0].mxu0
        %6684 = vmatprep.mubr.f32.mxu0 0.0
        %6685 = vmatmul.mubr.f32.gmra.mrb[0].mxu0 %v6479
        %v6686 = vpop.f32.mrb[0].mxu0
        %v6687 = vadd.f32 0.0, %v6686
        %v6688 = vpop.f32.mrb[0].mxu0
        %6689 = vmatprep.mubr.f32.mxu0 0.0
        %6690 = vmatmul.mubr.f32.gmra.mrb[0].mxu0 %v6480
        %v6691 = vpop.f32.mrb[0].mxu0
        %v6692 = vadd.f32 0.0, %v6691
        %v6693 = vpop.f32.mrb[0].mxu0
        %6694 = vmatprep.mubr.f32.mxu0 0.0
        %6695 = vmatmul.mubr.f32.gmra.mrb[0].mxu0 %v6481
        %v6696 = vpop.f32.mrb[0].mxu0
        %v6697 = vadd.f32 0.0, %v6696
        %v6698 = vpop.f32.mrb[0].mxu0
        %6699 = vmatprep.mubr.f32.mxu0 0.0
        %6700 = vmatmul.mubr.f32.gmra.mrb[0].mxu0 %v6482
        %v6701 = vpop.f32.mrb[0].mxu0
        %v6702 = vadd.f32 0.0, %v6701
        %v6703 = vpop.f32.mrb[0].mxu0
        %6704 = vmatprep.mubr.f32.mxu0 0.0
        %6705 = vmatmul.mubr.f32.gmra.mrb[0].mxu0 %v6483
        %v6706 = vpop.f32.mrb[0].mxu0
        %v6707 = vadd.f32 0.0, %v6706
        %v6708 = vpop.f32.mrb[0].mxu0
        %6709 = vmatprep.mubr.f32.mxu0 0.0
        %6710 = vmatmul.mubr.f32.gmra.mrb[0].mxu0 %v6484
        %v6711 = vpop.f32.mrb[0].mxu0
        %v6712 = vadd.f32 0.0, %v6711
        %v6713 = vpop.f32.mrb[0].mxu0
        %6714 = vmatprep.mubr.f32.mxu0 0.0
        %6715 = vmatmul.mubr.f32.gmra.mrb[0].mxu0 %v6485
        %v6716 = vpop.f32.mrb[0].mxu0
        %v6717 = vadd.f32 0.0, %v6716
        %v6718 = vpop.f32.mrb[0].mxu0
        %6719 = vmatprep.mubr.f32.mxu0 0.0
        %6720 = vmatmul.mubr.f32.gmra.mrb[0].mxu0 %v6486
        %v6721 = vpop.f32.mrb[0].mxu0
        %v6722 = vadd.f32 0.0, %v6721
        %v6723 = vpop.f32.mrb[0].mxu0
        %6724 = vmatprep.mubr.f32.mxu0 0.0
        %6725 = vmatmul.mubr.f32.gmra.mrb[0].mxu0 %v6487
        %v6726 = vpop.f32.mrb[0].mxu0
        %v6727 = vadd.f32 0.0, %v6726
        %v6728 = vpop.f32.mrb[0].mxu0
        %6729 = vdwg.mxu0
        %v6730 = vadd.f32 %v6298, %v6572
        %v6731 = vadd.f32 %v6303, %v6577
        %v6732 = vadd.f32 %v6308, %v6582
        %v6733 = vadd.f32 %v6313, %v6587
        %v6734 = vadd.f32 %v6318, %v6592
        %v6735 = vadd.f32 %v6323, %v6597
        %v6736 = vadd.f32 %v6328, %v6602
        %v6737 = vadd.f32 %v6333, %v6607
        %v6738 = vadd.f32 %v6338, %v6612
        %v6739 = vadd.f32 %v6343, %v6617
        %v6740 = vadd.f32 %v6348, %v6622
        %v6741 = vadd.f32 %v6353, %v6627
        %v6742 = vadd.f32 %v6358, %v6632
        %v6743 = vadd.f32 %v6363, %v6637
        %v6744 = vadd.f32 %v6368, %v6642
        %v6745 = vadd.f32 %v6373, %v6647
        %v6746 = vadd.f32 %v6378, %v6652
        %v6747 = vadd.f32 %v6383, %v6657
        %v6748 = vadd.f32 %v6388, %v6662
        %v6749 = vadd.f32 %v6393, %v6667
        %v6750 = vadd.f32 %v6398, %v6672
        %v6751 = vadd.f32 %v6403, %v6677
        %v6752 = vadd.f32 %v6408, %v6682
        %v6753 = vadd.f32 %v6413, %v6687
        %v6754 = vadd.f32 %v6418, %v6692
        %v6755 = vadd.f32 %v6423, %v6697
        %v6756 = vadd.f32 %v6428, %v6702
        %v6757 = vadd.f32 %v6433, %v6707
        %v6758 = vadd.f32 %v6438, %v6712
        %v6759 = vadd.f32 %v6443, %v6717
        %v6760 = vadd.f32 %v6448, %v6722
        %v6761 = vadd.f32 %v6453, %v6727
        %v6762 = vld [vmem:[%s287 + $0xf] sm:$0xff]
        %v6763 = vld [vmem:[%s287 + $0x17] sm:$0xff]
        %v6764 = vld [vmem:[%s287 + $0x3f] sm:$0xff]
        %v6765 = vld [vmem:[%s287 + $0x47] sm:$0xff]
        %v6766 = vld [vmem:[%s287 + $0x6f] sm:$0xff]
        %v6767 = vld [vmem:[%s287 + $0x77] sm:$0xff]
        %v6768 = vld [vmem:[%s287 + $0x9f] sm:$0xff]
        %v6769 = vld [vmem:[%s287 + $0xa7] sm:$0xff]
        %v6770 = vld [vmem:[%s287 + $0xcf] sm:$0xff]
        %v6771 = vld [vmem:[%s287 + $0xd7] sm:$0xff]
        %v6772 = vld [vmem:[%s287 + $0xff] sm:$0xff]
        %v6773 = vld [vmem:[%s287 + $0x107] sm:$0xff]
        %v6774 = vld [vmem:[%s287 + $0x12f] sm:$0xff]
        %v6775 = vld [vmem:[%s287 + $0x137] sm:$0xff]
        %v6776 = vld [vmem:[%s287 + $0x15f] sm:$0xff]
        %v6777 = vld [vmem:[%s287 + $0x167] sm:$0xff]
        %v6778 = vld [vmem:[%s287 + $0x18f] sm:$0xff]
        %v6779 = vld [vmem:[%s287 + $0x197] sm:$0xff]
        %v6780 = vld [vmem:[%s287 + $0x1bf] sm:$0xff]
        %v6781 = vld [vmem:[%s287 + $0x1c7] sm:$0xff]
        %v6782 = vld [vmem:[%s287 + $0x1ef] sm:$0xff]
        %v6783 = vld [vmem:[%s287 + $0x1f7] sm:$0xff]
        %v6784 = vld [vmem:[%s287 + $0x21f] sm:$0xff]
        %v6785 = vld [vmem:[%s287 + $0x227] sm:$0xff]
        %v6786 = vld [vmem:[%s287 + $0x24f] sm:$0xff]
        %v6787 = vld [vmem:[%s287 + $0x257] sm:$0xff]
        %v6788 = vld [vmem:[%s287 + $0x27f] sm:$0xff]
        %v6789 = vld [vmem:[%s287 + $0x287] sm:$0xff]
        %v6790 = vld [vmem:[%s287 + $0x2af] sm:$0xff]
        %v6791 = vld [vmem:[%s287 + $0x2b7] sm:$0xff]
        %v6792 = vld [vmem:[%s287 + $0x2df] sm:$0xff]
        %v6793 = vld [vmem:[%s287 + $0x2e7] sm:$0xff]
        %s6794 = scalar_lea.vmem [#allocation3], 2688
        %v6795 = vld [vmem:[%s6794] sm:$0xff]
        %v6796 = vld [vmem:[%s6794 + $0x8] sm:$0xff]
        %v6797 = vld [vmem:[%s6794 + $0x10] sm:$0xff]
        %v6798 = vld [vmem:[%s6794 + $0x18] sm:$0xff]
        %v6799 = vld [vmem:[%s6794 + $0x20] sm:$0xff]
        %v6800 = vld [vmem:[%s6794 + $0x28] sm:$0xff]
        %v6801 = vld [vmem:[%s6794 + $0x30] sm:$0xff]
        %v6802 = vld [vmem:[%s6794 + $0x38] sm:$0xff]
        %v6803 = vld [vmem:[%s6794 + $0x40] sm:$0xff]
        %v6804 = vld [vmem:[%s6794 + $0x48] sm:$0xff]
        %v6805 = vld [vmem:[%s6794 + $0x50] sm:$0xff]
        %v6806 = vld [vmem:[%s6794 + $0x58] sm:$0xff]
        %v6807 = vld [vmem:[%s6794 + $0x60] sm:$0xff]
        %v6808 = vld [vmem:[%s6794 + $0x68] sm:$0xff]
        %v6809 = vld [vmem:[%s6794 + $0x70] sm:$0xff]
        %v6810 = vld [vmem:[%s6794 + $0x78] sm:$0xff]
        %6811 = vmatprep.subr.mxu0 0.0
        %6812 = vmatpush1.msra.mxu0 %v6795
        %6813 = vmatprep.subr.mxu0 0.0
        %6814 = vmatpush1.msra.mxu0 %v6796
        %6815 = vmatprep.subr.mxu0 0.0
        %6816 = vmatpush1.msra.mxu0 %v6797
        %6817 = vmatprep.subr.mxu0 0.0
        %6818 = vmatpush1.msra.mxu0 %v6798
        %6819 = vmatprep.subr.mxu0 0.0
        %6820 = vmatpush1.msra.mxu0 %v6799
        %6821 = vmatprep.subr.mxu0 0.0
        %6822 = vmatpush1.msra.mxu0 %v6800
        %6823 = vmatprep.subr.mxu0 0.0
        %6824 = vmatpush1.msra.mxu0 %v6801
        %6825 = vmatprep.subr.mxu0 0.0
        %6826 = vmatpush1.msra.mxu0 %v6802
        %6827 = vmatprep.subr.mxu0 0.0
        %6828 = vmatpush1.msra.mxu0 %v6803
        %6829 = vmatprep.subr.mxu0 0.0
        %6830 = vmatpush1.msra.mxu0 %v6804
        %6831 = vmatprep.subr.mxu0 0.0
        %6832 = vmatpush1.msra.mxu0 %v6805
        %6833 = vmatprep.subr.mxu0 0.0
        %6834 = vmatpush1.msra.mxu0 %v6806
        %6835 = vmatprep.subr.mxu0 0.0
        %6836 = vmatpush1.msra.mxu0 %v6807
        %6837 = vmatprep.subr.mxu0 0.0
        %6838 = vmatpush1.msra.mxu0 %v6808
        %6839 = vmatprep.subr.mxu0 0.0
        %6840 = vmatpush1.msra.mxu0 %v6809
        %6841 = vmatprep.subr.mxu0 0.0
        %6842 = vmatpush1.msra.mxu0 %v6810
        %6843 = vmatprep.subr.mxu0 0.0
        %6844 = vmatpush1.msra.mxu0 0.0
        %6845 = vmatprep.subr.mxu0 0.0
        %6846 = vmatpush1.msra.mxu0 0.0
        %6847 = vmatprep.subr.mxu0 0.0
        %6848 = vmatpush1.msra.mxu0 0.0
        %6849 = vmatprep.subr.mxu0 0.0
        %6850 = vmatpush1.msra.mxu0 0.0
        %6851 = vmatprep.subr.mxu0 0.0
        %6852 = vmatpush1.msra.mxu0 0.0
        %6853 = vmatprep.subr.mxu0 0.0
        %6854 = vmatpush1.msra.mxu0 0.0
        %6855 = vmatprep.subr.mxu0 0.0
        %6856 = vmatpush1.msra.mxu0 0.0
        %6857 = vmatprep.subr.mxu0 0.0
        %6858 = vmatpush1.msra.mxu0 0.0
        %6859 = vmatprep.subr.mxu0 0.0
        %6860 = vmatpush1.msra.mxu0 0.0
        %6861 = vmatprep.subr.mxu0 0.0
        %6862 = vmatpush1.msra.mxu0 0.0
        %6863 = vmatprep.subr.mxu0 0.0
        %6864 = vmatpush1.msra.mxu0 0.0
        %6865 = vmatprep.subr.mxu0 0.0
        %6866 = vmatpush1.msra.mxu0 0.0
        %6867 = vmatprep.subr.mxu0 0.0
        %6868 = vmatpush1.msra.mxu0 0.0
        %6869 = vmatprep.subr.mxu0 0.0
        %6870 = vmatpush1.msra.mxu0 0.0
        %6871 = vmatprep.subr.mxu0 0.0
        %6872 = vmatpush1.msra.mxu0 0.0
        %6873 = vmatprep.subr.mxu0 0.0
        %6874 = vmatpush1.msra.mxu0 0.0
        %6875 = vmatprep.mubr.f32.mxu0 0.0
        %6876 = vmatmul.mubr.f32.gmra.mrb[0].mxu0 %v6762
        %v6877 = vpop.f32.mrb[0].mxu0
        %v6878 = vadd.f32 0.0, %v6877
        %v6879 = vpop.f32.mrb[0].mxu0
        %6880 = vmatprep.mubr.f32.mxu0 0.0
        %6881 = vmatmul.mubr.f32.gmra.mrb[0].mxu0 %v6763
        %v6882 = vpop.f32.mrb[0].mxu0
        %v6883 = vadd.f32 0.0, %v6882
        %v6884 = vpop.f32.mrb[0].mxu0
        %6885 = vmatprep.mubr.f32.mxu0 0.0
        %6886 = vmatmul.mubr.f32.gmra.mrb[0].mxu0 %v6764
        %v6887 = vpop.f32.mrb[0].mxu0
        %v6888 = vadd.f32 0.0, %v6887
        %v6889 = vpop.f32.mrb[0].mxu0
        %6890 = vmatprep.mubr.f32.mxu0 0.0
        %6891 = vmatmul.mubr.f32.gmra.mrb[0].mxu0 %v6765
        %v6892 = vpop.f32.mrb[0].mxu0
        %v6893 = vadd.f32 0.0, %v6892
        %v6894 = vpop.f32.mrb[0].mxu0
        %6895 = vmatprep.mubr.f32.mxu0 0.0
        %6896 = vmatmul.mubr.f32.gmra.mrb[0].mxu0 %v6766
        %v6897 = vpop.f32.mrb[0].mxu0
        %v6898 = vadd.f32 0.0, %v6897
        %v6899 = vpop.f32.mrb[0].mxu0
        %6900 = vmatprep.mubr.f32.mxu0 0.0
        %6901 = vmatmul.mubr.f32.gmra.mrb[0].mxu0 %v6767
        %v6902 = vpop.f32.mrb[0].mxu0
        %v6903 = vadd.f32 0.0, %v6902
        %v6904 = vpop.f32.mrb[0].mxu0
        %6905 = vmatprep.mubr.f32.mxu0 0.0
        %6906 = vmatmul.mubr.f32.gmra.mrb[0].mxu0 %v6768
        %v6907 = vpop.f32.mrb[0].mxu0
        %v6908 = vadd.f32 0.0, %v6907
        %v6909 = vpop.f32.mrb[0].mxu0
        %6910 = vmatprep.mubr.f32.mxu0 0.0
        %6911 = vmatmul.mubr.f32.gmra.mrb[0].mxu0 %v6769
        %v6912 = vpop.f32.mrb[0].mxu0
        %v6913 = vadd.f32 0.0, %v6912
        %v6914 = vpop.f32.mrb[0].mxu0
        %6915 = vmatprep.mubr.f32.mxu0 0.0
        %6916 = vmatmul.mubr.f32.gmra.mrb[0].mxu0 %v6770
        %v6917 = vpop.f32.mrb[0].mxu0
        %v6918 = vadd.f32 0.0, %v6917
        %v6919 = vpop.f32.mrb[0].mxu0
        %6920 = vmatprep.mubr.f32.mxu0 0.0
        %6921 = vmatmul.mubr.f32.gmra.mrb[0].mxu0 %v6771
        %v6922 = vpop.f32.mrb[0].mxu0
        %v6923 = vadd.f32 0.0, %v6922
        %v6924 = vpop.f32.mrb[0].mxu0
        %6925 = vmatprep.mubr.f32.mxu0 0.0
        %6926 = vmatmul.mubr.f32.gmra.mrb[0].mxu0 %v6772
        %v6927 = vpop.f32.mrb[0].mxu0
        %v6928 = vadd.f32 0.0, %v6927
        %v6929 = vpop.f32.mrb[0].mxu0
        %6930 = vmatprep.mubr.f32.mxu0 0.0
        %6931 = vmatmul.mubr.f32.gmra.mrb[0].mxu0 %v6773
        %v6932 = vpop.f32.mrb[0].mxu0
        %v6933 = vadd.f32 0.0, %v6932
        %v6934 = vpop.f32.mrb[0].mxu0
        %6935 = vmatprep.mubr.f32.mxu0 0.0
        %6936 = vmatmul.mubr.f32.gmra.mrb[0].mxu0 %v6774
        %v6937 = vpop.f32.mrb[0].mxu0
        %v6938 = vadd.f32 0.0, %v6937
        %v6939 = vpop.f32.mrb[0].mxu0
        %6940 = vmatprep.mubr.f32.mxu0 0.0
        %6941 = vmatmul.mubr.f32.gmra.mrb[0].mxu0 %v6775
        %v6942 = vpop.f32.mrb[0].mxu0
        %v6943 = vadd.f32 0.0, %v6942
        %v6944 = vpop.f32.mrb[0].mxu0
        %6945 = vmatprep.mubr.f32.mxu0 0.0
        %6946 = vmatmul.mubr.f32.gmra.mrb[0].mxu0 %v6776
        %v6947 = vpop.f32.mrb[0].mxu0
        %v6948 = vadd.f32 0.0, %v6947
        %v6949 = vpop.f32.mrb[0].mxu0
        %6950 = vmatprep.mubr.f32.mxu0 0.0
        %6951 = vmatmul.mubr.f32.gmra.mrb[0].mxu0 %v6777
        %v6952 = vpop.f32.mrb[0].mxu0
        %v6953 = vadd.f32 0.0, %v6952
        %v6954 = vpop.f32.mrb[0].mxu0
        %6955 = vmatprep.mubr.f32.mxu0 0.0
        %6956 = vmatmul.mubr.f32.gmra.mrb[0].mxu0 %v6778
        %v6957 = vpop.f32.mrb[0].mxu0
        %v6958 = vadd.f32 0.0, %v6957
        %v6959 = vpop.f32.mrb[0].mxu0
        %6960 = vmatprep.mubr.f32.mxu0 0.0
        %6961 = vmatmul.mubr.f32.gmra.mrb[0].mxu0 %v6779
        %v6962 = vpop.f32.mrb[0].mxu0
        %v6963 = vadd.f32 0.0, %v6962
        %v6964 = vpop.f32.mrb[0].mxu0
        %6965 = vmatprep.mubr.f32.mxu0 0.0
        %6966 = vmatmul.mubr.f32.gmra.mrb[0].mxu0 %v6780
        %v6967 = vpop.f32.mrb[0].mxu0
        %v6968 = vadd.f32 0.0, %v6967
        %v6969 = vpop.f32.mrb[0].mxu0
        %6970 = vmatprep.mubr.f32.mxu0 0.0
        %6971 = vmatmul.mubr.f32.gmra.mrb[0].mxu0 %v6781
        %v6972 = vpop.f32.mrb[0].mxu0
        %v6973 = vadd.f32 0.0, %v6972
        %v6974 = vpop.f32.mrb[0].mxu0
        %6975 = vmatprep.mubr.f32.mxu0 0.0
        %6976 = vmatmul.mubr.f32.gmra.mrb[0].mxu0 %v6782
        %v6977 = vpop.f32.mrb[0].mxu0
        %v6978 = vadd.f32 0.0, %v6977
        %v6979 = vpop.f32.mrb[0].mxu0
        %6980 = vmatprep.mubr.f32.mxu0 0.0
        %6981 = vmatmul.mubr.f32.gmra.mrb[0].mxu0 %v6783
        %v6982 = vpop.f32.mrb[0].mxu0
        %v6983 = vadd.f32 0.0, %v6982
        %v6984 = vpop.f32.mrb[0].mxu0
        %6985 = vmatprep.mubr.f32.mxu0 0.0
        %6986 = vmatmul.mubr.f32.gmra.mrb[0].mxu0 %v6784
        %v6987 = vpop.f32.mrb[0].mxu0
        %v6988 = vadd.f32 0.0, %v6987
        %v6989 = vpop.f32.mrb[0].mxu0
        %6990 = vmatprep.mubr.f32.mxu0 0.0
        %6991 = vmatmul.mubr.f32.gmra.mrb[0].mxu0 %v6785
        %v6992 = vpop.f32.mrb[0].mxu0
        %v6993 = vadd.f32 0.0, %v6992
        %v6994 = vpop.f32.mrb[0].mxu0
        %6995 = vmatprep.mubr.f32.mxu0 0.0
        %6996 = vmatmul.mubr.f32.gmra.mrb[0].mxu0 %v6786
        %v6997 = vpop.f32.mrb[0].mxu0
        %v6998 = vadd.f32 0.0, %v6997
        %v6999 = vpop.f32.mrb[0].mxu0
        %7000 = vmatprep.mubr.f32.mxu0 0.0
        %7001 = vmatmul.mubr.f32.gmra.mrb[0].mxu0 %v6787
        %v7002 = vpop.f32.mrb[0].mxu0
        %v7003 = vadd.f32 0.0, %v7002
        %v7004 = vpop.f32.mrb[0].mxu0
        %7005 = vmatprep.mubr.f32.mxu0 0.0
        %7006 = vmatmul.mubr.f32.gmra.mrb[0].mxu0 %v6788
        %v7007 = vpop.f32.mrb[0].mxu0
        %v7008 = vadd.f32 0.0, %v7007
        %v7009 = vpop.f32.mrb[0].mxu0
        %7010 = vmatprep.mubr.f32.mxu0 0.0
        %7011 = vmatmul.mubr.f32.gmra.mrb[0].mxu0 %v6789
        %v7012 = vpop.f32.mrb[0].mxu0
        %v7013 = vadd.f32 0.0, %v7012
        %v7014 = vpop.f32.mrb[0].mxu0
        %7015 = vmatprep.mubr.f32.mxu0 0.0
        %7016 = vmatmul.mubr.f32.gmra.mrb[0].mxu0 %v6790
        %v7017 = vpop.f32.mrb[0].mxu0
        %v7018 = vadd.f32 0.0, %v7017
        %v7019 = vpop.f32.mrb[0].mxu0
        %7020 = vmatprep.mubr.f32.mxu0 0.0
        %7021 = vmatmul.mubr.f32.gmra.mrb[0].mxu0 %v6791
        %v7022 = vpop.f32.mrb[0].mxu0
        %v7023 = vadd.f32 0.0, %v7022
        %v7024 = vpop.f32.mrb[0].mxu0
        %7025 = vmatprep.mubr.f32.mxu0 0.0
        %7026 = vmatmul.mubr.f32.gmra.mrb[0].mxu0 %v6792
        %v7027 = vpop.f32.mrb[0].mxu0
        %v7028 = vadd.f32 0.0, %v7027
        %v7029 = vpop.f32.mrb[0].mxu0
        %7030 = vmatprep.mubr.f32.mxu0 0.0
        %7031 = vmatmul.mubr.f32.gmra.mrb[0].mxu0 %v6793
        %v7032 = vpop.f32.mrb[0].mxu0
        %v7033 = vadd.f32 0.0, %v7032
        %v7034 = vpop.f32.mrb[0].mxu0
        %7035 = vdwg.mxu0
        %v7036 = vadd.f32 %v6730, %v6878
        %v7037 = vadd.f32 %v6731, %v6883
        %v7038 = vadd.f32 %v6732, %v6888
        %v7039 = vadd.f32 %v6733, %v6893
        %v7040 = vadd.f32 %v6734, %v6898
        %v7041 = vadd.f32 %v6735, %v6903
        %v7042 = vadd.f32 %v6736, %v6908
        %v7043 = vadd.f32 %v6737, %v6913
        %v7044 = vadd.f32 %v6738, %v6918
        %v7045 = vadd.f32 %v6739, %v6923
        %v7046 = vadd.f32 %v6740, %v6928
        %v7047 = vadd.f32 %v6741, %v6933
        %v7048 = vadd.f32 %v6742, %v6938
        %v7049 = vadd.f32 %v6743, %v6943
        %v7050 = vadd.f32 %v6744, %v6948
        %v7051 = vadd.f32 %v6745, %v6953
        %v7052 = vadd.f32 %v6746, %v6958
        %v7053 = vadd.f32 %v6747, %v6963
        %v7054 = vadd.f32 %v6748, %v6968
        %v7055 = vadd.f32 %v6749, %v6973
        %v7056 = vadd.f32 %v6750, %v6978
        %v7057 = vadd.f32 %v6751, %v6983
        %v7058 = vadd.f32 %v6752, %v6988
        %v7059 = vadd.f32 %v6753, %v6993
        %v7060 = vadd.f32 %v6754, %v6998
        %v7061 = vadd.f32 %v6755, %v7003
        %v7062 = vadd.f32 %v6756, %v7008
        %v7063 = vadd.f32 %v6757, %v7013
        %v7064 = vadd.f32 %v6758, %v7018
        %v7065 = vadd.f32 %v6759, %v7023
        %v7066 = vadd.f32 %v6760, %v7028
        %v7067 = vadd.f32 %v6761, %v7033
        %v7068 = vld [vmem:[%s287 + $0x10] sm:$0xff]
        %v7069 = vld [vmem:[%s287 + $0x18] sm:$0xff]
        %v7070 = vld [vmem:[%s287 + $0x40] sm:$0xff]
        %v7071 = vld [vmem:[%s287 + $0x48] sm:$0xff]
        %v7072 = vld [vmem:[%s287 + $0x70] sm:$0xff]
        %v7073 = vld [vmem:[%s287 + $0x78] sm:$0xff]
        %v7074 = vld [vmem:[%s287 + $0xa0] sm:$0xff]
        %v7075 = vld [vmem:[%s287 + $0xa8] sm:$0xff]
        %v7076 = vld [vmem:[%s287 + $0xd0] sm:$0xff]
        %v7077 = vld [vmem:[%s287 + $0xd8] sm:$0xff]
        %v7078 = vld [vmem:[%s287 + $0x100] sm:$0xff]
        %v7079 = vld [vmem:[%s287 + $0x108] sm:$0xff]
        %v7080 = vld [vmem:[%s287 + $0x130] sm:$0xff]
        %v7081 = vld [vmem:[%s287 + $0x138] sm:$0xff]
        %v7082 = vld [vmem:[%s287 + $0x160] sm:$0xff]
        %v7083 = vld [vmem:[%s287 + $0x168] sm:$0xff]
        %v7084 = vld [vmem:[%s287 + $0x190] sm:$0xff]
        %v7085 = vld [vmem:[%s287 + $0x198] sm:$0xff]
        %v7086 = vld [vmem:[%s287 + $0x1c0] sm:$0xff]
        %v7087 = vld [vmem:[%s287 + $0x1c8] sm:$0xff]
        %v7088 = vld [vmem:[%s287 + $0x1f0] sm:$0xff]
        %v7089 = vld [vmem:[%s287 + $0x1f8] sm:$0xff]
        %v7090 = vld [vmem:[%s287 + $0x220] sm:$0xff]
        %v7091 = vld [vmem:[%s287 + $0x228] sm:$0xff]
        %v7092 = vld [vmem:[%s287 + $0x250] sm:$0xff]
        %v7093 = vld [vmem:[%s287 + $0x258] sm:$0xff]
        %v7094 = vld [vmem:[%s287 + $0x280] sm:$0xff]
        %v7095 = vld [vmem:[%s287 + $0x288] sm:$0xff]
        %v7096 = vld [vmem:[%s287 + $0x2b0] sm:$0xff]
        %v7097 = vld [vmem:[%s287 + $0x2b8] sm:$0xff]
        %v7098 = vld [vmem:[%s287 + $0x2e0] sm:$0xff]
        %v7099 = vld [vmem:[%s287 + $0x2e8] sm:$0xff]
        %s7100 = scalar_lea.vmem [#allocation3], 2816
        %v7101 = vld [vmem:[%s7100] sm:$0xff]
        %v7102 = vld [vmem:[%s7100 + $0x8] sm:$0xff]
        %v7103 = vld [vmem:[%s7100 + $0x10] sm:$0xff]
        %v7104 = vld [vmem:[%s7100 + $0x18] sm:$0xff]
        %v7105 = vld [vmem:[%s7100 + $0x20] sm:$0xff]
        %v7106 = vld [vmem:[%s7100 + $0x28] sm:$0xff]
        %v7107 = vld [vmem:[%s7100 + $0x30] sm:$0xff]
        %v7108 = vld [vmem:[%s7100 + $0x38] sm:$0xff]
        %v7109 = vld [vmem:[%s7100 + $0x40] sm:$0xff]
        %v7110 = vld [vmem:[%s7100 + $0x48] sm:$0xff]
        %v7111 = vld [vmem:[%s7100 + $0x50] sm:$0xff]
        %v7112 = vld [vmem:[%s7100 + $0x58] sm:$0xff]
        %v7113 = vld [vmem:[%s7100 + $0x60] sm:$0xff]
        %v7114 = vld [vmem:[%s7100 + $0x68] sm:$0xff]
        %v7115 = vld [vmem:[%s7100 + $0x70] sm:$0xff]
        %v7116 = vld [vmem:[%s7100 + $0x78] sm:$0xff]
        %7117 = vmatprep.subr.mxu0 0.0
        %7118 = vmatpush1.msra.mxu0 %v7101
        %7119 = vmatprep.subr.mxu0 0.0
        %7120 = vmatpush1.msra.mxu0 %v7102
        %7121 = vmatprep.subr.mxu0 0.0
        %7122 = vmatpush1.msra.mxu0 %v7103
        %7123 = vmatprep.subr.mxu0 0.0
        %7124 = vmatpush1.msra.mxu0 %v7104
        %7125 = vmatprep.subr.mxu0 0.0
        %7126 = vmatpush1.msra.mxu0 %v7105
        %7127 = vmatprep.subr.mxu0 0.0
        %7128 = vmatpush1.msra.mxu0 %v7106
        %7129 = vmatprep.subr.mxu0 0.0
        %7130 = vmatpush1.msra.mxu0 %v7107
        %7131 = vmatprep.subr.mxu0 0.0
        %7132 = vmatpush1.msra.mxu0 %v7108
        %7133 = vmatprep.subr.mxu0 0.0
        %7134 = vmatpush1.msra.mxu0 %v7109
        %7135 = vmatprep.subr.mxu0 0.0
        %7136 = vmatpush1.msra.mxu0 %v7110
        %7137 = vmatprep.subr.mxu0 0.0
        %7138 = vmatpush1.msra.mxu0 %v7111
        %7139 = vmatprep.subr.mxu0 0.0
        %7140 = vmatpush1.msra.mxu0 %v7112
        %7141 = vmatprep.subr.mxu0 0.0
        %7142 = vmatpush1.msra.mxu0 %v7113
        %7143 = vmatprep.subr.mxu0 0.0
        %7144 = vmatpush1.msra.mxu0 %v7114
        %7145 = vmatprep.subr.mxu0 0.0
        %7146 = vmatpush1.msra.mxu0 %v7115
        %7147 = vmatprep.subr.mxu0 0.0
        %7148 = vmatpush1.msra.mxu0 %v7116
        %7149 = vmatprep.subr.mxu0 0.0
        %7150 = vmatpush1.msra.mxu0 0.0
        %7151 = vmatprep.subr.mxu0 0.0
        %7152 = vmatpush1.msra.mxu0 0.0
        %7153 = vmatprep.subr.mxu0 0.0
        %7154 = vmatpush1.msra.mxu0 0.0
        %7155 = vmatprep.subr.mxu0 0.0
        %7156 = vmatpush1.msra.mxu0 0.0
        %7157 = vmatprep.subr.mxu0 0.0
        %7158 = vmatpush1.msra.mxu0 0.0
        %7159 = vmatprep.subr.mxu0 0.0
        %7160 = vmatpush1.msra.mxu0 0.0
        %7161 = vmatprep.subr.mxu0 0.0
        %7162 = vmatpush1.msra.mxu0 0.0
        %7163 = vmatprep.subr.mxu0 0.0
        %7164 = vmatpush1.msra.mxu0 0.0
        %7165 = vmatprep.subr.mxu0 0.0
        %7166 = vmatpush1.msra.mxu0 0.0
        %7167 = vmatprep.subr.mxu0 0.0
        %7168 = vmatpush1.msra.mxu0 0.0
        %7169 = vmatprep.subr.mxu0 0.0
        %7170 = vmatpush1.msra.mxu0 0.0
        %7171 = vmatprep.subr.mxu0 0.0
        %7172 = vmatpush1.msra.mxu0 0.0
        %7173 = vmatprep.subr.mxu0 0.0
        %7174 = vmatpush1.msra.mxu0 0.0
        %7175 = vmatprep.subr.mxu0 0.0
        %7176 = vmatpush1.msra.mxu0 0.0
        %7177 = vmatprep.subr.mxu0 0.0
        %7178 = vmatpush1.msra.mxu0 0.0
        %7179 = vmatprep.subr.mxu0 0.0
        %7180 = vmatpush1.msra.mxu0 0.0
        %7181 = vmatprep.mubr.f32.mxu0 0.0
        %7182 = vmatmul.mubr.f32.gmra.mrb[0].mxu0 %v7068
        %v7183 = vpop.f32.mrb[0].mxu0
        %v7184 = vadd.f32 0.0, %v7183
        %v7185 = vpop.f32.mrb[0].mxu0
        %7186 = vmatprep.mubr.f32.mxu0 0.0
        %7187 = vmatmul.mubr.f32.gmra.mrb[0].mxu0 %v7069
        %v7188 = vpop.f32.mrb[0].mxu0
        %v7189 = vadd.f32 0.0, %v7188
        %v7190 = vpop.f32.mrb[0].mxu0
        %7191 = vmatprep.mubr.f32.mxu0 0.0
        %7192 = vmatmul.mubr.f32.gmra.mrb[0].mxu0 %v7070
        %v7193 = vpop.f32.mrb[0].mxu0
        %v7194 = vadd.f32 0.0, %v7193
        %v7195 = vpop.f32.mrb[0].mxu0
        %7196 = vmatprep.mubr.f32.mxu0 0.0
        %7197 = vmatmul.mubr.f32.gmra.mrb[0].mxu0 %v7071
        %v7198 = vpop.f32.mrb[0].mxu0
        %v7199 = vadd.f32 0.0, %v7198
        %v7200 = vpop.f32.mrb[0].mxu0
        %7201 = vmatprep.mubr.f32.mxu0 0.0
        %7202 = vmatmul.mubr.f32.gmra.mrb[0].mxu0 %v7072
        %v7203 = vpop.f32.mrb[0].mxu0
        %v7204 = vadd.f32 0.0, %v7203
        %v7205 = vpop.f32.mrb[0].mxu0
        %7206 = vmatprep.mubr.f32.mxu0 0.0
        %7207 = vmatmul.mubr.f32.gmra.mrb[0].mxu0 %v7073
        %v7208 = vpop.f32.mrb[0].mxu0
        %v7209 = vadd.f32 0.0, %v7208
        %v7210 = vpop.f32.mrb[0].mxu0
        %7211 = vmatprep.mubr.f32.mxu0 0.0
        %7212 = vmatmul.mubr.f32.gmra.mrb[0].mxu0 %v7074
        %v7213 = vpop.f32.mrb[0].mxu0
        %v7214 = vadd.f32 0.0, %v7213
        %v7215 = vpop.f32.mrb[0].mxu0
        %7216 = vmatprep.mubr.f32.mxu0 0.0
        %7217 = vmatmul.mubr.f32.gmra.mrb[0].mxu0 %v7075
        %v7218 = vpop.f32.mrb[0].mxu0
        %v7219 = vadd.f32 0.0, %v7218
        %v7220 = vpop.f32.mrb[0].mxu0
        %7221 = vmatprep.mubr.f32.mxu0 0.0
        %7222 = vmatmul.mubr.f32.gmra.mrb[0].mxu0 %v7076
        %v7223 = vpop.f32.mrb[0].mxu0
        %v7224 = vadd.f32 0.0, %v7223
        %v7225 = vpop.f32.mrb[0].mxu0
        %7226 = vmatprep.mubr.f32.mxu0 0.0
        %7227 = vmatmul.mubr.f32.gmra.mrb[0].mxu0 %v7077
        %v7228 = vpop.f32.mrb[0].mxu0
        %v7229 = vadd.f32 0.0, %v7228
        %v7230 = vpop.f32.mrb[0].mxu0
        %7231 = vmatprep.mubr.f32.mxu0 0.0
        %7232 = vmatmul.mubr.f32.gmra.mrb[0].mxu0 %v7078
        %v7233 = vpop.f32.mrb[0].mxu0
        %v7234 = vadd.f32 0.0, %v7233
        %v7235 = vpop.f32.mrb[0].mxu0
        %7236 = vmatprep.mubr.f32.mxu0 0.0
        %7237 = vmatmul.mubr.f32.gmra.mrb[0].mxu0 %v7079
        %v7238 = vpop.f32.mrb[0].mxu0
        %v7239 = vadd.f32 0.0, %v7238
        %v7240 = vpop.f32.mrb[0].mxu0
        %7241 = vmatprep.mubr.f32.mxu0 0.0
        %7242 = vmatmul.mubr.f32.gmra.mrb[0].mxu0 %v7080
        %v7243 = vpop.f32.mrb[0].mxu0
        %v7244 = vadd.f32 0.0, %v7243
        %v7245 = vpop.f32.mrb[0].mxu0
        %7246 = vmatprep.mubr.f32.mxu0 0.0
        %7247 = vmatmul.mubr.f32.gmra.mrb[0].mxu0 %v7081
        %v7248 = vpop.f32.mrb[0].mxu0
        %v7249 = vadd.f32 0.0, %v7248
        %v7250 = vpop.f32.mrb[0].mxu0
        %7251 = vmatprep.mubr.f32.mxu0 0.0
        %7252 = vmatmul.mubr.f32.gmra.mrb[0].mxu0 %v7082
        %v7253 = vpop.f32.mrb[0].mxu0
        %v7254 = vadd.f32 0.0, %v7253
        %v7255 = vpop.f32.mrb[0].mxu0
        %7256 = vmatprep.mubr.f32.mxu0 0.0
        %7257 = vmatmul.mubr.f32.gmra.mrb[0].mxu0 %v7083
        %v7258 = vpop.f32.mrb[0].mxu0
        %v7259 = vadd.f32 0.0, %v7258
        %v7260 = vpop.f32.mrb[0].mxu0
        %7261 = vmatprep.mubr.f32.mxu0 0.0
        %7262 = vmatmul.mubr.f32.gmra.mrb[0].mxu0 %v7084
        %v7263 = vpop.f32.mrb[0].mxu0
        %v7264 = vadd.f32 0.0, %v7263
        %v7265 = vpop.f32.mrb[0].mxu0
        %7266 = vmatprep.mubr.f32.mxu0 0.0
        %7267 = vmatmul.mubr.f32.gmra.mrb[0].mxu0 %v7085
        %v7268 = vpop.f32.mrb[0].mxu0
        %v7269 = vadd.f32 0.0, %v7268
        %v7270 = vpop.f32.mrb[0].mxu0
        %7271 = vmatprep.mubr.f32.mxu0 0.0
        %7272 = vmatmul.mubr.f32.gmra.mrb[0].mxu0 %v7086
        %v7273 = vpop.f32.mrb[0].mxu0
        %v7274 = vadd.f32 0.0, %v7273
        %v7275 = vpop.f32.mrb[0].mxu0
        %7276 = vmatprep.mubr.f32.mxu0 0.0
        %7277 = vmatmul.mubr.f32.gmra.mrb[0].mxu0 %v7087
        %v7278 = vpop.f32.mrb[0].mxu0
        %v7279 = vadd.f32 0.0, %v7278
        %v7280 = vpop.f32.mrb[0].mxu0
        %7281 = vmatprep.mubr.f32.mxu0 0.0
        %7282 = vmatmul.mubr.f32.gmra.mrb[0].mxu0 %v7088
        %v7283 = vpop.f32.mrb[0].mxu0
        %v7284 = vadd.f32 0.0, %v7283
        %v7285 = vpop.f32.mrb[0].mxu0
        %7286 = vmatprep.mubr.f32.mxu0 0.0
        %7287 = vmatmul.mubr.f32.gmra.mrb[0].mxu0 %v7089
        %v7288 = vpop.f32.mrb[0].mxu0
        %v7289 = vadd.f32 0.0, %v7288
        %v7290 = vpop.f32.mrb[0].mxu0
        %7291 = vmatprep.mubr.f32.mxu0 0.0
        %7292 = vmatmul.mubr.f32.gmra.mrb[0].mxu0 %v7090
        %v7293 = vpop.f32.mrb[0].mxu0
        %v7294 = vadd.f32 0.0, %v7293
        %v7295 = vpop.f32.mrb[0].mxu0
        %7296 = vmatprep.mubr.f32.mxu0 0.0
        %7297 = vmatmul.mubr.f32.gmra.mrb[0].mxu0 %v7091
        %v7298 = vpop.f32.mrb[0].mxu0
        %v7299 = vadd.f32 0.0, %v7298
        %v7300 = vpop.f32.mrb[0].mxu0
        %7301 = vmatprep.mubr.f32.mxu0 0.0
        %7302 = vmatmul.mubr.f32.gmra.mrb[0].mxu0 %v7092
        %v7303 = vpop.f32.mrb[0].mxu0
        %v7304 = vadd.f32 0.0, %v7303
        %v7305 = vpop.f32.mrb[0].mxu0
        %7306 = vmatprep.mubr.f32.mxu0 0.0
        %7307 = vmatmul.mubr.f32.gmra.mrb[0].mxu0 %v7093
        %v7308 = vpop.f32.mrb[0].mxu0
        %v7309 = vadd.f32 0.0, %v7308
        %v7310 = vpop.f32.mrb[0].mxu0
        %7311 = vmatprep.mubr.f32.mxu0 0.0
        %7312 = vmatmul.mubr.f32.gmra.mrb[0].mxu0 %v7094
        %v7313 = vpop.f32.mrb[0].mxu0
        %v7314 = vadd.f32 0.0, %v7313
        %v7315 = vpop.f32.mrb[0].mxu0
        %7316 = vmatprep.mubr.f32.mxu0 0.0
        %7317 = vmatmul.mubr.f32.gmra.mrb[0].mxu0 %v7095
        %v7318 = vpop.f32.mrb[0].mxu0
        %v7319 = vadd.f32 0.0, %v7318
        %v7320 = vpop.f32.mrb[0].mxu0
        %7321 = vmatprep.mubr.f32.mxu0 0.0
        %7322 = vmatmul.mubr.f32.gmra.mrb[0].mxu0 %v7096
        %v7323 = vpop.f32.mrb[0].mxu0
        %v7324 = vadd.f32 0.0, %v7323
        %v7325 = vpop.f32.mrb[0].mxu0
        %7326 = vmatprep.mubr.f32.mxu0 0.0
        %7327 = vmatmul.mubr.f32.gmra.mrb[0].mxu0 %v7097
        %v7328 = vpop.f32.mrb[0].mxu0
        %v7329 = vadd.f32 0.0, %v7328
        %v7330 = vpop.f32.mrb[0].mxu0
        %7331 = vmatprep.mubr.f32.mxu0 0.0
        %7332 = vmatmul.mubr.f32.gmra.mrb[0].mxu0 %v7098
        %v7333 = vpop.f32.mrb[0].mxu0
        %v7334 = vadd.f32 0.0, %v7333
        %v7335 = vpop.f32.mrb[0].mxu0
        %7336 = vmatprep.mubr.f32.mxu0 0.0
        %7337 = vmatmul.mubr.f32.gmra.mrb[0].mxu0 %v7099
        %v7338 = vpop.f32.mrb[0].mxu0
        %v7339 = vadd.f32 0.0, %v7338
        %v7340 = vpop.f32.mrb[0].mxu0
        %7341 = vdwg.mxu0
        %v7342 = vadd.f32 %v7036, %v7184
        %v7343 = vadd.f32 %v7037, %v7189
        %v7344 = vadd.f32 %v7038, %v7194
        %v7345 = vadd.f32 %v7039, %v7199
        %v7346 = vadd.f32 %v7040, %v7204
        %v7347 = vadd.f32 %v7041, %v7209
        %v7348 = vadd.f32 %v7042, %v7214
        %v7349 = vadd.f32 %v7043, %v7219
        %v7350 = vadd.f32 %v7044, %v7224
        %v7351 = vadd.f32 %v7045, %v7229
        %v7352 = vadd.f32 %v7046, %v7234
        %v7353 = vadd.f32 %v7047, %v7239
        %v7354 = vadd.f32 %v7048, %v7244
        %v7355 = vadd.f32 %v7049, %v7249
        %v7356 = vadd.f32 %v7050, %v7254
        %v7357 = vadd.f32 %v7051, %v7259
        %v7358 = vadd.f32 %v7052, %v7264
        %v7359 = vadd.f32 %v7053, %v7269
        %v7360 = vadd.f32 %v7054, %v7274
        %v7361 = vadd.f32 %v7055, %v7279
        %v7362 = vadd.f32 %v7056, %v7284
        %v7363 = vadd.f32 %v7057, %v7289
        %v7364 = vadd.f32 %v7058, %v7294
        %v7365 = vadd.f32 %v7059, %v7299
        %v7366 = vadd.f32 %v7060, %v7304
        %v7367 = vadd.f32 %v7061, %v7309
        %v7368 = vadd.f32 %v7062, %v7314
        %v7369 = vadd.f32 %v7063, %v7319
        %v7370 = vadd.f32 %v7064, %v7324
        %v7371 = vadd.f32 %v7065, %v7329
        %v7372 = vadd.f32 %v7066, %v7334
        %v7373 = vadd.f32 %v7067, %v7339
        %v7374 = vld [vmem:[%s287 + $0x11] sm:$0xff]
        %v7375 = vld [vmem:[%s287 + $0x19] sm:$0xff]
        %v7376 = vld [vmem:[%s287 + $0x41] sm:$0xff]
        %v7377 = vld [vmem:[%s287 + $0x49] sm:$0xff]
        %v7378 = vld [vmem:[%s287 + $0x71] sm:$0xff]
        %v7379 = vld [vmem:[%s287 + $0x79] sm:$0xff]
        %v7380 = vld [vmem:[%s287 + $0xa1] sm:$0xff]
        %v7381 = vld [vmem:[%s287 + $0xa9] sm:$0xff]
        %v7382 = vld [vmem:[%s287 + $0xd1] sm:$0xff]
        %v7383 = vld [vmem:[%s287 + $0xd9] sm:$0xff]
        %v7384 = vld [vmem:[%s287 + $0x101] sm:$0xff]
        %v7385 = vld [vmem:[%s287 + $0x109] sm:$0xff]
        %v7386 = vld [vmem:[%s287 + $0x131] sm:$0xff]
        %v7387 = vld [vmem:[%s287 + $0x139] sm:$0xff]
        %v7388 = vld [vmem:[%s287 + $0x161] sm:$0xff]
        %v7389 = vld [vmem:[%s287 + $0x169] sm:$0xff]
        %v7390 = vld [vmem:[%s287 + $0x191] sm:$0xff]
        %v7391 = vld [vmem:[%s287 + $0x199] sm:$0xff]
        %v7392 = vld [vmem:[%s287 + $0x1c1] sm:$0xff]
        %v7393 = vld [vmem:[%s287 + $0x1c9] sm:$0xff]
        %v7394 = vld [vmem:[%s287 + $0x1f1] sm:$0xff]
        %v7395 = vld [vmem:[%s287 + $0x1f9] sm:$0xff]
        %v7396 = vld [vmem:[%s287 + $0x221] sm:$0xff]
        %v7397 = vld [vmem:[%s287 + $0x229] sm:$0xff]
        %v7398 = vld [vmem:[%s287 + $0x251] sm:$0xff]
        %v7399 = vld [vmem:[%s287 + $0x259] sm:$0xff]
        %v7400 = vld [vmem:[%s287 + $0x281] sm:$0xff]
        %v7401 = vld [vmem:[%s287 + $0x289] sm:$0xff]
        %v7402 = vld [vmem:[%s287 + $0x2b1] sm:$0xff]
        %v7403 = vld [vmem:[%s287 + $0x2b9] sm:$0xff]
        %v7404 = vld [vmem:[%s287 + $0x2e1] sm:$0xff]
        %v7405 = vld [vmem:[%s287 + $0x2e9] sm:$0xff]
        %s7406 = scalar_lea.vmem [#allocation3], 2944
        %v7407 = vld [vmem:[%s7406] sm:$0xff]
        %v7408 = vld [vmem:[%s7406 + $0x8] sm:$0xff]
        %v7409 = vld [vmem:[%s7406 + $0x10] sm:$0xff]
        %v7410 = vld [vmem:[%s7406 + $0x18] sm:$0xff]
        %v7411 = vld [vmem:[%s7406 + $0x20] sm:$0xff]
        %v7412 = vld [vmem:[%s7406 + $0x28] sm:$0xff]
        %v7413 = vld [vmem:[%s7406 + $0x30] sm:$0xff]
        %v7414 = vld [vmem:[%s7406 + $0x38] sm:$0xff]
        %v7415 = vld [vmem:[%s7406 + $0x40] sm:$0xff]
        %v7416 = vld [vmem:[%s7406 + $0x48] sm:$0xff]
        %v7417 = vld [vmem:[%s7406 + $0x50] sm:$0xff]
        %v7418 = vld [vmem:[%s7406 + $0x58] sm:$0xff]
        %v7419 = vld [vmem:[%s7406 + $0x60] sm:$0xff]
        %v7420 = vld [vmem:[%s7406 + $0x68] sm:$0xff]
        %v7421 = vld [vmem:[%s7406 + $0x70] sm:$0xff]
        %v7422 = vld [vmem:[%s7406 + $0x78] sm:$0xff]
        %7423 = vmatprep.subr.mxu0 0.0
        %7424 = vmatpush1.msra.mxu0 %v7407
        %7425 = vmatprep.subr.mxu0 0.0
        %7426 = vmatpush1.msra.mxu0 %v7408
        %7427 = vmatprep.subr.mxu0 0.0
        %7428 = vmatpush1.msra.mxu0 %v7409
        %7429 = vmatprep.subr.mxu0 0.0
        %7430 = vmatpush1.msra.mxu0 %v7410
        %7431 = vmatprep.subr.mxu0 0.0
        %7432 = vmatpush1.msra.mxu0 %v7411
        %7433 = vmatprep.subr.mxu0 0.0
        %7434 = vmatpush1.msra.mxu0 %v7412
        %7435 = vmatprep.subr.mxu0 0.0
        %7436 = vmatpush1.msra.mxu0 %v7413
        %7437 = vmatprep.subr.mxu0 0.0
        %7438 = vmatpush1.msra.mxu0 %v7414
        %7439 = vmatprep.subr.mxu0 0.0
        %7440 = vmatpush1.msra.mxu0 %v7415
        %7441 = vmatprep.subr.mxu0 0.0
        %7442 = vmatpush1.msra.mxu0 %v7416
        %7443 = vmatprep.subr.mxu0 0.0
        %7444 = vmatpush1.msra.mxu0 %v7417
        %7445 = vmatprep.subr.mxu0 0.0
        %7446 = vmatpush1.msra.mxu0 %v7418
        %7447 = vmatprep.subr.mxu0 0.0
        %7448 = vmatpush1.msra.mxu0 %v7419
        %7449 = vmatprep.subr.mxu0 0.0
        %7450 = vmatpush1.msra.mxu0 %v7420
        %7451 = vmatprep.subr.mxu0 0.0
        %7452 = vmatpush1.msra.mxu0 %v7421
        %7453 = vmatprep.subr.mxu0 0.0
        %7454 = vmatpush1.msra.mxu0 %v7422
        %7455 = vmatprep.subr.mxu0 0.0
        %7456 = vmatpush1.msra.mxu0 0.0
        %7457 = vmatprep.subr.mxu0 0.0
        %7458 = vmatpush1.msra.mxu0 0.0
        %7459 = vmatprep.subr.mxu0 0.0
        %7460 = vmatpush1.msra.mxu0 0.0
        %7461 = vmatprep.subr.mxu0 0.0
        %7462 = vmatpush1.msra.mxu0 0.0
        %7463 = vmatprep.subr.mxu0 0.0
        %7464 = vmatpush1.msra.mxu0 0.0
        %7465 = vmatprep.subr.mxu0 0.0
        %7466 = vmatpush1.msra.mxu0 0.0
        %7467 = vmatprep.subr.mxu0 0.0
        %7468 = vmatpush1.msra.mxu0 0.0
        %7469 = vmatprep.subr.mxu0 0.0
        %7470 = vmatpush1.msra.mxu0 0.0
        %7471 = vmatprep.subr.mxu0 0.0
        %7472 = vmatpush1.msra.mxu0 0.0
        %7473 = vmatprep.subr.mxu0 0.0
        %7474 = vmatpush1.msra.mxu0 0.0
        %7475 = vmatprep.subr.mxu0 0.0
        %7476 = vmatpush1.msra.mxu0 0.0
        %7477 = vmatprep.subr.mxu0 0.0
        %7478 = vmatpush1.msra.mxu0 0.0
        %7479 = vmatprep.subr.mxu0 0.0
        %7480 = vmatpush1.msra.mxu0 0.0
        %7481 = vmatprep.subr.mxu0 0.0
        %7482 = vmatpush1.msra.mxu0 0.0
        %7483 = vmatprep.subr.mxu0 0.0
        %7484 = vmatpush1.msra.mxu0 0.0
        %7485 = vmatprep.subr.mxu0 0.0
        %7486 = vmatpush1.msra.mxu0 0.0
        %7487 = vmatprep.mubr.f32.mxu0 0.0
        %7488 = vmatmul.mubr.f32.gmra.mrb[0].mxu0 %v7374
        %v7489 = vpop.f32.mrb[0].mxu0
        %v7490 = vadd.f32 0.0, %v7489
        %v7491 = vpop.f32.mrb[0].mxu0
        %7492 = vmatprep.mubr.f32.mxu0 0.0
        %7493 = vmatmul.mubr.f32.gmra.mrb[0].mxu0 %v7375
        %v7494 = vpop.f32.mrb[0].mxu0
        %v7495 = vadd.f32 0.0, %v7494
        %v7496 = vpop.f32.mrb[0].mxu0
        %7497 = vmatprep.mubr.f32.mxu0 0.0
        %7498 = vmatmul.mubr.f32.gmra.mrb[0].mxu0 %v7376
        %v7499 = vpop.f32.mrb[0].mxu0
        %v7500 = vadd.f32 0.0, %v7499
        %v7501 = vpop.f32.mrb[0].mxu0
        %7502 = vmatprep.mubr.f32.mxu0 0.0
        %7503 = vmatmul.mubr.f32.gmra.mrb[0].mxu0 %v7377
        %v7504 = vpop.f32.mrb[0].mxu0
        %v7505 = vadd.f32 0.0, %v7504
        %v7506 = vpop.f32.mrb[0].mxu0
        %7507 = vmatprep.mubr.f32.mxu0 0.0
        %7508 = vmatmul.mubr.f32.gmra.mrb[0].mxu0 %v7378
        %v7509 = vpop.f32.mrb[0].mxu0
        %v7510 = vadd.f32 0.0, %v7509
        %v7511 = vpop.f32.mrb[0].mxu0
        %7512 = vmatprep.mubr.f32.mxu0 0.0
        %7513 = vmatmul.mubr.f32.gmra.mrb[0].mxu0 %v7379
        %v7514 = vpop.f32.mrb[0].mxu0
        %v7515 = vadd.f32 0.0, %v7514
        %v7516 = vpop.f32.mrb[0].mxu0
        %7517 = vmatprep.mubr.f32.mxu0 0.0
        %7518 = vmatmul.mubr.f32.gmra.mrb[0].mxu0 %v7380
        %v7519 = vpop.f32.mrb[0].mxu0
        %v7520 = vadd.f32 0.0, %v7519
        %v7521 = vpop.f32.mrb[0].mxu0
        %7522 = vmatprep.mubr.f32.mxu0 0.0
        %7523 = vmatmul.mubr.f32.gmra.mrb[0].mxu0 %v7381
        %v7524 = vpop.f32.mrb[0].mxu0
        %v7525 = vadd.f32 0.0, %v7524
        %v7526 = vpop.f32.mrb[0].mxu0
        %7527 = vmatprep.mubr.f32.mxu0 0.0
        %7528 = vmatmul.mubr.f32.gmra.mrb[0].mxu0 %v7382
        %v7529 = vpop.f32.mrb[0].mxu0
        %v7530 = vadd.f32 0.0, %v7529
        %v7531 = vpop.f32.mrb[0].mxu0
        %7532 = vmatprep.mubr.f32.mxu0 0.0
        %7533 = vmatmul.mubr.f32.gmra.mrb[0].mxu0 %v7383
        %v7534 = vpop.f32.mrb[0].mxu0
        %v7535 = vadd.f32 0.0, %v7534
        %v7536 = vpop.f32.mrb[0].mxu0
        %7537 = vmatprep.mubr.f32.mxu0 0.0
        %7538 = vmatmul.mubr.f32.gmra.mrb[0].mxu0 %v7384
        %v7539 = vpop.f32.mrb[0].mxu0
        %v7540 = vadd.f32 0.0, %v7539
        %v7541 = vpop.f32.mrb[0].mxu0
        %7542 = vmatprep.mubr.f32.mxu0 0.0
        %7543 = vmatmul.mubr.f32.gmra.mrb[0].mxu0 %v7385
        %v7544 = vpop.f32.mrb[0].mxu0
        %v7545 = vadd.f32 0.0, %v7544
        %v7546 = vpop.f32.mrb[0].mxu0
        %7547 = vmatprep.mubr.f32.mxu0 0.0
        %7548 = vmatmul.mubr.f32.gmra.mrb[0].mxu0 %v7386
        %v7549 = vpop.f32.mrb[0].mxu0
        %v7550 = vadd.f32 0.0, %v7549
        %v7551 = vpop.f32.mrb[0].mxu0
        %7552 = vmatprep.mubr.f32.mxu0 0.0
        %7553 = vmatmul.mubr.f32.gmra.mrb[0].mxu0 %v7387
        %v7554 = vpop.f32.mrb[0].mxu0
        %v7555 = vadd.f32 0.0, %v7554
        %v7556 = vpop.f32.mrb[0].mxu0
        %7557 = vmatprep.mubr.f32.mxu0 0.0
        %7558 = vmatmul.mubr.f32.gmra.mrb[0].mxu0 %v7388
        %v7559 = vpop.f32.mrb[0].mxu0
        %v7560 = vadd.f32 0.0, %v7559
        %v7561 = vpop.f32.mrb[0].mxu0
        %7562 = vmatprep.mubr.f32.mxu0 0.0
        %7563 = vmatmul.mubr.f32.gmra.mrb[0].mxu0 %v7389
        %v7564 = vpop.f32.mrb[0].mxu0
        %v7565 = vadd.f32 0.0, %v7564
        %v7566 = vpop.f32.mrb[0].mxu0
        %7567 = vmatprep.mubr.f32.mxu0 0.0
        %7568 = vmatmul.mubr.f32.gmra.mrb[0].mxu0 %v7390
        %v7569 = vpop.f32.mrb[0].mxu0
        %v7570 = vadd.f32 0.0, %v7569
        %v7571 = vpop.f32.mrb[0].mxu0
        %7572 = vmatprep.mubr.f32.mxu0 0.0
        %7573 = vmatmul.mubr.f32.gmra.mrb[0].mxu0 %v7391
        %v7574 = vpop.f32.mrb[0].mxu0
        %v7575 = vadd.f32 0.0, %v7574
        %v7576 = vpop.f32.mrb[0].mxu0
        %7577 = vmatprep.mubr.f32.mxu0 0.0
        %7578 = vmatmul.mubr.f32.gmra.mrb[0].mxu0 %v7392
        %v7579 = vpop.f32.mrb[0].mxu0
        %v7580 = vadd.f32 0.0, %v7579
        %v7581 = vpop.f32.mrb[0].mxu0
        %7582 = vmatprep.mubr.f32.mxu0 0.0
        %7583 = vmatmul.mubr.f32.gmra.mrb[0].mxu0 %v7393
        %v7584 = vpop.f32.mrb[0].mxu0
        %v7585 = vadd.f32 0.0, %v7584
        %v7586 = vpop.f32.mrb[0].mxu0
        %7587 = vmatprep.mubr.f32.mxu0 0.0
        %7588 = vmatmul.mubr.f32.gmra.mrb[0].mxu0 %v7394
        %v7589 = vpop.f32.mrb[0].mxu0
        %v7590 = vadd.f32 0.0, %v7589
        %v7591 = vpop.f32.mrb[0].mxu0
        %7592 = vmatprep.mubr.f32.mxu0 0.0
        %7593 = vmatmul.mubr.f32.gmra.mrb[0].mxu0 %v7395
        %v7594 = vpop.f32.mrb[0].mxu0
        %v7595 = vadd.f32 0.0, %v7594
        %v7596 = vpop.f32.mrb[0].mxu0
        %7597 = vmatprep.mubr.f32.mxu0 0.0
        %7598 = vmatmul.mubr.f32.gmra.mrb[0].mxu0 %v7396
        %v7599 = vpop.f32.mrb[0].mxu0
        %v7600 = vadd.f32 0.0, %v7599
        %v7601 = vpop.f32.mrb[0].mxu0
        %7602 = vmatprep.mubr.f32.mxu0 0.0
        %7603 = vmatmul.mubr.f32.gmra.mrb[0].mxu0 %v7397
        %v7604 = vpop.f32.mrb[0].mxu0
        %v7605 = vadd.f32 0.0, %v7604
        %v7606 = vpop.f32.mrb[0].mxu0
        %7607 = vmatprep.mubr.f32.mxu0 0.0
        %7608 = vmatmul.mubr.f32.gmra.mrb[0].mxu0 %v7398
        %v7609 = vpop.f32.mrb[0].mxu0
        %v7610 = vadd.f32 0.0, %v7609
        %v7611 = vpop.f32.mrb[0].mxu0
        %7612 = vmatprep.mubr.f32.mxu0 0.0
        %7613 = vmatmul.mubr.f32.gmra.mrb[0].mxu0 %v7399
        %v7614 = vpop.f32.mrb[0].mxu0
        %v7615 = vadd.f32 0.0, %v7614
        %v7616 = vpop.f32.mrb[0].mxu0
        %7617 = vmatprep.mubr.f32.mxu0 0.0
        %7618 = vmatmul.mubr.f32.gmra.mrb[0].mxu0 %v7400
        %v7619 = vpop.f32.mrb[0].mxu0
        %v7620 = vadd.f32 0.0, %v7619
        %v7621 = vpop.f32.mrb[0].mxu0
        %7622 = vmatprep.mubr.f32.mxu0 0.0
        %7623 = vmatmul.mubr.f32.gmra.mrb[0].mxu0 %v7401
        %v7624 = vpop.f32.mrb[0].mxu0
        %v7625 = vadd.f32 0.0, %v7624
        %v7626 = vpop.f32.mrb[0].mxu0
        %7627 = vmatprep.mubr.f32.mxu0 0.0
        %7628 = vmatmul.mubr.f32.gmra.mrb[0].mxu0 %v7402
        %v7629 = vpop.f32.mrb[0].mxu0
        %v7630 = vadd.f32 0.0, %v7629
        %v7631 = vpop.f32.mrb[0].mxu0
        %7632 = vmatprep.mubr.f32.mxu0 0.0
        %7633 = vmatmul.mubr.f32.gmra.mrb[0].mxu0 %v7403
        %v7634 = vpop.f32.mrb[0].mxu0
        %v7635 = vadd.f32 0.0, %v7634
        %v7636 = vpop.f32.mrb[0].mxu0
        %7637 = vmatprep.mubr.f32.mxu0 0.0
        %7638 = vmatmul.mubr.f32.gmra.mrb[0].mxu0 %v7404
        %v7639 = vpop.f32.mrb[0].mxu0
        %v7640 = vadd.f32 0.0, %v7639
        %v7641 = vpop.f32.mrb[0].mxu0
        %7642 = vmatprep.mubr.f32.mxu0 0.0
        %7643 = vmatmul.mubr.f32.gmra.mrb[0].mxu0 %v7405
        %v7644 = vpop.f32.mrb[0].mxu0
        %v7645 = vadd.f32 0.0, %v7644
        %v7646 = vpop.f32.mrb[0].mxu0
        %7647 = vdwg.mxu0
        %v7648 = vadd.f32 %v7342, %v7490
        %v7649 = vadd.f32 %v7343, %v7495
        %v7650 = vadd.f32 %v7344, %v7500
        %v7651 = vadd.f32 %v7345, %v7505
        %v7652 = vadd.f32 %v7346, %v7510
        %v7653 = vadd.f32 %v7347, %v7515
        %v7654 = vadd.f32 %v7348, %v7520
        %v7655 = vadd.f32 %v7349, %v7525
        %v7656 = vadd.f32 %v7350, %v7530
        %v7657 = vadd.f32 %v7351, %v7535
        %v7658 = vadd.f32 %v7352, %v7540
        %v7659 = vadd.f32 %v7353, %v7545
        %v7660 = vadd.f32 %v7354, %v7550
        %v7661 = vadd.f32 %v7355, %v7555
        %v7662 = vadd.f32 %v7356, %v7560
        %v7663 = vadd.f32 %v7357, %v7565
        %v7664 = vadd.f32 %v7358, %v7570
        %v7665 = vadd.f32 %v7359, %v7575
        %v7666 = vadd.f32 %v7360, %v7580
        %v7667 = vadd.f32 %v7361, %v7585
        %v7668 = vadd.f32 %v7362, %v7590
        %v7669 = vadd.f32 %v7363, %v7595
        %v7670 = vadd.f32 %v7364, %v7600
        %v7671 = vadd.f32 %v7365, %v7605
        %v7672 = vadd.f32 %v7366, %v7610
        %v7673 = vadd.f32 %v7367, %v7615
        %v7674 = vadd.f32 %v7368, %v7620
        %v7675 = vadd.f32 %v7369, %v7625
        %v7676 = vadd.f32 %v7370, %v7630
        %v7677 = vadd.f32 %v7371, %v7635
        %v7678 = vadd.f32 %v7372, %v7640
        %v7679 = vadd.f32 %v7373, %v7645
        %v7680 = vld [vmem:[%s2092 + $0xf] sm:$0xff]
        %v7681 = vld [vmem:[%s2092 + $0x17] sm:$0xff]
        %v7682 = vld [vmem:[%s2092 + $0x3f] sm:$0xff]
        %v7683 = vld [vmem:[%s2092 + $0x47] sm:$0xff]
        %v7684 = vld [vmem:[%s2092 + $0x6f] sm:$0xff]
        %v7685 = vld [vmem:[%s2092 + $0x77] sm:$0xff]
        %v7686 = vld [vmem:[%s2092 + $0x9f] sm:$0xff]
        %v7687 = vld [vmem:[%s2092 + $0xa7] sm:$0xff]
        %v7688 = vld [vmem:[%s2092 + $0xcf] sm:$0xff]
        %v7689 = vld [vmem:[%s2092 + $0xd7] sm:$0xff]
        %v7690 = vld [vmem:[%s2092 + $0xff] sm:$0xff]
        %v7691 = vld [vmem:[%s2092 + $0x107] sm:$0xff]
        %v7692 = vld [vmem:[%s2092 + $0x12f] sm:$0xff]
        %v7693 = vld [vmem:[%s2092 + $0x137] sm:$0xff]
        %v7694 = vld [vmem:[%s2092 + $0x15f] sm:$0xff]
        %v7695 = vld [vmem:[%s2092 + $0x167] sm:$0xff]
        %v7696 = vld [vmem:[%s2092 + $0x18f] sm:$0xff]
        %v7697 = vld [vmem:[%s2092 + $0x197] sm:$0xff]
        %v7698 = vld [vmem:[%s2092 + $0x1bf] sm:$0xff]
        %v7699 = vld [vmem:[%s2092 + $0x1c7] sm:$0xff]
        %v7700 = vld [vmem:[%s2092 + $0x1ef] sm:$0xff]
        %v7701 = vld [vmem:[%s2092 + $0x1f7] sm:$0xff]
        %v7702 = vld [vmem:[%s2092 + $0x21f] sm:$0xff]
        %v7703 = vld [vmem:[%s2092 + $0x227] sm:$0xff]
        %v7704 = vld [vmem:[%s2092 + $0x24f] sm:$0xff]
        %v7705 = vld [vmem:[%s2092 + $0x257] sm:$0xff]
        %v7706 = vld [vmem:[%s2092 + $0x27f] sm:$0xff]
        %v7707 = vld [vmem:[%s2092 + $0x287] sm:$0xff]
        %v7708 = vld [vmem:[%s2092 + $0x2af] sm:$0xff]
        %v7709 = vld [vmem:[%s2092 + $0x2b7] sm:$0xff]
        %v7710 = vld [vmem:[%s2092 + $0x2df] sm:$0xff]
        %v7711 = vld [vmem:[%s2092 + $0x2e7] sm:$0xff]
        %s7712 = scalar_lea.vmem [#allocation3], 3072
        %v7713 = vld [vmem:[%s7712] sm:$0xff]
        %v7714 = vld [vmem:[%s7712 + $0x8] sm:$0xff]
        %v7715 = vld [vmem:[%s7712 + $0x10] sm:$0xff]
        %v7716 = vld [vmem:[%s7712 + $0x18] sm:$0xff]
        %v7717 = vld [vmem:[%s7712 + $0x20] sm:$0xff]
        %v7718 = vld [vmem:[%s7712 + $0x28] sm:$0xff]
        %v7719 = vld [vmem:[%s7712 + $0x30] sm:$0xff]
        %v7720 = vld [vmem:[%s7712 + $0x38] sm:$0xff]
        %v7721 = vld [vmem:[%s7712 + $0x40] sm:$0xff]
        %v7722 = vld [vmem:[%s7712 + $0x48] sm:$0xff]
        %v7723 = vld [vmem:[%s7712 + $0x50] sm:$0xff]
        %v7724 = vld [vmem:[%s7712 + $0x58] sm:$0xff]
        %v7725 = vld [vmem:[%s7712 + $0x60] sm:$0xff]
        %v7726 = vld [vmem:[%s7712 + $0x68] sm:$0xff]
        %v7727 = vld [vmem:[%s7712 + $0x70] sm:$0xff]
        %v7728 = vld [vmem:[%s7712 + $0x78] sm:$0xff]
        %7729 = vmatprep.subr.mxu0 0.0
        %7730 = vmatpush1.msra.mxu0 %v7713
        %7731 = vmatprep.subr.mxu0 0.0
        %7732 = vmatpush1.msra.mxu0 %v7714
        %7733 = vmatprep.subr.mxu0 0.0
        %7734 = vmatpush1.msra.mxu0 %v7715
        %7735 = vmatprep.subr.mxu0 0.0
        %7736 = vmatpush1.msra.mxu0 %v7716
        %7737 = vmatprep.subr.mxu0 0.0
        %7738 = vmatpush1.msra.mxu0 %v7717
        %7739 = vmatprep.subr.mxu0 0.0
        %7740 = vmatpush1.msra.mxu0 %v7718
        %7741 = vmatprep.subr.mxu0 0.0
        %7742 = vmatpush1.msra.mxu0 %v7719
        %7743 = vmatprep.subr.mxu0 0.0
        %7744 = vmatpush1.msra.mxu0 %v7720
        %7745 = vmatprep.subr.mxu0 0.0
        %7746 = vmatpush1.msra.mxu0 %v7721
        %7747 = vmatprep.subr.mxu0 0.0
        %7748 = vmatpush1.msra.mxu0 %v7722
        %7749 = vmatprep.subr.mxu0 0.0
        %7750 = vmatpush1.msra.mxu0 %v7723
        %7751 = vmatprep.subr.mxu0 0.0
        %7752 = vmatpush1.msra.mxu0 %v7724
        %7753 = vmatprep.subr.mxu0 0.0
        %7754 = vmatpush1.msra.mxu0 %v7725
        %7755 = vmatprep.subr.mxu0 0.0
        %7756 = vmatpush1.msra.mxu0 %v7726
        %7757 = vmatprep.subr.mxu0 0.0
        %7758 = vmatpush1.msra.mxu0 %v7727
        %7759 = vmatprep.subr.mxu0 0.0
        %7760 = vmatpush1.msra.mxu0 %v7728
        %7761 = vmatprep.subr.mxu0 0.0
        %7762 = vmatpush1.msra.mxu0 0.0
        %7763 = vmatprep.subr.mxu0 0.0
        %7764 = vmatpush1.msra.mxu0 0.0
        %7765 = vmatprep.subr.mxu0 0.0
        %7766 = vmatpush1.msra.mxu0 0.0
        %7767 = vmatprep.subr.mxu0 0.0
        %7768 = vmatpush1.msra.mxu0 0.0
        %7769 = vmatprep.subr.mxu0 0.0
        %7770 = vmatpush1.msra.mxu0 0.0
        %7771 = vmatprep.subr.mxu0 0.0
        %7772 = vmatpush1.msra.mxu0 0.0
        %7773 = vmatprep.subr.mxu0 0.0
        %7774 = vmatpush1.msra.mxu0 0.0
        %7775 = vmatprep.subr.mxu0 0.0
        %7776 = vmatpush1.msra.mxu0 0.0
        %7777 = vmatprep.subr.mxu0 0.0
        %7778 = vmatpush1.msra.mxu0 0.0
        %7779 = vmatprep.subr.mxu0 0.0
        %7780 = vmatpush1.msra.mxu0 0.0
        %7781 = vmatprep.subr.mxu0 0.0
        %7782 = vmatpush1.msra.mxu0 0.0
        %7783 = vmatprep.subr.mxu0 0.0
        %7784 = vmatpush1.msra.mxu0 0.0
        %7785 = vmatprep.subr.mxu0 0.0
        %7786 = vmatpush1.msra.mxu0 0.0
        %7787 = vmatprep.subr.mxu0 0.0
        %7788 = vmatpush1.msra.mxu0 0.0
        %7789 = vmatprep.subr.mxu0 0.0
        %7790 = vmatpush1.msra.mxu0 0.0
        %7791 = vmatprep.subr.mxu0 0.0
        %7792 = vmatpush1.msra.mxu0 0.0
        %7793 = vmatprep.mubr.f32.mxu0 0.0
        %7794 = vmatmul.mubr.f32.gmra.mrb[0].mxu0 %v7680
        %v7795 = vpop.f32.mrb[0].mxu0
        %v7796 = vadd.f32 0.0, %v7795
        %v7797 = vpop.f32.mrb[0].mxu0
        %7798 = vmatprep.mubr.f32.mxu0 0.0
        %7799 = vmatmul.mubr.f32.gmra.mrb[0].mxu0 %v7681
        %v7800 = vpop.f32.mrb[0].mxu0
        %v7801 = vadd.f32 0.0, %v7800
        %v7802 = vpop.f32.mrb[0].mxu0
        %7803 = vmatprep.mubr.f32.mxu0 0.0
        %7804 = vmatmul.mubr.f32.gmra.mrb[0].mxu0 %v7682
        %v7805 = vpop.f32.mrb[0].mxu0
        %v7806 = vadd.f32 0.0, %v7805
        %v7807 = vpop.f32.mrb[0].mxu0
        %7808 = vmatprep.mubr.f32.mxu0 0.0
        %7809 = vmatmul.mubr.f32.gmra.mrb[0].mxu0 %v7683
        %v7810 = vpop.f32.mrb[0].mxu0
        %v7811 = vadd.f32 0.0, %v7810
        %v7812 = vpop.f32.mrb[0].mxu0
        %7813 = vmatprep.mubr.f32.mxu0 0.0
        %7814 = vmatmul.mubr.f32.gmra.mrb[0].mxu0 %v7684
        %v7815 = vpop.f32.mrb[0].mxu0
        %v7816 = vadd.f32 0.0, %v7815
        %v7817 = vpop.f32.mrb[0].mxu0
        %7818 = vmatprep.mubr.f32.mxu0 0.0
        %7819 = vmatmul.mubr.f32.gmra.mrb[0].mxu0 %v7685
        %v7820 = vpop.f32.mrb[0].mxu0
        %v7821 = vadd.f32 0.0, %v7820
        %v7822 = vpop.f32.mrb[0].mxu0
        %7823 = vmatprep.mubr.f32.mxu0 0.0
        %7824 = vmatmul.mubr.f32.gmra.mrb[0].mxu0 %v7686
        %v7825 = vpop.f32.mrb[0].mxu0
        %v7826 = vadd.f32 0.0, %v7825
        %v7827 = vpop.f32.mrb[0].mxu0
        %7828 = vmatprep.mubr.f32.mxu0 0.0
        %7829 = vmatmul.mubr.f32.gmra.mrb[0].mxu0 %v7687
        %v7830 = vpop.f32.mrb[0].mxu0
        %v7831 = vadd.f32 0.0, %v7830
        %v7832 = vpop.f32.mrb[0].mxu0
        %7833 = vmatprep.mubr.f32.mxu0 0.0
        %7834 = vmatmul.mubr.f32.gmra.mrb[0].mxu0 %v7688
        %v7835 = vpop.f32.mrb[0].mxu0
        %v7836 = vadd.f32 0.0, %v7835
        %v7837 = vpop.f32.mrb[0].mxu0
        %7838 = vmatprep.mubr.f32.mxu0 0.0
        %7839 = vmatmul.mubr.f32.gmra.mrb[0].mxu0 %v7689
        %v7840 = vpop.f32.mrb[0].mxu0
        %v7841 = vadd.f32 0.0, %v7840
        %v7842 = vpop.f32.mrb[0].mxu0
        %7843 = vmatprep.mubr.f32.mxu0 0.0
        %7844 = vmatmul.mubr.f32.gmra.mrb[0].mxu0 %v7690
        %v7845 = vpop.f32.mrb[0].mxu0
        %v7846 = vadd.f32 0.0, %v7845
        %v7847 = vpop.f32.mrb[0].mxu0
        %7848 = vmatprep.mubr.f32.mxu0 0.0
        %7849 = vmatmul.mubr.f32.gmra.mrb[0].mxu0 %v7691
        %v7850 = vpop.f32.mrb[0].mxu0
        %v7851 = vadd.f32 0.0, %v7850
        %v7852 = vpop.f32.mrb[0].mxu0
        %7853 = vmatprep.mubr.f32.mxu0 0.0
        %7854 = vmatmul.mubr.f32.gmra.mrb[0].mxu0 %v7692
        %v7855 = vpop.f32.mrb[0].mxu0
        %v7856 = vadd.f32 0.0, %v7855
        %v7857 = vpop.f32.mrb[0].mxu0
        %7858 = vmatprep.mubr.f32.mxu0 0.0
        %7859 = vmatmul.mubr.f32.gmra.mrb[0].mxu0 %v7693
        %v7860 = vpop.f32.mrb[0].mxu0
        %v7861 = vadd.f32 0.0, %v7860
        %v7862 = vpop.f32.mrb[0].mxu0
        %7863 = vmatprep.mubr.f32.mxu0 0.0
        %7864 = vmatmul.mubr.f32.gmra.mrb[0].mxu0 %v7694
        %v7865 = vpop.f32.mrb[0].mxu0
        %v7866 = vadd.f32 0.0, %v7865
        %v7867 = vpop.f32.mrb[0].mxu0
        %7868 = vmatprep.mubr.f32.mxu0 0.0
        %7869 = vmatmul.mubr.f32.gmra.mrb[0].mxu0 %v7695
        %v7870 = vpop.f32.mrb[0].mxu0
        %v7871 = vadd.f32 0.0, %v7870
        %v7872 = vpop.f32.mrb[0].mxu0
        %7873 = vmatprep.mubr.f32.mxu0 0.0
        %7874 = vmatmul.mubr.f32.gmra.mrb[0].mxu0 %v7696
        %v7875 = vpop.f32.mrb[0].mxu0
        %v7876 = vadd.f32 0.0, %v7875
        %v7877 = vpop.f32.mrb[0].mxu0
        %7878 = vmatprep.mubr.f32.mxu0 0.0
        %7879 = vmatmul.mubr.f32.gmra.mrb[0].mxu0 %v7697
        %v7880 = vpop.f32.mrb[0].mxu0
        %v7881 = vadd.f32 0.0, %v7880
        %v7882 = vpop.f32.mrb[0].mxu0
        %7883 = vmatprep.mubr.f32.mxu0 0.0
        %7884 = vmatmul.mubr.f32.gmra.mrb[0].mxu0 %v7698
        %v7885 = vpop.f32.mrb[0].mxu0
        %v7886 = vadd.f32 0.0, %v7885
        %v7887 = vpop.f32.mrb[0].mxu0
        %7888 = vmatprep.mubr.f32.mxu0 0.0
        %7889 = vmatmul.mubr.f32.gmra.mrb[0].mxu0 %v7699
        %v7890 = vpop.f32.mrb[0].mxu0
        %v7891 = vadd.f32 0.0, %v7890
        %v7892 = vpop.f32.mrb[0].mxu0
        %7893 = vmatprep.mubr.f32.mxu0 0.0
        %7894 = vmatmul.mubr.f32.gmra.mrb[0].mxu0 %v7700
        %v7895 = vpop.f32.mrb[0].mxu0
        %v7896 = vadd.f32 0.0, %v7895
        %v7897 = vpop.f32.mrb[0].mxu0
        %7898 = vmatprep.mubr.f32.mxu0 0.0
        %7899 = vmatmul.mubr.f32.gmra.mrb[0].mxu0 %v7701
        %v7900 = vpop.f32.mrb[0].mxu0
        %v7901 = vadd.f32 0.0, %v7900
        %v7902 = vpop.f32.mrb[0].mxu0
        %7903 = vmatprep.mubr.f32.mxu0 0.0
        %7904 = vmatmul.mubr.f32.gmra.mrb[0].mxu0 %v7702
        %v7905 = vpop.f32.mrb[0].mxu0
        %v7906 = vadd.f32 0.0, %v7905
        %v7907 = vpop.f32.mrb[0].mxu0
        %7908 = vmatprep.mubr.f32.mxu0 0.0
        %7909 = vmatmul.mubr.f32.gmra.mrb[0].mxu0 %v7703
        %v7910 = vpop.f32.mrb[0].mxu0
        %v7911 = vadd.f32 0.0, %v7910
        %v7912 = vpop.f32.mrb[0].mxu0
        %7913 = vmatprep.mubr.f32.mxu0 0.0
        %7914 = vmatmul.mubr.f32.gmra.mrb[0].mxu0 %v7704
        %v7915 = vpop.f32.mrb[0].mxu0
        %v7916 = vadd.f32 0.0, %v7915
        %v7917 = vpop.f32.mrb[0].mxu0
        %7918 = vmatprep.mubr.f32.mxu0 0.0
        %7919 = vmatmul.mubr.f32.gmra.mrb[0].mxu0 %v7705
        %v7920 = vpop.f32.mrb[0].mxu0
        %v7921 = vadd.f32 0.0, %v7920
        %v7922 = vpop.f32.mrb[0].mxu0
        %7923 = vmatprep.mubr.f32.mxu0 0.0
        %7924 = vmatmul.mubr.f32.gmra.mrb[0].mxu0 %v7706
        %v7925 = vpop.f32.mrb[0].mxu0
        %v7926 = vadd.f32 0.0, %v7925
        %v7927 = vpop.f32.mrb[0].mxu0
        %7928 = vmatprep.mubr.f32.mxu0 0.0
        %7929 = vmatmul.mubr.f32.gmra.mrb[0].mxu0 %v7707
        %v7930 = vpop.f32.mrb[0].mxu0
        %v7931 = vadd.f32 0.0, %v7930
        %v7932 = vpop.f32.mrb[0].mxu0
        %7933 = vmatprep.mubr.f32.mxu0 0.0
        %7934 = vmatmul.mubr.f32.gmra.mrb[0].mxu0 %v7708
        %v7935 = vpop.f32.mrb[0].mxu0
        %v7936 = vadd.f32 0.0, %v7935
        %v7937 = vpop.f32.mrb[0].mxu0
        %7938 = vmatprep.mubr.f32.mxu0 0.0
        %7939 = vmatmul.mubr.f32.gmra.mrb[0].mxu0 %v7709
        %v7940 = vpop.f32.mrb[0].mxu0
        %v7941 = vadd.f32 0.0, %v7940
        %v7942 = vpop.f32.mrb[0].mxu0
        %7943 = vmatprep.mubr.f32.mxu0 0.0
        %7944 = vmatmul.mubr.f32.gmra.mrb[0].mxu0 %v7710
        %v7945 = vpop.f32.mrb[0].mxu0
        %v7946 = vadd.f32 0.0, %v7945
        %v7947 = vpop.f32.mrb[0].mxu0
        %7948 = vmatprep.mubr.f32.mxu0 0.0
        %7949 = vmatmul.mubr.f32.gmra.mrb[0].mxu0 %v7711
        %v7950 = vpop.f32.mrb[0].mxu0
        %v7951 = vadd.f32 0.0, %v7950
        %v7952 = vpop.f32.mrb[0].mxu0
        %7953 = vdwg.mxu0
        %v7954 = vadd.f32 %v7648, %v7796
        %v7955 = vadd.f32 %v7649, %v7801
        %v7956 = vadd.f32 %v7650, %v7806
        %v7957 = vadd.f32 %v7651, %v7811
        %v7958 = vadd.f32 %v7652, %v7816
        %v7959 = vadd.f32 %v7653, %v7821
        %v7960 = vadd.f32 %v7654, %v7826
        %v7961 = vadd.f32 %v7655, %v7831
        %v7962 = vadd.f32 %v7656, %v7836
        %v7963 = vadd.f32 %v7657, %v7841
        %v7964 = vadd.f32 %v7658, %v7846
        %v7965 = vadd.f32 %v7659, %v7851
        %v7966 = vadd.f32 %v7660, %v7856
        %v7967 = vadd.f32 %v7661, %v7861
        %v7968 = vadd.f32 %v7662, %v7866
        %v7969 = vadd.f32 %v7663, %v7871
        %v7970 = vadd.f32 %v7664, %v7876
        %v7971 = vadd.f32 %v7665, %v7881
        %v7972 = vadd.f32 %v7666, %v7886
        %v7973 = vadd.f32 %v7667, %v7891
        %v7974 = vadd.f32 %v7668, %v7896
        %v7975 = vadd.f32 %v7669, %v7901
        %v7976 = vadd.f32 %v7670, %v7906
        %v7977 = vadd.f32 %v7671, %v7911
        %v7978 = vadd.f32 %v7672, %v7916
        %v7979 = vadd.f32 %v7673, %v7921
        %v7980 = vadd.f32 %v7674, %v7926
        %v7981 = vadd.f32 %v7675, %v7931
        %v7982 = vadd.f32 %v7676, %v7936
        %v7983 = vadd.f32 %v7677, %v7941
        %v7984 = vadd.f32 %v7678, %v7946
        %v7985 = vadd.f32 %v7679, %v7951
        %v7986 = vld [vmem:[%s2092 + $0x10] sm:$0xff]
        %v7987 = vld [vmem:[%s2092 + $0x18] sm:$0xff]
        %v7988 = vld [vmem:[%s2092 + $0x40] sm:$0xff]
        %v7989 = vld [vmem:[%s2092 + $0x48] sm:$0xff]
        %v7990 = vld [vmem:[%s2092 + $0x70] sm:$0xff]
        %v7991 = vld [vmem:[%s2092 + $0x78] sm:$0xff]
        %v7992 = vld [vmem:[%s2092 + $0xa0] sm:$0xff]
        %v7993 = vld [vmem:[%s2092 + $0xa8] sm:$0xff]
        %v7994 = vld [vmem:[%s2092 + $0xd0] sm:$0xff]
        %v7995 = vld [vmem:[%s2092 + $0xd8] sm:$0xff]
        %v7996 = vld [vmem:[%s2092 + $0x100] sm:$0xff]
        %v7997 = vld [vmem:[%s2092 + $0x108] sm:$0xff]
        %v7998 = vld [vmem:[%s2092 + $0x130] sm:$0xff]
        %v7999 = vld [vmem:[%s2092 + $0x138] sm:$0xff]
        %v8000 = vld [vmem:[%s2092 + $0x160] sm:$0xff]
        %v8001 = vld [vmem:[%s2092 + $0x168] sm:$0xff]
        %v8002 = vld [vmem:[%s2092 + $0x190] sm:$0xff]
        %v8003 = vld [vmem:[%s2092 + $0x198] sm:$0xff]
        %v8004 = vld [vmem:[%s2092 + $0x1c0] sm:$0xff]
        %v8005 = vld [vmem:[%s2092 + $0x1c8] sm:$0xff]
        %v8006 = vld [vmem:[%s2092 + $0x1f0] sm:$0xff]
        %v8007 = vld [vmem:[%s2092 + $0x1f8] sm:$0xff]
        %v8008 = vld [vmem:[%s2092 + $0x220] sm:$0xff]
        %v8009 = vld [vmem:[%s2092 + $0x228] sm:$0xff]
        %v8010 = vld [vmem:[%s2092 + $0x250] sm:$0xff]
        %v8011 = vld [vmem:[%s2092 + $0x258] sm:$0xff]
        %v8012 = vld [vmem:[%s2092 + $0x280] sm:$0xff]
        %v8013 = vld [vmem:[%s2092 + $0x288] sm:$0xff]
        %v8014 = vld [vmem:[%s2092 + $0x2b0] sm:$0xff]
        %v8015 = vld [vmem:[%s2092 + $0x2b8] sm:$0xff]
        %v8016 = vld [vmem:[%s2092 + $0x2e0] sm:$0xff]
        %v8017 = vld [vmem:[%s2092 + $0x2e8] sm:$0xff]
        %s8018 = scalar_lea.vmem [#allocation3], 3200
        %v8019 = vld [vmem:[%s8018] sm:$0xff]
        %v8020 = vld [vmem:[%s8018 + $0x8] sm:$0xff]
        %v8021 = vld [vmem:[%s8018 + $0x10] sm:$0xff]
        %v8022 = vld [vmem:[%s8018 + $0x18] sm:$0xff]
        %v8023 = vld [vmem:[%s8018 + $0x20] sm:$0xff]
        %v8024 = vld [vmem:[%s8018 + $0x28] sm:$0xff]
        %v8025 = vld [vmem:[%s8018 + $0x30] sm:$0xff]
        %v8026 = vld [vmem:[%s8018 + $0x38] sm:$0xff]
        %v8027 = vld [vmem:[%s8018 + $0x40] sm:$0xff]
        %v8028 = vld [vmem:[%s8018 + $0x48] sm:$0xff]
        %v8029 = vld [vmem:[%s8018 + $0x50] sm:$0xff]
        %v8030 = vld [vmem:[%s8018 + $0x58] sm:$0xff]
        %v8031 = vld [vmem:[%s8018 + $0x60] sm:$0xff]
        %v8032 = vld [vmem:[%s8018 + $0x68] sm:$0xff]
        %v8033 = vld [vmem:[%s8018 + $0x70] sm:$0xff]
        %v8034 = vld [vmem:[%s8018 + $0x78] sm:$0xff]
        %8035 = vmatprep.subr.mxu0 0.0
        %8036 = vmatpush1.msra.mxu0 %v8019
        %8037 = vmatprep.subr.mxu0 0.0
        %8038 = vmatpush1.msra.mxu0 %v8020
        %8039 = vmatprep.subr.mxu0 0.0
        %8040 = vmatpush1.msra.mxu0 %v8021
        %8041 = vmatprep.subr.mxu0 0.0
        %8042 = vmatpush1.msra.mxu0 %v8022
        %8043 = vmatprep.subr.mxu0 0.0
        %8044 = vmatpush1.msra.mxu0 %v8023
        %8045 = vmatprep.subr.mxu0 0.0
        %8046 = vmatpush1.msra.mxu0 %v8024
        %8047 = vmatprep.subr.mxu0 0.0
        %8048 = vmatpush1.msra.mxu0 %v8025
        %8049 = vmatprep.subr.mxu0 0.0
        %8050 = vmatpush1.msra.mxu0 %v8026
        %8051 = vmatprep.subr.mxu0 0.0
        %8052 = vmatpush1.msra.mxu0 %v8027
        %8053 = vmatprep.subr.mxu0 0.0
        %8054 = vmatpush1.msra.mxu0 %v8028
        %8055 = vmatprep.subr.mxu0 0.0
        %8056 = vmatpush1.msra.mxu0 %v8029
        %8057 = vmatprep.subr.mxu0 0.0
        %8058 = vmatpush1.msra.mxu0 %v8030
        %8059 = vmatprep.subr.mxu0 0.0
        %8060 = vmatpush1.msra.mxu0 %v8031
        %8061 = vmatprep.subr.mxu0 0.0
        %8062 = vmatpush1.msra.mxu0 %v8032
        %8063 = vmatprep.subr.mxu0 0.0
        %8064 = vmatpush1.msra.mxu0 %v8033
        %8065 = vmatprep.subr.mxu0 0.0
        %8066 = vmatpush1.msra.mxu0 %v8034
        %8067 = vmatprep.subr.mxu0 0.0
        %8068 = vmatpush1.msra.mxu0 0.0
        %8069 = vmatprep.subr.mxu0 0.0
        %8070 = vmatpush1.msra.mxu0 0.0
        %8071 = vmatprep.subr.mxu0 0.0
        %8072 = vmatpush1.msra.mxu0 0.0
        %8073 = vmatprep.subr.mxu0 0.0
        %8074 = vmatpush1.msra.mxu0 0.0
        %8075 = vmatprep.subr.mxu0 0.0
        %8076 = vmatpush1.msra.mxu0 0.0
        %8077 = vmatprep.subr.mxu0 0.0
        %8078 = vmatpush1.msra.mxu0 0.0
        %8079 = vmatprep.subr.mxu0 0.0
        %8080 = vmatpush1.msra.mxu0 0.0
        %8081 = vmatprep.subr.mxu0 0.0
        %8082 = vmatpush1.msra.mxu0 0.0
        %8083 = vmatprep.subr.mxu0 0.0
        %8084 = vmatpush1.msra.mxu0 0.0
        %8085 = vmatprep.subr.mxu0 0.0
        %8086 = vmatpush1.msra.mxu0 0.0
        %8087 = vmatprep.subr.mxu0 0.0
        %8088 = vmatpush1.msra.mxu0 0.0
        %8089 = vmatprep.subr.mxu0 0.0
        %8090 = vmatpush1.msra.mxu0 0.0
        %8091 = vmatprep.subr.mxu0 0.0
        %8092 = vmatpush1.msra.mxu0 0.0
        %8093 = vmatprep.subr.mxu0 0.0
        %8094 = vmatpush1.msra.mxu0 0.0
        %8095 = vmatprep.subr.mxu0 0.0
        %8096 = vmatpush1.msra.mxu0 0.0
        %8097 = vmatprep.subr.mxu0 0.0
        %8098 = vmatpush1.msra.mxu0 0.0
        %8099 = vmatprep.mubr.f32.mxu0 0.0
        %8100 = vmatmul.mubr.f32.gmra.mrb[0].mxu0 %v7986
        %v8101 = vpop.f32.mrb[0].mxu0
        %v8102 = vadd.f32 0.0, %v8101
        %v8103 = vpop.f32.mrb[0].mxu0
        %8104 = vmatprep.mubr.f32.mxu0 0.0
        %8105 = vmatmul.mubr.f32.gmra.mrb[0].mxu0 %v7987
        %v8106 = vpop.f32.mrb[0].mxu0
        %v8107 = vadd.f32 0.0, %v8106
        %v8108 = vpop.f32.mrb[0].mxu0
        %8109 = vmatprep.mubr.f32.mxu0 0.0
        %8110 = vmatmul.mubr.f32.gmra.mrb[0].mxu0 %v7988
        %v8111 = vpop.f32.mrb[0].mxu0
        %v8112 = vadd.f32 0.0, %v8111
        %v8113 = vpop.f32.mrb[0].mxu0
        %8114 = vmatprep.mubr.f32.mxu0 0.0
        %8115 = vmatmul.mubr.f32.gmra.mrb[0].mxu0 %v7989
        %v8116 = vpop.f32.mrb[0].mxu0
        %v8117 = vadd.f32 0.0, %v8116
        %v8118 = vpop.f32.mrb[0].mxu0
        %8119 = vmatprep.mubr.f32.mxu0 0.0
        %8120 = vmatmul.mubr.f32.gmra.mrb[0].mxu0 %v7990
        %v8121 = vpop.f32.mrb[0].mxu0
        %v8122 = vadd.f32 0.0, %v8121
        %v8123 = vpop.f32.mrb[0].mxu0
        %8124 = vmatprep.mubr.f32.mxu0 0.0
        %8125 = vmatmul.mubr.f32.gmra.mrb[0].mxu0 %v7991
        %v8126 = vpop.f32.mrb[0].mxu0
        %v8127 = vadd.f32 0.0, %v8126
        %v8128 = vpop.f32.mrb[0].mxu0
        %8129 = vmatprep.mubr.f32.mxu0 0.0
        %8130 = vmatmul.mubr.f32.gmra.mrb[0].mxu0 %v7992
        %v8131 = vpop.f32.mrb[0].mxu0
        %v8132 = vadd.f32 0.0, %v8131
        %v8133 = vpop.f32.mrb[0].mxu0
        %8134 = vmatprep.mubr.f32.mxu0 0.0
        %8135 = vmatmul.mubr.f32.gmra.mrb[0].mxu0 %v7993
        %v8136 = vpop.f32.mrb[0].mxu0
        %v8137 = vadd.f32 0.0, %v8136
        %v8138 = vpop.f32.mrb[0].mxu0
        %8139 = vmatprep.mubr.f32.mxu0 0.0
        %8140 = vmatmul.mubr.f32.gmra.mrb[0].mxu0 %v7994
        %v8141 = vpop.f32.mrb[0].mxu0
        %v8142 = vadd.f32 0.0, %v8141
        %v8143 = vpop.f32.mrb[0].mxu0
        %8144 = vmatprep.mubr.f32.mxu0 0.0
        %8145 = vmatmul.mubr.f32.gmra.mrb[0].mxu0 %v7995
        %v8146 = vpop.f32.mrb[0].mxu0
        %v8147 = vadd.f32 0.0, %v8146
        %v8148 = vpop.f32.mrb[0].mxu0
        %8149 = vmatprep.mubr.f32.mxu0 0.0
        %8150 = vmatmul.mubr.f32.gmra.mrb[0].mxu0 %v7996
        %v8151 = vpop.f32.mrb[0].mxu0
        %v8152 = vadd.f32 0.0, %v8151
        %v8153 = vpop.f32.mrb[0].mxu0
        %8154 = vmatprep.mubr.f32.mxu0 0.0
        %8155 = vmatmul.mubr.f32.gmra.mrb[0].mxu0 %v7997
        %v8156 = vpop.f32.mrb[0].mxu0
        %v8157 = vadd.f32 0.0, %v8156
        %v8158 = vpop.f32.mrb[0].mxu0
        %8159 = vmatprep.mubr.f32.mxu0 0.0
        %8160 = vmatmul.mubr.f32.gmra.mrb[0].mxu0 %v7998
        %v8161 = vpop.f32.mrb[0].mxu0
        %v8162 = vadd.f32 0.0, %v8161
        %v8163 = vpop.f32.mrb[0].mxu0
        %8164 = vmatprep.mubr.f32.mxu0 0.0
        %8165 = vmatmul.mubr.f32.gmra.mrb[0].mxu0 %v7999
        %v8166 = vpop.f32.mrb[0].mxu0
        %v8167 = vadd.f32 0.0, %v8166
        %v8168 = vpop.f32.mrb[0].mxu0
        %8169 = vmatprep.mubr.f32.mxu0 0.0
        %8170 = vmatmul.mubr.f32.gmra.mrb[0].mxu0 %v8000
        %v8171 = vpop.f32.mrb[0].mxu0
        %v8172 = vadd.f32 0.0, %v8171
        %v8173 = vpop.f32.mrb[0].mxu0
        %8174 = vmatprep.mubr.f32.mxu0 0.0
        %8175 = vmatmul.mubr.f32.gmra.mrb[0].mxu0 %v8001
        %v8176 = vpop.f32.mrb[0].mxu0
        %v8177 = vadd.f32 0.0, %v8176
        %v8178 = vpop.f32.mrb[0].mxu0
        %8179 = vmatprep.mubr.f32.mxu0 0.0
        %8180 = vmatmul.mubr.f32.gmra.mrb[0].mxu0 %v8002
        %v8181 = vpop.f32.mrb[0].mxu0
        %v8182 = vadd.f32 0.0, %v8181
        %v8183 = vpop.f32.mrb[0].mxu0
        %8184 = vmatprep.mubr.f32.mxu0 0.0
        %8185 = vmatmul.mubr.f32.gmra.mrb[0].mxu0 %v8003
        %v8186 = vpop.f32.mrb[0].mxu0
        %v8187 = vadd.f32 0.0, %v8186
        %v8188 = vpop.f32.mrb[0].mxu0
        %8189 = vmatprep.mubr.f32.mxu0 0.0
        %8190 = vmatmul.mubr.f32.gmra.mrb[0].mxu0 %v8004
        %v8191 = vpop.f32.mrb[0].mxu0
        %v8192 = vadd.f32 0.0, %v8191
        %v8193 = vpop.f32.mrb[0].mxu0
        %8194 = vmatprep.mubr.f32.mxu0 0.0
        %8195 = vmatmul.mubr.f32.gmra.mrb[0].mxu0 %v8005
        %v8196 = vpop.f32.mrb[0].mxu0
        %v8197 = vadd.f32 0.0, %v8196
        %v8198 = vpop.f32.mrb[0].mxu0
        %8199 = vmatprep.mubr.f32.mxu0 0.0
        %8200 = vmatmul.mubr.f32.gmra.mrb[0].mxu0 %v8006
        %v8201 = vpop.f32.mrb[0].mxu0
        %v8202 = vadd.f32 0.0, %v8201
        %v8203 = vpop.f32.mrb[0].mxu0
        %8204 = vmatprep.mubr.f32.mxu0 0.0
        %8205 = vmatmul.mubr.f32.gmra.mrb[0].mxu0 %v8007
        %v8206 = vpop.f32.mrb[0].mxu0
        %v8207 = vadd.f32 0.0, %v8206
        %v8208 = vpop.f32.mrb[0].mxu0
        %8209 = vmatprep.mubr.f32.mxu0 0.0
        %8210 = vmatmul.mubr.f32.gmra.mrb[0].mxu0 %v8008
        %v8211 = vpop.f32.mrb[0].mxu0
        %v8212 = vadd.f32 0.0, %v8211
        %v8213 = vpop.f32.mrb[0].mxu0
        %8214 = vmatprep.mubr.f32.mxu0 0.0
        %8215 = vmatmul.mubr.f32.gmra.mrb[0].mxu0 %v8009
        %v8216 = vpop.f32.mrb[0].mxu0
        %v8217 = vadd.f32 0.0, %v8216
        %v8218 = vpop.f32.mrb[0].mxu0
        %8219 = vmatprep.mubr.f32.mxu0 0.0
        %8220 = vmatmul.mubr.f32.gmra.mrb[0].mxu0 %v8010
        %v8221 = vpop.f32.mrb[0].mxu0
        %v8222 = vadd.f32 0.0, %v8221
        %v8223 = vpop.f32.mrb[0].mxu0
        %8224 = vmatprep.mubr.f32.mxu0 0.0
        %8225 = vmatmul.mubr.f32.gmra.mrb[0].mxu0 %v8011
        %v8226 = vpop.f32.mrb[0].mxu0
        %v8227 = vadd.f32 0.0, %v8226
        %v8228 = vpop.f32.mrb[0].mxu0
        %8229 = vmatprep.mubr.f32.mxu0 0.0
        %8230 = vmatmul.mubr.f32.gmra.mrb[0].mxu0 %v8012
        %v8231 = vpop.f32.mrb[0].mxu0
        %v8232 = vadd.f32 0.0, %v8231
        %v8233 = vpop.f32.mrb[0].mxu0
        %8234 = vmatprep.mubr.f32.mxu0 0.0
        %8235 = vmatmul.mubr.f32.gmra.mrb[0].mxu0 %v8013
        %v8236 = vpop.f32.mrb[0].mxu0
        %v8237 = vadd.f32 0.0, %v8236
        %v8238 = vpop.f32.mrb[0].mxu0
        %8239 = vmatprep.mubr.f32.mxu0 0.0
        %8240 = vmatmul.mubr.f32.gmra.mrb[0].mxu0 %v8014
        %v8241 = vpop.f32.mrb[0].mxu0
        %v8242 = vadd.f32 0.0, %v8241
        %v8243 = vpop.f32.mrb[0].mxu0
        %8244 = vmatprep.mubr.f32.mxu0 0.0
        %8245 = vmatmul.mubr.f32.gmra.mrb[0].mxu0 %v8015
        %v8246 = vpop.f32.mrb[0].mxu0
        %v8247 = vadd.f32 0.0, %v8246
        %v8248 = vpop.f32.mrb[0].mxu0
        %8249 = vmatprep.mubr.f32.mxu0 0.0
        %8250 = vmatmul.mubr.f32.gmra.mrb[0].mxu0 %v8016
        %v8251 = vpop.f32.mrb[0].mxu0
        %v8252 = vadd.f32 0.0, %v8251
        %v8253 = vpop.f32.mrb[0].mxu0
        %8254 = vmatprep.mubr.f32.mxu0 0.0
        %8255 = vmatmul.mubr.f32.gmra.mrb[0].mxu0 %v8017
        %v8256 = vpop.f32.mrb[0].mxu0
        %v8257 = vadd.f32 0.0, %v8256
        %v8258 = vpop.f32.mrb[0].mxu0
        %8259 = vdwg.mxu0
        %v8260 = vadd.f32 %v7954, %v8102
        %v8261 = vadd.f32 %v7955, %v8107
        %v8262 = vadd.f32 %v7956, %v8112
        %v8263 = vadd.f32 %v7957, %v8117
        %v8264 = vadd.f32 %v7958, %v8122
        %v8265 = vadd.f32 %v7959, %v8127
        %v8266 = vadd.f32 %v7960, %v8132
        %v8267 = vadd.f32 %v7961, %v8137
        %v8268 = vadd.f32 %v7962, %v8142
        %v8269 = vadd.f32 %v7963, %v8147
        %v8270 = vadd.f32 %v7964, %v8152
        %v8271 = vadd.f32 %v7965, %v8157
        %v8272 = vadd.f32 %v7966, %v8162
        %v8273 = vadd.f32 %v7967, %v8167
        %v8274 = vadd.f32 %v7968, %v8172
        %v8275 = vadd.f32 %v7969, %v8177
        %v8276 = vadd.f32 %v7970, %v8182
        %v8277 = vadd.f32 %v7971, %v8187
        %v8278 = vadd.f32 %v7972, %v8192
        %v8279 = vadd.f32 %v7973, %v8197
        %v8280 = vadd.f32 %v7974, %v8202
        %v8281 = vadd.f32 %v7975, %v8207
        %v8282 = vadd.f32 %v7976, %v8212
        %v8283 = vadd.f32 %v7977, %v8217
        %v8284 = vadd.f32 %v7978, %v8222
        %v8285 = vadd.f32 %v7979, %v8227
        %v8286 = vadd.f32 %v7980, %v8232
        %v8287 = vadd.f32 %v7981, %v8237
        %v8288 = vadd.f32 %v7982, %v8242
        %v8289 = vadd.f32 %v7983, %v8247
        %v8290 = vadd.f32 %v7984, %v8252
        %v8291 = vadd.f32 %v7985, %v8257
        %v8292 = vld [vmem:[%s2092 + $0x11] sm:$0xff]
        %v8293 = vld [vmem:[%s2092 + $0x19] sm:$0xff]
        %v8294 = vld [vmem:[%s2092 + $0x41] sm:$0xff]
        %v8295 = vld [vmem:[%s2092 + $0x49] sm:$0xff]
        %v8296 = vld [vmem:[%s2092 + $0x71] sm:$0xff]
        %v8297 = vld [vmem:[%s2092 + $0x79] sm:$0xff]
        %v8298 = vld [vmem:[%s2092 + $0xa1] sm:$0xff]
        %v8299 = vld [vmem:[%s2092 + $0xa9] sm:$0xff]
        %v8300 = vld [vmem:[%s2092 + $0xd1] sm:$0xff]
        %v8301 = vld [vmem:[%s2092 + $0xd9] sm:$0xff]
        %v8302 = vld [vmem:[%s2092 + $0x101] sm:$0xff]
        %v8303 = vld [vmem:[%s2092 + $0x109] sm:$0xff]
        %v8304 = vld [vmem:[%s2092 + $0x131] sm:$0xff]
        %v8305 = vld [vmem:[%s2092 + $0x139] sm:$0xff]
        %v8306 = vld [vmem:[%s2092 + $0x161] sm:$0xff]
        %v8307 = vld [vmem:[%s2092 + $0x169] sm:$0xff]
        %v8308 = vld [vmem:[%s2092 + $0x191] sm:$0xff]
        %v8309 = vld [vmem:[%s2092 + $0x199] sm:$0xff]
        %v8310 = vld [vmem:[%s2092 + $0x1c1] sm:$0xff]
        %v8311 = vld [vmem:[%s2092 + $0x1c9] sm:$0xff]
        %v8312 = vld [vmem:[%s2092 + $0x1f1] sm:$0xff]
        %v8313 = vld [vmem:[%s2092 + $0x1f9] sm:$0xff]
        %v8314 = vld [vmem:[%s2092 + $0x221] sm:$0xff]
        %v8315 = vld [vmem:[%s2092 + $0x229] sm:$0xff]
        %v8316 = vld [vmem:[%s2092 + $0x251] sm:$0xff]
        %v8317 = vld [vmem:[%s2092 + $0x259] sm:$0xff]
        %v8318 = vld [vmem:[%s2092 + $0x281] sm:$0xff]
        %v8319 = vld [vmem:[%s2092 + $0x289] sm:$0xff]
        %v8320 = vld [vmem:[%s2092 + $0x2b1] sm:$0xff]
        %v8321 = vld [vmem:[%s2092 + $0x2b9] sm:$0xff]
        %v8322 = vld [vmem:[%s2092 + $0x2e1] sm:$0xff]
        %v8323 = vld [vmem:[%s2092 + $0x2e9] sm:$0xff]
        %s8324 = scalar_lea.vmem [#allocation3], 3328
        %v8325 = vld [vmem:[%s8324] sm:$0xff]
        %v8326 = vld [vmem:[%s8324 + $0x8] sm:$0xff]
        %v8327 = vld [vmem:[%s8324 + $0x10] sm:$0xff]
        %v8328 = vld [vmem:[%s8324 + $0x18] sm:$0xff]
        %v8329 = vld [vmem:[%s8324 + $0x20] sm:$0xff]
        %v8330 = vld [vmem:[%s8324 + $0x28] sm:$0xff]
        %v8331 = vld [vmem:[%s8324 + $0x30] sm:$0xff]
        %v8332 = vld [vmem:[%s8324 + $0x38] sm:$0xff]
        %v8333 = vld [vmem:[%s8324 + $0x40] sm:$0xff]
        %v8334 = vld [vmem:[%s8324 + $0x48] sm:$0xff]
        %v8335 = vld [vmem:[%s8324 + $0x50] sm:$0xff]
        %v8336 = vld [vmem:[%s8324 + $0x58] sm:$0xff]
        %v8337 = vld [vmem:[%s8324 + $0x60] sm:$0xff]
        %v8338 = vld [vmem:[%s8324 + $0x68] sm:$0xff]
        %v8339 = vld [vmem:[%s8324 + $0x70] sm:$0xff]
        %v8340 = vld [vmem:[%s8324 + $0x78] sm:$0xff]
        %8341 = vmatprep.subr.mxu0 0.0
        %8342 = vmatpush1.msra.mxu0 %v8325
        %8343 = vmatprep.subr.mxu0 0.0
        %8344 = vmatpush1.msra.mxu0 %v8326
        %8345 = vmatprep.subr.mxu0 0.0
        %8346 = vmatpush1.msra.mxu0 %v8327
        %8347 = vmatprep.subr.mxu0 0.0
        %8348 = vmatpush1.msra.mxu0 %v8328
        %8349 = vmatprep.subr.mxu0 0.0
        %8350 = vmatpush1.msra.mxu0 %v8329
        %8351 = vmatprep.subr.mxu0 0.0
        %8352 = vmatpush1.msra.mxu0 %v8330
        %8353 = vmatprep.subr.mxu0 0.0
        %8354 = vmatpush1.msra.mxu0 %v8331
        %8355 = vmatprep.subr.mxu0 0.0
        %8356 = vmatpush1.msra.mxu0 %v8332
        %8357 = vmatprep.subr.mxu0 0.0
        %8358 = vmatpush1.msra.mxu0 %v8333
        %8359 = vmatprep.subr.mxu0 0.0
        %8360 = vmatpush1.msra.mxu0 %v8334
        %8361 = vmatprep.subr.mxu0 0.0
        %8362 = vmatpush1.msra.mxu0 %v8335
        %8363 = vmatprep.subr.mxu0 0.0
        %8364 = vmatpush1.msra.mxu0 %v8336
        %8365 = vmatprep.subr.mxu0 0.0
        %8366 = vmatpush1.msra.mxu0 %v8337
        %8367 = vmatprep.subr.mxu0 0.0
        %8368 = vmatpush1.msra.mxu0 %v8338
        %8369 = vmatprep.subr.mxu0 0.0
        %8370 = vmatpush1.msra.mxu0 %v8339
        %8371 = vmatprep.subr.mxu0 0.0
        %8372 = vmatpush1.msra.mxu0 %v8340
        %8373 = vmatprep.subr.mxu0 0.0
        %8374 = vmatpush1.msra.mxu0 0.0
        %8375 = vmatprep.subr.mxu0 0.0
        %8376 = vmatpush1.msra.mxu0 0.0
        %8377 = vmatprep.subr.mxu0 0.0
        %8378 = vmatpush1.msra.mxu0 0.0
        %8379 = vmatprep.subr.mxu0 0.0
        %8380 = vmatpush1.msra.mxu0 0.0
        %8381 = vmatprep.subr.mxu0 0.0
        %8382 = vmatpush1.msra.mxu0 0.0
        %8383 = vmatprep.subr.mxu0 0.0
        %8384 = vmatpush1.msra.mxu0 0.0
        %8385 = vmatprep.subr.mxu0 0.0
        %8386 = vmatpush1.msra.mxu0 0.0
        %8387 = vmatprep.subr.mxu0 0.0
        %8388 = vmatpush1.msra.mxu0 0.0
        %8389 = vmatprep.subr.mxu0 0.0
        %8390 = vmatpush1.msra.mxu0 0.0
        %8391 = vmatprep.subr.mxu0 0.0
        %8392 = vmatpush1.msra.mxu0 0.0
        %8393 = vmatprep.subr.mxu0 0.0
        %8394 = vmatpush1.msra.mxu0 0.0
        %8395 = vmatprep.subr.mxu0 0.0
        %8396 = vmatpush1.msra.mxu0 0.0
        %8397 = vmatprep.subr.mxu0 0.0
        %8398 = vmatpush1.msra.mxu0 0.0
        %8399 = vmatprep.subr.mxu0 0.0
        %8400 = vmatpush1.msra.mxu0 0.0
        %8401 = vmatprep.subr.mxu0 0.0
        %8402 = vmatpush1.msra.mxu0 0.0
        %8403 = vmatprep.subr.mxu0 0.0
        %8404 = vmatpush1.msra.mxu0 0.0
        %8405 = vmatprep.mubr.f32.mxu0 0.0
        %8406 = vmatmul.mubr.f32.gmra.mrb[0].mxu0 %v8292
        %v8407 = vpop.f32.mrb[0].mxu0
        %v8408 = vadd.f32 0.0, %v8407
        %v8409 = vpop.f32.mrb[0].mxu0
        %8410 = vmatprep.mubr.f32.mxu0 0.0
        %8411 = vmatmul.mubr.f32.gmra.mrb[0].mxu0 %v8293
        %v8412 = vpop.f32.mrb[0].mxu0
        %v8413 = vadd.f32 0.0, %v8412
        %v8414 = vpop.f32.mrb[0].mxu0
        %8415 = vmatprep.mubr.f32.mxu0 0.0
        %8416 = vmatmul.mubr.f32.gmra.mrb[0].mxu0 %v8294
        %v8417 = vpop.f32.mrb[0].mxu0
        %v8418 = vadd.f32 0.0, %v8417
        %v8419 = vpop.f32.mrb[0].mxu0
        %8420 = vmatprep.mubr.f32.mxu0 0.0
        %8421 = vmatmul.mubr.f32.gmra.mrb[0].mxu0 %v8295
        %v8422 = vpop.f32.mrb[0].mxu0
        %v8423 = vadd.f32 0.0, %v8422
        %v8424 = vpop.f32.mrb[0].mxu0
        %8425 = vmatprep.mubr.f32.mxu0 0.0
        %8426 = vmatmul.mubr.f32.gmra.mrb[0].mxu0 %v8296
        %v8427 = vpop.f32.mrb[0].mxu0
        %v8428 = vadd.f32 0.0, %v8427
        %v8429 = vpop.f32.mrb[0].mxu0
        %8430 = vmatprep.mubr.f32.mxu0 0.0
        %8431 = vmatmul.mubr.f32.gmra.mrb[0].mxu0 %v8297
        %v8432 = vpop.f32.mrb[0].mxu0
        %v8433 = vadd.f32 0.0, %v8432
        %v8434 = vpop.f32.mrb[0].mxu0
        %8435 = vmatprep.mubr.f32.mxu0 0.0
        %8436 = vmatmul.mubr.f32.gmra.mrb[0].mxu0 %v8298
        %v8437 = vpop.f32.mrb[0].mxu0
        %v8438 = vadd.f32 0.0, %v8437
        %v8439 = vpop.f32.mrb[0].mxu0
        %8440 = vmatprep.mubr.f32.mxu0 0.0
        %8441 = vmatmul.mubr.f32.gmra.mrb[0].mxu0 %v8299
        %v8442 = vpop.f32.mrb[0].mxu0
        %v8443 = vadd.f32 0.0, %v8442
        %v8444 = vpop.f32.mrb[0].mxu0
        %8445 = vmatprep.mubr.f32.mxu0 0.0
        %8446 = vmatmul.mubr.f32.gmra.mrb[0].mxu0 %v8300
        %v8447 = vpop.f32.mrb[0].mxu0
        %v8448 = vadd.f32 0.0, %v8447
        %v8449 = vpop.f32.mrb[0].mxu0
        %8450 = vmatprep.mubr.f32.mxu0 0.0
        %8451 = vmatmul.mubr.f32.gmra.mrb[0].mxu0 %v8301
        %v8452 = vpop.f32.mrb[0].mxu0
        %v8453 = vadd.f32 0.0, %v8452
        %v8454 = vpop.f32.mrb[0].mxu0
        %8455 = vmatprep.mubr.f32.mxu0 0.0
        %8456 = vmatmul.mubr.f32.gmra.mrb[0].mxu0 %v8302
        %v8457 = vpop.f32.mrb[0].mxu0
        %v8458 = vadd.f32 0.0, %v8457
        %v8459 = vpop.f32.mrb[0].mxu0
        %8460 = vmatprep.mubr.f32.mxu0 0.0
        %8461 = vmatmul.mubr.f32.gmra.mrb[0].mxu0 %v8303
        %v8462 = vpop.f32.mrb[0].mxu0
        %v8463 = vadd.f32 0.0, %v8462
        %v8464 = vpop.f32.mrb[0].mxu0
        %8465 = vmatprep.mubr.f32.mxu0 0.0
        %8466 = vmatmul.mubr.f32.gmra.mrb[0].mxu0 %v8304
        %v8467 = vpop.f32.mrb[0].mxu0
        %v8468 = vadd.f32 0.0, %v8467
        %v8469 = vpop.f32.mrb[0].mxu0
        %8470 = vmatprep.mubr.f32.mxu0 0.0
        %8471 = vmatmul.mubr.f32.gmra.mrb[0].mxu0 %v8305
        %v8472 = vpop.f32.mrb[0].mxu0
        %v8473 = vadd.f32 0.0, %v8472
        %v8474 = vpop.f32.mrb[0].mxu0
        %8475 = vmatprep.mubr.f32.mxu0 0.0
        %8476 = vmatmul.mubr.f32.gmra.mrb[0].mxu0 %v8306
        %v8477 = vpop.f32.mrb[0].mxu0
        %v8478 = vadd.f32 0.0, %v8477
        %v8479 = vpop.f32.mrb[0].mxu0
        %8480 = vmatprep.mubr.f32.mxu0 0.0
        %8481 = vmatmul.mubr.f32.gmra.mrb[0].mxu0 %v8307
        %v8482 = vpop.f32.mrb[0].mxu0
        %v8483 = vadd.f32 0.0, %v8482
        %v8484 = vpop.f32.mrb[0].mxu0
        %8485 = vmatprep.mubr.f32.mxu0 0.0
        %8486 = vmatmul.mubr.f32.gmra.mrb[0].mxu0 %v8308
        %v8487 = vpop.f32.mrb[0].mxu0
        %v8488 = vadd.f32 0.0, %v8487
        %v8489 = vpop.f32.mrb[0].mxu0
        %8490 = vmatprep.mubr.f32.mxu0 0.0
        %8491 = vmatmul.mubr.f32.gmra.mrb[0].mxu0 %v8309
        %v8492 = vpop.f32.mrb[0].mxu0
        %v8493 = vadd.f32 0.0, %v8492
        %v8494 = vpop.f32.mrb[0].mxu0
        %8495 = vmatprep.mubr.f32.mxu0 0.0
        %8496 = vmatmul.mubr.f32.gmra.mrb[0].mxu0 %v8310
        %v8497 = vpop.f32.mrb[0].mxu0
        %v8498 = vadd.f32 0.0, %v8497
        %v8499 = vpop.f32.mrb[0].mxu0
        %8500 = vmatprep.mubr.f32.mxu0 0.0
        %8501 = vmatmul.mubr.f32.gmra.mrb[0].mxu0 %v8311
        %v8502 = vpop.f32.mrb[0].mxu0
        %v8503 = vadd.f32 0.0, %v8502
        %v8504 = vpop.f32.mrb[0].mxu0
        %8505 = vmatprep.mubr.f32.mxu0 0.0
        %8506 = vmatmul.mubr.f32.gmra.mrb[0].mxu0 %v8312
        %v8507 = vpop.f32.mrb[0].mxu0
        %v8508 = vadd.f32 0.0, %v8507
        %v8509 = vpop.f32.mrb[0].mxu0
        %8510 = vmatprep.mubr.f32.mxu0 0.0
        %8511 = vmatmul.mubr.f32.gmra.mrb[0].mxu0 %v8313
        %v8512 = vpop.f32.mrb[0].mxu0
        %v8513 = vadd.f32 0.0, %v8512
        %v8514 = vpop.f32.mrb[0].mxu0
        %8515 = vmatprep.mubr.f32.mxu0 0.0
        %8516 = vmatmul.mubr.f32.gmra.mrb[0].mxu0 %v8314
        %v8517 = vpop.f32.mrb[0].mxu0
        %v8518 = vadd.f32 0.0, %v8517
        %v8519 = vpop.f32.mrb[0].mxu0
        %8520 = vmatprep.mubr.f32.mxu0 0.0
        %8521 = vmatmul.mubr.f32.gmra.mrb[0].mxu0 %v8315
        %v8522 = vpop.f32.mrb[0].mxu0
        %v8523 = vadd.f32 0.0, %v8522
        %v8524 = vpop.f32.mrb[0].mxu0
        %8525 = vmatprep.mubr.f32.mxu0 0.0
        %8526 = vmatmul.mubr.f32.gmra.mrb[0].mxu0 %v8316
        %v8527 = vpop.f32.mrb[0].mxu0
        %v8528 = vadd.f32 0.0, %v8527
        %v8529 = vpop.f32.mrb[0].mxu0
        %8530 = vmatprep.mubr.f32.mxu0 0.0
        %8531 = vmatmul.mubr.f32.gmra.mrb[0].mxu0 %v8317
        %v8532 = vpop.f32.mrb[0].mxu0
        %v8533 = vadd.f32 0.0, %v8532
        %v8534 = vpop.f32.mrb[0].mxu0
        %8535 = vmatprep.mubr.f32.mxu0 0.0
        %8536 = vmatmul.mubr.f32.gmra.mrb[0].mxu0 %v8318
        %v8537 = vpop.f32.mrb[0].mxu0
        %v8538 = vadd.f32 0.0, %v8537
        %v8539 = vpop.f32.mrb[0].mxu0
        %8540 = vmatprep.mubr.f32.mxu0 0.0
        %8541 = vmatmul.mubr.f32.gmra.mrb[0].mxu0 %v8319
        %v8542 = vpop.f32.mrb[0].mxu0
        %v8543 = vadd.f32 0.0, %v8542
        %v8544 = vpop.f32.mrb[0].mxu0
        %8545 = vmatprep.mubr.f32.mxu0 0.0
        %8546 = vmatmul.mubr.f32.gmra.mrb[0].mxu0 %v8320
        %v8547 = vpop.f32.mrb[0].mxu0
        %v8548 = vadd.f32 0.0, %v8547
        %v8549 = vpop.f32.mrb[0].mxu0
        %8550 = vmatprep.mubr.f32.mxu0 0.0
        %8551 = vmatmul.mubr.f32.gmra.mrb[0].mxu0 %v8321
        %v8552 = vpop.f32.mrb[0].mxu0
        %v8553 = vadd.f32 0.0, %v8552
        %v8554 = vpop.f32.mrb[0].mxu0
        %8555 = vmatprep.mubr.f32.mxu0 0.0
        %8556 = vmatmul.mubr.f32.gmra.mrb[0].mxu0 %v8322
        %v8557 = vpop.f32.mrb[0].mxu0
        %v8558 = vadd.f32 0.0, %v8557
        %v8559 = vpop.f32.mrb[0].mxu0
        %8560 = vmatprep.mubr.f32.mxu0 0.0
        %8561 = vmatmul.mubr.f32.gmra.mrb[0].mxu0 %v8323
        %v8562 = vpop.f32.mrb[0].mxu0
        %v8563 = vadd.f32 0.0, %v8562
        %v8564 = vpop.f32.mrb[0].mxu0
        %8565 = vdwg.mxu0
        %v8566 = vadd.f32 %v8260, %v8408
        %v8567 = vadd.f32 %v8261, %v8413
        %v8568 = vadd.f32 %v8262, %v8418
        %v8569 = vadd.f32 %v8263, %v8423
        %v8570 = vadd.f32 %v8264, %v8428
        %v8571 = vadd.f32 %v8265, %v8433
        %v8572 = vadd.f32 %v8266, %v8438
        %v8573 = vadd.f32 %v8267, %v8443
        %v8574 = vadd.f32 %v8268, %v8448
        %v8575 = vadd.f32 %v8269, %v8453
        %v8576 = vadd.f32 %v8270, %v8458
        %v8577 = vadd.f32 %v8271, %v8463
        %v8578 = vadd.f32 %v8272, %v8468
        %v8579 = vadd.f32 %v8273, %v8473
        %v8580 = vadd.f32 %v8274, %v8478
        %v8581 = vadd.f32 %v8275, %v8483
        %v8582 = vadd.f32 %v8276, %v8488
        %v8583 = vadd.f32 %v8277, %v8493
        %v8584 = vadd.f32 %v8278, %v8498
        %v8585 = vadd.f32 %v8279, %v8503
        %v8586 = vadd.f32 %v8280, %v8508
        %v8587 = vadd.f32 %v8281, %v8513
        %v8588 = vadd.f32 %v8282, %v8518
        %v8589 = vadd.f32 %v8283, %v8523
        %v8590 = vadd.f32 %v8284, %v8528
        %v8591 = vadd.f32 %v8285, %v8533
        %v8592 = vadd.f32 %v8286, %v8538
        %v8593 = vadd.f32 %v8287, %v8543
        %v8594 = vadd.f32 %v8288, %v8548
        %v8595 = vadd.f32 %v8289, %v8553
        %v8596 = vadd.f32 %v8290, %v8558
        %v8597 = vadd.f32 %v8291, %v8563
        %s8598 = scalar_lea.vmem [#allocation5], 2
        %v8599 = vld [vmem:[%s8598] sm:$0x1]
        %v8601 = vlaneseq
        %v8602 = vshrl.u32 %v8601, 7
        %v8603 = vsub.s32 0, %v8602
        %v8604 = vrot.slane %v8599, %v8603
        %v8606 = vadd.f32 %v8566, %v8604
        %v8607 = vadd.f32 %v8567, %v8604
        %v8608 = vadd.f32 %v8568, %v8604
        %v8609 = vadd.f32 %v8569, %v8604
        %v8610 = vadd.f32 %v8570, %v8604
        %v8611 = vadd.f32 %v8571, %v8604
        %v8612 = vadd.f32 %v8572, %v8604
        %v8613 = vadd.f32 %v8573, %v8604
        %v8614 = vadd.f32 %v8574, %v8604
        %v8615 = vadd.f32 %v8575, %v8604
        %v8616 = vadd.f32 %v8576, %v8604
        %v8617 = vadd.f32 %v8577, %v8604
        %v8618 = vadd.f32 %v8578, %v8604
        %v8619 = vadd.f32 %v8579, %v8604
        %v8620 = vadd.f32 %v8580, %v8604
        %v8621 = vadd.f32 %v8581, %v8604
        %v8622 = vadd.f32 %v8582, %v8604
        %v8623 = vadd.f32 %v8583, %v8604
        %v8624 = vadd.f32 %v8584, %v8604
        %v8625 = vadd.f32 %v8585, %v8604
        %v8626 = vadd.f32 %v8586, %v8604
        %v8627 = vadd.f32 %v8587, %v8604
        %v8628 = vadd.f32 %v8588, %v8604
        %v8629 = vadd.f32 %v8589, %v8604
        %v8630 = vadd.f32 %v8590, %v8604
        %v8631 = vadd.f32 %v8591, %v8604
        %v8632 = vadd.f32 %v8592, %v8604
        %v8633 = vadd.f32 %v8593, %v8604
        %v8634 = vadd.f32 %v8594, %v8604
        %v8635 = vadd.f32 %v8595, %v8604
        %v8636 = vadd.f32 %v8596, %v8604
        %v8637 = vadd.f32 %v8597, %v8604
        %8638 = vst [vmem:[%s200] sm:$0xff] %v8606
        %8639 = vst [vmem:[%s200 + $0x8] sm:$0xff] %v8607
        %8640 = vst [vmem:[%s200 + $0x10] sm:$0xff] %v8608
        %8641 = vst [vmem:[%s200 + $0x18] sm:$0xff] %v8609
        %8642 = vst [vmem:[%s200 + $0x20] sm:$0xff] %v8610
        %8643 = vst [vmem:[%s200 + $0x28] sm:$0xff] %v8611
        %8644 = vst [vmem:[%s200 + $0x30] sm:$0xff] %v8612
        %8645 = vst [vmem:[%s200 + $0x38] sm:$0xff] %v8613
        %8646 = vst [vmem:[%s200 + $0x40] sm:$0xff] %v8614
        %8647 = vst [vmem:[%s200 + $0x48] sm:$0xff] %v8615
        %8648 = vst [vmem:[%s200 + $0x50] sm:$0xff] %v8616
        %8649 = vst [vmem:[%s200 + $0x58] sm:$0xff] %v8617
        %8650 = vst [vmem:[%s200 + $0x60] sm:$0xff] %v8618
        %8651 = vst [vmem:[%s200 + $0x68] sm:$0xff] %v8619
        %8652 = vst [vmem:[%s200 + $0x70] sm:$0xff] %v8620
        %8653 = vst [vmem:[%s200 + $0x78] sm:$0xff] %v8621
        %8654 = vst [vmem:[%s200 + $0x80] sm:$0xff] %v8622
        %8655 = vst [vmem:[%s200 + $0x88] sm:$0xff] %v8623
        %8656 = vst [vmem:[%s200 + $0x90] sm:$0xff] %v8624
        %8657 = vst [vmem:[%s200 + $0x98] sm:$0xff] %v8625
        %8658 = vst [vmem:[%s200 + $0xa0] sm:$0xff] %v8626
        %8659 = vst [vmem:[%s200 + $0xa8] sm:$0xff] %v8627
        %8660 = vst [vmem:[%s200 + $0xb0] sm:$0xff] %v8628
        %8661 = vst [vmem:[%s200 + $0xb8] sm:$0xff] %v8629
        %8662 = vst [vmem:[%s200 + $0xc0] sm:$0xff] %v8630
        %8663 = vst [vmem:[%s200 + $0xc8] sm:$0xff] %v8631
        %8664 = vst [vmem:[%s200 + $0xd0] sm:$0xff] %v8632
        %8665 = vst [vmem:[%s200 + $0xd8] sm:$0xff] %v8633
        %8666 = vst [vmem:[%s200 + $0xe0] sm:$0xff] %v8634
        %8667 = vst [vmem:[%s200 + $0xe8] sm:$0xff] %v8635
        %8668 = vst [vmem:[%s200 + $0xf0] sm:$0xff] %v8636
        %8669 = vst [vmem:[%s200 + $0xf8] sm:$0xff] %v8637
        %p8670 = scmp.lt.s32.totalorder %s16, 1
        %s8671 = scalar_select %p8670, %s16, 1
        %s8672 = smul.addr %s8671, 32
        %s8673 = smul.addr %s8672, 8
        %s8674 = scalar_lea.vmem %s3, %s8673
        // Predicated region
        $region41: #{pred_forward_pallas.1} parent=31 // pred_check
          %p8675 = pneg %p102
        $region42: #{pred_forward_pallas.1} parent=31 // pred_check_branch
          %8677 = sbr.rel (%p8675) target = $region44
        $region43: #{pred_forward_pallas.1} parent=31 // pred_region
          _
        $region44: #{pred_forward_pallas.1} parent=31 // pred_fallthru
          _
      $region32: #{pred_forward_pallas.1} parent=5 // pred_fallthru
        _
      %p8678 = scmp.le.s32.totalorder 2, %s11
      // Predicated region
      $region45: #{pred_forward_pallas.1} parent=5 // pred_check
        %p8679 = pneg %p8678
      $region46: #{pred_forward_pallas.1} parent=5 // pred_check_branch
        %8681 = sbr.rel (%p8679) target = $region48
      $region47: #{pred_forward_pallas.1} parent=5 // pred_region
        %s8682 = ssub.s32 %s11, 2
        // Predicated region
        $region49: #{pred_forward_pallas.1} parent=47 // pred_check
          %p8683 = pneg %p108
        $region50: #{pred_forward_pallas.1} parent=47 // pred_check_branch
          %8685 = sbr.rel (%p8683) target = $region52
        $region51: #{pred_forward_pallas.1} parent=47 // pred_region
          %p8686 = scmp.lt.s32.totalorder %s17, 1
          %s8687 = scalar_select %p8686, %s17, 1
          %s8688 = smul.addr %s8687, 32
          %s8689 = smul.addr %s8688, 8
          %s8690 = scalar_lea.vmem %s3, %s8689
        $region52: #{pred_forward_pallas.1} parent=47 // pred_fallthru
          _
      $region48: #{pred_forward_pallas.1} parent=5 // pred_fallthru
        _
    $region6: #{pred_forward_pallas.1} parent=1 // loop_footer
      %s15 = sadd.s32 1, %s11
    $region7: #{pred_forward_pallas.1} parent=1 // loop_footer_branch
      %10 = sbr.rel target = $region3
    $region8: #{pred_forward_pallas.1} parent=1 // loop_exit
      _
    %8691 = vsyncpa [#allocation4], 1
    %s8692 = scalar_lea.sflag [#allocation4], 1
    %8693 = vsyncpa %s8692, 1
    %8694 = vsyncpa [#allocation6], 1

</llo_original>
